<compile_context>
chip_gen: v7x
topology: tpu7x:2x2x1
jax: 0.10.0
libtpu: 0.0.40
codegen_flags: <defaults>
</compile_context>

<pallas_src>
import math
import functools
import jax
import jax.numpy as jnp
from jax import lax
from jax.experimental import pallas as pl
from jax.experimental.pallas import tpu as pltpu

C_IN = 768
C_HID = 3072
EPS = 1e-6
INV_SQRT2 = 1.0 / math.sqrt(2.0)


def _mlp_block_kernel(x_ref, g_ref, b_ref, w1_ref, b1_ref, w2_ref,
                      o_ref, xn_ref):
    """Grid = (n_split, nk). Axis 0 splits the hidden dim (parallel, one output
    block per split); axis 1 streams tk-wide weight slices (arbitrary, o_ref
    resident and accumulated)."""
    k = pl.program_id(1)

    # First K step of this split: LayerNorm (f32) into a bf16 scratch, zero the
    # resident output block (b2 is added outside, once, when the splits are summed).
    @pl.when(k == 0)
    def _():
        x = x_ref[...]                                        # (R_pad, 768) f32
        mean = jnp.mean(x, axis=-1, keepdims=True)
        xc = x - mean
        var = jnp.mean(xc * xc, axis=-1, keepdims=True)
        xn = (xc * lax.rsqrt(var + EPS)) * g_ref[...] + b_ref[...]
        xn_ref[...] = xn.astype(jnp.bfloat16)
        o_ref[...] = jnp.zeros_like(o_ref)

    # Linear 768 -> tk slice of the hidden dim (bf16 MXU operands, f32 accumulation).
    h = jnp.dot(xn_ref[...], w1_ref[...], preferred_element_type=jnp.float32)
    h = h + b1_ref[...]

    # Exact GELU (approximate='none'): 0.5 * h * (1 + erf(h / sqrt(2))), f32.
    h = 0.5 * h * (1.0 + lax.erf(h * INV_SQRT2))

    # Linear tk -> 768, accumulated into the resident output block.
    o_ref[...] += jnp.dot(h.astype(jnp.bfloat16), w2_ref[...],
                          preferred_element_type=jnp.float32)


def prepare_params(gamma, beta, w1, b1, w2, b2):
    """One-time parameter prep (do NOT call per forward pass): bf16 matmul weights,
    TPU-friendly 2-D layouts for the vectors.  Weights stored (in, out)."""
    return dict(
        gamma=gamma.reshape(1, C_IN).astype(jnp.float32),
        beta=beta.reshape(1, C_IN).astype(jnp.float32),
        w1=w1.astype(jnp.bfloat16),            # (768, 3072)
        b1=b1.reshape(1, C_HID).astype(jnp.float32),
        w2=w2.astype(jnp.bfloat16),            # (3072, 768)
        b2=b2.reshape(1, C_IN).astype(jnp.float32),
    )


def mlp_block(x_nhwc, params, *, tk=768, n_split=2):
    """x_nhwc: (N, H, W, 768) float32. Returns same shape, float32."""
    N, H, W, C = x_nhwc.shape
    assert C == C_IN
    w1, w2 = params["w1"], params["w2"]
    assert w1.dtype == jnp.bfloat16 and w2.dtype == jnp.bfloat16, \
        "call prepare_params() once; do not cast weights per call"
    assert C_HID % n_split == 0
    hid_per_split = C_HID // n_split
    assert hid_per_split % tk == 0
    nk = hid_per_split // tk

    # Pad rows to a multiple of 16 (full f32 sublanes + clean bf16 packing).
    R = N * H * W
    R_pad = ((R + 15) // 16) * 16
    x2d = x_nhwc.reshape(R, C)
    if R_pad != R:
        x2d = jnp.pad(x2d, ((0, R_pad - R), (0, 0)))

    cost = pl.CostEstimate(
        flops=4 * R_pad * C_IN * C_HID,                 # two matmuls
        transcendentals=R_pad * C_HID,                  # one erf per hidden act
        bytes_accessed=2 * 2 * C_IN * C_HID             # bf16 w1 + w2
        + 4 * R_pad * C_IN * (2 + n_split),             # x in, partial outs
    )

    partials = pl.pallas_call(
        _mlp_block_kernel,
        out_shape=jax.ShapeDtypeStruct((n_split, R_pad, C_IN), jnp.float32),
        grid_spec=pltpu.PrefetchScalarGridSpec(
            num_scalar_prefetch=0,
            grid=(n_split, nk),
            in_specs=[
                pl.BlockSpec((R_pad, C_IN), lambda p, k: (0, 0)),        # x (resident)
                pl.BlockSpec((1, C_IN), lambda p, k: (0, 0)),            # gamma
                pl.BlockSpec((1, C_IN), lambda p, k: (0, 0)),            # beta
                pl.BlockSpec((C_IN, tk), lambda p, k: (0, p * nk + k)),  # w1 slice
                pl.BlockSpec((1, tk), lambda p, k: (0, p * nk + k)),     # b1 slice
                pl.BlockSpec((tk, C_IN), lambda p, k: (p * nk + k, 0)),  # w2 slice
            ],
            out_specs=pl.BlockSpec((None, R_pad, C_IN), lambda p, k: (p, 0, 0)),
            scratch_shapes=[
                pltpu.VMEM((R_pad, C_IN), jnp.bfloat16),   # normalized activations
            ],
        ),
        compiler_params=pltpu.CompilerParams(
            # Split axis is independent (megacore on v7x); K axis is the reduction.
            dimension_semantics=("parallel", "arbitrary"),
        ),
        cost_estimate=cost,
    )(x2d, params["gamma"], params["beta"], w1, params["b1"], w2)

    out2d = partials.sum(axis=0) + params["b2"]
    if R_pad != R:
        out2d = out2d[:R]
    return out2d.reshape(N, H, W, C)


def _reference(x_nhwc, gamma, beta, w1, b1, w2, b2):
    mean = jnp.mean(x_nhwc, axis=-1, keepdims=True)
    var = jnp.mean((x_nhwc - mean) ** 2, axis=-1, keepdims=True)
    xn = (x_nhwc - mean) * lax.rsqrt(var + EPS) * gamma + beta
    h = xn @ w1 + b1
    h = 0.5 * h * (1.0 + lax.erf(h * INV_SQRT2))
    return h @ w2 + b2


if __name__ == "__main__":
    key = jax.random.PRNGKey(0)
    kx, kg, kb, kw1, kb1, kw2, kb2 = jax.random.split(key, 7)

    # Input matching the module: (1, 14, 14, 768), channels-last.
    x = jax.random.normal(kx, (1, 14, 14, C_IN), dtype=jnp.float32)

    # Deterministic parameter init (shapes from the PyTorch module).
    gamma = 1.0 + 0.02 * jax.random.normal(kg, (C_IN,), dtype=jnp.float32)
    beta = 0.02 * jax.random.normal(kb, (C_IN,), dtype=jnp.float32)
    # PyTorch Linear weights are (out, in); stored transposed (in, out) here.
    w1 = 0.02 * jax.random.normal(kw1, (C_IN, C_HID), dtype=jnp.float32)
    b1 = 0.02 * jax.random.normal(kb1, (C_HID,), dtype=jnp.float32)
    w2 = 0.02 * jax.random.normal(kw2, (C_HID, C_IN), dtype=jnp.float32)
    b2 = 0.02 * jax.random.normal(kb2, (C_IN,), dtype=jnp.float32)

    # One-time parameter prep (bf16 weight cast hoisted out of the forward call).
    params = jax.tree.map(jax.block_until_ready, prepare_params(gamma, beta, w1, b1, w2, b2))

    fwd = jax.jit(mlp_block)
    out = jax.block_until_ready(fwd(x, params))

    ref = _reference(x, gamma, beta, w1, b1, w2, b2)
    assert out.shape == (1, 14, 14, C_IN)
    assert jnp.allclose(out, ref, atol=3e-2, rtol=3e-2), "mismatch vs reference"

    print("KERNEL_OK")
</pallas_src>

<mosaic_0001>
module attributes {stable_mosaic.version = 11 : i64} {
  func.func @_mlp_block_kernel(%arg0: i32, %arg1: i32, %arg2: memref<208x768xf32, #tpu.memory_space<vmem>>, %arg3: memref<1x768xf32, #tpu.memory_space<vmem>>, %arg4: memref<1x768xf32, #tpu.memory_space<vmem>>, %arg5: memref<768x768xbf16, #tpu.memory_space<vmem>>, %arg6: memref<1x768xf32, #tpu.memory_space<vmem>>, %arg7: memref<768x768xbf16, #tpu.memory_space<vmem>>, %arg8: memref<1x208x768xf32, #tpu.memory_space<vmem>>, %arg9: memref<208x768xbf16, #tpu.memory_space<vmem>>) attributes {dimension_semantics = [#tpu.dimension_semantics<parallel>, #tpu.dimension_semantics<arbitrary>], iteration_bounds = array<i64: 2, 2>, scalar_prefetch = 0 : i64, scratch_operands = 1 : i64, tpu.core_type = #tpu.core_type<tc>, window_params = [{pipeline_mode = #tpu.pipeline_mode<synchronous>, transform_indices = @transform_0, window_bounds = array<i64: 208, 768>}, {pipeline_mode = #tpu.pipeline_mode<synchronous>, transform_indices = @transform_1, window_bounds = array<i64: 1, 768>}, {pipeline_mode = #tpu.pipeline_mode<synchronous>, transform_indices = @transform_2, window_bounds = array<i64: 1, 768>}, {transform_indices = @transform_3, window_bounds = array<i64: 768, 768>}, {transform_indices = @transform_4, window_bounds = array<i64: 1, 768>}, {transform_indices = @transform_5, window_bounds = array<i64: 768, 768>}, {transform_indices = @transform_6, window_bounds = array<i64: 1, 208, 768>}]} {
    %c0_i32 = arith.constant 0 : i32
    %0 = arith.cmpi eq, %arg1, %c0_i32 : i32
    %1 = arith.extui %0 : i1 to i32
    %c0_i32_0 = arith.constant 0 : i32
    %2 = arith.cmpi ne, %1, %c0_i32_0 : i32
    scf.if %2 {
      %c0_18 = arith.constant 0 : index
      %c0_19 = arith.constant 0 : index
      %26 = vector.load %arg2[%c0_18, %c0_19] : memref<208x768xf32, #tpu.memory_space<vmem>>, vector<208x768xf32>
      %cst_20 = arith.constant dense<0.000000e+00> : vector<208xf32>
      %27 = vector.multi_reduction <add>, %26, %cst_20 [1] : vector<208x768xf32> to vector<208xf32>
      %28 = vector.shape_cast %27 : vector<208xf32> to vector<208x1xf32>
      %cst_21 = arith.constant 7.680000e+02 : f32
      %29 = vector.broadcast %cst_21 : f32 to vector<208x1xf32>
      %30 = arith.divf %28, %29 : vector<208x1xf32>
      %31 = vector.broadcast %30 : vector<208x1xf32> to vector<208x768xf32>
      %32 = arith.subf %26, %31 : vector<208x768xf32>
      %33 = arith.mulf %32, %32 : vector<208x768xf32>
      %cst_22 = arith.constant dense<0.000000e+00> : vector<208xf32>
      %34 = vector.multi_reduction <add>, %33, %cst_22 [1] : vector<208x768xf32> to vector<208xf32>
      %35 = vector.shape_cast %34 : vector<208xf32> to vector<208x1xf32>
      %cst_23 = arith.constant 7.680000e+02 : f32
      %36 = vector.broadcast %cst_23 : f32 to vector<208x1xf32>
      %37 = arith.divf %35, %36 : vector<208x1xf32>
      %cst_24 = arith.constant 9.99999997E-7 : f32
      %38 = vector.broadcast %cst_24 : f32 to vector<208x1xf32>
      %39 = arith.addf %37, %38 : vector<208x1xf32>
      %40 = math.rsqrt %39 : vector<208x1xf32>
      %41 = vector.broadcast %40 : vector<208x1xf32> to vector<208x768xf32>
      %42 = arith.mulf %32, %41 : vector<208x768xf32>
      %c0_25 = arith.constant 0 : index
      %c0_26 = arith.constant 0 : index
      %43 = vector.load %arg3[%c0_25, %c0_26] : memref<1x768xf32, #tpu.memory_space<vmem>>, vector<1x768xf32>
      %44 = vector.broadcast %43 : vector<1x768xf32> to vector<208x768xf32>
      %45 = arith.mulf %42, %44 : vector<208x768xf32>
      %c0_27 = arith.constant 0 : index
      %c0_28 = arith.constant 0 : index
      %46 = vector.load %arg4[%c0_27, %c0_28] : memref<1x768xf32, #tpu.memory_space<vmem>>, vector<1x768xf32>
      %47 = vector.broadcast %46 : vector<1x768xf32> to vector<208x768xf32>
      %48 = arith.addf %45, %47 : vector<208x768xf32>
      %49 = arith.truncf %48 : vector<208x768xf32> to vector<208x768xbf16>
      %c0_29 = arith.constant 0 : index
      %c0_30 = arith.constant 0 : index
      %50 = vector.load %arg9[%c0_29, %c0_30] : memref<208x768xbf16, #tpu.memory_space<vmem>>, vector<208x768xbf16>
      tpu.vector_store %arg9[%c0_29, %c0_30], %49 {strides = array<i32>} : memref<208x768xbf16, #tpu.memory_space<vmem>>, vector<208x768xbf16>,
      %cst_31 = arith.constant 0.000000e+00 : f32
      %51 = vector.broadcast %cst_31 : f32 to vector<208x768xf32>
      %c0_32 = arith.constant 0 : index
      %c0_33 = arith.constant 0 : index
      %c0_34 = arith.constant 0 : index
      %52 = vector.load %arg8[%c0_32, %c0_33, %c0_34] : memref<1x208x768xf32, #tpu.memory_space<vmem>>, vector<1x208x768xf32>
      %53 = vector.shape_cast %52 : vector<1x208x768xf32> to vector<208x768xf32>
      %54 = vector.shape_cast %51 : vector<208x768xf32> to vector<1x208x768xf32>
      tpu.vector_store %arg8[%c0_32, %c0_33, %c0_34], %54 {strides = array<i32>} : memref<1x208x768xf32, #tpu.memory_space<vmem>>, vector<1x208x768xf32>,
    } else {
    }
    %c0 = arith.constant 0 : index
    %c0_1 = arith.constant 0 : index
    %3 = vector.load %arg9[%c0, %c0_1] : memref<208x768xbf16, #tpu.memory_space<vmem>>, vector<208x768xbf16>
    %c0_2 = arith.constant 0 : index
    %c0_3 = arith.constant 0 : index
    %4 = vector.load %arg5[%c0_2, %c0_3] : memref<768x768xbf16, #tpu.memory_space<vmem>>, vector<768x768xbf16>
    %cst = arith.constant dense<0.000000e+00> : vector<208x768xf32>
    %5 = tpu.matmul %3, %4, %cst {dimension_numbers = #tpu.dot_dimension_numbers<[1], [0], [0], [1], [0, 0, 1, 1], [], []>} : vector<208x768xbf16>, vector<768x768xbf16>, vector<208x768xf32> -> vector<208x768xf32>
    %c0_4 = arith.constant 0 : index
    %c0_5 = arith.constant 0 : index
    %6 = vector.load %arg6[%c0_4, %c0_5] : memref<1x768xf32, #tpu.memory_space<vmem>>, vector<1x768xf32>
    %7 = vector.broadcast %6 : vector<1x768xf32> to vector<208x768xf32>
    %8 = arith.addf %5, %7 : vector<208x768xf32>
    %cst_6 = arith.constant 5.000000e-01 : f32
    %9 = vector.broadcast %cst_6 : f32 to vector<208x768xf32>
    %10 = arith.mulf %9, %8 : vector<208x768xf32>
    %cst_7 = arith.constant 0.707106769 : f32
    %11 = vector.broadcast %cst_7 : f32 to vector<208x768xf32>
    %12 = arith.mulf %8, %11 : vector<208x768xf32>
    %13 = math.erf %12 : vector<208x768xf32>
    %cst_8 = arith.constant 1.000000e+00 : f32
    %14 = vector.broadcast %cst_8 : f32 to vector<208x768xf32>
    %15 = arith.addf %14, %13 : vector<208x768xf32>
    %16 = arith.mulf %10, %15 : vector<208x768xf32>
    %c0_9 = arith.constant 0 : index
    %c0_10 = arith.constant 0 : index
    %c0_11 = arith.constant 0 : index
    %17 = vector.load %arg8[%c0_9, %c0_10, %c0_11] : memref<1x208x768xf32, #tpu.memory_space<vmem>>, vector<1x208x768xf32>
    %18 = vector.shape_cast %17 : vector<1x208x768xf32> to vector<208x768xf32>
    %19 = arith.truncf %16 : vector<208x768xf32> to vector<208x768xbf16>
    %c0_12 = arith.constant 0 : index
    %c0_13 = arith.constant 0 : index
    %20 = vector.load %arg7[%c0_12, %c0_13] : memref<768x768xbf16, #tpu.memory_space<vmem>>, vector<768x768xbf16>
    %cst_14 = arith.constant dense<0.000000e+00> : vector<208x768xf32>
    %21 = tpu.matmul %19, %20, %cst_14 {dimension_numbers = #tpu.dot_dimension_numbers<[1], [0], [0], [1], [0, 0, 1, 1], [], []>} : vector<208x768xbf16>, vector<768x768xbf16>, vector<208x768xf32> -> vector<208x768xf32>
    %22 = arith.addf %18, %21 : vector<208x768xf32>
    %c0_15 = arith.constant 0 : index
    %c0_16 = arith.constant 0 : index
    %c0_17 = arith.constant 0 : index
    %23 = vector.load %arg8[%c0_15, %c0_16, %c0_17] : memref<1x208x768xf32, #tpu.memory_space<vmem>>, vector<1x208x768xf32>
    %24 = vector.shape_cast %23 : vector<1x208x768xf32> to vector<208x768xf32>
    %25 = vector.shape_cast %22 : vector<208x768xf32> to vector<1x208x768xf32>
    tpu.vector_store %arg8[%c0_15, %c0_16, %c0_17], %25 {strides = array<i32>} : memref<1x208x768xf32, #tpu.memory_space<vmem>>, vector<1x208x768xf32>,
    return
  }
  func.func @transform_0(%arg0: i32, %arg1: i32) -> (i32, i32) {
    %c0_i32 = arith.constant 0 : i32
    %c0_i32_0 = arith.constant 0 : i32
    %c0_i32_1 = arith.constant 0 : i32
    return %c0_i32, %c0_i32_0 : i32, i32
  }
  func.func @transform_1(%arg0: i32, %arg1: i32) -> (i32, i32) {
    %c0_i32 = arith.constant 0 : i32
    %c0_i32_0 = arith.constant 0 : i32
    %c0_i32_1 = arith.constant 0 : i32
    return %c0_i32, %c0_i32_0 : i32, i32
  }
  func.func @transform_2(%arg0: i32, %arg1: i32) -> (i32, i32) {
    %c0_i32 = arith.constant 0 : i32
    %c0_i32_0 = arith.constant 0 : i32
    %c0_i32_1 = arith.constant 0 : i32
    return %c0_i32, %c0_i32_0 : i32, i32
  }
  func.func @transform_3(%arg0: i32, %arg1: i32) -> (i32, i32) {
    %c2_i32 = arith.constant 2 : i32
    %0 = arith.muli %arg0, %c2_i32 : i32
    %1 = arith.addi %0, %arg1 : i32
    %c0_i32 = arith.constant 0 : i32
    %c0_i32_0 = arith.constant 0 : i32
    return %c0_i32, %1 : i32, i32
  }
  func.func @transform_4(%arg0: i32, %arg1: i32) -> (i32, i32) {
    %c2_i32 = arith.constant 2 : i32
    %0 = arith.muli %arg0, %c2_i32 : i32
    %1 = arith.addi %0, %arg1 : i32
    %c0_i32 = arith.constant 0 : i32
    %c0_i32_0 = arith.constant 0 : i32
    return %c0_i32, %1 : i32, i32
  }
  func.func @transform_5(%arg0: i32, %arg1: i32) -> (i32, i32) {
    %c2_i32 = arith.constant 2 : i32
    %0 = arith.muli %arg0, %c2_i32 : i32
    %1 = arith.addi %0, %arg1 : i32
    %c0_i32 = arith.constant 0 : i32
    %c0_i32_0 = arith.constant 0 : i32
    return %1, %c0_i32 : i32, i32
  }
  func.func @transform_6(%arg0: i32, %arg1: i32) -> (i32, i32, i32) {
    %c0_i32 = arith.constant 0 : i32
    %c0_i32_0 = arith.constant 0 : i32
    %c0_i32_1 = arith.constant 0 : i32
    return %arg0, %c0_i32, %c0_i32_0 : i32, i32, i32
  }
}

</mosaic_0001>

<llo_original>
// kernel: mlp_block.1
$region0: #{mlp_block.1}
  #allocation0 [shape = 'u32[]', space=smem, size = 0x4, offset = 0x4, fixed_abs, tag = 'smem constant byte address 0x4 - core index']
  #allocation1 [shape = 'u32[144,128]{1,0:T(1,128)}', space=vmem, size = 0x12000, scoped, tag = 'internal scratch']
  #allocation2 [shape = 'bf16[208,768]{1,0:T(16,128)(2,1)}', space=vmem, size = 0x4e000, scoped, tag = 'scratch operand']
  %s0 = inlined_call_operand.vmem [shape: f32[208,768], index: 0, kind: input, shape index: {}]
  %s1 = inlined_call_operand.hbm [shape: f32[1,768], index: 1, kind: input, shape index: {}]
  %s2 = inlined_call_operand.hbm [shape: f32[1,768], index: 2, kind: input, shape index: {}]
  %s3 = inlined_call_operand.hbm [shape: bf16[768,3072], index: 3, kind: input, shape index: {}]
  %s4 = inlined_call_operand.hbm [shape: f32[1,3072], index: 4, kind: input, shape index: {}]
  %s5 = inlined_call_operand.hbm [shape: bf16[3072,768], index: 5, kind: input, shape index: {}]
  %s6 = inlined_call_operand.vmem [shape: f32[2,208,768], index: 6, kind: output, shape index: {}]
  %s7 = sld [smem:[#allocation0]]
  $region81: #{mlp_block.1} parent=0
    _
  %s9 = ssub.s32 1, %s7
  %s10 = scalar_select 0, %s9, %s7
  $region1: #{mlp_block.1} parent=0
    #allocation3 [shape = 'u8[3072]{0}', space=vmem, size = 0xc00, scoped, tag = 'input window, operand 1, single buffered']
    #allocation4 [shape = 's32[2]{0}', space=sflag, size = 0x8, scoped, tag = 'scoped memory for mlp_block.1']
    #allocation5 [shape = 'u8[3072]{0}', space=vmem, size = 0xc00, scoped, tag = 'input window, operand 2, single buffered']
    #allocation6 [shape = 's32[1]{0}', space=sflag, size = 0x4, scoped, tag = 'scoped memory for mlp_block.1']
    #allocation7 [shape = 'u8[2359296]{0}', space=vmem, size = 0x240000, scoped, tag = 'input window, operand 3']
    #allocation8 [shape = 'u8[6144]{0}', space=vmem, size = 0x1800, scoped, tag = 'input window, operand 4']
    #allocation9 [shape = 'u8[2359296]{0}', space=vmem, size = 0x240000, scoped, tag = 'input window, operand 5']
    %11 = vsyncpa [#allocation4], 0
    %12 = vsyncpa [#allocation6], 0
    loop: start=0, step=1, limit=6
    $region2: #{mlp_block.1} parent=1 // loop_pre_header
      _
    $region3: #{mlp_block.1} parent=1 // loop_header
      %s14 = sphi 0, %s18
      %p15 = scmp.ge.s32.totalorder %s14, 6
      %s21 = sphi 0, %s33
      %s22 = sphi 0, %s29
      %s23 = sphi 0, %s21
      %s24 = sphi 0, %s22
      %s25 = sphi 0, %s23
      %s26 = sphi 0, %s24
      %s34 = sphi 0, %s34
      %s36 = sphi 0, %s34
      %s37 = sphi 0, %s36
      %s51 = sphi 0, %s37
      %s55 = sphi 0, %s55
      %s57 = sphi 0, %s55
      %s58 = sphi 0, %s57
      %s72 = sphi 0, %s58
      %s76 = sphi 0, %s76
      %s78 = sphi 0, %s76
      %s79 = sphi 0, %s78
      %s93 = sphi 0, %s79
      %s103 = sphi 0, %s105
      %s106 = sphi 0, %s103
      %s107 = sphi 0, %s106
      %s123 = sphi 0, %s107
      %s133 = sphi 0, %s135
      %s136 = sphi 0, %s133
      %s137 = sphi 0, %s136
      %s153 = sphi 0, %s137
      %s163 = sphi 0, %s165
      %s166 = sphi 0, %s163
      %s167 = sphi 0, %s166
      %s183 = sphi 0, %s167
      %s189 = sphi 0, %s191
      %s192 = sphi 0, %s189
      %s193 = sphi 0, %s192
      %s209 = sphi 0, %s193
    $region4: #{mlp_block.1} parent=1 // loop_header_branch
      %17 = sbr.rel (%p15) target = $region8
    $region5: #{mlp_block.1} parent=1 // loop_body
      %s19 = ssub.s32 %s14, 1
      %s20 = ssub.s32 %s14, 2
      %s27 = sadd.s32 1, %s22
      %p28 = scmp.ge.s32.totalorder %s27, 2
      %s29 = scalar_select %p28, 0, %s27
      %s30 = sadd.s32 1, %s21
      %s31 = scalar_select %p28, %s30, %s21
      %p32 = scmp.ge.s32.totalorder %s31, 2
      %s33 = scalar_select %p32, 0, %s31
      %s35 = sadd.s32 %s34, 1
      %p38 = scmp.eq.s32.totalorder %s14, 3
      %p39 = scmp.ne.s32.totalorder %s34, %s36
      %p40 = scmp.eq.s32.totalorder %s14, 0
      %p41 = por %p39, %p40
      %p42 = scmp.ne.s32.totalorder %s34, %s36
      %p43 = scmp.eq.s32.totalorder %s19, 3
      %p44 = por %p42, %p43
      %p45 = scmp.ne.s32.totalorder %s36, %s37
      %p46 = scmp.eq.s32.totalorder %s19, 0
      %p47 = por %p45, %p46
      %p48 = scmp.ne.s32.totalorder %s36, %s37
      %p49 = scmp.eq.s32.totalorder %s20, 3
      %p50 = por %p48, %p49
      %p52 = scmp.ne.s32.totalorder %s37, %s51
      %p53 = scmp.eq.s32.totalorder %s20, 0
      %p54 = por %p52, %p53
      %s56 = sadd.s32 %s55, 1
      %p59 = scmp.eq.s32.totalorder %s14, 3
      %p60 = scmp.ne.s32.totalorder %s55, %s57
      %p61 = scmp.eq.s32.totalorder %s14, 0
      %p62 = por %p60, %p61
      %p63 = scmp.ne.s32.totalorder %s55, %s57
      %p64 = scmp.eq.s32.totalorder %s19, 3
      %p65 = por %p63, %p64
      %p66 = scmp.ne.s32.totalorder %s57, %s58
      %p67 = scmp.eq.s32.totalorder %s19, 0
      %p68 = por %p66, %p67
      %p69 = scmp.ne.s32.totalorder %s57, %s58
      %p70 = scmp.eq.s32.totalorder %s20, 3
      %p71 = por %p69, %p70
      %p73 = scmp.ne.s32.totalorder %s58, %s72
      %p74 = scmp.eq.s32.totalorder %s20, 0
      %p75 = por %p73, %p74
      %s77 = sadd.s32 %s76, 1
      %p80 = scmp.eq.s32.totalorder %s14, 3
      %p81 = scmp.ne.s32.totalorder %s76, %s78
      %p82 = scmp.eq.s32.totalorder %s14, 0
      %p83 = por %p81, %p82
      %p84 = scmp.ne.s32.totalorder %s76, %s78
      %p85 = scmp.eq.s32.totalorder %s19, 3
      %p86 = por %p84, %p85
      %p87 = scmp.ne.s32.totalorder %s78, %s79
      %p88 = scmp.eq.s32.totalorder %s19, 0
      %p89 = por %p87, %p88
      %p90 = scmp.ne.s32.totalorder %s78, %s79
      %p91 = scmp.eq.s32.totalorder %s20, 3
      %p92 = por %p90, %p91
      %p94 = scmp.ne.s32.totalorder %s79, %s93
      %p95 = scmp.eq.s32.totalorder %s20, 0
      %p96 = por %p94, %p95
      %s97 = smul.u32 %s21, 2
      %s98 = sadd.s32 %s97, %s22
      %s99 = smul.u32 %s33, 2
      %s100 = sadd.s32 %s99, %s29
      %s101 = ssub.s32 %s98, %s100
      %p102 = scmp.eq.s32.totalorder %s101, 0
      %s104 = sadd.s32 %s103, 1
      %s105 = scalar_select %p102, %s103, %s104
      %p108 = pneg %p102
      %p109 = scmp.eq.s32.totalorder %s14, 3
      %p110 = por %p108, %p109
      %p111 = scmp.ne.s32.totalorder %s103, %s106
      %p112 = scmp.eq.s32.totalorder %s14, 0
      %p113 = por %p111, %p112
      %p114 = scmp.ne.s32.totalorder %s103, %s106
      %p115 = scmp.eq.s32.totalorder %s19, 3
      %p116 = por %p114, %p115
      %p117 = scmp.ne.s32.totalorder %s106, %s107
      %p118 = scmp.eq.s32.totalorder %s19, 0
      %p119 = por %p117, %p118
      %p120 = scmp.ne.s32.totalorder %s106, %s107
      %p121 = scmp.eq.s32.totalorder %s20, 3
      %p122 = por %p120, %p121
      %p124 = scmp.ne.s32.totalorder %s107, %s123
      %p125 = scmp.eq.s32.totalorder %s20, 0
      %p126 = por %p124, %p125
      %s127 = smul.u32 %s21, 2
      %s128 = sadd.s32 %s127, %s22
      %s129 = smul.u32 %s33, 2
      %s130 = sadd.s32 %s129, %s29
      %s131 = ssub.s32 %s128, %s130
      %p132 = scmp.eq.s32.totalorder %s131, 0
      %s134 = sadd.s32 %s133, 1
      %s135 = scalar_select %p132, %s133, %s134
      %p138 = pneg %p132
      %p139 = scmp.eq.s32.totalorder %s14, 3
      %p140 = por %p138, %p139
      %p141 = scmp.ne.s32.totalorder %s133, %s136
      %p142 = scmp.eq.s32.totalorder %s14, 0
      %p143 = por %p141, %p142
      %p144 = scmp.ne.s32.totalorder %s133, %s136
      %p145 = scmp.eq.s32.totalorder %s19, 3
      %p146 = por %p144, %p145
      %p147 = scmp.ne.s32.totalorder %s136, %s137
      %p148 = scmp.eq.s32.totalorder %s19, 0
      %p149 = por %p147, %p148
      %p150 = scmp.ne.s32.totalorder %s136, %s137
      %p151 = scmp.eq.s32.totalorder %s20, 3
      %p152 = por %p150, %p151
      %p154 = scmp.ne.s32.totalorder %s137, %s153
      %p155 = scmp.eq.s32.totalorder %s20, 0
      %p156 = por %p154, %p155
      %s157 = smul.u32 %s21, 2
      %s158 = sadd.s32 %s157, %s22
      %s159 = smul.u32 %s33, 2
      %s160 = sadd.s32 %s159, %s29
      %s161 = ssub.s32 %s158, %s160
      %p162 = scmp.eq.s32.totalorder %s161, 0
      %s164 = sadd.s32 %s163, 1
      %s165 = scalar_select %p162, %s163, %s164
      %p168 = pneg %p162
      %p169 = scmp.eq.s32.totalorder %s14, 3
      %p170 = por %p168, %p169
      %p171 = scmp.ne.s32.totalorder %s163, %s166
      %p172 = scmp.eq.s32.totalorder %s14, 0
      %p173 = por %p171, %p172
      %p174 = scmp.ne.s32.totalorder %s163, %s166
      %p175 = scmp.eq.s32.totalorder %s19, 3
      %p176 = por %p174, %p175
      %p177 = scmp.ne.s32.totalorder %s166, %s167
      %p178 = scmp.eq.s32.totalorder %s19, 0
      %p179 = por %p177, %p178
      %p180 = scmp.ne.s32.totalorder %s166, %s167
      %p181 = scmp.eq.s32.totalorder %s20, 3
      %p182 = por %p180, %p181
      %p184 = scmp.ne.s32.totalorder %s167, %s183
      %p185 = scmp.eq.s32.totalorder %s20, 0
      %p186 = por %p184, %p185
      %s187 = ssub.s32 %s21, %s33
      %p188 = scmp.eq.s32.totalorder %s187, 0
      %s190 = sadd.s32 %s189, 1
      %s191 = scalar_select %p188, %s189, %s190
      %p194 = pneg %p188
      %p195 = scmp.eq.s32.totalorder %s14, 3
      %p196 = por %p194, %p195
      %p197 = scmp.ne.s32.totalorder %s189, %s192
      %p198 = scmp.eq.s32.totalorder %s14, 0
      %p199 = por %p197, %p198
      %p200 = scmp.ne.s32.totalorder %s189, %s192
      %p201 = scmp.eq.s32.totalorder %s19, 3
      %p202 = por %p200, %p201
      %p203 = scmp.ne.s32.totalorder %s192, %s193
      %p204 = scmp.eq.s32.totalorder %s19, 0
      %p205 = por %p203, %p204
      %p206 = scmp.ne.s32.totalorder %s192, %s193
      %p207 = scmp.eq.s32.totalorder %s20, 3
      %p208 = por %p206, %p207
      %p210 = scmp.ne.s32.totalorder %s193, %s209
      %p211 = scmp.eq.s32.totalorder %s20, 0
      %p212 = por %p210, %p211
      %p213 = scmp.le.s32.totalorder 1, %s14
      %p214 = scmp.lt.s32.totalorder %s14, 5
      %p215 = pnand %p213, %p214
      %p216 = pneg %p215
      // Predicated region
      $region9: #{mlp_block.1} parent=5 // pred_check
        _
      $region10: #{mlp_block.1} parent=5 // pred_check_branch
        %218 = sbr.rel (%p215) target = $region12
      $region11: #{mlp_block.1} parent=5 // pred_region
        %s219 = ssub.s32 %s14, 1
        // Predicated region
        $region13: #{mlp_block.1} parent=11 // pred_check
          %p220 = pneg %p47
        $region14: #{mlp_block.1} parent=11 // pred_check_branch
          %222 = sbr.rel (%p220) target = $region16
        $region15: #{mlp_block.1} parent=11 // pred_region
          _
        $region16: #{mlp_block.1} parent=11 // pred_fallthru
          _
        // Predicated region
        $region17: #{mlp_block.1} parent=11 // pred_check
          %p223 = pneg %p68
        $region18: #{mlp_block.1} parent=11 // pred_check_branch
          %225 = sbr.rel (%p223) target = $region20
        $region19: #{mlp_block.1} parent=11 // pred_region
          %s227 = ssub.s32 96, 96
          %228 = vsyncadd [#allocation4], %s227
          %s230 = sshll.u32 [#allocation3], 4
          %s231 = int_to_ptr.vmem [resolvable:$true] %s230
          %233 = dma.hbm_to_vmem [thread:$0]  %s1, 96, %s231, [#allocation4]
        $region20: #{mlp_block.1} parent=11 // pred_fallthru
          _
        // Predicated region
        $region21: #{mlp_block.1} parent=11 // pred_check
          %p234 = pneg %p89
        $region22: #{mlp_block.1} parent=11 // pred_check_branch
          %236 = sbr.rel (%p234) target = $region24
        $region23: #{mlp_block.1} parent=11 // pred_region
          %s238 = ssub.s32 96, 96
          %239 = vsyncadd [#allocation6], %s238
          %s241 = sshll.u32 [#allocation5], 4
          %s242 = int_to_ptr.vmem [resolvable:$true] %s241
          %244 = dma.hbm_to_vmem [thread:$0]  %s2, 96, %s242, [#allocation6]
        $region24: #{mlp_block.1} parent=11 // pred_fallthru
          _
      $region12: #{mlp_block.1} parent=5 // pred_fallthru
        _
      %p245 = scmp.lt.s32.totalorder %s14, 4
      // Predicated region
      $region25: #{mlp_block.1} parent=5 // pred_check
        %p246 = pneg %p245
      $region26: #{mlp_block.1} parent=5 // pred_check_branch
        %248 = sbr.rel (%p246) target = $region28
      $region27: #{mlp_block.1} parent=5 // pred_region
        // Predicated region
        $region29: #{mlp_block.1} parent=27 // pred_check
          %p249 = pneg %p113
        $region30: #{mlp_block.1} parent=27 // pred_check_branch
          %251 = sbr.rel (%p249) target = $region32
        $region31: #{mlp_block.1} parent=27 // pred_region
          %s252 = sand.u32 %s14, 1
          %s253 = scalar_lea.sflag [#allocation4], %s252
          %s254 = sand.u32 %s103, 1
          %s255 = smul.addr %s254, 2304
          %s256 = scalar_lea.vmem [#allocation7], %s255
          %s257 = smul.u32 %s21, 2
          %s258 = sadd.s32 %s257, %s22
          %s259 = smul.u32 6, %s258
          %s261 = ssub.s32 36864, 36864
          %262 = vsyncadd %s253, %s261
          %s263 = smul.addr %s259, 64
          %s264 = scalar_lea.hbm %s3, %s263
          %s265 = sshll.u32 %s256, 4
          %s266 = int_to_ptr.vmem [resolvable:$true] %s265
          %271 = dma.hbm_to_vmem [thread:$0]  %s264, 36864, %s266, %s253, 1536, 384, 24
        $region32: #{mlp_block.1} parent=27 // pred_fallthru
          _
        // Predicated region
        $region33: #{mlp_block.1} parent=27 // pred_check
          %p272 = pneg %p143
        $region34: #{mlp_block.1} parent=27 // pred_check_branch
          %274 = sbr.rel (%p272) target = $region36
        $region35: #{mlp_block.1} parent=27 // pred_region
          %s275 = sand.u32 %s14, 1
          %s276 = scalar_lea.sflag [#allocation4], %s275
          %s277 = sand.u32 %s133, 1
          %s278 = smul.addr %s277, 6
          %s279 = scalar_lea.vmem [#allocation8], %s278
          %s280 = smul.u32 %s21, 2
          %s281 = sadd.s32 %s280, %s22
          %s282 = smul.u32 6, %s281
          %s284 = ssub.s32 96, 96
          %285 = vsyncadd %s276, %s284
          %s286 = smul.addr %s282, 16
          %s287 = scalar_lea.hbm %s4, %s286
          %s289 = sshll.u32 %s279, 4
          %s290 = int_to_ptr.vmem [resolvable:$true] %s289
          %292 = dma.hbm_to_vmem [thread:$0]  %s287, 96, %s290, %s276
        $region36: #{mlp_block.1} parent=27 // pred_fallthru
          _
        // Predicated region
        $region37: #{mlp_block.1} parent=27 // pred_check
          %p293 = pneg %p173
        $region38: #{mlp_block.1} parent=27 // pred_check_branch
          %295 = sbr.rel (%p293) target = $region40
        $region39: #{mlp_block.1} parent=27 // pred_region
          %s296 = sand.u32 %s14, 1
          %s297 = scalar_lea.sflag [#allocation4], %s296
          %s298 = sand.u32 %s163, 1
          %s299 = smul.addr %s298, 2304
          %s300 = scalar_lea.vmem [#allocation9], %s299
          %s301 = smul.u32 %s21, 2
          %s302 = sadd.s32 %s301, %s22
          %s303 = smul.u32 96, %s302
          %s305 = ssub.s32 36864, 36864
          %306 = vsyncadd %s297, %s305
          %s307 = smul.addr %s303, 6
          %s308 = smul.addr %s307, 64
          %s309 = scalar_lea.hbm %s5, %s308
          %s310 = sshll.u32 %s300, 4
          %s311 = int_to_ptr.vmem [resolvable:$true] %s310
          %316 = dma.hbm_to_vmem [thread:$0]  %s309, 36864, %s311, %s297, 384, 384, 24
        $region40: #{mlp_block.1} parent=27 // pred_fallthru
          _
      $region28: #{mlp_block.1} parent=5 // pred_fallthru
        _
      %p317 = scmp.le.s32.totalorder 1, %s14
      %p318 = scmp.lt.s32.totalorder %s14, 5
      %p319 = pnand %p317, %p318
      %p320 = pneg %p319
      // Predicated region
      $region41: #{mlp_block.1} parent=5 // pred_check
        _
      $region42: #{mlp_block.1} parent=5 // pred_check_branch
        %322 = sbr.rel (%p319) target = $region44
      $region43: #{mlp_block.1} parent=5 // pred_region
        %s323 = ssub.s32 %s14, 1
        // Predicated region
        $region45: #{mlp_block.1} parent=43 // pred_check
          %p324 = pneg %p68
        $region46: #{mlp_block.1} parent=43 // pred_check_branch
          %326 = sbr.rel (%p324) target = $region48
        $region47: #{mlp_block.1} parent=43 // pred_region
          %327 = dma.done [#allocation4], 96
        $region48: #{mlp_block.1} parent=43 // pred_fallthru
          _
        // Predicated region
        $region49: #{mlp_block.1} parent=43 // pred_check
          %p328 = pneg %p89
        $region50: #{mlp_block.1} parent=43 // pred_check_branch
          %330 = sbr.rel (%p328) target = $region52
        $region51: #{mlp_block.1} parent=43 // pred_region
          %331 = dma.done [#allocation6], 96
        $region52: #{mlp_block.1} parent=43 // pred_fallthru
          _
        %s332 = sand.u32 %s19, 1
        %s333 = scalar_lea.sflag [#allocation4], %s332
        %s334 = sand.u32 %s106, 1
        %s335 = smul.addr %s334, 2304
        %s336 = scalar_lea.vmem [#allocation7], %s335
        // Predicated region
        $region53: #{mlp_block.1} parent=43 // pred_check
          %p337 = pneg %p119
        $region54: #{mlp_block.1} parent=43 // pred_check_branch
          %339 = sbr.rel (%p337) target = $region56
        $region55: #{mlp_block.1} parent=43 // pred_region
          %340 = dma.done %s333, 36864
        $region56: #{mlp_block.1} parent=43 // pred_fallthru
          _
        %s341 = sand.u32 %s19, 1
        %s342 = scalar_lea.sflag [#allocation4], %s341
        %s343 = sand.u32 %s136, 1
        %s344 = smul.addr %s343, 6
        %s345 = scalar_lea.vmem [#allocation8], %s344
        // Predicated region
        $region57: #{mlp_block.1} parent=43 // pred_check
          %p346 = pneg %p149
        $region58: #{mlp_block.1} parent=43 // pred_check_branch
          %348 = sbr.rel (%p346) target = $region60
        $region59: #{mlp_block.1} parent=43 // pred_region
          %349 = dma.done %s342, 96
        $region60: #{mlp_block.1} parent=43 // pred_fallthru
          _
        %s350 = sand.u32 %s19, 1
        %s351 = scalar_lea.sflag [#allocation4], %s350
        %s352 = sand.u32 %s166, 1
        %s353 = smul.addr %s352, 2304
        %s354 = scalar_lea.vmem [#allocation9], %s353
        // Predicated region
        $region61: #{mlp_block.1} parent=43 // pred_check
          %p355 = pneg %p179
        $region62: #{mlp_block.1} parent=43 // pred_check_branch
          %357 = sbr.rel (%p355) target = $region64
        $region63: #{mlp_block.1} parent=43 // pred_region
          %358 = dma.done %s351, 36864
        $region64: #{mlp_block.1} parent=43 // pred_fallthru
          _
        %p359 = pneg %p47
        %p360 = pneg %p44
        %p361 = pneg %p68
        %p362 = pneg %p65
        %p363 = pneg %p89
        %p364 = pneg %p86
        %s365 = sand.u32 %s19, 1
        %s366 = scalar_lea.sflag [#allocation4], %s365
        %s367 = sand.u32 %s106, 1
        %s368 = smul.addr %s367, 2304
        %s369 = scalar_lea.vmem [#allocation7], %s368
        %p370 = pneg %p119
        %p371 = pneg %p116
        %s372 = sand.u32 %s19, 1
        %s373 = scalar_lea.sflag [#allocation4], %s372
        %s374 = sand.u32 %s136, 1
        %s375 = smul.addr %s374, 6
        %s376 = scalar_lea.vmem [#allocation8], %s375
        %p377 = pneg %p149
        %p378 = pneg %p146
        %s379 = sand.u32 %s19, 1
        %s380 = scalar_lea.sflag [#allocation4], %s379
        %s381 = sand.u32 %s166, 1
        %s382 = smul.addr %s381, 2304
        %s383 = scalar_lea.vmem [#allocation9], %s382
        %p384 = pneg %p179
        %p385 = pneg %p176
        %p386 = pneg %p205
        %p387 = pneg %p202
        %p388 = scmp.lt.s32.totalorder %s23, 1
        %s389 = scalar_select %p388, %s23, 1
        %s390 = smul.addr %s389, 156
        %s391 = smul.addr %s390, 8
        %s392 = scalar_lea.vmem %s6, %s391
        %s393 = smul.u32 %s23, 2
        %s394 = sadd.s32 %s393, %s24
        %s395 = smul.u32 6, %s394
        %s396 = smul.u32 %s23, 2
        %s397 = sadd.s32 %s396, %s24
        %s398 = smul.u32 6, %s397
        %s399 = smul.u32 %s23, 2
        %s400 = sadd.s32 %s399, %s24
        %s401 = smul.u32 96, %s400
        %p402 = scmp.lt.s32.totalorder %s23, 1
        %s403 = scalar_select %p402, %s23, 1
        %s404 = smul.addr %s403, 156
        %s405 = smul.addr %s404, 8
        %s406 = scalar_lea.vmem %s6, %s405
        %p407 = scmp.eq.s32.totalorder %s24, 0
        // Predicated region
        $region65: #{mlp_block.1} parent=43 // pred_check
          %p408 = pneg %p407
        $region66: #{mlp_block.1} parent=43 // pred_check_branch
          %410 = sbr.rel (%p408) target = $region68
        $region67: #{mlp_block.1} parent=43 // pred_region
          %v411 = vld [vmem:[%s0] sm:$0xff]
          %v412 = vld [vmem:[%s0 + $0x8] sm:$0xff]
          %v413 = vld [vmem:[%s0 + $0x10] sm:$0xff]
          %v414 = vld [vmem:[%s0 + $0x18] sm:$0xff]
          %v415 = vld [vmem:[%s0 + $0x20] sm:$0xff]
          %v416 = vld [vmem:[%s0 + $0x28] sm:$0xff]
          %v417 = vld [vmem:[%s0 + $0x30] sm:$0xff]
          %v418 = vld [vmem:[%s0 + $0x38] sm:$0xff]
          %v419 = vld [vmem:[%s0 + $0x40] sm:$0xff]
          %v420 = vld [vmem:[%s0 + $0x48] sm:$0xff]
          %v421 = vld [vmem:[%s0 + $0x50] sm:$0xff]
          %v422 = vld [vmem:[%s0 + $0x58] sm:$0xff]
          %v423 = vld [vmem:[%s0 + $0x60] sm:$0xff]
          %v424 = vld [vmem:[%s0 + $0x68] sm:$0xff]
          %v425 = vld [vmem:[%s0 + $0x70] sm:$0xff]
          %v426 = vld [vmem:[%s0 + $0x78] sm:$0xff]
          %v427 = vld [vmem:[%s0 + $0x80] sm:$0xff]
          %v428 = vld [vmem:[%s0 + $0x88] sm:$0xff]
          %v429 = vld [vmem:[%s0 + $0x90] sm:$0xff]
          %v430 = vld [vmem:[%s0 + $0x98] sm:$0xff]
          %v431 = vld [vmem:[%s0 + $0xa0] sm:$0xff]
          %v432 = vld [vmem:[%s0 + $0xa8] sm:$0xff]
          %v433 = vld [vmem:[%s0 + $0xb0] sm:$0xff]
          %v434 = vld [vmem:[%s0 + $0xb8] sm:$0xff]
          %v435 = vld [vmem:[%s0 + $0xc0] sm:$0xff]
          %v436 = vld [vmem:[%s0 + $0xc8] sm:$0xff]
          %v437 = vld [vmem:[%s0 + $0xd0] sm:$0xff]
          %v438 = vld [vmem:[%s0 + $0xd8] sm:$0xff]
          %v439 = vld [vmem:[%s0 + $0xe0] sm:$0xff]
          %v440 = vld [vmem:[%s0 + $0xe8] sm:$0xff]
          %v441 = vld [vmem:[%s0 + $0xf0] sm:$0xff]
          %v442 = vld [vmem:[%s0 + $0xf8] sm:$0xff]
          %v443 = vld [vmem:[%s0 + $0x100] sm:$0xff]
          %v444 = vld [vmem:[%s0 + $0x108] sm:$0xff]
          %v445 = vld [vmem:[%s0 + $0x110] sm:$0xff]
          %v446 = vld [vmem:[%s0 + $0x118] sm:$0xff]
          %v447 = vld [vmem:[%s0 + $0x120] sm:$0xff]
          %v448 = vld [vmem:[%s0 + $0x128] sm:$0xff]
          %v449 = vld [vmem:[%s0 + $0x130] sm:$0xff]
          %v450 = vld [vmem:[%s0 + $0x138] sm:$0xff]
          %v451 = vld [vmem:[%s0 + $0x140] sm:$0xff]
          %v452 = vld [vmem:[%s0 + $0x148] sm:$0xff]
          %v453 = vld [vmem:[%s0 + $0x150] sm:$0xff]
          %v454 = vld [vmem:[%s0 + $0x158] sm:$0xff]
          %v455 = vld [vmem:[%s0 + $0x160] sm:$0xff]
          %v456 = vld [vmem:[%s0 + $0x168] sm:$0xff]
          %v457 = vld [vmem:[%s0 + $0x170] sm:$0xff]
          %v458 = vld [vmem:[%s0 + $0x178] sm:$0xff]
          %v459 = vld [vmem:[%s0 + $0x180] sm:$0xff]
          %v460 = vld [vmem:[%s0 + $0x188] sm:$0xff]
          %v461 = vld [vmem:[%s0 + $0x190] sm:$0xff]
          %v462 = vld [vmem:[%s0 + $0x198] sm:$0xff]
          %v463 = vld [vmem:[%s0 + $0x1a0] sm:$0xff]
          %v464 = vld [vmem:[%s0 + $0x1a8] sm:$0xff]
          %v465 = vld [vmem:[%s0 + $0x1b0] sm:$0xff]
          %v466 = vld [vmem:[%s0 + $0x1b8] sm:$0xff]
          %v467 = vld [vmem:[%s0 + $0x1c0] sm:$0xff]
          %v468 = vld [vmem:[%s0 + $0x1c8] sm:$0xff]
          %v469 = vld [vmem:[%s0 + $0x1d0] sm:$0xff]
          %v470 = vld [vmem:[%s0 + $0x1d8] sm:$0xff]
          %v471 = vld [vmem:[%s0 + $0x1e0] sm:$0xff]
          %v472 = vld [vmem:[%s0 + $0x1e8] sm:$0xff]
          %v473 = vld [vmem:[%s0 + $0x1f0] sm:$0xff]
          %v474 = vld [vmem:[%s0 + $0x1f8] sm:$0xff]
          %v475 = vld [vmem:[%s0 + $0x200] sm:$0xff]
          %v476 = vld [vmem:[%s0 + $0x208] sm:$0xff]
          %v477 = vld [vmem:[%s0 + $0x210] sm:$0xff]
          %v478 = vld [vmem:[%s0 + $0x218] sm:$0xff]
          %v479 = vld [vmem:[%s0 + $0x220] sm:$0xff]
          %v480 = vld [vmem:[%s0 + $0x228] sm:$0xff]
          %v481 = vld [vmem:[%s0 + $0x230] sm:$0xff]
          %v482 = vld [vmem:[%s0 + $0x238] sm:$0xff]
          %v483 = vld [vmem:[%s0 + $0x240] sm:$0xff]
          %v484 = vld [vmem:[%s0 + $0x248] sm:$0xff]
          %v485 = vld [vmem:[%s0 + $0x250] sm:$0xff]
          %v486 = vld [vmem:[%s0 + $0x258] sm:$0xff]
          %v487 = vld [vmem:[%s0 + $0x260] sm:$0xff]
          %v488 = vld [vmem:[%s0 + $0x268] sm:$0xff]
          %v489 = vld [vmem:[%s0 + $0x270] sm:$0xff]
          %v490 = vld [vmem:[%s0 + $0x278] sm:$0xff]
          %v491 = vld [vmem:[%s0 + $0x280] sm:$0xff]
          %v492 = vld [vmem:[%s0 + $0x288] sm:$0xff]
          %v493 = vld [vmem:[%s0 + $0x290] sm:$0xff]
          %v494 = vld [vmem:[%s0 + $0x298] sm:$0xff]
          %v495 = vld [vmem:[%s0 + $0x2a0] sm:$0xff]
          %v496 = vld [vmem:[%s0 + $0x2a8] sm:$0xff]
          %v497 = vld [vmem:[%s0 + $0x2b0] sm:$0xff]
          %v498 = vld [vmem:[%s0 + $0x2b8] sm:$0xff]
          %v499 = vld [vmem:[%s0 + $0x2c0] sm:$0xff]
          %v500 = vld [vmem:[%s0 + $0x2c8] sm:$0xff]
          %v501 = vld [vmem:[%s0 + $0x2d0] sm:$0xff]
          %v502 = vld [vmem:[%s0 + $0x2d8] sm:$0xff]
          %v503 = vld [vmem:[%s0 + $0x2e0] sm:$0xff]
          %v504 = vld [vmem:[%s0 + $0x2e8] sm:$0xff]
          %v505 = vld [vmem:[%s0 + $0x2f0] sm:$0xff]
          %v506 = vld [vmem:[%s0 + $0x2f8] sm:$0xff]
          %v507 = vld [vmem:[%s0 + $0x300] sm:$0xff]
          %v508 = vld [vmem:[%s0 + $0x308] sm:$0xff]
          %v509 = vld [vmem:[%s0 + $0x310] sm:$0xff]
          %v510 = vld [vmem:[%s0 + $0x318] sm:$0xff]
          %v511 = vld [vmem:[%s0 + $0x320] sm:$0xff]
          %v512 = vld [vmem:[%s0 + $0x328] sm:$0xff]
          %v513 = vld [vmem:[%s0 + $0x330] sm:$0xff]
          %v514 = vld [vmem:[%s0 + $0x338] sm:$0xff]
          %v515 = vld [vmem:[%s0 + $0x340] sm:$0xff]
          %v516 = vld [vmem:[%s0 + $0x348] sm:$0xff]
          %v517 = vld [vmem:[%s0 + $0x350] sm:$0xff]
          %v518 = vld [vmem:[%s0 + $0x358] sm:$0xff]
          %v519 = vld [vmem:[%s0 + $0x360] sm:$0xff]
          %v520 = vld [vmem:[%s0 + $0x368] sm:$0xff]
          %v521 = vld [vmem:[%s0 + $0x370] sm:$0xff]
          %v522 = vld [vmem:[%s0 + $0x378] sm:$0xff]
          %v523 = vld [vmem:[%s0 + $0x380] sm:$0xff]
          %v524 = vld [vmem:[%s0 + $0x388] sm:$0xff]
          %v525 = vld [vmem:[%s0 + $0x390] sm:$0xff]
          %v526 = vld [vmem:[%s0 + $0x398] sm:$0xff]
          %v527 = vld [vmem:[%s0 + $0x3a0] sm:$0xff]
          %v528 = vld [vmem:[%s0 + $0x3a8] sm:$0xff]
          %v529 = vld [vmem:[%s0 + $0x3b0] sm:$0xff]
          %v530 = vld [vmem:[%s0 + $0x3b8] sm:$0xff]
          %v531 = vld [vmem:[%s0 + $0x3c0] sm:$0xff]
          %v532 = vld [vmem:[%s0 + $0x3c8] sm:$0xff]
          %v533 = vld [vmem:[%s0 + $0x3d0] sm:$0xff]
          %v534 = vld [vmem:[%s0 + $0x3d8] sm:$0xff]
          %v535 = vld [vmem:[%s0 + $0x3e0] sm:$0xff]
          %v536 = vld [vmem:[%s0 + $0x3e8] sm:$0xff]
          %v537 = vld [vmem:[%s0 + $0x3f0] sm:$0xff]
          %v538 = vld [vmem:[%s0 + $0x3f8] sm:$0xff]
          %v539 = vld [vmem:[%s0 + $0x400] sm:$0xff]
          %v540 = vld [vmem:[%s0 + $0x408] sm:$0xff]
          %v541 = vld [vmem:[%s0 + $0x410] sm:$0xff]
          %v542 = vld [vmem:[%s0 + $0x418] sm:$0xff]
          %v543 = vld [vmem:[%s0 + $0x420] sm:$0xff]
          %v544 = vld [vmem:[%s0 + $0x428] sm:$0xff]
          %v545 = vld [vmem:[%s0 + $0x430] sm:$0xff]
          %v546 = vld [vmem:[%s0 + $0x438] sm:$0xff]
          %v547 = vld [vmem:[%s0 + $0x440] sm:$0xff]
          %v548 = vld [vmem:[%s0 + $0x448] sm:$0xff]
          %v549 = vld [vmem:[%s0 + $0x450] sm:$0xff]
          %v550 = vld [vmem:[%s0 + $0x458] sm:$0xff]
          %v551 = vld [vmem:[%s0 + $0x460] sm:$0xff]
          %v552 = vld [vmem:[%s0 + $0x468] sm:$0xff]
          %v553 = vld [vmem:[%s0 + $0x470] sm:$0xff]
          %v554 = vld [vmem:[%s0 + $0x478] sm:$0xff]
          %v555 = vld [vmem:[%s0 + $0x480] sm:$0xff]
          %v556 = vld [vmem:[%s0 + $0x488] sm:$0xff]
          %v557 = vld [vmem:[%s0 + $0x490] sm:$0xff]
          %v558 = vld [vmem:[%s0 + $0x498] sm:$0xff]
          %v559 = vld [vmem:[%s0 + $0x4a0] sm:$0xff]
          %v560 = vld [vmem:[%s0 + $0x4a8] sm:$0xff]
          %v561 = vld [vmem:[%s0 + $0x4b0] sm:$0xff]
          %v562 = vld [vmem:[%s0 + $0x4b8] sm:$0xff]
          %v563 = vld [vmem:[%s0 + $0x4c0] sm:$0xff]
          %v564 = vld [vmem:[%s0 + $0x4c8] sm:$0xff]
          %v565 = vld [vmem:[%s0 + $0x4d0] sm:$0xff]
          %v566 = vld [vmem:[%s0 + $0x4d8] sm:$0xff]
          %v567 = vadd.f32 %v411, %v412
          %v568 = vadd.f32 %v567, %v413
          %v569 = vadd.f32 %v568, %v414
          %v570 = vadd.f32 %v569, %v415
          %v571 = vadd.f32 %v570, %v416
          %572 = vadd.xlane.f32.xlu0 %v571
          %v573 = vpop.xlane.xlu0 %572
          %v574 = vadd.f32 %v417, %v418
          %v575 = vadd.f32 %v574, %v419
          %v576 = vadd.f32 %v575, %v420
          %v577 = vadd.f32 %v576, %v421
          %v578 = vadd.f32 %v577, %v422
          %579 = vadd.xlane.f32.xlu0 %v578
          %v580 = vpop.xlane.xlu0 %579
          %v581 = vadd.f32 %v423, %v424
          %v582 = vadd.f32 %v581, %v425
          %v583 = vadd.f32 %v582, %v426
          %v584 = vadd.f32 %v583, %v427
          %v585 = vadd.f32 %v584, %v428
          %586 = vadd.xlane.f32.xlu0 %v585
          %v587 = vpop.xlane.xlu0 %586
          %v588 = vadd.f32 %v429, %v430
          %v589 = vadd.f32 %v588, %v431
          %v590 = vadd.f32 %v589, %v432
          %v591 = vadd.f32 %v590, %v433
          %v592 = vadd.f32 %v591, %v434
          %593 = vadd.xlane.f32.xlu0 %v592
          %v594 = vpop.xlane.xlu0 %593
          %v595 = vadd.f32 %v435, %v436
          %v596 = vadd.f32 %v595, %v437
          %v597 = vadd.f32 %v596, %v438
          %v598 = vadd.f32 %v597, %v439
          %v599 = vadd.f32 %v598, %v440
          %600 = vadd.xlane.f32.xlu0 %v599
          %v601 = vpop.xlane.xlu0 %600
          %v602 = vadd.f32 %v441, %v442
          %v603 = vadd.f32 %v602, %v443
          %v604 = vadd.f32 %v603, %v444
          %v605 = vadd.f32 %v604, %v445
          %v606 = vadd.f32 %v605, %v446
          %607 = vadd.xlane.f32.xlu0 %v606
          %v608 = vpop.xlane.xlu0 %607
          %v609 = vadd.f32 %v447, %v448
          %v610 = vadd.f32 %v609, %v449
          %v611 = vadd.f32 %v610, %v450
          %v612 = vadd.f32 %v611, %v451
          %v613 = vadd.f32 %v612, %v452
          %614 = vadd.xlane.f32.xlu0 %v613
          %v615 = vpop.xlane.xlu0 %614
          %v616 = vadd.f32 %v453, %v454
          %v617 = vadd.f32 %v616, %v455
          %v618 = vadd.f32 %v617, %v456
          %v619 = vadd.f32 %v618, %v457
          %v620 = vadd.f32 %v619, %v458
          %621 = vadd.xlane.f32.xlu0 %v620
          %v622 = vpop.xlane.xlu0 %621
          %v623 = vadd.f32 %v459, %v460
          %v624 = vadd.f32 %v623, %v461
          %v625 = vadd.f32 %v624, %v462
          %v626 = vadd.f32 %v625, %v463
          %v627 = vadd.f32 %v626, %v464
          %628 = vadd.xlane.f32.xlu0 %v627
          %v629 = vpop.xlane.xlu0 %628
          %v630 = vadd.f32 %v465, %v466
          %v631 = vadd.f32 %v630, %v467
          %v632 = vadd.f32 %v631, %v468
          %v633 = vadd.f32 %v632, %v469
          %v634 = vadd.f32 %v633, %v470
          %635 = vadd.xlane.f32.xlu0 %v634
          %v636 = vpop.xlane.xlu0 %635
          %v637 = vadd.f32 %v471, %v472
          %v638 = vadd.f32 %v637, %v473
          %v639 = vadd.f32 %v638, %v474
          %v640 = vadd.f32 %v639, %v475
          %v641 = vadd.f32 %v640, %v476
          %642 = vadd.xlane.f32.xlu0 %v641
          %v643 = vpop.xlane.xlu0 %642
          %v644 = vadd.f32 %v477, %v478
          %v645 = vadd.f32 %v644, %v479
          %v646 = vadd.f32 %v645, %v480
          %v647 = vadd.f32 %v646, %v481
          %v648 = vadd.f32 %v647, %v482
          %649 = vadd.xlane.f32.xlu0 %v648
          %v650 = vpop.xlane.xlu0 %649
          %v651 = vadd.f32 %v483, %v484
          %v652 = vadd.f32 %v651, %v485
          %v653 = vadd.f32 %v652, %v486
          %v654 = vadd.f32 %v653, %v487
          %v655 = vadd.f32 %v654, %v488
          %656 = vadd.xlane.f32.xlu0 %v655
          %v657 = vpop.xlane.xlu0 %656
          %v658 = vadd.f32 %v489, %v490
          %v659 = vadd.f32 %v658, %v491
          %v660 = vadd.f32 %v659, %v492
          %v661 = vadd.f32 %v660, %v493
          %v662 = vadd.f32 %v661, %v494
          %663 = vadd.xlane.f32.xlu0 %v662
          %v664 = vpop.xlane.xlu0 %663
          %v665 = vadd.f32 %v495, %v496
          %v666 = vadd.f32 %v665, %v497
          %v667 = vadd.f32 %v666, %v498
          %v668 = vadd.f32 %v667, %v499
          %v669 = vadd.f32 %v668, %v500
          %670 = vadd.xlane.f32.xlu0 %v669
          %v671 = vpop.xlane.xlu0 %670
          %v672 = vadd.f32 %v501, %v502
          %v673 = vadd.f32 %v672, %v503
          %v674 = vadd.f32 %v673, %v504
          %v675 = vadd.f32 %v674, %v505
          %v676 = vadd.f32 %v675, %v506
          %677 = vadd.xlane.f32.xlu0 %v676
          %v678 = vpop.xlane.xlu0 %677
          %v679 = vadd.f32 %v507, %v508
          %v680 = vadd.f32 %v679, %v509
          %v681 = vadd.f32 %v680, %v510
          %v682 = vadd.f32 %v681, %v511
          %v683 = vadd.f32 %v682, %v512
          %684 = vadd.xlane.f32.xlu0 %v683
          %v685 = vpop.xlane.xlu0 %684
          %v686 = vadd.f32 %v513, %v514
          %v687 = vadd.f32 %v686, %v515
          %v688 = vadd.f32 %v687, %v516
          %v689 = vadd.f32 %v688, %v517
          %v690 = vadd.f32 %v689, %v518
          %691 = vadd.xlane.f32.xlu0 %v690
          %v692 = vpop.xlane.xlu0 %691
          %v693 = vadd.f32 %v519, %v520
          %v694 = vadd.f32 %v693, %v521
          %v695 = vadd.f32 %v694, %v522
          %v696 = vadd.f32 %v695, %v523
          %v697 = vadd.f32 %v696, %v524
          %698 = vadd.xlane.f32.xlu0 %v697
          %v699 = vpop.xlane.xlu0 %698
          %v700 = vadd.f32 %v525, %v526
          %v701 = vadd.f32 %v700, %v527
          %v702 = vadd.f32 %v701, %v528
          %v703 = vadd.f32 %v702, %v529
          %v704 = vadd.f32 %v703, %v530
          %705 = vadd.xlane.f32.xlu0 %v704
          %v706 = vpop.xlane.xlu0 %705
          %v707 = vadd.f32 %v531, %v532
          %v708 = vadd.f32 %v707, %v533
          %v709 = vadd.f32 %v708, %v534
          %v710 = vadd.f32 %v709, %v535
          %v711 = vadd.f32 %v710, %v536
          %712 = vadd.xlane.f32.xlu0 %v711
          %v713 = vpop.xlane.xlu0 %712
          %v714 = vadd.f32 %v537, %v538
          %v715 = vadd.f32 %v714, %v539
          %v716 = vadd.f32 %v715, %v540
          %v717 = vadd.f32 %v716, %v541
          %v718 = vadd.f32 %v717, %v542
          %719 = vadd.xlane.f32.xlu0 %v718
          %v720 = vpop.xlane.xlu0 %719
          %v721 = vadd.f32 %v543, %v544
          %v722 = vadd.f32 %v721, %v545
          %v723 = vadd.f32 %v722, %v546
          %v724 = vadd.f32 %v723, %v547
          %v725 = vadd.f32 %v724, %v548
          %726 = vadd.xlane.f32.xlu0 %v725
          %v727 = vpop.xlane.xlu0 %726
          %v728 = vadd.f32 %v549, %v550
          %v729 = vadd.f32 %v728, %v551
          %v730 = vadd.f32 %v729, %v552
          %v731 = vadd.f32 %v730, %v553
          %v732 = vadd.f32 %v731, %v554
          %733 = vadd.xlane.f32.xlu0 %v732
          %v734 = vpop.xlane.xlu0 %733
          %v735 = vadd.f32 %v555, %v556
          %v736 = vadd.f32 %v735, %v557
          %v737 = vadd.f32 %v736, %v558
          %v738 = vadd.f32 %v737, %v559
          %v739 = vadd.f32 %v738, %v560
          %740 = vadd.xlane.f32.xlu0 %v739
          %v741 = vpop.xlane.xlu0 %740
          %v742 = vadd.f32 %v561, %v562
          %v743 = vadd.f32 %v742, %v563
          %v744 = vadd.f32 %v743, %v564
          %v745 = vadd.f32 %v744, %v565
          %v746 = vadd.f32 %v745, %v566
          %747 = vadd.xlane.f32.xlu0 %v746
          %v748 = vpop.xlane.xlu0 %747
          %v749 = vrcp.pop 768.0
          %v750 = vmul.f32 %v573, %v749
          %v751 = vmul.f32 %v580, %v749
          %v752 = vmul.f32 %v587, %v749
          %v753 = vmul.f32 %v594, %v749
          %v754 = vmul.f32 %v601, %v749
          %v755 = vmul.f32 %v608, %v749
          %v756 = vmul.f32 %v615, %v749
          %v757 = vmul.f32 %v622, %v749
          %v758 = vmul.f32 %v629, %v749
          %v759 = vmul.f32 %v636, %v749
          %v760 = vmul.f32 %v643, %v749
          %v761 = vmul.f32 %v650, %v749
          %v762 = vmul.f32 %v657, %v749
          %v763 = vmul.f32 %v664, %v749
          %v764 = vmul.f32 %v671, %v749
          %v765 = vmul.f32 %v678, %v749
          %v766 = vmul.f32 %v685, %v749
          %v767 = vmul.f32 %v692, %v749
          %v768 = vmul.f32 %v699, %v749
          %v769 = vmul.f32 %v706, %v749
          %v770 = vmul.f32 %v713, %v749
          %v771 = vmul.f32 %v720, %v749
          %v772 = vmul.f32 %v727, %v749
          %v773 = vmul.f32 %v734, %v749
          %v774 = vmul.f32 %v741, %v749
          %v775 = vmul.f32 %v748, %v749
          %v776 = vsub.f32 %v411, %v750
          %v777 = vsub.f32 %v412, %v750
          %v778 = vsub.f32 %v413, %v750
          %v779 = vsub.f32 %v414, %v750
          %v780 = vsub.f32 %v415, %v750
          %v781 = vsub.f32 %v416, %v750
          %v782 = vsub.f32 %v417, %v751
          %v783 = vsub.f32 %v418, %v751
          %v784 = vsub.f32 %v419, %v751
          %v785 = vsub.f32 %v420, %v751
          %v786 = vsub.f32 %v421, %v751
          %v787 = vsub.f32 %v422, %v751
          %v788 = vsub.f32 %v423, %v752
          %v789 = vsub.f32 %v424, %v752
          %v790 = vsub.f32 %v425, %v752
          %v791 = vsub.f32 %v426, %v752
          %v792 = vsub.f32 %v427, %v752
          %v793 = vsub.f32 %v428, %v752
          %v794 = vsub.f32 %v429, %v753
          %v795 = vsub.f32 %v430, %v753
          %v796 = vsub.f32 %v431, %v753
          %v797 = vsub.f32 %v432, %v753
          %v798 = vsub.f32 %v433, %v753
          %v799 = vsub.f32 %v434, %v753
          %v800 = vsub.f32 %v435, %v754
          %v801 = vsub.f32 %v436, %v754
          %v802 = vsub.f32 %v437, %v754
          %v803 = vsub.f32 %v438, %v754
          %v804 = vsub.f32 %v439, %v754
          %v805 = vsub.f32 %v440, %v754
          %v806 = vsub.f32 %v441, %v755
          %v807 = vsub.f32 %v442, %v755
          %v808 = vsub.f32 %v443, %v755
          %v809 = vsub.f32 %v444, %v755
          %v810 = vsub.f32 %v445, %v755
          %v811 = vsub.f32 %v446, %v755
          %v812 = vsub.f32 %v447, %v756
          %v813 = vsub.f32 %v448, %v756
          %v814 = vsub.f32 %v449, %v756
          %v815 = vsub.f32 %v450, %v756
          %v816 = vsub.f32 %v451, %v756
          %v817 = vsub.f32 %v452, %v756
          %v818 = vsub.f32 %v453, %v757
          %v819 = vsub.f32 %v454, %v757
          %v820 = vsub.f32 %v455, %v757
          %v821 = vsub.f32 %v456, %v757
          %v822 = vsub.f32 %v457, %v757
          %v823 = vsub.f32 %v458, %v757
          %v824 = vsub.f32 %v459, %v758
          %v825 = vsub.f32 %v460, %v758
          %v826 = vsub.f32 %v461, %v758
          %v827 = vsub.f32 %v462, %v758
          %v828 = vsub.f32 %v463, %v758
          %v829 = vsub.f32 %v464, %v758
          %v830 = vsub.f32 %v465, %v759
          %v831 = vsub.f32 %v466, %v759
          %v832 = vsub.f32 %v467, %v759
          %v833 = vsub.f32 %v468, %v759
          %v834 = vsub.f32 %v469, %v759
          %v835 = vsub.f32 %v470, %v759
          %v836 = vsub.f32 %v471, %v760
          %v837 = vsub.f32 %v472, %v760
          %v838 = vsub.f32 %v473, %v760
          %v839 = vsub.f32 %v474, %v760
          %v840 = vsub.f32 %v475, %v760
          %v841 = vsub.f32 %v476, %v760
          %v842 = vsub.f32 %v477, %v761
          %v843 = vsub.f32 %v478, %v761
          %v844 = vsub.f32 %v479, %v761
          %v845 = vsub.f32 %v480, %v761
          %v846 = vsub.f32 %v481, %v761
          %v847 = vsub.f32 %v482, %v761
          %v848 = vsub.f32 %v483, %v762
          %v849 = vsub.f32 %v484, %v762
          %v850 = vsub.f32 %v485, %v762
          %v851 = vsub.f32 %v486, %v762
          %v852 = vsub.f32 %v487, %v762
          %v853 = vsub.f32 %v488, %v762
          %v854 = vsub.f32 %v489, %v763
          %v855 = vsub.f32 %v490, %v763
          %v856 = vsub.f32 %v491, %v763
          %v857 = vsub.f32 %v492, %v763
          %v858 = vsub.f32 %v493, %v763
          %v859 = vsub.f32 %v494, %v763
          %v860 = vsub.f32 %v495, %v764
          %v861 = vsub.f32 %v496, %v764
          %v862 = vsub.f32 %v497, %v764
          %v863 = vsub.f32 %v498, %v764
          %v864 = vsub.f32 %v499, %v764
          %v865 = vsub.f32 %v500, %v764
          %v866 = vsub.f32 %v501, %v765
          %v867 = vsub.f32 %v502, %v765
          %v868 = vsub.f32 %v503, %v765
          %v869 = vsub.f32 %v504, %v765
          %v870 = vsub.f32 %v505, %v765
          %v871 = vsub.f32 %v506, %v765
          %v872 = vsub.f32 %v507, %v766
          %v873 = vsub.f32 %v508, %v766
          %v874 = vsub.f32 %v509, %v766
          %v875 = vsub.f32 %v510, %v766
          %v876 = vsub.f32 %v511, %v766
          %v877 = vsub.f32 %v512, %v766
          %v878 = vsub.f32 %v513, %v767
          %v879 = vsub.f32 %v514, %v767
          %v880 = vsub.f32 %v515, %v767
          %v881 = vsub.f32 %v516, %v767
          %v882 = vsub.f32 %v517, %v767
          %v883 = vsub.f32 %v518, %v767
          %v884 = vsub.f32 %v519, %v768
          %v885 = vsub.f32 %v520, %v768
          %v886 = vsub.f32 %v521, %v768
          %v887 = vsub.f32 %v522, %v768
          %v888 = vsub.f32 %v523, %v768
          %v889 = vsub.f32 %v524, %v768
          %v890 = vsub.f32 %v525, %v769
          %v891 = vsub.f32 %v526, %v769
          %v892 = vsub.f32 %v527, %v769
          %v893 = vsub.f32 %v528, %v769
          %v894 = vsub.f32 %v529, %v769
          %v895 = vsub.f32 %v530, %v769
          %v896 = vsub.f32 %v531, %v770
          %v897 = vsub.f32 %v532, %v770
          %v898 = vsub.f32 %v533, %v770
          %v899 = vsub.f32 %v534, %v770
          %v900 = vsub.f32 %v535, %v770
          %v901 = vsub.f32 %v536, %v770
          %v902 = vsub.f32 %v537, %v771
          %v903 = vsub.f32 %v538, %v771
          %v904 = vsub.f32 %v539, %v771
          %v905 = vsub.f32 %v540, %v771
          %v906 = vsub.f32 %v541, %v771
          %v907 = vsub.f32 %v542, %v771
          %v908 = vsub.f32 %v543, %v772
          %v909 = vsub.f32 %v544, %v772
          %v910 = vsub.f32 %v545, %v772
          %v911 = vsub.f32 %v546, %v772
          %v912 = vsub.f32 %v547, %v772
          %v913 = vsub.f32 %v548, %v772
          %v914 = vsub.f32 %v549, %v773
          %v915 = vsub.f32 %v550, %v773
          %v916 = vsub.f32 %v551, %v773
          %v917 = vsub.f32 %v552, %v773
          %v918 = vsub.f32 %v553, %v773
          %v919 = vsub.f32 %v554, %v773
          %v920 = vsub.f32 %v555, %v774
          %v921 = vsub.f32 %v556, %v774
          %v922 = vsub.f32 %v557, %v774
          %v923 = vsub.f32 %v558, %v774
          %v924 = vsub.f32 %v559, %v774
          %v925 = vsub.f32 %v560, %v774
          %v926 = vsub.f32 %v561, %v775
          %v927 = vsub.f32 %v562, %v775
          %v928 = vsub.f32 %v563, %v775
          %v929 = vsub.f32 %v564, %v775
          %v930 = vsub.f32 %v565, %v775
          %v931 = vsub.f32 %v566, %v775
          %v932 = vmul.f32 %v776, %v776
          %v933 = vmul.f32 %v777, %v777
          %v934 = vmul.f32 %v778, %v778
          %v935 = vmul.f32 %v779, %v779
          %v936 = vmul.f32 %v780, %v780
          %v937 = vmul.f32 %v781, %v781
          %v938 = vmul.f32 %v782, %v782
          %v939 = vmul.f32 %v783, %v783
          %v940 = vmul.f32 %v784, %v784
          %v941 = vmul.f32 %v785, %v785
          %v942 = vmul.f32 %v786, %v786
          %v943 = vmul.f32 %v787, %v787
          %v944 = vmul.f32 %v788, %v788
          %v945 = vmul.f32 %v789, %v789
          %v946 = vmul.f32 %v790, %v790
          %v947 = vmul.f32 %v791, %v791
          %v948 = vmul.f32 %v792, %v792
          %v949 = vmul.f32 %v793, %v793
          %v950 = vmul.f32 %v794, %v794
          %v951 = vmul.f32 %v795, %v795
          %v952 = vmul.f32 %v796, %v796
          %v953 = vmul.f32 %v797, %v797
          %v954 = vmul.f32 %v798, %v798
          %v955 = vmul.f32 %v799, %v799
          %v956 = vmul.f32 %v800, %v800
          %v957 = vmul.f32 %v801, %v801
          %v958 = vmul.f32 %v802, %v802
          %v959 = vmul.f32 %v803, %v803
          %v960 = vmul.f32 %v804, %v804
          %v961 = vmul.f32 %v805, %v805
          %v962 = vmul.f32 %v806, %v806
          %v963 = vmul.f32 %v807, %v807
          %v964 = vmul.f32 %v808, %v808
          %v965 = vmul.f32 %v809, %v809
          %v966 = vmul.f32 %v810, %v810
          %v967 = vmul.f32 %v811, %v811
          %v968 = vmul.f32 %v812, %v812
          %v969 = vmul.f32 %v813, %v813
          %v970 = vmul.f32 %v814, %v814
          %v971 = vmul.f32 %v815, %v815
          %v972 = vmul.f32 %v816, %v816
          %v973 = vmul.f32 %v817, %v817
          %v974 = vmul.f32 %v818, %v818
          %v975 = vmul.f32 %v819, %v819
          %v976 = vmul.f32 %v820, %v820
          %v977 = vmul.f32 %v821, %v821
          %v978 = vmul.f32 %v822, %v822
          %v979 = vmul.f32 %v823, %v823
          %v980 = vmul.f32 %v824, %v824
          %v981 = vmul.f32 %v825, %v825
          %v982 = vmul.f32 %v826, %v826
          %v983 = vmul.f32 %v827, %v827
          %v984 = vmul.f32 %v828, %v828
          %v985 = vmul.f32 %v829, %v829
          %v986 = vmul.f32 %v830, %v830
          %v987 = vmul.f32 %v831, %v831
          %v988 = vmul.f32 %v832, %v832
          %v989 = vmul.f32 %v833, %v833
          %v990 = vmul.f32 %v834, %v834
          %v991 = vmul.f32 %v835, %v835
          %v992 = vmul.f32 %v836, %v836
          %v993 = vmul.f32 %v837, %v837
          %v994 = vmul.f32 %v838, %v838
          %v995 = vmul.f32 %v839, %v839
          %v996 = vmul.f32 %v840, %v840
          %v997 = vmul.f32 %v841, %v841
          %v998 = vmul.f32 %v842, %v842
          %v999 = vmul.f32 %v843, %v843
          %v1000 = vmul.f32 %v844, %v844
          %v1001 = vmul.f32 %v845, %v845
          %v1002 = vmul.f32 %v846, %v846
          %v1003 = vmul.f32 %v847, %v847
          %v1004 = vmul.f32 %v848, %v848
          %v1005 = vmul.f32 %v849, %v849
          %v1006 = vmul.f32 %v850, %v850
          %v1007 = vmul.f32 %v851, %v851
          %v1008 = vmul.f32 %v852, %v852
          %v1009 = vmul.f32 %v853, %v853
          %v1010 = vmul.f32 %v854, %v854
          %v1011 = vmul.f32 %v855, %v855
          %v1012 = vmul.f32 %v856, %v856
          %v1013 = vmul.f32 %v857, %v857
          %v1014 = vmul.f32 %v858, %v858
          %v1015 = vmul.f32 %v859, %v859
          %v1016 = vmul.f32 %v860, %v860
          %v1017 = vmul.f32 %v861, %v861
          %v1018 = vmul.f32 %v862, %v862
          %v1019 = vmul.f32 %v863, %v863
          %v1020 = vmul.f32 %v864, %v864
          %v1021 = vmul.f32 %v865, %v865
          %v1022 = vmul.f32 %v866, %v866
          %v1023 = vmul.f32 %v867, %v867
          %v1024 = vmul.f32 %v868, %v868
          %v1025 = vmul.f32 %v869, %v869
          %v1026 = vmul.f32 %v870, %v870
          %v1027 = vmul.f32 %v871, %v871
          %v1028 = vmul.f32 %v872, %v872
          %v1029 = vmul.f32 %v873, %v873
          %v1030 = vmul.f32 %v874, %v874
          %v1031 = vmul.f32 %v875, %v875
          %v1032 = vmul.f32 %v876, %v876
          %v1033 = vmul.f32 %v877, %v877
          %v1034 = vmul.f32 %v878, %v878
          %v1035 = vmul.f32 %v879, %v879
          %v1036 = vmul.f32 %v880, %v880
          %v1037 = vmul.f32 %v881, %v881
          %v1038 = vmul.f32 %v882, %v882
          %v1039 = vmul.f32 %v883, %v883
          %v1040 = vmul.f32 %v884, %v884
          %v1041 = vmul.f32 %v885, %v885
          %v1042 = vmul.f32 %v886, %v886
          %v1043 = vmul.f32 %v887, %v887
          %v1044 = vmul.f32 %v888, %v888
          %v1045 = vmul.f32 %v889, %v889
          %v1046 = vmul.f32 %v890, %v890
          %v1047 = vmul.f32 %v891, %v891
          %v1048 = vmul.f32 %v892, %v892
          %v1049 = vmul.f32 %v893, %v893
          %v1050 = vmul.f32 %v894, %v894
          %v1051 = vmul.f32 %v895, %v895
          %v1052 = vmul.f32 %v896, %v896
          %v1053 = vmul.f32 %v897, %v897
          %v1054 = vmul.f32 %v898, %v898
          %v1055 = vmul.f32 %v899, %v899
          %v1056 = vmul.f32 %v900, %v900
          %v1057 = vmul.f32 %v901, %v901
          %v1058 = vmul.f32 %v902, %v902
          %v1059 = vmul.f32 %v903, %v903
          %v1060 = vmul.f32 %v904, %v904
          %v1061 = vmul.f32 %v905, %v905
          %v1062 = vmul.f32 %v906, %v906
          %v1063 = vmul.f32 %v907, %v907
          %v1064 = vmul.f32 %v908, %v908
          %v1065 = vmul.f32 %v909, %v909
          %v1066 = vmul.f32 %v910, %v910
          %v1067 = vmul.f32 %v911, %v911
          %v1068 = vmul.f32 %v912, %v912
          %v1069 = vmul.f32 %v913, %v913
          %v1070 = vmul.f32 %v914, %v914
          %v1071 = vmul.f32 %v915, %v915
          %v1072 = vmul.f32 %v916, %v916
          %v1073 = vmul.f32 %v917, %v917
          %v1074 = vmul.f32 %v918, %v918
          %v1075 = vmul.f32 %v919, %v919
          %v1076 = vmul.f32 %v920, %v920
          %v1077 = vmul.f32 %v921, %v921
          %v1078 = vmul.f32 %v922, %v922
          %v1079 = vmul.f32 %v923, %v923
          %v1080 = vmul.f32 %v924, %v924
          %v1081 = vmul.f32 %v925, %v925
          %v1082 = vmul.f32 %v926, %v926
          %v1083 = vmul.f32 %v927, %v927
          %v1084 = vmul.f32 %v928, %v928
          %v1085 = vmul.f32 %v929, %v929
          %v1086 = vmul.f32 %v930, %v930
          %v1087 = vmul.f32 %v931, %v931
          %v1088 = vadd.f32 %v932, %v933
          %v1089 = vadd.f32 %v1088, %v934
          %v1090 = vadd.f32 %v1089, %v935
          %v1091 = vadd.f32 %v1090, %v936
          %v1092 = vadd.f32 %v1091, %v937
          %1093 = vadd.xlane.f32.xlu0 %v1092
          %v1094 = vpop.xlane.xlu0 %1093
          %v1095 = vadd.f32 %v938, %v939
          %v1096 = vadd.f32 %v1095, %v940
          %v1097 = vadd.f32 %v1096, %v941
          %v1098 = vadd.f32 %v1097, %v942
          %v1099 = vadd.f32 %v1098, %v943
          %1100 = vadd.xlane.f32.xlu0 %v1099
          %v1101 = vpop.xlane.xlu0 %1100
          %v1102 = vadd.f32 %v944, %v945
          %v1103 = vadd.f32 %v1102, %v946
          %v1104 = vadd.f32 %v1103, %v947
          %v1105 = vadd.f32 %v1104, %v948
          %v1106 = vadd.f32 %v1105, %v949
          %1107 = vadd.xlane.f32.xlu0 %v1106
          %v1108 = vpop.xlane.xlu0 %1107
          %v1109 = vadd.f32 %v950, %v951
          %v1110 = vadd.f32 %v1109, %v952
          %v1111 = vadd.f32 %v1110, %v953
          %v1112 = vadd.f32 %v1111, %v954
          %v1113 = vadd.f32 %v1112, %v955
          %1114 = vadd.xlane.f32.xlu0 %v1113
          %v1115 = vpop.xlane.xlu0 %1114
          %v1116 = vadd.f32 %v956, %v957
          %v1117 = vadd.f32 %v1116, %v958
          %v1118 = vadd.f32 %v1117, %v959
          %v1119 = vadd.f32 %v1118, %v960
          %v1120 = vadd.f32 %v1119, %v961
          %1121 = vadd.xlane.f32.xlu0 %v1120
          %v1122 = vpop.xlane.xlu0 %1121
          %v1123 = vadd.f32 %v962, %v963
          %v1124 = vadd.f32 %v1123, %v964
          %v1125 = vadd.f32 %v1124, %v965
          %v1126 = vadd.f32 %v1125, %v966
          %v1127 = vadd.f32 %v1126, %v967
          %1128 = vadd.xlane.f32.xlu0 %v1127
          %v1129 = vpop.xlane.xlu0 %1128
          %v1130 = vadd.f32 %v968, %v969
          %v1131 = vadd.f32 %v1130, %v970
          %v1132 = vadd.f32 %v1131, %v971
          %v1133 = vadd.f32 %v1132, %v972
          %v1134 = vadd.f32 %v1133, %v973
          %1135 = vadd.xlane.f32.xlu0 %v1134
          %v1136 = vpop.xlane.xlu0 %1135
          %v1137 = vadd.f32 %v974, %v975
          %v1138 = vadd.f32 %v1137, %v976
          %v1139 = vadd.f32 %v1138, %v977
          %v1140 = vadd.f32 %v1139, %v978
          %v1141 = vadd.f32 %v1140, %v979
          %1142 = vadd.xlane.f32.xlu0 %v1141
          %v1143 = vpop.xlane.xlu0 %1142
          %v1144 = vadd.f32 %v980, %v981
          %v1145 = vadd.f32 %v1144, %v982
          %v1146 = vadd.f32 %v1145, %v983
          %v1147 = vadd.f32 %v1146, %v984
          %v1148 = vadd.f32 %v1147, %v985
          %1149 = vadd.xlane.f32.xlu0 %v1148
          %v1150 = vpop.xlane.xlu0 %1149
          %v1151 = vadd.f32 %v986, %v987
          %v1152 = vadd.f32 %v1151, %v988
          %v1153 = vadd.f32 %v1152, %v989
          %v1154 = vadd.f32 %v1153, %v990
          %v1155 = vadd.f32 %v1154, %v991
          %1156 = vadd.xlane.f32.xlu0 %v1155
          %v1157 = vpop.xlane.xlu0 %1156
          %v1158 = vadd.f32 %v992, %v993
          %v1159 = vadd.f32 %v1158, %v994
          %v1160 = vadd.f32 %v1159, %v995
          %v1161 = vadd.f32 %v1160, %v996
          %v1162 = vadd.f32 %v1161, %v997
          %1163 = vadd.xlane.f32.xlu0 %v1162
          %v1164 = vpop.xlane.xlu0 %1163
          %v1165 = vadd.f32 %v998, %v999
          %v1166 = vadd.f32 %v1165, %v1000
          %v1167 = vadd.f32 %v1166, %v1001
          %v1168 = vadd.f32 %v1167, %v1002
          %v1169 = vadd.f32 %v1168, %v1003
          %1170 = vadd.xlane.f32.xlu0 %v1169
          %v1171 = vpop.xlane.xlu0 %1170
          %v1172 = vadd.f32 %v1004, %v1005
          %v1173 = vadd.f32 %v1172, %v1006
          %v1174 = vadd.f32 %v1173, %v1007
          %v1175 = vadd.f32 %v1174, %v1008
          %v1176 = vadd.f32 %v1175, %v1009
          %1177 = vadd.xlane.f32.xlu0 %v1176
          %v1178 = vpop.xlane.xlu0 %1177
          %v1179 = vadd.f32 %v1010, %v1011
          %v1180 = vadd.f32 %v1179, %v1012
          %v1181 = vadd.f32 %v1180, %v1013
          %v1182 = vadd.f32 %v1181, %v1014
          %v1183 = vadd.f32 %v1182, %v1015
          %1184 = vadd.xlane.f32.xlu0 %v1183
          %v1185 = vpop.xlane.xlu0 %1184
          %v1186 = vadd.f32 %v1016, %v1017
          %v1187 = vadd.f32 %v1186, %v1018
          %v1188 = vadd.f32 %v1187, %v1019
          %v1189 = vadd.f32 %v1188, %v1020
          %v1190 = vadd.f32 %v1189, %v1021
          %1191 = vadd.xlane.f32.xlu0 %v1190
          %v1192 = vpop.xlane.xlu0 %1191
          %v1193 = vadd.f32 %v1022, %v1023
          %v1194 = vadd.f32 %v1193, %v1024
          %v1195 = vadd.f32 %v1194, %v1025
          %v1196 = vadd.f32 %v1195, %v1026
          %v1197 = vadd.f32 %v1196, %v1027
          %1198 = vadd.xlane.f32.xlu0 %v1197
          %v1199 = vpop.xlane.xlu0 %1198
          %v1200 = vadd.f32 %v1028, %v1029
          %v1201 = vadd.f32 %v1200, %v1030
          %v1202 = vadd.f32 %v1201, %v1031
          %v1203 = vadd.f32 %v1202, %v1032
          %v1204 = vadd.f32 %v1203, %v1033
          %1205 = vadd.xlane.f32.xlu0 %v1204
          %v1206 = vpop.xlane.xlu0 %1205
          %v1207 = vadd.f32 %v1034, %v1035
          %v1208 = vadd.f32 %v1207, %v1036
          %v1209 = vadd.f32 %v1208, %v1037
          %v1210 = vadd.f32 %v1209, %v1038
          %v1211 = vadd.f32 %v1210, %v1039
          %1212 = vadd.xlane.f32.xlu0 %v1211
          %v1213 = vpop.xlane.xlu0 %1212
          %v1214 = vadd.f32 %v1040, %v1041
          %v1215 = vadd.f32 %v1214, %v1042
          %v1216 = vadd.f32 %v1215, %v1043
          %v1217 = vadd.f32 %v1216, %v1044
          %v1218 = vadd.f32 %v1217, %v1045
          %1219 = vadd.xlane.f32.xlu0 %v1218
          %v1220 = vpop.xlane.xlu0 %1219
          %v1221 = vadd.f32 %v1046, %v1047
          %v1222 = vadd.f32 %v1221, %v1048
          %v1223 = vadd.f32 %v1222, %v1049
          %v1224 = vadd.f32 %v1223, %v1050
          %v1225 = vadd.f32 %v1224, %v1051
          %1226 = vadd.xlane.f32.xlu0 %v1225
          %v1227 = vpop.xlane.xlu0 %1226
          %v1228 = vadd.f32 %v1052, %v1053
          %v1229 = vadd.f32 %v1228, %v1054
          %v1230 = vadd.f32 %v1229, %v1055
          %v1231 = vadd.f32 %v1230, %v1056
          %v1232 = vadd.f32 %v1231, %v1057
          %1233 = vadd.xlane.f32.xlu0 %v1232
          %v1234 = vpop.xlane.xlu0 %1233
          %v1235 = vadd.f32 %v1058, %v1059
          %v1236 = vadd.f32 %v1235, %v1060
          %v1237 = vadd.f32 %v1236, %v1061
          %v1238 = vadd.f32 %v1237, %v1062
          %v1239 = vadd.f32 %v1238, %v1063
          %1240 = vadd.xlane.f32.xlu0 %v1239
          %v1241 = vpop.xlane.xlu0 %1240
          %v1242 = vadd.f32 %v1064, %v1065
          %v1243 = vadd.f32 %v1242, %v1066
          %v1244 = vadd.f32 %v1243, %v1067
          %v1245 = vadd.f32 %v1244, %v1068
          %v1246 = vadd.f32 %v1245, %v1069
          %1247 = vadd.xlane.f32.xlu0 %v1246
          %v1248 = vpop.xlane.xlu0 %1247
          %v1249 = vadd.f32 %v1070, %v1071
          %v1250 = vadd.f32 %v1249, %v1072
          %v1251 = vadd.f32 %v1250, %v1073
          %v1252 = vadd.f32 %v1251, %v1074
          %v1253 = vadd.f32 %v1252, %v1075
          %1254 = vadd.xlane.f32.xlu0 %v1253
          %v1255 = vpop.xlane.xlu0 %1254
          %v1256 = vadd.f32 %v1076, %v1077
          %v1257 = vadd.f32 %v1256, %v1078
          %v1258 = vadd.f32 %v1257, %v1079
          %v1259 = vadd.f32 %v1258, %v1080
          %v1260 = vadd.f32 %v1259, %v1081
          %1261 = vadd.xlane.f32.xlu0 %v1260
          %v1262 = vpop.xlane.xlu0 %1261
          %v1263 = vadd.f32 %v1082, %v1083
          %v1264 = vadd.f32 %v1263, %v1084
          %v1265 = vadd.f32 %v1264, %v1085
          %v1266 = vadd.f32 %v1265, %v1086
          %v1267 = vadd.f32 %v1266, %v1087
          %1268 = vadd.xlane.f32.xlu0 %v1267
          %v1269 = vpop.xlane.xlu0 %1268
          %v1270 = vmul.f32 %v1094, %v749
          %v1271 = vmul.f32 %v1101, %v749
          %v1272 = vmul.f32 %v1108, %v749
          %v1273 = vmul.f32 %v1115, %v749
          %v1274 = vmul.f32 %v1122, %v749
          %v1275 = vmul.f32 %v1129, %v749
          %v1276 = vmul.f32 %v1136, %v749
          %v1277 = vmul.f32 %v1143, %v749
          %v1278 = vmul.f32 %v1150, %v749
          %v1279 = vmul.f32 %v1157, %v749
          %v1280 = vmul.f32 %v1164, %v749
          %v1281 = vmul.f32 %v1171, %v749
          %v1282 = vmul.f32 %v1178, %v749
          %v1283 = vmul.f32 %v1185, %v749
          %v1284 = vmul.f32 %v1192, %v749
          %v1285 = vmul.f32 %v1199, %v749
          %v1286 = vmul.f32 %v1206, %v749
          %v1287 = vmul.f32 %v1213, %v749
          %v1288 = vmul.f32 %v1220, %v749
          %v1289 = vmul.f32 %v1227, %v749
          %v1290 = vmul.f32 %v1234, %v749
          %v1291 = vmul.f32 %v1241, %v749
          %v1292 = vmul.f32 %v1248, %v749
          %v1293 = vmul.f32 %v1255, %v749
          %v1294 = vmul.f32 %v1262, %v749
          %v1295 = vmul.f32 %v1269, %v749
          %v1296 = vadd.f32 %v1270, 1e-06
          %v1297 = vadd.f32 %v1271, 1e-06
          %v1298 = vadd.f32 %v1272, 1e-06
          %v1299 = vadd.f32 %v1273, 1e-06
          %v1300 = vadd.f32 %v1274, 1e-06
          %v1301 = vadd.f32 %v1275, 1e-06
          %v1302 = vadd.f32 %v1276, 1e-06
          %v1303 = vadd.f32 %v1277, 1e-06
          %v1304 = vadd.f32 %v1278, 1e-06
          %v1305 = vadd.f32 %v1279, 1e-06
          %v1306 = vadd.f32 %v1280, 1e-06
          %v1307 = vadd.f32 %v1281, 1e-06
          %v1308 = vadd.f32 %v1282, 1e-06
          %v1309 = vadd.f32 %v1283, 1e-06
          %v1310 = vadd.f32 %v1284, 1e-06
          %v1311 = vadd.f32 %v1285, 1e-06
          %v1312 = vadd.f32 %v1286, 1e-06
          %v1313 = vadd.f32 %v1287, 1e-06
          %v1314 = vadd.f32 %v1288, 1e-06
          %v1315 = vadd.f32 %v1289, 1e-06
          %v1316 = vadd.f32 %v1290, 1e-06
          %v1317 = vadd.f32 %v1291, 1e-06
          %v1318 = vadd.f32 %v1292, 1e-06
          %v1319 = vadd.f32 %v1293, 1e-06
          %v1320 = vadd.f32 %v1294, 1e-06
          %v1321 = vadd.f32 %v1295, 1e-06
          %v1322 = vrsqrt.pop %v1296
          %v1323 = vrsqrt.pop %v1297
          %v1324 = vrsqrt.pop %v1298
          %v1325 = vrsqrt.pop %v1299
          %v1326 = vrsqrt.pop %v1300
          %v1327 = vrsqrt.pop %v1301
          %v1328 = vrsqrt.pop %v1302
          %v1329 = vrsqrt.pop %v1303
          %v1330 = vrsqrt.pop %v1304
          %v1331 = vrsqrt.pop %v1305
          %v1332 = vrsqrt.pop %v1306
          %v1333 = vrsqrt.pop %v1307
          %v1334 = vrsqrt.pop %v1308
          %v1335 = vrsqrt.pop %v1309
          %v1336 = vrsqrt.pop %v1310
          %v1337 = vrsqrt.pop %v1311
          %v1338 = vrsqrt.pop %v1312
          %v1339 = vrsqrt.pop %v1313
          %v1340 = vrsqrt.pop %v1314
          %v1341 = vrsqrt.pop %v1315
          %v1342 = vrsqrt.pop %v1316
          %v1343 = vrsqrt.pop %v1317
          %v1344 = vrsqrt.pop %v1318
          %v1345 = vrsqrt.pop %v1319
          %v1346 = vrsqrt.pop %v1320
          %v1347 = vrsqrt.pop %v1321
          %v1348 = vmul.f32 %v776, %v1322
          %v1349 = vmul.f32 %v777, %v1322
          %v1350 = vmul.f32 %v778, %v1322
          %v1351 = vmul.f32 %v779, %v1322
          %v1352 = vmul.f32 %v780, %v1322
          %v1353 = vmul.f32 %v781, %v1322
          %v1354 = vmul.f32 %v782, %v1323
          %v1355 = vmul.f32 %v783, %v1323
          %v1356 = vmul.f32 %v784, %v1323
          %v1357 = vmul.f32 %v785, %v1323
          %v1358 = vmul.f32 %v786, %v1323
          %v1359 = vmul.f32 %v787, %v1323
          %v1360 = vmul.f32 %v788, %v1324
          %v1361 = vmul.f32 %v789, %v1324
          %v1362 = vmul.f32 %v790, %v1324
          %v1363 = vmul.f32 %v791, %v1324
          %v1364 = vmul.f32 %v792, %v1324
          %v1365 = vmul.f32 %v793, %v1324
          %v1366 = vmul.f32 %v794, %v1325
          %v1367 = vmul.f32 %v795, %v1325
          %v1368 = vmul.f32 %v796, %v1325
          %v1369 = vmul.f32 %v797, %v1325
          %v1370 = vmul.f32 %v798, %v1325
          %v1371 = vmul.f32 %v799, %v1325
          %v1372 = vmul.f32 %v800, %v1326
          %v1373 = vmul.f32 %v801, %v1326
          %v1374 = vmul.f32 %v802, %v1326
          %v1375 = vmul.f32 %v803, %v1326
          %v1376 = vmul.f32 %v804, %v1326
          %v1377 = vmul.f32 %v805, %v1326
          %v1378 = vmul.f32 %v806, %v1327
          %v1379 = vmul.f32 %v807, %v1327
          %v1380 = vmul.f32 %v808, %v1327
          %v1381 = vmul.f32 %v809, %v1327
          %v1382 = vmul.f32 %v810, %v1327
          %v1383 = vmul.f32 %v811, %v1327
          %v1384 = vmul.f32 %v812, %v1328
          %v1385 = vmul.f32 %v813, %v1328
          %v1386 = vmul.f32 %v814, %v1328
          %v1387 = vmul.f32 %v815, %v1328
          %v1388 = vmul.f32 %v816, %v1328
          %v1389 = vmul.f32 %v817, %v1328
          %v1390 = vmul.f32 %v818, %v1329
          %v1391 = vmul.f32 %v819, %v1329
          %v1392 = vmul.f32 %v820, %v1329
          %v1393 = vmul.f32 %v821, %v1329
          %v1394 = vmul.f32 %v822, %v1329
          %v1395 = vmul.f32 %v823, %v1329
          %v1396 = vmul.f32 %v824, %v1330
          %v1397 = vmul.f32 %v825, %v1330
          %v1398 = vmul.f32 %v826, %v1330
          %v1399 = vmul.f32 %v827, %v1330
          %v1400 = vmul.f32 %v828, %v1330
          %v1401 = vmul.f32 %v829, %v1330
          %v1402 = vmul.f32 %v830, %v1331
          %v1403 = vmul.f32 %v831, %v1331
          %v1404 = vmul.f32 %v832, %v1331
          %v1405 = vmul.f32 %v833, %v1331
          %v1406 = vmul.f32 %v834, %v1331
          %v1407 = vmul.f32 %v835, %v1331
          %v1408 = vmul.f32 %v836, %v1332
          %v1409 = vmul.f32 %v837, %v1332
          %v1410 = vmul.f32 %v838, %v1332
          %v1411 = vmul.f32 %v839, %v1332
          %v1412 = vmul.f32 %v840, %v1332
          %v1413 = vmul.f32 %v841, %v1332
          %v1414 = vmul.f32 %v842, %v1333
          %v1415 = vmul.f32 %v843, %v1333
          %v1416 = vmul.f32 %v844, %v1333
          %v1417 = vmul.f32 %v845, %v1333
          %v1418 = vmul.f32 %v846, %v1333
          %v1419 = vmul.f32 %v847, %v1333
          %v1420 = vmul.f32 %v848, %v1334
          %v1421 = vmul.f32 %v849, %v1334
          %v1422 = vmul.f32 %v850, %v1334
          %v1423 = vmul.f32 %v851, %v1334
          %v1424 = vmul.f32 %v852, %v1334
          %v1425 = vmul.f32 %v853, %v1334
          %v1426 = vmul.f32 %v854, %v1335
          %v1427 = vmul.f32 %v855, %v1335
          %v1428 = vmul.f32 %v856, %v1335
          %v1429 = vmul.f32 %v857, %v1335
          %v1430 = vmul.f32 %v858, %v1335
          %v1431 = vmul.f32 %v859, %v1335
          %v1432 = vmul.f32 %v860, %v1336
          %v1433 = vmul.f32 %v861, %v1336
          %v1434 = vmul.f32 %v862, %v1336
          %v1435 = vmul.f32 %v863, %v1336
          %v1436 = vmul.f32 %v864, %v1336
          %v1437 = vmul.f32 %v865, %v1336
          %v1438 = vmul.f32 %v866, %v1337
          %v1439 = vmul.f32 %v867, %v1337
          %v1440 = vmul.f32 %v868, %v1337
          %v1441 = vmul.f32 %v869, %v1337
          %v1442 = vmul.f32 %v870, %v1337
          %v1443 = vmul.f32 %v871, %v1337
          %v1444 = vmul.f32 %v872, %v1338
          %v1445 = vmul.f32 %v873, %v1338
          %v1446 = vmul.f32 %v874, %v1338
          %v1447 = vmul.f32 %v875, %v1338
          %v1448 = vmul.f32 %v876, %v1338
          %v1449 = vmul.f32 %v877, %v1338
          %v1450 = vmul.f32 %v878, %v1339
          %v1451 = vmul.f32 %v879, %v1339
          %v1452 = vmul.f32 %v880, %v1339
          %v1453 = vmul.f32 %v881, %v1339
          %v1454 = vmul.f32 %v882, %v1339
          %v1455 = vmul.f32 %v883, %v1339
          %v1456 = vmul.f32 %v884, %v1340
          %v1457 = vmul.f32 %v885, %v1340
          %v1458 = vmul.f32 %v886, %v1340
          %v1459 = vmul.f32 %v887, %v1340
          %v1460 = vmul.f32 %v888, %v1340
          %v1461 = vmul.f32 %v889, %v1340
          %v1462 = vmul.f32 %v890, %v1341
          %v1463 = vmul.f32 %v891, %v1341
          %v1464 = vmul.f32 %v892, %v1341
          %v1465 = vmul.f32 %v893, %v1341
          %v1466 = vmul.f32 %v894, %v1341
          %v1467 = vmul.f32 %v895, %v1341
          %v1468 = vmul.f32 %v896, %v1342
          %v1469 = vmul.f32 %v897, %v1342
          %v1470 = vmul.f32 %v898, %v1342
          %v1471 = vmul.f32 %v899, %v1342
          %v1472 = vmul.f32 %v900, %v1342
          %v1473 = vmul.f32 %v901, %v1342
          %v1474 = vmul.f32 %v902, %v1343
          %v1475 = vmul.f32 %v903, %v1343
          %v1476 = vmul.f32 %v904, %v1343
          %v1477 = vmul.f32 %v905, %v1343
          %v1478 = vmul.f32 %v906, %v1343
          %v1479 = vmul.f32 %v907, %v1343
          %v1480 = vmul.f32 %v908, %v1344
          %v1481 = vmul.f32 %v909, %v1344
          %v1482 = vmul.f32 %v910, %v1344
          %v1483 = vmul.f32 %v911, %v1344
          %v1484 = vmul.f32 %v912, %v1344
          %v1485 = vmul.f32 %v913, %v1344
          %v1486 = vmul.f32 %v914, %v1345
          %v1487 = vmul.f32 %v915, %v1345
          %v1488 = vmul.f32 %v916, %v1345
          %v1489 = vmul.f32 %v917, %v1345
          %v1490 = vmul.f32 %v918, %v1345
          %v1491 = vmul.f32 %v919, %v1345
          %v1492 = vmul.f32 %v920, %v1346
          %v1493 = vmul.f32 %v921, %v1346
          %v1494 = vmul.f32 %v922, %v1346
          %v1495 = vmul.f32 %v923, %v1346
          %v1496 = vmul.f32 %v924, %v1346
          %v1497 = vmul.f32 %v925, %v1346
          %v1498 = vmul.f32 %v926, %v1347
          %v1499 = vmul.f32 %v927, %v1347
          %v1500 = vmul.f32 %v928, %v1347
          %v1501 = vmul.f32 %v929, %v1347
          %v1502 = vmul.f32 %v930, %v1347
          %v1503 = vmul.f32 %v931, %v1347
          %v1504 = vld [vmem:[#allocation3] sm:$0x3f]
          %v1506 = vlaneseq
          %v1507 = vshrl.u32 %v1506, 7
          %v1508 = vsub.s32 0, %v1507
          %v1509 = vrot.slane %v1504, %v1508
          %v1510 = vlaneseq
          %v1511 = vshrl.u32 %v1510, 7
          %v1512 = vsub.s32 1, %v1511
          %v1513 = vrot.slane %v1504, %v1512
          %v1514 = vlaneseq
          %v1515 = vshrl.u32 %v1514, 7
          %v1516 = vsub.s32 2, %v1515
          %v1517 = vrot.slane %v1504, %v1516
          %v1518 = vlaneseq
          %v1519 = vshrl.u32 %v1518, 7
          %v1520 = vsub.s32 3, %v1519
          %v1521 = vrot.slane %v1504, %v1520
          %v1522 = vlaneseq
          %v1523 = vshrl.u32 %v1522, 7
          %v1524 = vsub.s32 4, %v1523
          %v1525 = vrot.slane %v1504, %v1524
          %v1526 = vlaneseq
          %v1527 = vshrl.u32 %v1526, 7
          %v1528 = vsub.s32 5, %v1527
          %v1529 = vrot.slane %v1504, %v1528
          %v1536 = vmul.f32 %v1348, %v1509
          %v1537 = vmul.f32 %v1349, %v1513
          %v1538 = vmul.f32 %v1350, %v1517
          %v1539 = vmul.f32 %v1351, %v1521
          %v1540 = vmul.f32 %v1352, %v1525
          %v1541 = vmul.f32 %v1353, %v1529
          %v1542 = vmul.f32 %v1354, %v1509
          %v1543 = vmul.f32 %v1355, %v1513
          %v1544 = vmul.f32 %v1356, %v1517
          %v1545 = vmul.f32 %v1357, %v1521
          %v1546 = vmul.f32 %v1358, %v1525
          %v1547 = vmul.f32 %v1359, %v1529
          %v1548 = vmul.f32 %v1360, %v1509
          %v1549 = vmul.f32 %v1361, %v1513
          %v1550 = vmul.f32 %v1362, %v1517
          %v1551 = vmul.f32 %v1363, %v1521
          %v1552 = vmul.f32 %v1364, %v1525
          %v1553 = vmul.f32 %v1365, %v1529
          %v1554 = vmul.f32 %v1366, %v1509
          %v1555 = vmul.f32 %v1367, %v1513
          %v1556 = vmul.f32 %v1368, %v1517
          %v1557 = vmul.f32 %v1369, %v1521
          %v1558 = vmul.f32 %v1370, %v1525
          %v1559 = vmul.f32 %v1371, %v1529
          %v1560 = vmul.f32 %v1372, %v1509
          %v1561 = vmul.f32 %v1373, %v1513
          %v1562 = vmul.f32 %v1374, %v1517
          %v1563 = vmul.f32 %v1375, %v1521
          %v1564 = vmul.f32 %v1376, %v1525
          %v1565 = vmul.f32 %v1377, %v1529
          %v1566 = vmul.f32 %v1378, %v1509
          %v1567 = vmul.f32 %v1379, %v1513
          %v1568 = vmul.f32 %v1380, %v1517
          %v1569 = vmul.f32 %v1381, %v1521
          %v1570 = vmul.f32 %v1382, %v1525
          %v1571 = vmul.f32 %v1383, %v1529
          %v1572 = vmul.f32 %v1384, %v1509
          %v1573 = vmul.f32 %v1385, %v1513
          %v1574 = vmul.f32 %v1386, %v1517
          %v1575 = vmul.f32 %v1387, %v1521
          %v1576 = vmul.f32 %v1388, %v1525
          %v1577 = vmul.f32 %v1389, %v1529
          %v1578 = vmul.f32 %v1390, %v1509
          %v1579 = vmul.f32 %v1391, %v1513
          %v1580 = vmul.f32 %v1392, %v1517
          %v1581 = vmul.f32 %v1393, %v1521
          %v1582 = vmul.f32 %v1394, %v1525
          %v1583 = vmul.f32 %v1395, %v1529
          %v1584 = vmul.f32 %v1396, %v1509
          %v1585 = vmul.f32 %v1397, %v1513
          %v1586 = vmul.f32 %v1398, %v1517
          %v1587 = vmul.f32 %v1399, %v1521
          %v1588 = vmul.f32 %v1400, %v1525
          %v1589 = vmul.f32 %v1401, %v1529
          %v1590 = vmul.f32 %v1402, %v1509
          %v1591 = vmul.f32 %v1403, %v1513
          %v1592 = vmul.f32 %v1404, %v1517
          %v1593 = vmul.f32 %v1405, %v1521
          %v1594 = vmul.f32 %v1406, %v1525
          %v1595 = vmul.f32 %v1407, %v1529
          %v1596 = vmul.f32 %v1408, %v1509
          %v1597 = vmul.f32 %v1409, %v1513
          %v1598 = vmul.f32 %v1410, %v1517
          %v1599 = vmul.f32 %v1411, %v1521
          %v1600 = vmul.f32 %v1412, %v1525
          %v1601 = vmul.f32 %v1413, %v1529
          %v1602 = vmul.f32 %v1414, %v1509
          %v1603 = vmul.f32 %v1415, %v1513
          %v1604 = vmul.f32 %v1416, %v1517
          %v1605 = vmul.f32 %v1417, %v1521
          %v1606 = vmul.f32 %v1418, %v1525
          %v1607 = vmul.f32 %v1419, %v1529
          %v1608 = vmul.f32 %v1420, %v1509
          %v1609 = vmul.f32 %v1421, %v1513
          %v1610 = vmul.f32 %v1422, %v1517
          %v1611 = vmul.f32 %v1423, %v1521
          %v1612 = vmul.f32 %v1424, %v1525
          %v1613 = vmul.f32 %v1425, %v1529
          %v1614 = vmul.f32 %v1426, %v1509
          %v1615 = vmul.f32 %v1427, %v1513
          %v1616 = vmul.f32 %v1428, %v1517
          %v1617 = vmul.f32 %v1429, %v1521
          %v1618 = vmul.f32 %v1430, %v1525
          %v1619 = vmul.f32 %v1431, %v1529
          %v1620 = vmul.f32 %v1432, %v1509
          %v1621 = vmul.f32 %v1433, %v1513
          %v1622 = vmul.f32 %v1434, %v1517
          %v1623 = vmul.f32 %v1435, %v1521
          %v1624 = vmul.f32 %v1436, %v1525
          %v1625 = vmul.f32 %v1437, %v1529
          %v1626 = vmul.f32 %v1438, %v1509
          %v1627 = vmul.f32 %v1439, %v1513
          %v1628 = vmul.f32 %v1440, %v1517
          %v1629 = vmul.f32 %v1441, %v1521
          %v1630 = vmul.f32 %v1442, %v1525
          %v1631 = vmul.f32 %v1443, %v1529
          %v1632 = vmul.f32 %v1444, %v1509
          %v1633 = vmul.f32 %v1445, %v1513
          %v1634 = vmul.f32 %v1446, %v1517
          %v1635 = vmul.f32 %v1447, %v1521
          %v1636 = vmul.f32 %v1448, %v1525
          %v1637 = vmul.f32 %v1449, %v1529
          %v1638 = vmul.f32 %v1450, %v1509
          %v1639 = vmul.f32 %v1451, %v1513
          %v1640 = vmul.f32 %v1452, %v1517
          %v1641 = vmul.f32 %v1453, %v1521
          %v1642 = vmul.f32 %v1454, %v1525
          %v1643 = vmul.f32 %v1455, %v1529
          %v1644 = vmul.f32 %v1456, %v1509
          %v1645 = vmul.f32 %v1457, %v1513
          %v1646 = vmul.f32 %v1458, %v1517
          %v1647 = vmul.f32 %v1459, %v1521
          %v1648 = vmul.f32 %v1460, %v1525
          %v1649 = vmul.f32 %v1461, %v1529
          %v1650 = vmul.f32 %v1462, %v1509
          %v1651 = vmul.f32 %v1463, %v1513
          %v1652 = vmul.f32 %v1464, %v1517
          %v1653 = vmul.f32 %v1465, %v1521
          %v1654 = vmul.f32 %v1466, %v1525
          %v1655 = vmul.f32 %v1467, %v1529
          %v1656 = vmul.f32 %v1468, %v1509
          %v1657 = vmul.f32 %v1469, %v1513
          %v1658 = vmul.f32 %v1470, %v1517
          %v1659 = vmul.f32 %v1471, %v1521
          %v1660 = vmul.f32 %v1472, %v1525
          %v1661 = vmul.f32 %v1473, %v1529
          %v1662 = vmul.f32 %v1474, %v1509
          %v1663 = vmul.f32 %v1475, %v1513
          %v1664 = vmul.f32 %v1476, %v1517
          %v1665 = vmul.f32 %v1477, %v1521
          %v1666 = vmul.f32 %v1478, %v1525
          %v1667 = vmul.f32 %v1479, %v1529
          %v1668 = vmul.f32 %v1480, %v1509
          %v1669 = vmul.f32 %v1481, %v1513
          %v1670 = vmul.f32 %v1482, %v1517
          %v1671 = vmul.f32 %v1483, %v1521
          %v1672 = vmul.f32 %v1484, %v1525
          %v1673 = vmul.f32 %v1485, %v1529
          %v1674 = vmul.f32 %v1486, %v1509
          %v1675 = vmul.f32 %v1487, %v1513
          %v1676 = vmul.f32 %v1488, %v1517
          %v1677 = vmul.f32 %v1489, %v1521
          %v1678 = vmul.f32 %v1490, %v1525
          %v1679 = vmul.f32 %v1491, %v1529
          %v1680 = vmul.f32 %v1492, %v1509
          %v1681 = vmul.f32 %v1493, %v1513
          %v1682 = vmul.f32 %v1494, %v1517
          %v1683 = vmul.f32 %v1495, %v1521
          %v1684 = vmul.f32 %v1496, %v1525
          %v1685 = vmul.f32 %v1497, %v1529
          %v1686 = vmul.f32 %v1498, %v1509
          %v1687 = vmul.f32 %v1499, %v1513
          %v1688 = vmul.f32 %v1500, %v1517
          %v1689 = vmul.f32 %v1501, %v1521
          %v1690 = vmul.f32 %v1502, %v1525
          %v1691 = vmul.f32 %v1503, %v1529
          %v1692 = vld [vmem:[#allocation5] sm:$0x3f]
          %v1694 = vlaneseq
          %v1695 = vshrl.u32 %v1694, 7
          %v1696 = vsub.s32 0, %v1695
          %v1697 = vrot.slane %v1692, %v1696
          %v1698 = vlaneseq
          %v1699 = vshrl.u32 %v1698, 7
          %v1700 = vsub.s32 1, %v1699
          %v1701 = vrot.slane %v1692, %v1700
          %v1702 = vlaneseq
          %v1703 = vshrl.u32 %v1702, 7
          %v1704 = vsub.s32 2, %v1703
          %v1705 = vrot.slane %v1692, %v1704
          %v1706 = vlaneseq
          %v1707 = vshrl.u32 %v1706, 7
          %v1708 = vsub.s32 3, %v1707
          %v1709 = vrot.slane %v1692, %v1708
          %v1710 = vlaneseq
          %v1711 = vshrl.u32 %v1710, 7
          %v1712 = vsub.s32 4, %v1711
          %v1713 = vrot.slane %v1692, %v1712
          %v1714 = vlaneseq
          %v1715 = vshrl.u32 %v1714, 7
          %v1716 = vsub.s32 5, %v1715
          %v1717 = vrot.slane %v1692, %v1716
          %v1724 = vadd.f32 %v1536, %v1697
          %v1725 = vadd.f32 %v1537, %v1701
          %v1726 = vadd.f32 %v1538, %v1705
          %v1727 = vadd.f32 %v1539, %v1709
          %v1728 = vadd.f32 %v1540, %v1713
          %v1729 = vadd.f32 %v1541, %v1717
          %v1730 = vadd.f32 %v1542, %v1697
          %v1731 = vadd.f32 %v1543, %v1701
          %v1732 = vadd.f32 %v1544, %v1705
          %v1733 = vadd.f32 %v1545, %v1709
          %v1734 = vadd.f32 %v1546, %v1713
          %v1735 = vadd.f32 %v1547, %v1717
          %v1736 = vadd.f32 %v1548, %v1697
          %v1737 = vadd.f32 %v1549, %v1701
          %v1738 = vadd.f32 %v1550, %v1705
          %v1739 = vadd.f32 %v1551, %v1709
          %v1740 = vadd.f32 %v1552, %v1713
          %v1741 = vadd.f32 %v1553, %v1717
          %v1742 = vadd.f32 %v1554, %v1697
          %v1743 = vadd.f32 %v1555, %v1701
          %v1744 = vadd.f32 %v1556, %v1705
          %v1745 = vadd.f32 %v1557, %v1709
          %v1746 = vadd.f32 %v1558, %v1713
          %v1747 = vadd.f32 %v1559, %v1717
          %v1748 = vadd.f32 %v1560, %v1697
          %v1749 = vadd.f32 %v1561, %v1701
          %v1750 = vadd.f32 %v1562, %v1705
          %v1751 = vadd.f32 %v1563, %v1709
          %v1752 = vadd.f32 %v1564, %v1713
          %v1753 = vadd.f32 %v1565, %v1717
          %v1754 = vadd.f32 %v1566, %v1697
          %v1755 = vadd.f32 %v1567, %v1701
          %v1756 = vadd.f32 %v1568, %v1705
          %v1757 = vadd.f32 %v1569, %v1709
          %v1758 = vadd.f32 %v1570, %v1713
          %v1759 = vadd.f32 %v1571, %v1717
          %v1760 = vadd.f32 %v1572, %v1697
          %v1761 = vadd.f32 %v1573, %v1701
          %v1762 = vadd.f32 %v1574, %v1705
          %v1763 = vadd.f32 %v1575, %v1709
          %v1764 = vadd.f32 %v1576, %v1713
          %v1765 = vadd.f32 %v1577, %v1717
          %v1766 = vadd.f32 %v1578, %v1697
          %v1767 = vadd.f32 %v1579, %v1701
          %v1768 = vadd.f32 %v1580, %v1705
          %v1769 = vadd.f32 %v1581, %v1709
          %v1770 = vadd.f32 %v1582, %v1713
          %v1771 = vadd.f32 %v1583, %v1717
          %v1772 = vadd.f32 %v1584, %v1697
          %v1773 = vadd.f32 %v1585, %v1701
          %v1774 = vadd.f32 %v1586, %v1705
          %v1775 = vadd.f32 %v1587, %v1709
          %v1776 = vadd.f32 %v1588, %v1713
          %v1777 = vadd.f32 %v1589, %v1717
          %v1778 = vadd.f32 %v1590, %v1697
          %v1779 = vadd.f32 %v1591, %v1701
          %v1780 = vadd.f32 %v1592, %v1705
          %v1781 = vadd.f32 %v1593, %v1709
          %v1782 = vadd.f32 %v1594, %v1713
          %v1783 = vadd.f32 %v1595, %v1717
          %v1784 = vadd.f32 %v1596, %v1697
          %v1785 = vadd.f32 %v1597, %v1701
          %v1786 = vadd.f32 %v1598, %v1705
          %v1787 = vadd.f32 %v1599, %v1709
          %v1788 = vadd.f32 %v1600, %v1713
          %v1789 = vadd.f32 %v1601, %v1717
          %v1790 = vadd.f32 %v1602, %v1697
          %v1791 = vadd.f32 %v1603, %v1701
          %v1792 = vadd.f32 %v1604, %v1705
          %v1793 = vadd.f32 %v1605, %v1709
          %v1794 = vadd.f32 %v1606, %v1713
          %v1795 = vadd.f32 %v1607, %v1717
          %v1796 = vadd.f32 %v1608, %v1697
          %v1797 = vadd.f32 %v1609, %v1701
          %v1798 = vadd.f32 %v1610, %v1705
          %v1799 = vadd.f32 %v1611, %v1709
          %v1800 = vadd.f32 %v1612, %v1713
          %v1801 = vadd.f32 %v1613, %v1717
          %v1802 = vadd.f32 %v1614, %v1697
          %v1803 = vadd.f32 %v1615, %v1701
          %v1804 = vadd.f32 %v1616, %v1705
          %v1805 = vadd.f32 %v1617, %v1709
          %v1806 = vadd.f32 %v1618, %v1713
          %v1807 = vadd.f32 %v1619, %v1717
          %v1808 = vadd.f32 %v1620, %v1697
          %v1809 = vadd.f32 %v1621, %v1701
          %v1810 = vadd.f32 %v1622, %v1705
          %v1811 = vadd.f32 %v1623, %v1709
          %v1812 = vadd.f32 %v1624, %v1713
          %v1813 = vadd.f32 %v1625, %v1717
          %v1814 = vadd.f32 %v1626, %v1697
          %v1815 = vadd.f32 %v1627, %v1701
          %v1816 = vadd.f32 %v1628, %v1705
          %v1817 = vadd.f32 %v1629, %v1709
          %v1818 = vadd.f32 %v1630, %v1713
          %v1819 = vadd.f32 %v1631, %v1717
          %v1820 = vadd.f32 %v1632, %v1697
          %v1821 = vadd.f32 %v1633, %v1701
          %v1822 = vadd.f32 %v1634, %v1705
          %v1823 = vadd.f32 %v1635, %v1709
          %v1824 = vadd.f32 %v1636, %v1713
          %v1825 = vadd.f32 %v1637, %v1717
          %v1826 = vadd.f32 %v1638, %v1697
          %v1827 = vadd.f32 %v1639, %v1701
          %v1828 = vadd.f32 %v1640, %v1705
          %v1829 = vadd.f32 %v1641, %v1709
          %v1830 = vadd.f32 %v1642, %v1713
          %v1831 = vadd.f32 %v1643, %v1717
          %v1832 = vadd.f32 %v1644, %v1697
          %v1833 = vadd.f32 %v1645, %v1701
          %v1834 = vadd.f32 %v1646, %v1705
          %v1835 = vadd.f32 %v1647, %v1709
          %v1836 = vadd.f32 %v1648, %v1713
          %v1837 = vadd.f32 %v1649, %v1717
          %v1838 = vadd.f32 %v1650, %v1697
          %v1839 = vadd.f32 %v1651, %v1701
          %v1840 = vadd.f32 %v1652, %v1705
          %v1841 = vadd.f32 %v1653, %v1709
          %v1842 = vadd.f32 %v1654, %v1713
          %v1843 = vadd.f32 %v1655, %v1717
          %v1844 = vadd.f32 %v1656, %v1697
          %v1845 = vadd.f32 %v1657, %v1701
          %v1846 = vadd.f32 %v1658, %v1705
          %v1847 = vadd.f32 %v1659, %v1709
          %v1848 = vadd.f32 %v1660, %v1713
          %v1849 = vadd.f32 %v1661, %v1717
          %v1850 = vadd.f32 %v1662, %v1697
          %v1851 = vadd.f32 %v1663, %v1701
          %v1852 = vadd.f32 %v1664, %v1705
          %v1853 = vadd.f32 %v1665, %v1709
          %v1854 = vadd.f32 %v1666, %v1713
          %v1855 = vadd.f32 %v1667, %v1717
          %v1856 = vadd.f32 %v1668, %v1697
          %v1857 = vadd.f32 %v1669, %v1701
          %v1858 = vadd.f32 %v1670, %v1705
          %v1859 = vadd.f32 %v1671, %v1709
          %v1860 = vadd.f32 %v1672, %v1713
          %v1861 = vadd.f32 %v1673, %v1717
          %v1862 = vadd.f32 %v1674, %v1697
          %v1863 = vadd.f32 %v1675, %v1701
          %v1864 = vadd.f32 %v1676, %v1705
          %v1865 = vadd.f32 %v1677, %v1709
          %v1866 = vadd.f32 %v1678, %v1713
          %v1867 = vadd.f32 %v1679, %v1717
          %v1868 = vadd.f32 %v1680, %v1697
          %v1869 = vadd.f32 %v1681, %v1701
          %v1870 = vadd.f32 %v1682, %v1705
          %v1871 = vadd.f32 %v1683, %v1709
          %v1872 = vadd.f32 %v1684, %v1713
          %v1873 = vadd.f32 %v1685, %v1717
          %v1874 = vadd.f32 %v1686, %v1697
          %v1875 = vadd.f32 %v1687, %v1701
          %v1876 = vadd.f32 %v1688, %v1705
          %v1877 = vadd.f32 %v1689, %v1709
          %v1878 = vadd.f32 %v1690, %v1713
          %v1879 = vadd.f32 %v1691, %v1717
          %v1880 = vpack.c.bf16 %v1730, %v1724
          %v1881 = vpack.c.bf16 %v1731, %v1725
          %v1882 = vpack.c.bf16 %v1732, %v1726
          %v1883 = vpack.c.bf16 %v1733, %v1727
          %v1884 = vpack.c.bf16 %v1734, %v1728
          %v1885 = vpack.c.bf16 %v1735, %v1729
          %v1886 = vpack.c.bf16 %v1742, %v1736
          %v1887 = vpack.c.bf16 %v1743, %v1737
          %v1888 = vpack.c.bf16 %v1744, %v1738
          %v1889 = vpack.c.bf16 %v1745, %v1739
          %v1890 = vpack.c.bf16 %v1746, %v1740
          %v1891 = vpack.c.bf16 %v1747, %v1741
          %v1892 = vpack.c.bf16 %v1754, %v1748
          %v1893 = vpack.c.bf16 %v1755, %v1749
          %v1894 = vpack.c.bf16 %v1756, %v1750
          %v1895 = vpack.c.bf16 %v1757, %v1751
          %v1896 = vpack.c.bf16 %v1758, %v1752
          %v1897 = vpack.c.bf16 %v1759, %v1753
          %v1898 = vpack.c.bf16 %v1766, %v1760
          %v1899 = vpack.c.bf16 %v1767, %v1761
          %v1900 = vpack.c.bf16 %v1768, %v1762
          %v1901 = vpack.c.bf16 %v1769, %v1763
          %v1902 = vpack.c.bf16 %v1770, %v1764
          %v1903 = vpack.c.bf16 %v1771, %v1765
          %v1904 = vpack.c.bf16 %v1778, %v1772
          %v1905 = vpack.c.bf16 %v1779, %v1773
          %v1906 = vpack.c.bf16 %v1780, %v1774
          %v1907 = vpack.c.bf16 %v1781, %v1775
          %v1908 = vpack.c.bf16 %v1782, %v1776
          %v1909 = vpack.c.bf16 %v1783, %v1777
          %v1910 = vpack.c.bf16 %v1790, %v1784
          %v1911 = vpack.c.bf16 %v1791, %v1785
          %v1912 = vpack.c.bf16 %v1792, %v1786
          %v1913 = vpack.c.bf16 %v1793, %v1787
          %v1914 = vpack.c.bf16 %v1794, %v1788
          %v1915 = vpack.c.bf16 %v1795, %v1789
          %v1916 = vpack.c.bf16 %v1802, %v1796
          %v1917 = vpack.c.bf16 %v1803, %v1797
          %v1918 = vpack.c.bf16 %v1804, %v1798
          %v1919 = vpack.c.bf16 %v1805, %v1799
          %v1920 = vpack.c.bf16 %v1806, %v1800
          %v1921 = vpack.c.bf16 %v1807, %v1801
          %v1922 = vpack.c.bf16 %v1814, %v1808
          %v1923 = vpack.c.bf16 %v1815, %v1809
          %v1924 = vpack.c.bf16 %v1816, %v1810
          %v1925 = vpack.c.bf16 %v1817, %v1811
          %v1926 = vpack.c.bf16 %v1818, %v1812
          %v1927 = vpack.c.bf16 %v1819, %v1813
          %v1928 = vpack.c.bf16 %v1826, %v1820
          %v1929 = vpack.c.bf16 %v1827, %v1821
          %v1930 = vpack.c.bf16 %v1828, %v1822
          %v1931 = vpack.c.bf16 %v1829, %v1823
          %v1932 = vpack.c.bf16 %v1830, %v1824
          %v1933 = vpack.c.bf16 %v1831, %v1825
          %v1934 = vpack.c.bf16 %v1838, %v1832
          %v1935 = vpack.c.bf16 %v1839, %v1833
          %v1936 = vpack.c.bf16 %v1840, %v1834
          %v1937 = vpack.c.bf16 %v1841, %v1835
          %v1938 = vpack.c.bf16 %v1842, %v1836
          %v1939 = vpack.c.bf16 %v1843, %v1837
          %v1940 = vpack.c.bf16 %v1850, %v1844
          %v1941 = vpack.c.bf16 %v1851, %v1845
          %v1942 = vpack.c.bf16 %v1852, %v1846
          %v1943 = vpack.c.bf16 %v1853, %v1847
          %v1944 = vpack.c.bf16 %v1854, %v1848
          %v1945 = vpack.c.bf16 %v1855, %v1849
          %v1946 = vpack.c.bf16 %v1862, %v1856
          %v1947 = vpack.c.bf16 %v1863, %v1857
          %v1948 = vpack.c.bf16 %v1864, %v1858
          %v1949 = vpack.c.bf16 %v1865, %v1859
          %v1950 = vpack.c.bf16 %v1866, %v1860
          %v1951 = vpack.c.bf16 %v1867, %v1861
          %v1952 = vpack.c.bf16 %v1874, %v1868
          %v1953 = vpack.c.bf16 %v1875, %v1869
          %v1954 = vpack.c.bf16 %v1876, %v1870
          %v1955 = vpack.c.bf16 %v1877, %v1871
          %v1956 = vpack.c.bf16 %v1878, %v1872
          %v1957 = vpack.c.bf16 %v1879, %v1873
          %1958 = vst [vmem:[#allocation2] sm:$0xff] %v1880
          %1959 = vst [vmem:[#allocation2 + $0x8] sm:$0xff] %v1881
          %1960 = vst [vmem:[#allocation2 + $0x10] sm:$0xff] %v1882
          %1961 = vst [vmem:[#allocation2 + $0x18] sm:$0xff] %v1883
          %1962 = vst [vmem:[#allocation2 + $0x20] sm:$0xff] %v1884
          %1963 = vst [vmem:[#allocation2 + $0x28] sm:$0xff] %v1885
          %1964 = vst [vmem:[#allocation2 + $0x30] sm:$0xff] %v1886
          %1965 = vst [vmem:[#allocation2 + $0x38] sm:$0xff] %v1887
          %1966 = vst [vmem:[#allocation2 + $0x40] sm:$0xff] %v1888
          %1967 = vst [vmem:[#allocation2 + $0x48] sm:$0xff] %v1889
          %1968 = vst [vmem:[#allocation2 + $0x50] sm:$0xff] %v1890
          %1969 = vst [vmem:[#allocation2 + $0x58] sm:$0xff] %v1891
          %1970 = vst [vmem:[#allocation2 + $0x60] sm:$0xff] %v1892
          %1971 = vst [vmem:[#allocation2 + $0x68] sm:$0xff] %v1893
          %1972 = vst [vmem:[#allocation2 + $0x70] sm:$0xff] %v1894
          %1973 = vst [vmem:[#allocation2 + $0x78] sm:$0xff] %v1895
          %1974 = vst [vmem:[#allocation2 + $0x80] sm:$0xff] %v1896
          %1975 = vst [vmem:[#allocation2 + $0x88] sm:$0xff] %v1897
          %1976 = vst [vmem:[#allocation2 + $0x90] sm:$0xff] %v1898
          %1977 = vst [vmem:[#allocation2 + $0x98] sm:$0xff] %v1899
          %1978 = vst [vmem:[#allocation2 + $0xa0] sm:$0xff] %v1900
          %1979 = vst [vmem:[#allocation2 + $0xa8] sm:$0xff] %v1901
          %1980 = vst [vmem:[#allocation2 + $0xb0] sm:$0xff] %v1902
          %1981 = vst [vmem:[#allocation2 + $0xb8] sm:$0xff] %v1903
          %1982 = vst [vmem:[#allocation2 + $0xc0] sm:$0xff] %v1904
          %1983 = vst [vmem:[#allocation2 + $0xc8] sm:$0xff] %v1905
          %1984 = vst [vmem:[#allocation2 + $0xd0] sm:$0xff] %v1906
          %1985 = vst [vmem:[#allocation2 + $0xd8] sm:$0xff] %v1907
          %1986 = vst [vmem:[#allocation2 + $0xe0] sm:$0xff] %v1908
          %1987 = vst [vmem:[#allocation2 + $0xe8] sm:$0xff] %v1909
          %1988 = vst [vmem:[#allocation2 + $0xf0] sm:$0xff] %v1910
          %1989 = vst [vmem:[#allocation2 + $0xf8] sm:$0xff] %v1911
          %1990 = vst [vmem:[#allocation2 + $0x100] sm:$0xff] %v1912
          %1991 = vst [vmem:[#allocation2 + $0x108] sm:$0xff] %v1913
          %1992 = vst [vmem:[#allocation2 + $0x110] sm:$0xff] %v1914
          %1993 = vst [vmem:[#allocation2 + $0x118] sm:$0xff] %v1915
          %1994 = vst [vmem:[#allocation2 + $0x120] sm:$0xff] %v1916
          %1995 = vst [vmem:[#allocation2 + $0x128] sm:$0xff] %v1917
          %1996 = vst [vmem:[#allocation2 + $0x130] sm:$0xff] %v1918
          %1997 = vst [vmem:[#allocation2 + $0x138] sm:$0xff] %v1919
          %1998 = vst [vmem:[#allocation2 + $0x140] sm:$0xff] %v1920
          %1999 = vst [vmem:[#allocation2 + $0x148] sm:$0xff] %v1921
          %2000 = vst [vmem:[#allocation2 + $0x150] sm:$0xff] %v1922
          %2001 = vst [vmem:[#allocation2 + $0x158] sm:$0xff] %v1923
          %2002 = vst [vmem:[#allocation2 + $0x160] sm:$0xff] %v1924
          %2003 = vst [vmem:[#allocation2 + $0x168] sm:$0xff] %v1925
          %2004 = vst [vmem:[#allocation2 + $0x170] sm:$0xff] %v1926
          %2005 = vst [vmem:[#allocation2 + $0x178] sm:$0xff] %v1927
          %2006 = vst [vmem:[#allocation2 + $0x180] sm:$0xff] %v1928
          %2007 = vst [vmem:[#allocation2 + $0x188] sm:$0xff] %v1929
          %2008 = vst [vmem:[#allocation2 + $0x190] sm:$0xff] %v1930
          %2009 = vst [vmem:[#allocation2 + $0x198] sm:$0xff] %v1931
          %2010 = vst [vmem:[#allocation2 + $0x1a0] sm:$0xff] %v1932
          %2011 = vst [vmem:[#allocation2 + $0x1a8] sm:$0xff] %v1933
          %2012 = vst [vmem:[#allocation2 + $0x1b0] sm:$0xff] %v1934
          %2013 = vst [vmem:[#allocation2 + $0x1b8] sm:$0xff] %v1935
          %2014 = vst [vmem:[#allocation2 + $0x1c0] sm:$0xff] %v1936
          %2015 = vst [vmem:[#allocation2 + $0x1c8] sm:$0xff] %v1937
          %2016 = vst [vmem:[#allocation2 + $0x1d0] sm:$0xff] %v1938
          %2017 = vst [vmem:[#allocation2 + $0x1d8] sm:$0xff] %v1939
          %2018 = vst [vmem:[#allocation2 + $0x1e0] sm:$0xff] %v1940
          %2019 = vst [vmem:[#allocation2 + $0x1e8] sm:$0xff] %v1941
          %2020 = vst [vmem:[#allocation2 + $0x1f0] sm:$0xff] %v1942
          %2021 = vst [vmem:[#allocation2 + $0x1f8] sm:$0xff] %v1943
          %2022 = vst [vmem:[#allocation2 + $0x200] sm:$0xff] %v1944
          %2023 = vst [vmem:[#allocation2 + $0x208] sm:$0xff] %v1945
          %2024 = vst [vmem:[#allocation2 + $0x210] sm:$0xff] %v1946
          %2025 = vst [vmem:[#allocation2 + $0x218] sm:$0xff] %v1947
          %2026 = vst [vmem:[#allocation2 + $0x220] sm:$0xff] %v1948
          %2027 = vst [vmem:[#allocation2 + $0x228] sm:$0xff] %v1949
          %2028 = vst [vmem:[#allocation2 + $0x230] sm:$0xff] %v1950
          %2029 = vst [vmem:[#allocation2 + $0x238] sm:$0xff] %v1951
          %2030 = vst [vmem:[#allocation2 + $0x240] sm:$0xff] %v1952
          %2031 = vst [vmem:[#allocation2 + $0x248] sm:$0xff] %v1953
          %2032 = vst [vmem:[#allocation2 + $0x250] sm:$0xff] %v1954
          %2033 = vst [vmem:[#allocation2 + $0x258] sm:$0xff] %v1955
          %2034 = vst [vmem:[#allocation2 + $0x260] sm:$0xff] %v1956
          %2035 = vst [vmem:[#allocation2 + $0x268] sm:$0xff] %v1957
          %2036 = vst [vmem:[%s406] sm:$0xff] 0.0
          %2037 = vst [vmem:[%s406 + $0x8] sm:$0xff] 0.0
          %2038 = vst [vmem:[%s406 + $0x10] sm:$0xff] 0.0
          %2039 = vst [vmem:[%s406 + $0x18] sm:$0xff] 0.0
          %2040 = vst [vmem:[%s406 + $0x20] sm:$0xff] 0.0
          %2041 = vst [vmem:[%s406 + $0x28] sm:$0xff] 0.0
          %2042 = vst [vmem:[%s406 + $0x30] sm:$0xff] 0.0
          %2043 = vst [vmem:[%s406 + $0x38] sm:$0xff] 0.0
          %2044 = vst [vmem:[%s406 + $0x40] sm:$0xff] 0.0
          %2045 = vst [vmem:[%s406 + $0x48] sm:$0xff] 0.0
          %2046 = vst [vmem:[%s406 + $0x50] sm:$0xff] 0.0
          %2047 = vst [vmem:[%s406 + $0x58] sm:$0xff] 0.0
          %2048 = vst [vmem:[%s406 + $0x60] sm:$0xff] 0.0
          %2049 = vst [vmem:[%s406 + $0x68] sm:$0xff] 0.0
          %2050 = vst [vmem:[%s406 + $0x70] sm:$0xff] 0.0
          %2051 = vst [vmem:[%s406 + $0x78] sm:$0xff] 0.0
          %2052 = vst [vmem:[%s406 + $0x80] sm:$0xff] 0.0
          %2053 = vst [vmem:[%s406 + $0x88] sm:$0xff] 0.0
          %2054 = vst [vmem:[%s406 + $0x90] sm:$0xff] 0.0
          %2055 = vst [vmem:[%s406 + $0x98] sm:$0xff] 0.0
          %2056 = vst [vmem:[%s406 + $0xa0] sm:$0xff] 0.0
          %2057 = vst [vmem:[%s406 + $0xa8] sm:$0xff] 0.0
          %2058 = vst [vmem:[%s406 + $0xb0] sm:$0xff] 0.0
          %2059 = vst [vmem:[%s406 + $0xb8] sm:$0xff] 0.0
          %2060 = vst [vmem:[%s406 + $0xc0] sm:$0xff] 0.0
          %2061 = vst [vmem:[%s406 + $0xc8] sm:$0xff] 0.0
          %2062 = vst [vmem:[%s406 + $0xd0] sm:$0xff] 0.0
          %2063 = vst [vmem:[%s406 + $0xd8] sm:$0xff] 0.0
          %2064 = vst [vmem:[%s406 + $0xe0] sm:$0xff] 0.0
          %2065 = vst [vmem:[%s406 + $0xe8] sm:$0xff] 0.0
          %2066 = vst [vmem:[%s406 + $0xf0] sm:$0xff] 0.0
          %2067 = vst [vmem:[%s406 + $0xf8] sm:$0xff] 0.0
          %2068 = vst [vmem:[%s406 + $0x100] sm:$0xff] 0.0
          %2069 = vst [vmem:[%s406 + $0x108] sm:$0xff] 0.0
          %2070 = vst [vmem:[%s406 + $0x110] sm:$0xff] 0.0
          %2071 = vst [vmem:[%s406 + $0x118] sm:$0xff] 0.0
          %2072 = vst [vmem:[%s406 + $0x120] sm:$0xff] 0.0
          %2073 = vst [vmem:[%s406 + $0x128] sm:$0xff] 0.0
          %2074 = vst [vmem:[%s406 + $0x130] sm:$0xff] 0.0
          %2075 = vst [vmem:[%s406 + $0x138] sm:$0xff] 0.0
          %2076 = vst [vmem:[%s406 + $0x140] sm:$0xff] 0.0
          %2077 = vst [vmem:[%s406 + $0x148] sm:$0xff] 0.0
          %2078 = vst [vmem:[%s406 + $0x150] sm:$0xff] 0.0
          %2079 = vst [vmem:[%s406 + $0x158] sm:$0xff] 0.0
          %2080 = vst [vmem:[%s406 + $0x160] sm:$0xff] 0.0
          %2081 = vst [vmem:[%s406 + $0x168] sm:$0xff] 0.0
          %2082 = vst [vmem:[%s406 + $0x170] sm:$0xff] 0.0
          %2083 = vst [vmem:[%s406 + $0x178] sm:$0xff] 0.0
          %2084 = vst [vmem:[%s406 + $0x180] sm:$0xff] 0.0
          %2085 = vst [vmem:[%s406 + $0x188] sm:$0xff] 0.0
          %2086 = vst [vmem:[%s406 + $0x190] sm:$0xff] 0.0
          %2087 = vst [vmem:[%s406 + $0x198] sm:$0xff] 0.0
          %2088 = vst [vmem:[%s406 + $0x1a0] sm:$0xff] 0.0
          %2089 = vst [vmem:[%s406 + $0x1a8] sm:$0xff] 0.0
          %2090 = vst [vmem:[%s406 + $0x1b0] sm:$0xff] 0.0
          %2091 = vst [vmem:[%s406 + $0x1b8] sm:$0xff] 0.0
          %2092 = vst [vmem:[%s406 + $0x1c0] sm:$0xff] 0.0
          %2093 = vst [vmem:[%s406 + $0x1c8] sm:$0xff] 0.0
          %2094 = vst [vmem:[%s406 + $0x1d0] sm:$0xff] 0.0
          %2095 = vst [vmem:[%s406 + $0x1d8] sm:$0xff] 0.0
          %2096 = vst [vmem:[%s406 + $0x1e0] sm:$0xff] 0.0
          %2097 = vst [vmem:[%s406 + $0x1e8] sm:$0xff] 0.0
          %2098 = vst [vmem:[%s406 + $0x1f0] sm:$0xff] 0.0
          %2099 = vst [vmem:[%s406 + $0x1f8] sm:$0xff] 0.0
          %2100 = vst [vmem:[%s406 + $0x200] sm:$0xff] 0.0
          %2101 = vst [vmem:[%s406 + $0x208] sm:$0xff] 0.0
          %2102 = vst [vmem:[%s406 + $0x210] sm:$0xff] 0.0
          %2103 = vst [vmem:[%s406 + $0x218] sm:$0xff] 0.0
          %2104 = vst [vmem:[%s406 + $0x220] sm:$0xff] 0.0
          %2105 = vst [vmem:[%s406 + $0x228] sm:$0xff] 0.0
          %2106 = vst [vmem:[%s406 + $0x230] sm:$0xff] 0.0
          %2107 = vst [vmem:[%s406 + $0x238] sm:$0xff] 0.0
          %2108 = vst [vmem:[%s406 + $0x240] sm:$0xff] 0.0
          %2109 = vst [vmem:[%s406 + $0x248] sm:$0xff] 0.0
          %2110 = vst [vmem:[%s406 + $0x250] sm:$0xff] 0.0
          %2111 = vst [vmem:[%s406 + $0x258] sm:$0xff] 0.0
          %2112 = vst [vmem:[%s406 + $0x260] sm:$0xff] 0.0
          %2113 = vst [vmem:[%s406 + $0x268] sm:$0xff] 0.0
          %2114 = vst [vmem:[%s406 + $0x270] sm:$0xff] 0.0
          %2115 = vst [vmem:[%s406 + $0x278] sm:$0xff] 0.0
          %2116 = vst [vmem:[%s406 + $0x280] sm:$0xff] 0.0
          %2117 = vst [vmem:[%s406 + $0x288] sm:$0xff] 0.0
          %2118 = vst [vmem:[%s406 + $0x290] sm:$0xff] 0.0
          %2119 = vst [vmem:[%s406 + $0x298] sm:$0xff] 0.0
          %2120 = vst [vmem:[%s406 + $0x2a0] sm:$0xff] 0.0
          %2121 = vst [vmem:[%s406 + $0x2a8] sm:$0xff] 0.0
          %2122 = vst [vmem:[%s406 + $0x2b0] sm:$0xff] 0.0
          %2123 = vst [vmem:[%s406 + $0x2b8] sm:$0xff] 0.0
          %2124 = vst [vmem:[%s406 + $0x2c0] sm:$0xff] 0.0
          %2125 = vst [vmem:[%s406 + $0x2c8] sm:$0xff] 0.0
          %2126 = vst [vmem:[%s406 + $0x2d0] sm:$0xff] 0.0
          %2127 = vst [vmem:[%s406 + $0x2d8] sm:$0xff] 0.0
          %2128 = vst [vmem:[%s406 + $0x2e0] sm:$0xff] 0.0
          %2129 = vst [vmem:[%s406 + $0x2e8] sm:$0xff] 0.0
          %2130 = vst [vmem:[%s406 + $0x2f0] sm:$0xff] 0.0
          %2131 = vst [vmem:[%s406 + $0x2f8] sm:$0xff] 0.0
          %2132 = vst [vmem:[%s406 + $0x300] sm:$0xff] 0.0
          %2133 = vst [vmem:[%s406 + $0x308] sm:$0xff] 0.0
          %2134 = vst [vmem:[%s406 + $0x310] sm:$0xff] 0.0
          %2135 = vst [vmem:[%s406 + $0x318] sm:$0xff] 0.0
          %2136 = vst [vmem:[%s406 + $0x320] sm:$0xff] 0.0
          %2137 = vst [vmem:[%s406 + $0x328] sm:$0xff] 0.0
          %2138 = vst [vmem:[%s406 + $0x330] sm:$0xff] 0.0
          %2139 = vst [vmem:[%s406 + $0x338] sm:$0xff] 0.0
          %2140 = vst [vmem:[%s406 + $0x340] sm:$0xff] 0.0
          %2141 = vst [vmem:[%s406 + $0x348] sm:$0xff] 0.0
          %2142 = vst [vmem:[%s406 + $0x350] sm:$0xff] 0.0
          %2143 = vst [vmem:[%s406 + $0x358] sm:$0xff] 0.0
          %2144 = vst [vmem:[%s406 + $0x360] sm:$0xff] 0.0
          %2145 = vst [vmem:[%s406 + $0x368] sm:$0xff] 0.0
          %2146 = vst [vmem:[%s406 + $0x370] sm:$0xff] 0.0
          %2147 = vst [vmem:[%s406 + $0x378] sm:$0xff] 0.0
          %2148 = vst [vmem:[%s406 + $0x380] sm:$0xff] 0.0
          %2149 = vst [vmem:[%s406 + $0x388] sm:$0xff] 0.0
          %2150 = vst [vmem:[%s406 + $0x390] sm:$0xff] 0.0
          %2151 = vst [vmem:[%s406 + $0x398] sm:$0xff] 0.0
          %2152 = vst [vmem:[%s406 + $0x3a0] sm:$0xff] 0.0
          %2153 = vst [vmem:[%s406 + $0x3a8] sm:$0xff] 0.0
          %2154 = vst [vmem:[%s406 + $0x3b0] sm:$0xff] 0.0
          %2155 = vst [vmem:[%s406 + $0x3b8] sm:$0xff] 0.0
          %2156 = vst [vmem:[%s406 + $0x3c0] sm:$0xff] 0.0
          %2157 = vst [vmem:[%s406 + $0x3c8] sm:$0xff] 0.0
          %2158 = vst [vmem:[%s406 + $0x3d0] sm:$0xff] 0.0
          %2159 = vst [vmem:[%s406 + $0x3d8] sm:$0xff] 0.0
          %2160 = vst [vmem:[%s406 + $0x3e0] sm:$0xff] 0.0
          %2161 = vst [vmem:[%s406 + $0x3e8] sm:$0xff] 0.0
          %2162 = vst [vmem:[%s406 + $0x3f0] sm:$0xff] 0.0
          %2163 = vst [vmem:[%s406 + $0x3f8] sm:$0xff] 0.0
          %2164 = vst [vmem:[%s406 + $0x400] sm:$0xff] 0.0
          %2165 = vst [vmem:[%s406 + $0x408] sm:$0xff] 0.0
          %2166 = vst [vmem:[%s406 + $0x410] sm:$0xff] 0.0
          %2167 = vst [vmem:[%s406 + $0x418] sm:$0xff] 0.0
          %2168 = vst [vmem:[%s406 + $0x420] sm:$0xff] 0.0
          %2169 = vst [vmem:[%s406 + $0x428] sm:$0xff] 0.0
          %2170 = vst [vmem:[%s406 + $0x430] sm:$0xff] 0.0
          %2171 = vst [vmem:[%s406 + $0x438] sm:$0xff] 0.0
          %2172 = vst [vmem:[%s406 + $0x440] sm:$0xff] 0.0
          %2173 = vst [vmem:[%s406 + $0x448] sm:$0xff] 0.0
          %2174 = vst [vmem:[%s406 + $0x450] sm:$0xff] 0.0
          %2175 = vst [vmem:[%s406 + $0x458] sm:$0xff] 0.0
          %2176 = vst [vmem:[%s406 + $0x460] sm:$0xff] 0.0
          %2177 = vst [vmem:[%s406 + $0x468] sm:$0xff] 0.0
          %2178 = vst [vmem:[%s406 + $0x470] sm:$0xff] 0.0
          %2179 = vst [vmem:[%s406 + $0x478] sm:$0xff] 0.0
          %2180 = vst [vmem:[%s406 + $0x480] sm:$0xff] 0.0
          %2181 = vst [vmem:[%s406 + $0x488] sm:$0xff] 0.0
          %2182 = vst [vmem:[%s406 + $0x490] sm:$0xff] 0.0
          %2183 = vst [vmem:[%s406 + $0x498] sm:$0xff] 0.0
          %2184 = vst [vmem:[%s406 + $0x4a0] sm:$0xff] 0.0
          %2185 = vst [vmem:[%s406 + $0x4a8] sm:$0xff] 0.0
          %2186 = vst [vmem:[%s406 + $0x4b0] sm:$0xff] 0.0
          %2187 = vst [vmem:[%s406 + $0x4b8] sm:$0xff] 0.0
          %2188 = vst [vmem:[%s406 + $0x4c0] sm:$0xff] 0.0
          %2189 = vst [vmem:[%s406 + $0x4c8] sm:$0xff] 0.0
          %2190 = vst [vmem:[%s406 + $0x4d0] sm:$0xff] 0.0
          %2191 = vst [vmem:[%s406 + $0x4d8] sm:$0xff] 0.0
        $region68: #{mlp_block.1} parent=43 // pred_fallthru
          _
        %v2192 = vld [vmem:[#allocation2] sm:$0xff]
        %v2193 = vld [vmem:[#allocation2 + $0x8] sm:$0xff]
        %v2194 = vld [vmem:[#allocation2 + $0x10] sm:$0xff]
        %v2195 = vld [vmem:[#allocation2 + $0x18] sm:$0xff]
        %v2196 = vld [vmem:[#allocation2 + $0x20] sm:$0xff]
        %v2197 = vld [vmem:[#allocation2 + $0x28] sm:$0xff]
        %v2198 = vld [vmem:[#allocation2 + $0x30] sm:$0xff]
        %v2199 = vld [vmem:[#allocation2 + $0x38] sm:$0xff]
        %v2200 = vld [vmem:[#allocation2 + $0x40] sm:$0xff]
        %v2201 = vld [vmem:[#allocation2 + $0x48] sm:$0xff]
        %v2202 = vld [vmem:[#allocation2 + $0x50] sm:$0xff]
        %v2203 = vld [vmem:[#allocation2 + $0x58] sm:$0xff]
        %v2204 = vld [vmem:[#allocation2 + $0x60] sm:$0xff]
        %v2205 = vld [vmem:[#allocation2 + $0x68] sm:$0xff]
        %v2206 = vld [vmem:[#allocation2 + $0x70] sm:$0xff]
        %v2207 = vld [vmem:[#allocation2 + $0x78] sm:$0xff]
        %v2208 = vld [vmem:[#allocation2 + $0x80] sm:$0xff]
        %v2209 = vld [vmem:[#allocation2 + $0x88] sm:$0xff]
        %v2210 = vld [vmem:[#allocation2 + $0x90] sm:$0xff]
        %v2211 = vld [vmem:[#allocation2 + $0x98] sm:$0xff]
        %v2212 = vld [vmem:[#allocation2 + $0xa0] sm:$0xff]
        %v2213 = vld [vmem:[#allocation2 + $0xa8] sm:$0xff]
        %v2214 = vld [vmem:[#allocation2 + $0xb0] sm:$0xff]
        %v2215 = vld [vmem:[#allocation2 + $0xb8] sm:$0xff]
        %v2216 = vld [vmem:[#allocation2 + $0xc0] sm:$0xff]
        %v2217 = vld [vmem:[#allocation2 + $0xc8] sm:$0xff]
        %v2218 = vld [vmem:[#allocation2 + $0xd0] sm:$0xff]
        %v2219 = vld [vmem:[#allocation2 + $0xd8] sm:$0xff]
        %v2220 = vld [vmem:[#allocation2 + $0xe0] sm:$0xff]
        %v2221 = vld [vmem:[#allocation2 + $0xe8] sm:$0xff]
        %v2222 = vld [vmem:[#allocation2 + $0xf0] sm:$0xff]
        %v2223 = vld [vmem:[#allocation2 + $0xf8] sm:$0xff]
        %v2224 = vld [vmem:[#allocation2 + $0x100] sm:$0xff]
        %v2225 = vld [vmem:[#allocation2 + $0x108] sm:$0xff]
        %v2226 = vld [vmem:[#allocation2 + $0x110] sm:$0xff]
        %v2227 = vld [vmem:[#allocation2 + $0x118] sm:$0xff]
        %v2228 = vld [vmem:[#allocation2 + $0x120] sm:$0xff]
        %v2229 = vld [vmem:[#allocation2 + $0x128] sm:$0xff]
        %v2230 = vld [vmem:[#allocation2 + $0x130] sm:$0xff]
        %v2231 = vld [vmem:[#allocation2 + $0x138] sm:$0xff]
        %v2232 = vld [vmem:[#allocation2 + $0x140] sm:$0xff]
        %v2233 = vld [vmem:[#allocation2 + $0x148] sm:$0xff]
        %v2234 = vld [vmem:[#allocation2 + $0x150] sm:$0xff]
        %v2235 = vld [vmem:[#allocation2 + $0x158] sm:$0xff]
        %v2236 = vld [vmem:[#allocation2 + $0x160] sm:$0xff]
        %v2237 = vld [vmem:[#allocation2 + $0x168] sm:$0xff]
        %v2238 = vld [vmem:[#allocation2 + $0x170] sm:$0xff]
        %v2239 = vld [vmem:[#allocation2 + $0x178] sm:$0xff]
        %v2240 = vld [vmem:[#allocation2 + $0x180] sm:$0xff]
        %v2241 = vld [vmem:[#allocation2 + $0x188] sm:$0xff]
        %v2242 = vld [vmem:[#allocation2 + $0x190] sm:$0xff]
        %v2243 = vld [vmem:[#allocation2 + $0x198] sm:$0xff]
        %v2244 = vld [vmem:[#allocation2 + $0x1a0] sm:$0xff]
        %v2245 = vld [vmem:[#allocation2 + $0x1a8] sm:$0xff]
        %v2246 = vld [vmem:[#allocation2 + $0x1b0] sm:$0xff]
        %v2247 = vld [vmem:[#allocation2 + $0x1b8] sm:$0xff]
        %v2248 = vld [vmem:[#allocation2 + $0x1c0] sm:$0xff]
        %v2249 = vld [vmem:[#allocation2 + $0x1c8] sm:$0xff]
        %v2250 = vld [vmem:[#allocation2 + $0x1d0] sm:$0xff]
        %v2251 = vld [vmem:[#allocation2 + $0x1d8] sm:$0xff]
        %v2252 = vld [vmem:[#allocation2 + $0x1e0] sm:$0xff]
        %v2253 = vld [vmem:[#allocation2 + $0x1e8] sm:$0xff]
        %v2254 = vld [vmem:[#allocation2 + $0x1f0] sm:$0xff]
        %v2255 = vld [vmem:[#allocation2 + $0x1f8] sm:$0xff]
        %v2256 = vld [vmem:[#allocation2 + $0x200] sm:$0xff]
        %v2257 = vld [vmem:[#allocation2 + $0x208] sm:$0xff]
        %v2258 = vld [vmem:[#allocation2 + $0x210] sm:$0xff]
        %v2259 = vld [vmem:[#allocation2 + $0x218] sm:$0xff]
        %v2260 = vld [vmem:[#allocation2 + $0x220] sm:$0xff]
        %v2261 = vld [vmem:[#allocation2 + $0x228] sm:$0xff]
        %v2262 = vld [vmem:[#allocation2 + $0x230] sm:$0xff]
        %v2263 = vld [vmem:[#allocation2 + $0x238] sm:$0xff]
        %v2264 = vld [vmem:[#allocation2 + $0x240] sm:$0xff]
        %v2265 = vld [vmem:[#allocation2 + $0x248] sm:$0xff]
        %v2266 = vld [vmem:[#allocation2 + $0x250] sm:$0xff]
        %v2267 = vld [vmem:[#allocation2 + $0x258] sm:$0xff]
        %v2268 = vld [vmem:[#allocation2 + $0x260] sm:$0xff]
        %v2269 = vld [vmem:[#allocation2 + $0x268] sm:$0xff]
        %v2270 = vld [vmem:[%s336] sm:$0xff]
        %v2271 = vld [vmem:[%s336 + $0x8] sm:$0xff]
        %v2272 = vld [vmem:[%s336 + $0x10] sm:$0xff]
        %v2273 = vld [vmem:[%s336 + $0x18] sm:$0xff]
        %v2274 = vld [vmem:[%s336 + $0x20] sm:$0xff]
        %v2275 = vld [vmem:[%s336 + $0x28] sm:$0xff]
        %v2276 = vld [vmem:[%s336 + $0x30] sm:$0xff]
        %v2277 = vld [vmem:[%s336 + $0x38] sm:$0xff]
        %v2278 = vld [vmem:[%s336 + $0x40] sm:$0xff]
        %v2279 = vld [vmem:[%s336 + $0x48] sm:$0xff]
        %v2280 = vld [vmem:[%s336 + $0x50] sm:$0xff]
        %v2281 = vld [vmem:[%s336 + $0x58] sm:$0xff]
        %v2282 = vld [vmem:[%s336 + $0x60] sm:$0xff]
        %v2283 = vld [vmem:[%s336 + $0x68] sm:$0xff]
        %v2284 = vld [vmem:[%s336 + $0x70] sm:$0xff]
        %v2285 = vld [vmem:[%s336 + $0x78] sm:$0xff]
        %v2286 = vld [vmem:[%s336 + $0x80] sm:$0xff]
        %v2287 = vld [vmem:[%s336 + $0x88] sm:$0xff]
        %v2288 = vld [vmem:[%s336 + $0x90] sm:$0xff]
        %v2289 = vld [vmem:[%s336 + $0x98] sm:$0xff]
        %v2290 = vld [vmem:[%s336 + $0xa0] sm:$0xff]
        %v2291 = vld [vmem:[%s336 + $0xa8] sm:$0xff]
        %v2292 = vld [vmem:[%s336 + $0xb0] sm:$0xff]
        %v2293 = vld [vmem:[%s336 + $0xb8] sm:$0xff]
        %v2294 = vld [vmem:[%s336 + $0xc0] sm:$0xff]
        %v2295 = vld [vmem:[%s336 + $0xc8] sm:$0xff]
        %v2296 = vld [vmem:[%s336 + $0xd0] sm:$0xff]
        %v2297 = vld [vmem:[%s336 + $0xd8] sm:$0xff]
        %v2298 = vld [vmem:[%s336 + $0xe0] sm:$0xff]
        %v2299 = vld [vmem:[%s336 + $0xe8] sm:$0xff]
        %v2300 = vld [vmem:[%s336 + $0xf0] sm:$0xff]
        %v2301 = vld [vmem:[%s336 + $0xf8] sm:$0xff]
        %v2302 = vld [vmem:[%s336 + $0x100] sm:$0xff]
        %v2303 = vld [vmem:[%s336 + $0x108] sm:$0xff]
        %v2304 = vld [vmem:[%s336 + $0x110] sm:$0xff]
        %v2305 = vld [vmem:[%s336 + $0x118] sm:$0xff]
        %v2306 = vld [vmem:[%s336 + $0x120] sm:$0xff]
        %v2307 = vld [vmem:[%s336 + $0x128] sm:$0xff]
        %v2308 = vld [vmem:[%s336 + $0x130] sm:$0xff]
        %v2309 = vld [vmem:[%s336 + $0x138] sm:$0xff]
        %v2310 = vld [vmem:[%s336 + $0x140] sm:$0xff]
        %v2311 = vld [vmem:[%s336 + $0x148] sm:$0xff]
        %v2312 = vld [vmem:[%s336 + $0x150] sm:$0xff]
        %v2313 = vld [vmem:[%s336 + $0x158] sm:$0xff]
        %v2314 = vld [vmem:[%s336 + $0x160] sm:$0xff]
        %v2315 = vld [vmem:[%s336 + $0x168] sm:$0xff]
        %v2316 = vld [vmem:[%s336 + $0x170] sm:$0xff]
        %v2317 = vld [vmem:[%s336 + $0x178] sm:$0xff]
        %v2318 = vld [vmem:[%s336 + $0x180] sm:$0xff]
        %v2319 = vld [vmem:[%s336 + $0x188] sm:$0xff]
        %v2320 = vld [vmem:[%s336 + $0x190] sm:$0xff]
        %v2321 = vld [vmem:[%s336 + $0x198] sm:$0xff]
        %v2322 = vld [vmem:[%s336 + $0x1a0] sm:$0xff]
        %v2323 = vld [vmem:[%s336 + $0x1a8] sm:$0xff]
        %v2324 = vld [vmem:[%s336 + $0x1b0] sm:$0xff]
        %v2325 = vld [vmem:[%s336 + $0x1b8] sm:$0xff]
        %v2326 = vld [vmem:[%s336 + $0x1c0] sm:$0xff]
        %v2327 = vld [vmem:[%s336 + $0x1c8] sm:$0xff]
        %v2328 = vld [vmem:[%s336 + $0x1d0] sm:$0xff]
        %v2329 = vld [vmem:[%s336 + $0x1d8] sm:$0xff]
        %v2330 = vld [vmem:[%s336 + $0x1e0] sm:$0xff]
        %v2331 = vld [vmem:[%s336 + $0x1e8] sm:$0xff]
        %v2332 = vld [vmem:[%s336 + $0x1f0] sm:$0xff]
        %v2333 = vld [vmem:[%s336 + $0x1f8] sm:$0xff]
        %v2334 = vld [vmem:[%s336 + $0x200] sm:$0xff]
        %v2335 = vld [vmem:[%s336 + $0x208] sm:$0xff]
        %v2336 = vld [vmem:[%s336 + $0x210] sm:$0xff]
        %v2337 = vld [vmem:[%s336 + $0x218] sm:$0xff]
        %v2338 = vld [vmem:[%s336 + $0x220] sm:$0xff]
        %v2339 = vld [vmem:[%s336 + $0x228] sm:$0xff]
        %v2340 = vld [vmem:[%s336 + $0x230] sm:$0xff]
        %v2341 = vld [vmem:[%s336 + $0x238] sm:$0xff]
        %v2342 = vld [vmem:[%s336 + $0x240] sm:$0xff]
        %v2343 = vld [vmem:[%s336 + $0x248] sm:$0xff]
        %v2344 = vld [vmem:[%s336 + $0x250] sm:$0xff]
        %v2345 = vld [vmem:[%s336 + $0x258] sm:$0xff]
        %v2346 = vld [vmem:[%s336 + $0x260] sm:$0xff]
        %v2347 = vld [vmem:[%s336 + $0x268] sm:$0xff]
        %v2348 = vld [vmem:[%s336 + $0x270] sm:$0xff]
        %v2349 = vld [vmem:[%s336 + $0x278] sm:$0xff]
        %v2350 = vld [vmem:[%s336 + $0x280] sm:$0xff]
        %v2351 = vld [vmem:[%s336 + $0x288] sm:$0xff]
        %v2352 = vld [vmem:[%s336 + $0x290] sm:$0xff]
        %v2353 = vld [vmem:[%s336 + $0x298] sm:$0xff]
        %v2354 = vld [vmem:[%s336 + $0x2a0] sm:$0xff]
        %v2355 = vld [vmem:[%s336 + $0x2a8] sm:$0xff]
        %v2356 = vld [vmem:[%s336 + $0x2b0] sm:$0xff]
        %v2357 = vld [vmem:[%s336 + $0x2b8] sm:$0xff]
        %v2358 = vld [vmem:[%s336 + $0x2c0] sm:$0xff]
        %v2359 = vld [vmem:[%s336 + $0x2c8] sm:$0xff]
        %v2360 = vld [vmem:[%s336 + $0x2d0] sm:$0xff]
        %v2361 = vld [vmem:[%s336 + $0x2d8] sm:$0xff]
        %v2362 = vld [vmem:[%s336 + $0x2e0] sm:$0xff]
        %v2363 = vld [vmem:[%s336 + $0x2e8] sm:$0xff]
        %v2364 = vld [vmem:[%s336 + $0x2f0] sm:$0xff]
        %v2365 = vld [vmem:[%s336 + $0x2f8] sm:$0xff]
        %v2366 = vld [vmem:[%s336 + $0x300] sm:$0xff]
        %v2367 = vld [vmem:[%s336 + $0x308] sm:$0xff]
        %v2368 = vld [vmem:[%s336 + $0x310] sm:$0xff]
        %v2369 = vld [vmem:[%s336 + $0x318] sm:$0xff]
        %v2370 = vld [vmem:[%s336 + $0x320] sm:$0xff]
        %v2371 = vld [vmem:[%s336 + $0x328] sm:$0xff]
        %v2372 = vld [vmem:[%s336 + $0x330] sm:$0xff]
        %v2373 = vld [vmem:[%s336 + $0x338] sm:$0xff]
        %v2374 = vld [vmem:[%s336 + $0x340] sm:$0xff]
        %v2375 = vld [vmem:[%s336 + $0x348] sm:$0xff]
        %v2376 = vld [vmem:[%s336 + $0x350] sm:$0xff]
        %v2377 = vld [vmem:[%s336 + $0x358] sm:$0xff]
        %v2378 = vld [vmem:[%s336 + $0x360] sm:$0xff]
        %v2379 = vld [vmem:[%s336 + $0x368] sm:$0xff]
        %v2380 = vld [vmem:[%s336 + $0x370] sm:$0xff]
        %v2381 = vld [vmem:[%s336 + $0x378] sm:$0xff]
        %v2382 = vld [vmem:[%s336 + $0x380] sm:$0xff]
        %v2383 = vld [vmem:[%s336 + $0x388] sm:$0xff]
        %v2384 = vld [vmem:[%s336 + $0x390] sm:$0xff]
        %v2385 = vld [vmem:[%s336 + $0x398] sm:$0xff]
        %v2386 = vld [vmem:[%s336 + $0x3a0] sm:$0xff]
        %v2387 = vld [vmem:[%s336 + $0x3a8] sm:$0xff]
        %v2388 = vld [vmem:[%s336 + $0x3b0] sm:$0xff]
        %v2389 = vld [vmem:[%s336 + $0x3b8] sm:$0xff]
        %v2390 = vld [vmem:[%s336 + $0x3c0] sm:$0xff]
        %v2391 = vld [vmem:[%s336 + $0x3c8] sm:$0xff]
        %v2392 = vld [vmem:[%s336 + $0x3d0] sm:$0xff]
        %v2393 = vld [vmem:[%s336 + $0x3d8] sm:$0xff]
        %v2394 = vld [vmem:[%s336 + $0x3e0] sm:$0xff]
        %v2395 = vld [vmem:[%s336 + $0x3e8] sm:$0xff]
        %v2396 = vld [vmem:[%s336 + $0x3f0] sm:$0xff]
        %v2397 = vld [vmem:[%s336 + $0x3f8] sm:$0xff]
        %v2398 = vld [vmem:[%s336 + $0x400] sm:$0xff]
        %v2399 = vld [vmem:[%s336 + $0x408] sm:$0xff]
        %v2400 = vld [vmem:[%s336 + $0x410] sm:$0xff]
        %v2401 = vld [vmem:[%s336 + $0x418] sm:$0xff]
        %v2402 = vld [vmem:[%s336 + $0x420] sm:$0xff]
        %v2403 = vld [vmem:[%s336 + $0x428] sm:$0xff]
        %v2404 = vld [vmem:[%s336 + $0x430] sm:$0xff]
        %v2405 = vld [vmem:[%s336 + $0x438] sm:$0xff]
        %v2406 = vld [vmem:[%s336 + $0x440] sm:$0xff]
        %v2407 = vld [vmem:[%s336 + $0x448] sm:$0xff]
        %v2408 = vld [vmem:[%s336 + $0x450] sm:$0xff]
        %v2409 = vld [vmem:[%s336 + $0x458] sm:$0xff]
        %v2410 = vld [vmem:[%s336 + $0x460] sm:$0xff]
        %v2411 = vld [vmem:[%s336 + $0x468] sm:$0xff]
        %v2412 = vld [vmem:[%s336 + $0x470] sm:$0xff]
        %v2413 = vld [vmem:[%s336 + $0x478] sm:$0xff]
        %v2414 = vld [vmem:[%s336 + $0x480] sm:$0xff]
        %v2415 = vld [vmem:[%s336 + $0x488] sm:$0xff]
        %v2416 = vld [vmem:[%s336 + $0x490] sm:$0xff]
        %v2417 = vld [vmem:[%s336 + $0x498] sm:$0xff]
        %v2418 = vld [vmem:[%s336 + $0x4a0] sm:$0xff]
        %v2419 = vld [vmem:[%s336 + $0x4a8] sm:$0xff]
        %v2420 = vld [vmem:[%s336 + $0x4b0] sm:$0xff]
        %v2421 = vld [vmem:[%s336 + $0x4b8] sm:$0xff]
        %v2422 = vld [vmem:[%s336 + $0x4c0] sm:$0xff]
        %v2423 = vld [vmem:[%s336 + $0x4c8] sm:$0xff]
        %v2424 = vld [vmem:[%s336 + $0x4d0] sm:$0xff]
        %v2425 = vld [vmem:[%s336 + $0x4d8] sm:$0xff]
        %v2426 = vld [vmem:[%s336 + $0x4e0] sm:$0xff]
        %v2427 = vld [vmem:[%s336 + $0x4e8] sm:$0xff]
        %v2428 = vld [vmem:[%s336 + $0x4f0] sm:$0xff]
        %v2429 = vld [vmem:[%s336 + $0x4f8] sm:$0xff]
        %v2430 = vld [vmem:[%s336 + $0x500] sm:$0xff]
        %v2431 = vld [vmem:[%s336 + $0x508] sm:$0xff]
        %v2432 = vld [vmem:[%s336 + $0x510] sm:$0xff]
        %v2433 = vld [vmem:[%s336 + $0x518] sm:$0xff]
        %v2434 = vld [vmem:[%s336 + $0x520] sm:$0xff]
        %v2435 = vld [vmem:[%s336 + $0x528] sm:$0xff]
        %v2436 = vld [vmem:[%s336 + $0x530] sm:$0xff]
        %v2437 = vld [vmem:[%s336 + $0x538] sm:$0xff]
        %v2438 = vld [vmem:[%s336 + $0x540] sm:$0xff]
        %v2439 = vld [vmem:[%s336 + $0x548] sm:$0xff]
        %v2440 = vld [vmem:[%s336 + $0x550] sm:$0xff]
        %v2441 = vld [vmem:[%s336 + $0x558] sm:$0xff]
        %v2442 = vld [vmem:[%s336 + $0x560] sm:$0xff]
        %v2443 = vld [vmem:[%s336 + $0x568] sm:$0xff]
        %v2444 = vld [vmem:[%s336 + $0x570] sm:$0xff]
        %v2445 = vld [vmem:[%s336 + $0x578] sm:$0xff]
        %v2446 = vld [vmem:[%s336 + $0x580] sm:$0xff]
        %v2447 = vld [vmem:[%s336 + $0x588] sm:$0xff]
        %v2448 = vld [vmem:[%s336 + $0x590] sm:$0xff]
        %v2449 = vld [vmem:[%s336 + $0x598] sm:$0xff]
        %v2450 = vld [vmem:[%s336 + $0x5a0] sm:$0xff]
        %v2451 = vld [vmem:[%s336 + $0x5a8] sm:$0xff]
        %v2452 = vld [vmem:[%s336 + $0x5b0] sm:$0xff]
        %v2453 = vld [vmem:[%s336 + $0x5b8] sm:$0xff]
        %v2454 = vld [vmem:[%s336 + $0x5c0] sm:$0xff]
        %v2455 = vld [vmem:[%s336 + $0x5c8] sm:$0xff]
        %v2456 = vld [vmem:[%s336 + $0x5d0] sm:$0xff]
        %v2457 = vld [vmem:[%s336 + $0x5d8] sm:$0xff]
        %v2458 = vld [vmem:[%s336 + $0x5e0] sm:$0xff]
        %v2459 = vld [vmem:[%s336 + $0x5e8] sm:$0xff]
        %v2460 = vld [vmem:[%s336 + $0x5f0] sm:$0xff]
        %v2461 = vld [vmem:[%s336 + $0x5f8] sm:$0xff]
        %v2462 = vld [vmem:[%s336 + $0x600] sm:$0xff]
        %v2463 = vld [vmem:[%s336 + $0x608] sm:$0xff]
        %v2464 = vld [vmem:[%s336 + $0x610] sm:$0xff]
        %v2465 = vld [vmem:[%s336 + $0x618] sm:$0xff]
        %v2466 = vld [vmem:[%s336 + $0x620] sm:$0xff]
        %v2467 = vld [vmem:[%s336 + $0x628] sm:$0xff]
        %v2468 = vld [vmem:[%s336 + $0x630] sm:$0xff]
        %v2469 = vld [vmem:[%s336 + $0x638] sm:$0xff]
        %v2470 = vld [vmem:[%s336 + $0x640] sm:$0xff]
        %v2471 = vld [vmem:[%s336 + $0x648] sm:$0xff]
        %v2472 = vld [vmem:[%s336 + $0x650] sm:$0xff]
        %v2473 = vld [vmem:[%s336 + $0x658] sm:$0xff]
        %v2474 = vld [vmem:[%s336 + $0x660] sm:$0xff]
        %v2475 = vld [vmem:[%s336 + $0x668] sm:$0xff]
        %v2476 = vld [vmem:[%s336 + $0x670] sm:$0xff]
        %v2477 = vld [vmem:[%s336 + $0x678] sm:$0xff]
        %v2478 = vld [vmem:[%s336 + $0x680] sm:$0xff]
        %v2479 = vld [vmem:[%s336 + $0x688] sm:$0xff]
        %v2480 = vld [vmem:[%s336 + $0x690] sm:$0xff]
        %v2481 = vld [vmem:[%s336 + $0x698] sm:$0xff]
        %v2482 = vld [vmem:[%s336 + $0x6a0] sm:$0xff]
        %v2483 = vld [vmem:[%s336 + $0x6a8] sm:$0xff]
        %v2484 = vld [vmem:[%s336 + $0x6b0] sm:$0xff]
        %v2485 = vld [vmem:[%s336 + $0x6b8] sm:$0xff]
        %v2486 = vld [vmem:[%s336 + $0x6c0] sm:$0xff]
        %v2487 = vld [vmem:[%s336 + $0x6c8] sm:$0xff]
        %v2488 = vld [vmem:[%s336 + $0x6d0] sm:$0xff]
        %v2489 = vld [vmem:[%s336 + $0x6d8] sm:$0xff]
        %v2490 = vld [vmem:[%s336 + $0x6e0] sm:$0xff]
        %v2491 = vld [vmem:[%s336 + $0x6e8] sm:$0xff]
        %v2492 = vld [vmem:[%s336 + $0x6f0] sm:$0xff]
        %v2493 = vld [vmem:[%s336 + $0x6f8] sm:$0xff]
        %v2494 = vld [vmem:[%s336 + $0x700] sm:$0xff]
        %v2495 = vld [vmem:[%s336 + $0x708] sm:$0xff]
        %v2496 = vld [vmem:[%s336 + $0x710] sm:$0xff]
        %v2497 = vld [vmem:[%s336 + $0x718] sm:$0xff]
        %v2498 = vld [vmem:[%s336 + $0x720] sm:$0xff]
        %v2499 = vld [vmem:[%s336 + $0x728] sm:$0xff]
        %v2500 = vld [vmem:[%s336 + $0x730] sm:$0xff]
        %v2501 = vld [vmem:[%s336 + $0x738] sm:$0xff]
        %v2502 = vld [vmem:[%s336 + $0x740] sm:$0xff]
        %v2503 = vld [vmem:[%s336 + $0x748] sm:$0xff]
        %v2504 = vld [vmem:[%s336 + $0x750] sm:$0xff]
        %v2505 = vld [vmem:[%s336 + $0x758] sm:$0xff]
        %v2506 = vld [vmem:[%s336 + $0x760] sm:$0xff]
        %v2507 = vld [vmem:[%s336 + $0x768] sm:$0xff]
        %v2508 = vld [vmem:[%s336 + $0x770] sm:$0xff]
        %v2509 = vld [vmem:[%s336 + $0x778] sm:$0xff]
        %v2510 = vld [vmem:[%s336 + $0x780] sm:$0xff]
        %v2511 = vld [vmem:[%s336 + $0x788] sm:$0xff]
        %v2512 = vld [vmem:[%s336 + $0x790] sm:$0xff]
        %v2513 = vld [vmem:[%s336 + $0x798] sm:$0xff]
        %v2514 = vld [vmem:[%s336 + $0x7a0] sm:$0xff]
        %v2515 = vld [vmem:[%s336 + $0x7a8] sm:$0xff]
        %v2516 = vld [vmem:[%s336 + $0x7b0] sm:$0xff]
        %v2517 = vld [vmem:[%s336 + $0x7b8] sm:$0xff]
        %v2518 = vld [vmem:[%s336 + $0x7c0] sm:$0xff]
        %v2519 = vld [vmem:[%s336 + $0x7c8] sm:$0xff]
        %v2520 = vld [vmem:[%s336 + $0x7d0] sm:$0xff]
        %v2521 = vld [vmem:[%s336 + $0x7d8] sm:$0xff]
        %v2522 = vld [vmem:[%s336 + $0x7e0] sm:$0xff]
        %v2523 = vld [vmem:[%s336 + $0x7e8] sm:$0xff]
        %v2524 = vld [vmem:[%s336 + $0x7f0] sm:$0xff]
        %v2525 = vld [vmem:[%s336 + $0x7f8] sm:$0xff]
        %v2526 = vld [vmem:[%s336 + $0x800] sm:$0xff]
        %v2527 = vld [vmem:[%s336 + $0x808] sm:$0xff]
        %v2528 = vld [vmem:[%s336 + $0x810] sm:$0xff]
        %v2529 = vld [vmem:[%s336 + $0x818] sm:$0xff]
        %v2530 = vld [vmem:[%s336 + $0x820] sm:$0xff]
        %v2531 = vld [vmem:[%s336 + $0x828] sm:$0xff]
        %v2532 = vld [vmem:[%s336 + $0x830] sm:$0xff]
        %v2533 = vld [vmem:[%s336 + $0x838] sm:$0xff]
        %v2534 = vld [vmem:[%s336 + $0x840] sm:$0xff]
        %v2535 = vld [vmem:[%s336 + $0x848] sm:$0xff]
        %v2536 = vld [vmem:[%s336 + $0x850] sm:$0xff]
        %v2537 = vld [vmem:[%s336 + $0x858] sm:$0xff]
        %v2538 = vld [vmem:[%s336 + $0x860] sm:$0xff]
        %v2539 = vld [vmem:[%s336 + $0x868] sm:$0xff]
        %v2540 = vld [vmem:[%s336 + $0x870] sm:$0xff]
        %v2541 = vld [vmem:[%s336 + $0x878] sm:$0xff]
        %v2542 = vld [vmem:[%s336 + $0x880] sm:$0xff]
        %v2543 = vld [vmem:[%s336 + $0x888] sm:$0xff]
        %v2544 = vld [vmem:[%s336 + $0x890] sm:$0xff]
        %v2545 = vld [vmem:[%s336 + $0x898] sm:$0xff]
        %v2546 = vld [vmem:[%s336 + $0x8a0] sm:$0xff]
        %v2547 = vld [vmem:[%s336 + $0x8a8] sm:$0xff]
        %v2548 = vld [vmem:[%s336 + $0x8b0] sm:$0xff]
        %v2549 = vld [vmem:[%s336 + $0x8b8] sm:$0xff]
        %v2550 = vld [vmem:[%s336 + $0x8c0] sm:$0xff]
        %v2551 = vld [vmem:[%s336 + $0x8c8] sm:$0xff]
        %v2552 = vld [vmem:[%s336 + $0x8d0] sm:$0xff]
        %v2553 = vld [vmem:[%s336 + $0x8d8] sm:$0xff]
        %v2554 = vld [vmem:[%s336 + $0x8e0] sm:$0xff]
        %v2555 = vld [vmem:[%s336 + $0x8e8] sm:$0xff]
        %v2556 = vld [vmem:[%s336 + $0x8f0] sm:$0xff]
        %v2557 = vld [vmem:[%s336 + $0x8f8] sm:$0xff]
        %v2558 = vld [vmem:[%s345] sm:$0x3f]
        %v2560 = vlaneseq
        %v2561 = vshrl.u32 %v2560, 7
        %v2562 = vsub.s32 0, %v2561
        %v2563 = vrot.slane %v2558, %v2562
        %v2564 = vlaneseq
        %v2565 = vshrl.u32 %v2564, 7
        %v2566 = vsub.s32 1, %v2565
        %v2567 = vrot.slane %v2558, %v2566
        %v2568 = vlaneseq
        %v2569 = vshrl.u32 %v2568, 7
        %v2570 = vsub.s32 2, %v2569
        %v2571 = vrot.slane %v2558, %v2570
        %v2572 = vlaneseq
        %v2573 = vshrl.u32 %v2572, 7
        %v2574 = vsub.s32 3, %v2573
        %v2575 = vrot.slane %v2558, %v2574
        %v2576 = vlaneseq
        %v2577 = vshrl.u32 %v2576, 7
        %v2578 = vsub.s32 4, %v2577
        %v2579 = vrot.slane %v2558, %v2578
        %v2580 = vlaneseq
        %v2581 = vshrl.u32 %v2580, 7
        %v2582 = vsub.s32 5, %v2581
        %v2583 = vrot.slane %v2558, %v2582
        %v2878 = vunpack.c.l.b16 %v2270
        %v2879 = vunpack.c.h.b16 %v2270
        %v2880 = vunpack.c.l.b16 %v2271
        %v2881 = vunpack.c.h.b16 %v2271
        %v2882 = vunpack.c.l.b16 %v2272
        %v2883 = vunpack.c.h.b16 %v2272
        %v2884 = vunpack.c.l.b16 %v2273
        %v2885 = vunpack.c.h.b16 %v2273
        %v2886 = vunpack.c.l.b16 %v2274
        %v2887 = vunpack.c.h.b16 %v2274
        %v2888 = vunpack.c.l.b16 %v2275
        %v2889 = vunpack.c.h.b16 %v2275
        %v2890 = vunpack.c.l.b16 %v2276
        %v2891 = vunpack.c.h.b16 %v2276
        %v2892 = vunpack.c.l.b16 %v2277
        %v2893 = vunpack.c.h.b16 %v2277
        %v2894 = vunpack.c.l.b16 %v2278
        %v2895 = vunpack.c.h.b16 %v2278
        %v2896 = vunpack.c.l.b16 %v2279
        %v2897 = vunpack.c.h.b16 %v2279
        %v2898 = vunpack.c.l.b16 %v2280
        %v2899 = vunpack.c.h.b16 %v2280
        %v2900 = vunpack.c.l.b16 %v2281
        %v2901 = vunpack.c.h.b16 %v2281
        %v2902 = vunpack.c.l.b16 %v2282
        %v2903 = vunpack.c.h.b16 %v2282
        %v2904 = vunpack.c.l.b16 %v2283
        %v2905 = vunpack.c.h.b16 %v2283
        %v2906 = vunpack.c.l.b16 %v2284
        %v2907 = vunpack.c.h.b16 %v2284
        %v2908 = vunpack.c.l.b16 %v2285
        %v2909 = vunpack.c.h.b16 %v2285
        %v2910 = vunpack.c.l.b16 %v2286
        %v2911 = vunpack.c.h.b16 %v2286
        %v2912 = vunpack.c.l.b16 %v2287
        %v2913 = vunpack.c.h.b16 %v2287
        %v2914 = vunpack.c.l.b16 %v2288
        %v2915 = vunpack.c.h.b16 %v2288
        %v2916 = vunpack.c.l.b16 %v2289
        %v2917 = vunpack.c.h.b16 %v2289
        %v2918 = vunpack.c.l.b16 %v2290
        %v2919 = vunpack.c.h.b16 %v2290
        %v2920 = vunpack.c.l.b16 %v2291
        %v2921 = vunpack.c.h.b16 %v2291
        %v2922 = vunpack.c.l.b16 %v2292
        %v2923 = vunpack.c.h.b16 %v2292
        %v2924 = vunpack.c.l.b16 %v2293
        %v2925 = vunpack.c.h.b16 %v2293
        %v2926 = vunpack.c.l.b16 %v2294
        %v2927 = vunpack.c.h.b16 %v2294
        %v2928 = vunpack.c.l.b16 %v2295
        %v2929 = vunpack.c.h.b16 %v2295
        %v2930 = vunpack.c.l.b16 %v2296
        %v2931 = vunpack.c.h.b16 %v2296
        %v2932 = vunpack.c.l.b16 %v2297
        %v2933 = vunpack.c.h.b16 %v2297
        %v2934 = vunpack.c.l.b16 %v2298
        %v2935 = vunpack.c.h.b16 %v2298
        %v2936 = vunpack.c.l.b16 %v2299
        %v2937 = vunpack.c.h.b16 %v2299
        %v2938 = vunpack.c.l.b16 %v2300
        %v2939 = vunpack.c.h.b16 %v2300
        %v2940 = vunpack.c.l.b16 %v2301
        %v2941 = vunpack.c.h.b16 %v2301
        %v2942 = vunpack.c.l.b16 %v2302
        %v2943 = vunpack.c.h.b16 %v2302
        %v2944 = vunpack.c.l.b16 %v2303
        %v2945 = vunpack.c.h.b16 %v2303
        %v2946 = vunpack.c.l.b16 %v2304
        %v2947 = vunpack.c.h.b16 %v2304
        %v2948 = vunpack.c.l.b16 %v2305
        %v2949 = vunpack.c.h.b16 %v2305
        %v2950 = vunpack.c.l.b16 %v2306
        %v2951 = vunpack.c.h.b16 %v2306
        %v2952 = vunpack.c.l.b16 %v2307
        %v2953 = vunpack.c.h.b16 %v2307
        %v2954 = vunpack.c.l.b16 %v2308
        %v2955 = vunpack.c.h.b16 %v2308
        %v2956 = vunpack.c.l.b16 %v2309
        %v2957 = vunpack.c.h.b16 %v2309
        %v2958 = vunpack.c.l.b16 %v2310
        %v2959 = vunpack.c.h.b16 %v2310
        %v2960 = vunpack.c.l.b16 %v2311
        %v2961 = vunpack.c.h.b16 %v2311
        %v2962 = vunpack.c.l.b16 %v2312
        %v2963 = vunpack.c.h.b16 %v2312
        %v2964 = vunpack.c.l.b16 %v2313
        %v2965 = vunpack.c.h.b16 %v2313
        %v2966 = vunpack.c.l.b16 %v2314
        %v2967 = vunpack.c.h.b16 %v2314
        %v2968 = vunpack.c.l.b16 %v2315
        %v2969 = vunpack.c.h.b16 %v2315
        %v2970 = vunpack.c.l.b16 %v2316
        %v2971 = vunpack.c.h.b16 %v2316
        %v2972 = vunpack.c.l.b16 %v2317
        %v2973 = vunpack.c.h.b16 %v2317
        %v2974 = vunpack.c.l.b16 %v2318
        %v2975 = vunpack.c.h.b16 %v2318
        %v2976 = vunpack.c.l.b16 %v2319
        %v2977 = vunpack.c.h.b16 %v2319
        %v2978 = vunpack.c.l.b16 %v2320
        %v2979 = vunpack.c.h.b16 %v2320
        %v2980 = vunpack.c.l.b16 %v2321
        %v2981 = vunpack.c.h.b16 %v2321
        %v2982 = vunpack.c.l.b16 %v2322
        %v2983 = vunpack.c.h.b16 %v2322
        %v2984 = vunpack.c.l.b16 %v2323
        %v2985 = vunpack.c.h.b16 %v2323
        %v2986 = vunpack.c.l.b16 %v2324
        %v2987 = vunpack.c.h.b16 %v2324
        %v2988 = vunpack.c.l.b16 %v2325
        %v2989 = vunpack.c.h.b16 %v2325
        %v2990 = vunpack.c.l.b16 %v2326
        %v2991 = vunpack.c.h.b16 %v2326
        %v2992 = vunpack.c.l.b16 %v2327
        %v2993 = vunpack.c.h.b16 %v2327
        %v2994 = vunpack.c.l.b16 %v2328
        %v2995 = vunpack.c.h.b16 %v2328
        %v2996 = vunpack.c.l.b16 %v2329
        %v2997 = vunpack.c.h.b16 %v2329
        %v2998 = vunpack.c.l.b16 %v2330
        %v2999 = vunpack.c.h.b16 %v2330
        %v3000 = vunpack.c.l.b16 %v2331
        %v3001 = vunpack.c.h.b16 %v2331
        %v3002 = vunpack.c.l.b16 %v2332
        %v3003 = vunpack.c.h.b16 %v2332
        %v3004 = vunpack.c.l.b16 %v2333
        %v3005 = vunpack.c.h.b16 %v2333
        %v3006 = vunpack.c.l.b16 %v2334
        %v3007 = vunpack.c.h.b16 %v2334
        %v3008 = vunpack.c.l.b16 %v2335
        %v3009 = vunpack.c.h.b16 %v2335
        %v3010 = vunpack.c.l.b16 %v2336
        %v3011 = vunpack.c.h.b16 %v2336
        %v3012 = vunpack.c.l.b16 %v2337
        %v3013 = vunpack.c.h.b16 %v2337
        %v3014 = vunpack.c.l.b16 %v2338
        %v3015 = vunpack.c.h.b16 %v2338
        %v3016 = vunpack.c.l.b16 %v2339
        %v3017 = vunpack.c.h.b16 %v2339
        %v3018 = vunpack.c.l.b16 %v2340
        %v3019 = vunpack.c.h.b16 %v2340
        %v3020 = vunpack.c.l.b16 %v2341
        %v3021 = vunpack.c.h.b16 %v2341
        %v3022 = vunpack.c.l.b16 %v2342
        %v3023 = vunpack.c.h.b16 %v2342
        %v3024 = vunpack.c.l.b16 %v2343
        %v3025 = vunpack.c.h.b16 %v2343
        %v3026 = vunpack.c.l.b16 %v2344
        %v3027 = vunpack.c.h.b16 %v2344
        %v3028 = vunpack.c.l.b16 %v2345
        %v3029 = vunpack.c.h.b16 %v2345
        %v3030 = vunpack.c.l.b16 %v2346
        %v3031 = vunpack.c.h.b16 %v2346
        %v3032 = vunpack.c.l.b16 %v2347
        %v3033 = vunpack.c.h.b16 %v2347
        %v3034 = vunpack.c.l.b16 %v2348
        %v3035 = vunpack.c.h.b16 %v2348
        %v3036 = vunpack.c.l.b16 %v2349
        %v3037 = vunpack.c.h.b16 %v2349
        %v3038 = vunpack.c.l.b16 %v2350
        %v3039 = vunpack.c.h.b16 %v2350
        %v3040 = vunpack.c.l.b16 %v2351
        %v3041 = vunpack.c.h.b16 %v2351
        %v3042 = vunpack.c.l.b16 %v2352
        %v3043 = vunpack.c.h.b16 %v2352
        %v3044 = vunpack.c.l.b16 %v2353
        %v3045 = vunpack.c.h.b16 %v2353
        %v3046 = vunpack.c.l.b16 %v2354
        %v3047 = vunpack.c.h.b16 %v2354
        %v3048 = vunpack.c.l.b16 %v2355
        %v3049 = vunpack.c.h.b16 %v2355
        %v3050 = vunpack.c.l.b16 %v2356
        %v3051 = vunpack.c.h.b16 %v2356
        %v3052 = vunpack.c.l.b16 %v2357
        %v3053 = vunpack.c.h.b16 %v2357
        %v3054 = vunpack.c.l.b16 %v2358
        %v3055 = vunpack.c.h.b16 %v2358
        %v3056 = vunpack.c.l.b16 %v2359
        %v3057 = vunpack.c.h.b16 %v2359
        %v3058 = vunpack.c.l.b16 %v2360
        %v3059 = vunpack.c.h.b16 %v2360
        %v3060 = vunpack.c.l.b16 %v2361
        %v3061 = vunpack.c.h.b16 %v2361
        %v3062 = vunpack.c.l.b16 %v2362
        %v3063 = vunpack.c.h.b16 %v2362
        %v3064 = vunpack.c.l.b16 %v2363
        %v3065 = vunpack.c.h.b16 %v2363
        %v3066 = vunpack.c.l.b16 %v2364
        %v3067 = vunpack.c.h.b16 %v2364
        %v3068 = vunpack.c.l.b16 %v2365
        %v3069 = vunpack.c.h.b16 %v2365
        %v3070 = vunpack.c.l.b16 %v2366
        %v3071 = vunpack.c.h.b16 %v2366
        %v3072 = vunpack.c.l.b16 %v2367
        %v3073 = vunpack.c.h.b16 %v2367
        %v3074 = vunpack.c.l.b16 %v2368
        %v3075 = vunpack.c.h.b16 %v2368
        %v3076 = vunpack.c.l.b16 %v2369
        %v3077 = vunpack.c.h.b16 %v2369
        %v3078 = vunpack.c.l.b16 %v2370
        %v3079 = vunpack.c.h.b16 %v2370
        %v3080 = vunpack.c.l.b16 %v2371
        %v3081 = vunpack.c.h.b16 %v2371
        %v3082 = vunpack.c.l.b16 %v2372
        %v3083 = vunpack.c.h.b16 %v2372
        %v3084 = vunpack.c.l.b16 %v2373
        %v3085 = vunpack.c.h.b16 %v2373
        %v3086 = vunpack.c.l.b16 %v2374
        %v3087 = vunpack.c.h.b16 %v2374
        %v3088 = vunpack.c.l.b16 %v2375
        %v3089 = vunpack.c.h.b16 %v2375
        %v3090 = vunpack.c.l.b16 %v2376
        %v3091 = vunpack.c.h.b16 %v2376
        %v3092 = vunpack.c.l.b16 %v2377
        %v3093 = vunpack.c.h.b16 %v2377
        %v3094 = vunpack.c.l.b16 %v2378
        %v3095 = vunpack.c.h.b16 %v2378
        %v3096 = vunpack.c.l.b16 %v2379
        %v3097 = vunpack.c.h.b16 %v2379
        %v3098 = vunpack.c.l.b16 %v2380
        %v3099 = vunpack.c.h.b16 %v2380
        %v3100 = vunpack.c.l.b16 %v2381
        %v3101 = vunpack.c.h.b16 %v2381
        %v3102 = vunpack.c.l.b16 %v2382
        %v3103 = vunpack.c.h.b16 %v2382
        %v3104 = vunpack.c.l.b16 %v2383
        %v3105 = vunpack.c.h.b16 %v2383
        %v3106 = vunpack.c.l.b16 %v2384
        %v3107 = vunpack.c.h.b16 %v2384
        %v3108 = vunpack.c.l.b16 %v2385
        %v3109 = vunpack.c.h.b16 %v2385
        %v3110 = vunpack.c.l.b16 %v2386
        %v3111 = vunpack.c.h.b16 %v2386
        %v3112 = vunpack.c.l.b16 %v2387
        %v3113 = vunpack.c.h.b16 %v2387
        %v3114 = vunpack.c.l.b16 %v2388
        %v3115 = vunpack.c.h.b16 %v2388
        %v3116 = vunpack.c.l.b16 %v2389
        %v3117 = vunpack.c.h.b16 %v2389
        %v3118 = vunpack.c.l.b16 %v2390
        %v3119 = vunpack.c.h.b16 %v2390
        %v3120 = vunpack.c.l.b16 %v2391
        %v3121 = vunpack.c.h.b16 %v2391
        %v3122 = vunpack.c.l.b16 %v2392
        %v3123 = vunpack.c.h.b16 %v2392
        %v3124 = vunpack.c.l.b16 %v2393
        %v3125 = vunpack.c.h.b16 %v2393
        %v3126 = vunpack.c.l.b16 %v2394
        %v3127 = vunpack.c.h.b16 %v2394
        %v3128 = vunpack.c.l.b16 %v2395
        %v3129 = vunpack.c.h.b16 %v2395
        %v3130 = vunpack.c.l.b16 %v2396
        %v3131 = vunpack.c.h.b16 %v2396
        %v3132 = vunpack.c.l.b16 %v2397
        %v3133 = vunpack.c.h.b16 %v2397
        %v3134 = vunpack.c.l.b16 %v2398
        %v3135 = vunpack.c.h.b16 %v2398
        %v3136 = vunpack.c.l.b16 %v2399
        %v3137 = vunpack.c.h.b16 %v2399
        %v3138 = vunpack.c.l.b16 %v2400
        %v3139 = vunpack.c.h.b16 %v2400
        %v3140 = vunpack.c.l.b16 %v2401
        %v3141 = vunpack.c.h.b16 %v2401
        %v3142 = vunpack.c.l.b16 %v2402
        %v3143 = vunpack.c.h.b16 %v2402
        %v3144 = vunpack.c.l.b16 %v2403
        %v3145 = vunpack.c.h.b16 %v2403
        %v3146 = vunpack.c.l.b16 %v2404
        %v3147 = vunpack.c.h.b16 %v2404
        %v3148 = vunpack.c.l.b16 %v2405
        %v3149 = vunpack.c.h.b16 %v2405
        %v3150 = vunpack.c.l.b16 %v2406
        %v3151 = vunpack.c.h.b16 %v2406
        %v3152 = vunpack.c.l.b16 %v2407
        %v3153 = vunpack.c.h.b16 %v2407
        %v3154 = vunpack.c.l.b16 %v2408
        %v3155 = vunpack.c.h.b16 %v2408
        %v3156 = vunpack.c.l.b16 %v2409
        %v3157 = vunpack.c.h.b16 %v2409
        %v3158 = vunpack.c.l.b16 %v2410
        %v3159 = vunpack.c.h.b16 %v2410
        %v3160 = vunpack.c.l.b16 %v2411
        %v3161 = vunpack.c.h.b16 %v2411
        %v3162 = vunpack.c.l.b16 %v2412
        %v3163 = vunpack.c.h.b16 %v2412
        %v3164 = vunpack.c.l.b16 %v2413
        %v3165 = vunpack.c.h.b16 %v2413
        %v3166 = vunpack.c.l.b16 %v2414
        %v3167 = vunpack.c.h.b16 %v2414
        %v3168 = vunpack.c.l.b16 %v2415
        %v3169 = vunpack.c.h.b16 %v2415
        %v3170 = vunpack.c.l.b16 %v2416
        %v3171 = vunpack.c.h.b16 %v2416
        %v3172 = vunpack.c.l.b16 %v2417
        %v3173 = vunpack.c.h.b16 %v2417
        %v3174 = vunpack.c.l.b16 %v2418
        %v3175 = vunpack.c.h.b16 %v2418
        %v3176 = vunpack.c.l.b16 %v2419
        %v3177 = vunpack.c.h.b16 %v2419
        %v3178 = vunpack.c.l.b16 %v2420
        %v3179 = vunpack.c.h.b16 %v2420
        %v3180 = vunpack.c.l.b16 %v2421
        %v3181 = vunpack.c.h.b16 %v2421
        %v3182 = vunpack.c.l.b16 %v2422
        %v3183 = vunpack.c.h.b16 %v2422
        %v3184 = vunpack.c.l.b16 %v2423
        %v3185 = vunpack.c.h.b16 %v2423
        %v3186 = vunpack.c.l.b16 %v2424
        %v3187 = vunpack.c.h.b16 %v2424
        %v3188 = vunpack.c.l.b16 %v2425
        %v3189 = vunpack.c.h.b16 %v2425
        %v3190 = vunpack.c.l.b16 %v2426
        %v3191 = vunpack.c.h.b16 %v2426
        %v3192 = vunpack.c.l.b16 %v2427
        %v3193 = vunpack.c.h.b16 %v2427
        %v3194 = vunpack.c.l.b16 %v2428
        %v3195 = vunpack.c.h.b16 %v2428
        %v3196 = vunpack.c.l.b16 %v2429
        %v3197 = vunpack.c.h.b16 %v2429
        %v3198 = vunpack.c.l.b16 %v2430
        %v3199 = vunpack.c.h.b16 %v2430
        %v3200 = vunpack.c.l.b16 %v2431
        %v3201 = vunpack.c.h.b16 %v2431
        %v3202 = vunpack.c.l.b16 %v2432
        %v3203 = vunpack.c.h.b16 %v2432
        %v3204 = vunpack.c.l.b16 %v2433
        %v3205 = vunpack.c.h.b16 %v2433
        %v3206 = vunpack.c.l.b16 %v2434
        %v3207 = vunpack.c.h.b16 %v2434
        %v3208 = vunpack.c.l.b16 %v2435
        %v3209 = vunpack.c.h.b16 %v2435
        %v3210 = vunpack.c.l.b16 %v2436
        %v3211 = vunpack.c.h.b16 %v2436
        %v3212 = vunpack.c.l.b16 %v2437
        %v3213 = vunpack.c.h.b16 %v2437
        %v3214 = vunpack.c.l.b16 %v2438
        %v3215 = vunpack.c.h.b16 %v2438
        %v3216 = vunpack.c.l.b16 %v2439
        %v3217 = vunpack.c.h.b16 %v2439
        %v3218 = vunpack.c.l.b16 %v2440
        %v3219 = vunpack.c.h.b16 %v2440
        %v3220 = vunpack.c.l.b16 %v2441
        %v3221 = vunpack.c.h.b16 %v2441
        %v3222 = vunpack.c.l.b16 %v2442
        %v3223 = vunpack.c.h.b16 %v2442
        %v3224 = vunpack.c.l.b16 %v2443
        %v3225 = vunpack.c.h.b16 %v2443
        %v3226 = vunpack.c.l.b16 %v2444
        %v3227 = vunpack.c.h.b16 %v2444
        %v3228 = vunpack.c.l.b16 %v2445
        %v3229 = vunpack.c.h.b16 %v2445
        %v3230 = vunpack.c.l.b16 %v2446
        %v3231 = vunpack.c.h.b16 %v2446
        %v3232 = vunpack.c.l.b16 %v2447
        %v3233 = vunpack.c.h.b16 %v2447
        %v3234 = vunpack.c.l.b16 %v2448
        %v3235 = vunpack.c.h.b16 %v2448
        %v3236 = vunpack.c.l.b16 %v2449
        %v3237 = vunpack.c.h.b16 %v2449
        %v3238 = vunpack.c.l.b16 %v2450
        %v3239 = vunpack.c.h.b16 %v2450
        %v3240 = vunpack.c.l.b16 %v2451
        %v3241 = vunpack.c.h.b16 %v2451
        %v3242 = vunpack.c.l.b16 %v2452
        %v3243 = vunpack.c.h.b16 %v2452
        %v3244 = vunpack.c.l.b16 %v2453
        %v3245 = vunpack.c.h.b16 %v2453
        %v3246 = vunpack.c.l.b16 %v2454
        %v3247 = vunpack.c.h.b16 %v2454
        %v3248 = vunpack.c.l.b16 %v2455
        %v3249 = vunpack.c.h.b16 %v2455
        %v3250 = vunpack.c.l.b16 %v2456
        %v3251 = vunpack.c.h.b16 %v2456
        %v3252 = vunpack.c.l.b16 %v2457
        %v3253 = vunpack.c.h.b16 %v2457
        %v3254 = vunpack.c.l.b16 %v2458
        %v3255 = vunpack.c.h.b16 %v2458
        %v3256 = vunpack.c.l.b16 %v2459
        %v3257 = vunpack.c.h.b16 %v2459
        %v3258 = vunpack.c.l.b16 %v2460
        %v3259 = vunpack.c.h.b16 %v2460
        %v3260 = vunpack.c.l.b16 %v2461
        %v3261 = vunpack.c.h.b16 %v2461
        %v3262 = vunpack.c.l.b16 %v2462
        %v3263 = vunpack.c.h.b16 %v2462
        %v3264 = vunpack.c.l.b16 %v2463
        %v3265 = vunpack.c.h.b16 %v2463
        %v3266 = vunpack.c.l.b16 %v2464
        %v3267 = vunpack.c.h.b16 %v2464
        %v3268 = vunpack.c.l.b16 %v2465
        %v3269 = vunpack.c.h.b16 %v2465
        %v3270 = vunpack.c.l.b16 %v2466
        %v3271 = vunpack.c.h.b16 %v2466
        %v3272 = vunpack.c.l.b16 %v2467
        %v3273 = vunpack.c.h.b16 %v2467
        %v3274 = vunpack.c.l.b16 %v2468
        %v3275 = vunpack.c.h.b16 %v2468
        %v3276 = vunpack.c.l.b16 %v2469
        %v3277 = vunpack.c.h.b16 %v2469
        %v3278 = vunpack.c.l.b16 %v2470
        %v3279 = vunpack.c.h.b16 %v2470
        %v3280 = vunpack.c.l.b16 %v2471
        %v3281 = vunpack.c.h.b16 %v2471
        %v3282 = vunpack.c.l.b16 %v2472
        %v3283 = vunpack.c.h.b16 %v2472
        %v3284 = vunpack.c.l.b16 %v2473
        %v3285 = vunpack.c.h.b16 %v2473
        %v3286 = vunpack.c.l.b16 %v2474
        %v3287 = vunpack.c.h.b16 %v2474
        %v3288 = vunpack.c.l.b16 %v2475
        %v3289 = vunpack.c.h.b16 %v2475
        %v3290 = vunpack.c.l.b16 %v2476
        %v3291 = vunpack.c.h.b16 %v2476
        %v3292 = vunpack.c.l.b16 %v2477
        %v3293 = vunpack.c.h.b16 %v2477
        %v3294 = vunpack.c.l.b16 %v2478
        %v3295 = vunpack.c.h.b16 %v2478
        %v3296 = vunpack.c.l.b16 %v2479
        %v3297 = vunpack.c.h.b16 %v2479
        %v3298 = vunpack.c.l.b16 %v2480
        %v3299 = vunpack.c.h.b16 %v2480
        %v3300 = vunpack.c.l.b16 %v2481
        %v3301 = vunpack.c.h.b16 %v2481
        %v3302 = vunpack.c.l.b16 %v2482
        %v3303 = vunpack.c.h.b16 %v2482
        %v3304 = vunpack.c.l.b16 %v2483
        %v3305 = vunpack.c.h.b16 %v2483
        %v3306 = vunpack.c.l.b16 %v2484
        %v3307 = vunpack.c.h.b16 %v2484
        %v3308 = vunpack.c.l.b16 %v2485
        %v3309 = vunpack.c.h.b16 %v2485
        %v3310 = vunpack.c.l.b16 %v2486
        %v3311 = vunpack.c.h.b16 %v2486
        %v3312 = vunpack.c.l.b16 %v2487
        %v3313 = vunpack.c.h.b16 %v2487
        %v3314 = vunpack.c.l.b16 %v2488
        %v3315 = vunpack.c.h.b16 %v2488
        %v3316 = vunpack.c.l.b16 %v2489
        %v3317 = vunpack.c.h.b16 %v2489
        %v3318 = vunpack.c.l.b16 %v2490
        %v3319 = vunpack.c.h.b16 %v2490
        %v3320 = vunpack.c.l.b16 %v2491
        %v3321 = vunpack.c.h.b16 %v2491
        %v3322 = vunpack.c.l.b16 %v2492
        %v3323 = vunpack.c.h.b16 %v2492
        %v3324 = vunpack.c.l.b16 %v2493
        %v3325 = vunpack.c.h.b16 %v2493
        %v3326 = vunpack.c.l.b16 %v2494
        %v3327 = vunpack.c.h.b16 %v2494
        %v3328 = vunpack.c.l.b16 %v2495
        %v3329 = vunpack.c.h.b16 %v2495
        %v3330 = vunpack.c.l.b16 %v2496
        %v3331 = vunpack.c.h.b16 %v2496
        %v3332 = vunpack.c.l.b16 %v2497
        %v3333 = vunpack.c.h.b16 %v2497
        %v3334 = vunpack.c.l.b16 %v2498
        %v3335 = vunpack.c.h.b16 %v2498
        %v3336 = vunpack.c.l.b16 %v2499
        %v3337 = vunpack.c.h.b16 %v2499
        %v3338 = vunpack.c.l.b16 %v2500
        %v3339 = vunpack.c.h.b16 %v2500
        %v3340 = vunpack.c.l.b16 %v2501
        %v3341 = vunpack.c.h.b16 %v2501
        %v3342 = vunpack.c.l.b16 %v2502
        %v3343 = vunpack.c.h.b16 %v2502
        %v3344 = vunpack.c.l.b16 %v2503
        %v3345 = vunpack.c.h.b16 %v2503
        %v3346 = vunpack.c.l.b16 %v2504
        %v3347 = vunpack.c.h.b16 %v2504
        %v3348 = vunpack.c.l.b16 %v2505
        %v3349 = vunpack.c.h.b16 %v2505
        %v3350 = vunpack.c.l.b16 %v2506
        %v3351 = vunpack.c.h.b16 %v2506
        %v3352 = vunpack.c.l.b16 %v2507
        %v3353 = vunpack.c.h.b16 %v2507
        %v3354 = vunpack.c.l.b16 %v2508
        %v3355 = vunpack.c.h.b16 %v2508
        %v3356 = vunpack.c.l.b16 %v2509
        %v3357 = vunpack.c.h.b16 %v2509
        %v3358 = vunpack.c.l.b16 %v2510
        %v3359 = vunpack.c.h.b16 %v2510
        %v3360 = vunpack.c.l.b16 %v2511
        %v3361 = vunpack.c.h.b16 %v2511
        %v3362 = vunpack.c.l.b16 %v2512
        %v3363 = vunpack.c.h.b16 %v2512
        %v3364 = vunpack.c.l.b16 %v2513
        %v3365 = vunpack.c.h.b16 %v2513
        %v3366 = vunpack.c.l.b16 %v2514
        %v3367 = vunpack.c.h.b16 %v2514
        %v3368 = vunpack.c.l.b16 %v2515
        %v3369 = vunpack.c.h.b16 %v2515
        %v3370 = vunpack.c.l.b16 %v2516
        %v3371 = vunpack.c.h.b16 %v2516
        %v3372 = vunpack.c.l.b16 %v2517
        %v3373 = vunpack.c.h.b16 %v2517
        %v3374 = vunpack.c.l.b16 %v2518
        %v3375 = vunpack.c.h.b16 %v2518
        %v3376 = vunpack.c.l.b16 %v2519
        %v3377 = vunpack.c.h.b16 %v2519
        %v3378 = vunpack.c.l.b16 %v2520
        %v3379 = vunpack.c.h.b16 %v2520
        %v3380 = vunpack.c.l.b16 %v2521
        %v3381 = vunpack.c.h.b16 %v2521
        %v3382 = vunpack.c.l.b16 %v2522
        %v3383 = vunpack.c.h.b16 %v2522
        %v3384 = vunpack.c.l.b16 %v2523
        %v3385 = vunpack.c.h.b16 %v2523
        %v3386 = vunpack.c.l.b16 %v2524
        %v3387 = vunpack.c.h.b16 %v2524
        %v3388 = vunpack.c.l.b16 %v2525
        %v3389 = vunpack.c.h.b16 %v2525
        %v3390 = vunpack.c.l.b16 %v2526
        %v3391 = vunpack.c.h.b16 %v2526
        %v3392 = vunpack.c.l.b16 %v2527
        %v3393 = vunpack.c.h.b16 %v2527
        %v3394 = vunpack.c.l.b16 %v2528
        %v3395 = vunpack.c.h.b16 %v2528
        %v3396 = vunpack.c.l.b16 %v2529
        %v3397 = vunpack.c.h.b16 %v2529
        %v3398 = vunpack.c.l.b16 %v2530
        %v3399 = vunpack.c.h.b16 %v2530
        %v3400 = vunpack.c.l.b16 %v2531
        %v3401 = vunpack.c.h.b16 %v2531
        %v3402 = vunpack.c.l.b16 %v2532
        %v3403 = vunpack.c.h.b16 %v2532
        %v3404 = vunpack.c.l.b16 %v2533
        %v3405 = vunpack.c.h.b16 %v2533
        %v3406 = vunpack.c.l.b16 %v2534
        %v3407 = vunpack.c.h.b16 %v2534
        %v3408 = vunpack.c.l.b16 %v2535
        %v3409 = vunpack.c.h.b16 %v2535
        %v3410 = vunpack.c.l.b16 %v2536
        %v3411 = vunpack.c.h.b16 %v2536
        %v3412 = vunpack.c.l.b16 %v2537
        %v3413 = vunpack.c.h.b16 %v2537
        %v3414 = vunpack.c.l.b16 %v2538
        %v3415 = vunpack.c.h.b16 %v2538
        %v3416 = vunpack.c.l.b16 %v2539
        %v3417 = vunpack.c.h.b16 %v2539
        %v3418 = vunpack.c.l.b16 %v2540
        %v3419 = vunpack.c.h.b16 %v2540
        %v3420 = vunpack.c.l.b16 %v2541
        %v3421 = vunpack.c.h.b16 %v2541
        %v3422 = vunpack.c.l.b16 %v2542
        %v3423 = vunpack.c.h.b16 %v2542
        %v3424 = vunpack.c.l.b16 %v2543
        %v3425 = vunpack.c.h.b16 %v2543
        %v3426 = vunpack.c.l.b16 %v2544
        %v3427 = vunpack.c.h.b16 %v2544
        %v3428 = vunpack.c.l.b16 %v2545
        %v3429 = vunpack.c.h.b16 %v2545
        %v3430 = vunpack.c.l.b16 %v2546
        %v3431 = vunpack.c.h.b16 %v2546
        %v3432 = vunpack.c.l.b16 %v2547
        %v3433 = vunpack.c.h.b16 %v2547
        %v3434 = vunpack.c.l.b16 %v2548
        %v3435 = vunpack.c.h.b16 %v2548
        %v3436 = vunpack.c.l.b16 %v2549
        %v3437 = vunpack.c.h.b16 %v2549
        %v3438 = vunpack.c.l.b16 %v2550
        %v3439 = vunpack.c.h.b16 %v2550
        %v3440 = vunpack.c.l.b16 %v2551
        %v3441 = vunpack.c.h.b16 %v2551
        %v3442 = vunpack.c.l.b16 %v2552
        %v3443 = vunpack.c.h.b16 %v2552
        %v3444 = vunpack.c.l.b16 %v2553
        %v3445 = vunpack.c.h.b16 %v2553
        %v3446 = vunpack.c.l.b16 %v2554
        %v3447 = vunpack.c.h.b16 %v2554
        %v3448 = vunpack.c.l.b16 %v2555
        %v3449 = vunpack.c.h.b16 %v2555
        %v3450 = vunpack.c.l.b16 %v2556
        %v3451 = vunpack.c.h.b16 %v2556
        %v3452 = vunpack.c.l.b16 %v2557
        %v3453 = vunpack.c.h.b16 %v2557
        %v3454 = vpack.c.b16 %v2884, %v2878
        %v3455 = vpack.c.b16 %v2885, %v2879
        %v3456 = vpack.c.b16 %v2886, %v2880
        %v3457 = vpack.c.b16 %v2887, %v2881
        %v3458 = vpack.c.b16 %v2888, %v2882
        %v3459 = vpack.c.b16 %v2889, %v2883
        %v3460 = vpack.c.b16 %v2896, %v2890
        %v3461 = vpack.c.b16 %v2897, %v2891
        %v3462 = vpack.c.b16 %v2898, %v2892
        %v3463 = vpack.c.b16 %v2899, %v2893
        %v3464 = vpack.c.b16 %v2900, %v2894
        %v3465 = vpack.c.b16 %v2901, %v2895
        %v3466 = vpack.c.b16 %v2908, %v2902
        %v3467 = vpack.c.b16 %v2909, %v2903
        %v3468 = vpack.c.b16 %v2910, %v2904
        %v3469 = vpack.c.b16 %v2911, %v2905
        %v3470 = vpack.c.b16 %v2912, %v2906
        %v3471 = vpack.c.b16 %v2913, %v2907
        %v3472 = vpack.c.b16 %v2920, %v2914
        %v3473 = vpack.c.b16 %v2921, %v2915
        %v3474 = vpack.c.b16 %v2922, %v2916
        %v3475 = vpack.c.b16 %v2923, %v2917
        %v3476 = vpack.c.b16 %v2924, %v2918
        %v3477 = vpack.c.b16 %v2925, %v2919
        %v3478 = vpack.c.b16 %v2932, %v2926
        %v3479 = vpack.c.b16 %v2933, %v2927
        %v3480 = vpack.c.b16 %v2934, %v2928
        %v3481 = vpack.c.b16 %v2935, %v2929
        %v3482 = vpack.c.b16 %v2936, %v2930
        %v3483 = vpack.c.b16 %v2937, %v2931
        %v3484 = vpack.c.b16 %v2944, %v2938
        %v3485 = vpack.c.b16 %v2945, %v2939
        %v3486 = vpack.c.b16 %v2946, %v2940
        %v3487 = vpack.c.b16 %v2947, %v2941
        %v3488 = vpack.c.b16 %v2948, %v2942
        %v3489 = vpack.c.b16 %v2949, %v2943
        %v3490 = vpack.c.b16 %v2956, %v2950
        %v3491 = vpack.c.b16 %v2957, %v2951
        %v3492 = vpack.c.b16 %v2958, %v2952
        %v3493 = vpack.c.b16 %v2959, %v2953
        %v3494 = vpack.c.b16 %v2960, %v2954
        %v3495 = vpack.c.b16 %v2961, %v2955
        %v3496 = vpack.c.b16 %v2968, %v2962
        %v3497 = vpack.c.b16 %v2969, %v2963
        %v3498 = vpack.c.b16 %v2970, %v2964
        %v3499 = vpack.c.b16 %v2971, %v2965
        %v3500 = vpack.c.b16 %v2972, %v2966
        %v3501 = vpack.c.b16 %v2973, %v2967
        %v3502 = vpack.c.b16 %v2980, %v2974
        %v3503 = vpack.c.b16 %v2981, %v2975
        %v3504 = vpack.c.b16 %v2982, %v2976
        %v3505 = vpack.c.b16 %v2983, %v2977
        %v3506 = vpack.c.b16 %v2984, %v2978
        %v3507 = vpack.c.b16 %v2985, %v2979
        %v3508 = vpack.c.b16 %v2992, %v2986
        %v3509 = vpack.c.b16 %v2993, %v2987
        %v3510 = vpack.c.b16 %v2994, %v2988
        %v3511 = vpack.c.b16 %v2995, %v2989
        %v3512 = vpack.c.b16 %v2996, %v2990
        %v3513 = vpack.c.b16 %v2997, %v2991
        %v3514 = vpack.c.b16 %v3004, %v2998
        %v3515 = vpack.c.b16 %v3005, %v2999
        %v3516 = vpack.c.b16 %v3006, %v3000
        %v3517 = vpack.c.b16 %v3007, %v3001
        %v3518 = vpack.c.b16 %v3008, %v3002
        %v3519 = vpack.c.b16 %v3009, %v3003
        %v3520 = vpack.c.b16 %v3016, %v3010
        %v3521 = vpack.c.b16 %v3017, %v3011
        %v3522 = vpack.c.b16 %v3018, %v3012
        %v3523 = vpack.c.b16 %v3019, %v3013
        %v3524 = vpack.c.b16 %v3020, %v3014
        %v3525 = vpack.c.b16 %v3021, %v3015
        %v3526 = vpack.c.b16 %v3028, %v3022
        %v3527 = vpack.c.b16 %v3029, %v3023
        %v3528 = vpack.c.b16 %v3030, %v3024
        %v3529 = vpack.c.b16 %v3031, %v3025
        %v3530 = vpack.c.b16 %v3032, %v3026
        %v3531 = vpack.c.b16 %v3033, %v3027
        %v3532 = vpack.c.b16 %v3040, %v3034
        %v3533 = vpack.c.b16 %v3041, %v3035
        %v3534 = vpack.c.b16 %v3042, %v3036
        %v3535 = vpack.c.b16 %v3043, %v3037
        %v3536 = vpack.c.b16 %v3044, %v3038
        %v3537 = vpack.c.b16 %v3045, %v3039
        %v3538 = vpack.c.b16 %v3052, %v3046
        %v3539 = vpack.c.b16 %v3053, %v3047
        %v3540 = vpack.c.b16 %v3054, %v3048
        %v3541 = vpack.c.b16 %v3055, %v3049
        %v3542 = vpack.c.b16 %v3056, %v3050
        %v3543 = vpack.c.b16 %v3057, %v3051
        %v3544 = vpack.c.b16 %v3064, %v3058
        %v3545 = vpack.c.b16 %v3065, %v3059
        %v3546 = vpack.c.b16 %v3066, %v3060
        %v3547 = vpack.c.b16 %v3067, %v3061
        %v3548 = vpack.c.b16 %v3068, %v3062
        %v3549 = vpack.c.b16 %v3069, %v3063
        %v3550 = vpack.c.b16 %v3076, %v3070
        %v3551 = vpack.c.b16 %v3077, %v3071
        %v3552 = vpack.c.b16 %v3078, %v3072
        %v3553 = vpack.c.b16 %v3079, %v3073
        %v3554 = vpack.c.b16 %v3080, %v3074
        %v3555 = vpack.c.b16 %v3081, %v3075
        %v3556 = vpack.c.b16 %v3088, %v3082
        %v3557 = vpack.c.b16 %v3089, %v3083
        %v3558 = vpack.c.b16 %v3090, %v3084
        %v3559 = vpack.c.b16 %v3091, %v3085
        %v3560 = vpack.c.b16 %v3092, %v3086
        %v3561 = vpack.c.b16 %v3093, %v3087
        %v3562 = vpack.c.b16 %v3100, %v3094
        %v3563 = vpack.c.b16 %v3101, %v3095
        %v3564 = vpack.c.b16 %v3102, %v3096
        %v3565 = vpack.c.b16 %v3103, %v3097
        %v3566 = vpack.c.b16 %v3104, %v3098
        %v3567 = vpack.c.b16 %v3105, %v3099
        %v3568 = vpack.c.b16 %v3112, %v3106
        %v3569 = vpack.c.b16 %v3113, %v3107
        %v3570 = vpack.c.b16 %v3114, %v3108
        %v3571 = vpack.c.b16 %v3115, %v3109
        %v3572 = vpack.c.b16 %v3116, %v3110
        %v3573 = vpack.c.b16 %v3117, %v3111
        %v3574 = vpack.c.b16 %v3124, %v3118
        %v3575 = vpack.c.b16 %v3125, %v3119
        %v3576 = vpack.c.b16 %v3126, %v3120
        %v3577 = vpack.c.b16 %v3127, %v3121
        %v3578 = vpack.c.b16 %v3128, %v3122
        %v3579 = vpack.c.b16 %v3129, %v3123
        %v3580 = vpack.c.b16 %v3136, %v3130
        %v3581 = vpack.c.b16 %v3137, %v3131
        %v3582 = vpack.c.b16 %v3138, %v3132
        %v3583 = vpack.c.b16 %v3139, %v3133
        %v3584 = vpack.c.b16 %v3140, %v3134
        %v3585 = vpack.c.b16 %v3141, %v3135
        %v3586 = vpack.c.b16 %v3148, %v3142
        %v3587 = vpack.c.b16 %v3149, %v3143
        %v3588 = vpack.c.b16 %v3150, %v3144
        %v3589 = vpack.c.b16 %v3151, %v3145
        %v3590 = vpack.c.b16 %v3152, %v3146
        %v3591 = vpack.c.b16 %v3153, %v3147
        %v3592 = vpack.c.b16 %v3160, %v3154
        %v3593 = vpack.c.b16 %v3161, %v3155
        %v3594 = vpack.c.b16 %v3162, %v3156
        %v3595 = vpack.c.b16 %v3163, %v3157
        %v3596 = vpack.c.b16 %v3164, %v3158
        %v3597 = vpack.c.b16 %v3165, %v3159
        %v3598 = vpack.c.b16 %v3172, %v3166
        %v3599 = vpack.c.b16 %v3173, %v3167
        %v3600 = vpack.c.b16 %v3174, %v3168
        %v3601 = vpack.c.b16 %v3175, %v3169
        %v3602 = vpack.c.b16 %v3176, %v3170
        %v3603 = vpack.c.b16 %v3177, %v3171
        %v3604 = vpack.c.b16 %v3184, %v3178
        %v3605 = vpack.c.b16 %v3185, %v3179
        %v3606 = vpack.c.b16 %v3186, %v3180
        %v3607 = vpack.c.b16 %v3187, %v3181
        %v3608 = vpack.c.b16 %v3188, %v3182
        %v3609 = vpack.c.b16 %v3189, %v3183
        %v3610 = vpack.c.b16 %v3196, %v3190
        %v3611 = vpack.c.b16 %v3197, %v3191
        %v3612 = vpack.c.b16 %v3198, %v3192
        %v3613 = vpack.c.b16 %v3199, %v3193
        %v3614 = vpack.c.b16 %v3200, %v3194
        %v3615 = vpack.c.b16 %v3201, %v3195
        %v3616 = vpack.c.b16 %v3208, %v3202
        %v3617 = vpack.c.b16 %v3209, %v3203
        %v3618 = vpack.c.b16 %v3210, %v3204
        %v3619 = vpack.c.b16 %v3211, %v3205
        %v3620 = vpack.c.b16 %v3212, %v3206
        %v3621 = vpack.c.b16 %v3213, %v3207
        %v3622 = vpack.c.b16 %v3220, %v3214
        %v3623 = vpack.c.b16 %v3221, %v3215
        %v3624 = vpack.c.b16 %v3222, %v3216
        %v3625 = vpack.c.b16 %v3223, %v3217
        %v3626 = vpack.c.b16 %v3224, %v3218
        %v3627 = vpack.c.b16 %v3225, %v3219
        %v3628 = vpack.c.b16 %v3232, %v3226
        %v3629 = vpack.c.b16 %v3233, %v3227
        %v3630 = vpack.c.b16 %v3234, %v3228
        %v3631 = vpack.c.b16 %v3235, %v3229
        %v3632 = vpack.c.b16 %v3236, %v3230
        %v3633 = vpack.c.b16 %v3237, %v3231
        %v3634 = vpack.c.b16 %v3244, %v3238
        %v3635 = vpack.c.b16 %v3245, %v3239
        %v3636 = vpack.c.b16 %v3246, %v3240
        %v3637 = vpack.c.b16 %v3247, %v3241
        %v3638 = vpack.c.b16 %v3248, %v3242
        %v3639 = vpack.c.b16 %v3249, %v3243
        %v3640 = vpack.c.b16 %v3256, %v3250
        %v3641 = vpack.c.b16 %v3257, %v3251
        %v3642 = vpack.c.b16 %v3258, %v3252
        %v3643 = vpack.c.b16 %v3259, %v3253
        %v3644 = vpack.c.b16 %v3260, %v3254
        %v3645 = vpack.c.b16 %v3261, %v3255
        %v3646 = vpack.c.b16 %v3268, %v3262
        %v3647 = vpack.c.b16 %v3269, %v3263
        %v3648 = vpack.c.b16 %v3270, %v3264
        %v3649 = vpack.c.b16 %v3271, %v3265
        %v3650 = vpack.c.b16 %v3272, %v3266
        %v3651 = vpack.c.b16 %v3273, %v3267
        %v3652 = vpack.c.b16 %v3280, %v3274
        %v3653 = vpack.c.b16 %v3281, %v3275
        %v3654 = vpack.c.b16 %v3282, %v3276
        %v3655 = vpack.c.b16 %v3283, %v3277
        %v3656 = vpack.c.b16 %v3284, %v3278
        %v3657 = vpack.c.b16 %v3285, %v3279
        %v3658 = vpack.c.b16 %v3292, %v3286
        %v3659 = vpack.c.b16 %v3293, %v3287
        %v3660 = vpack.c.b16 %v3294, %v3288
        %v3661 = vpack.c.b16 %v3295, %v3289
        %v3662 = vpack.c.b16 %v3296, %v3290
        %v3663 = vpack.c.b16 %v3297, %v3291
        %v3664 = vpack.c.b16 %v3304, %v3298
        %v3665 = vpack.c.b16 %v3305, %v3299
        %v3666 = vpack.c.b16 %v3306, %v3300
        %v3667 = vpack.c.b16 %v3307, %v3301
        %v3668 = vpack.c.b16 %v3308, %v3302
        %v3669 = vpack.c.b16 %v3309, %v3303
        %v3670 = vpack.c.b16 %v3316, %v3310
        %v3671 = vpack.c.b16 %v3317, %v3311
        %v3672 = vpack.c.b16 %v3318, %v3312
        %v3673 = vpack.c.b16 %v3319, %v3313
        %v3674 = vpack.c.b16 %v3320, %v3314
        %v3675 = vpack.c.b16 %v3321, %v3315
        %v3676 = vpack.c.b16 %v3328, %v3322
        %v3677 = vpack.c.b16 %v3329, %v3323
        %v3678 = vpack.c.b16 %v3330, %v3324
        %v3679 = vpack.c.b16 %v3331, %v3325
        %v3680 = vpack.c.b16 %v3332, %v3326
        %v3681 = vpack.c.b16 %v3333, %v3327
        %v3682 = vpack.c.b16 %v3340, %v3334
        %v3683 = vpack.c.b16 %v3341, %v3335
        %v3684 = vpack.c.b16 %v3342, %v3336
        %v3685 = vpack.c.b16 %v3343, %v3337
        %v3686 = vpack.c.b16 %v3344, %v3338
        %v3687 = vpack.c.b16 %v3345, %v3339
        %v3688 = vpack.c.b16 %v3352, %v3346
        %v3689 = vpack.c.b16 %v3353, %v3347
        %v3690 = vpack.c.b16 %v3354, %v3348
        %v3691 = vpack.c.b16 %v3355, %v3349
        %v3692 = vpack.c.b16 %v3356, %v3350
        %v3693 = vpack.c.b16 %v3357, %v3351
        %v3694 = vpack.c.b16 %v3364, %v3358
        %v3695 = vpack.c.b16 %v3365, %v3359
        %v3696 = vpack.c.b16 %v3366, %v3360
        %v3697 = vpack.c.b16 %v3367, %v3361
        %v3698 = vpack.c.b16 %v3368, %v3362
        %v3699 = vpack.c.b16 %v3369, %v3363
        %v3700 = vpack.c.b16 %v3376, %v3370
        %v3701 = vpack.c.b16 %v3377, %v3371
        %v3702 = vpack.c.b16 %v3378, %v3372
        %v3703 = vpack.c.b16 %v3379, %v3373
        %v3704 = vpack.c.b16 %v3380, %v3374
        %v3705 = vpack.c.b16 %v3381, %v3375
        %v3706 = vpack.c.b16 %v3388, %v3382
        %v3707 = vpack.c.b16 %v3389, %v3383
        %v3708 = vpack.c.b16 %v3390, %v3384
        %v3709 = vpack.c.b16 %v3391, %v3385
        %v3710 = vpack.c.b16 %v3392, %v3386
        %v3711 = vpack.c.b16 %v3393, %v3387
        %v3712 = vpack.c.b16 %v3400, %v3394
        %v3713 = vpack.c.b16 %v3401, %v3395
        %v3714 = vpack.c.b16 %v3402, %v3396
        %v3715 = vpack.c.b16 %v3403, %v3397
        %v3716 = vpack.c.b16 %v3404, %v3398
        %v3717 = vpack.c.b16 %v3405, %v3399
        %v3718 = vpack.c.b16 %v3412, %v3406
        %v3719 = vpack.c.b16 %v3413, %v3407
        %v3720 = vpack.c.b16 %v3414, %v3408
        %v3721 = vpack.c.b16 %v3415, %v3409
        %v3722 = vpack.c.b16 %v3416, %v3410
        %v3723 = vpack.c.b16 %v3417, %v3411
        %v3724 = vpack.c.b16 %v3424, %v3418
        %v3725 = vpack.c.b16 %v3425, %v3419
        %v3726 = vpack.c.b16 %v3426, %v3420
        %v3727 = vpack.c.b16 %v3427, %v3421
        %v3728 = vpack.c.b16 %v3428, %v3422
        %v3729 = vpack.c.b16 %v3429, %v3423
        %v3730 = vpack.c.b16 %v3436, %v3430
        %v3731 = vpack.c.b16 %v3437, %v3431
        %v3732 = vpack.c.b16 %v3438, %v3432
        %v3733 = vpack.c.b16 %v3439, %v3433
        %v3734 = vpack.c.b16 %v3440, %v3434
        %v3735 = vpack.c.b16 %v3441, %v3435
        %v3736 = vpack.c.b16 %v3448, %v3442
        %v3737 = vpack.c.b16 %v3449, %v3443
        %v3738 = vpack.c.b16 %v3450, %v3444
        %v3739 = vpack.c.b16 %v3451, %v3445
        %v3740 = vpack.c.b16 %v3452, %v3446
        %v3741 = vpack.c.b16 %v3453, %v3447
        %4030 = vmatprep.subr.bf16.mxu0 %v3455
        %4031 = vmatpush1.bf16.msra.mxu0 %v3454
        %4032 = vmatprep.subr.bf16.mxu0 %v3461
        %4033 = vmatpush1.bf16.msra.mxu0 %v3460
        %4034 = vmatprep.subr.bf16.mxu0 %v3467
        %4035 = vmatpush1.bf16.msra.mxu0 %v3466
        %4036 = vmatprep.subr.bf16.mxu0 %v3473
        %4037 = vmatpush1.bf16.msra.mxu0 %v3472
        %4038 = vmatprep.subr.bf16.mxu0 %v3479
        %4039 = vmatpush1.bf16.msra.mxu0 %v3478
        %4040 = vmatprep.subr.bf16.mxu0 %v3485
        %4041 = vmatpush1.bf16.msra.mxu0 %v3484
        %4042 = vmatprep.subr.bf16.mxu0 %v3491
        %4043 = vmatpush1.bf16.msra.mxu0 %v3490
        %4044 = vmatprep.subr.bf16.mxu0 %v3497
        %4045 = vmatpush1.bf16.msra.mxu0 %v3496
        %4046 = vmatprep.subr.bf16.mxu0 %v3503
        %4047 = vmatpush1.bf16.msra.mxu0 %v3502
        %4048 = vmatprep.subr.bf16.mxu0 %v3509
        %4049 = vmatpush1.bf16.msra.mxu0 %v3508
        %4050 = vmatprep.subr.bf16.mxu0 %v3515
        %4051 = vmatpush1.bf16.msra.mxu0 %v3514
        %4052 = vmatprep.subr.bf16.mxu0 %v3521
        %4053 = vmatpush1.bf16.msra.mxu0 %v3520
        %4054 = vmatprep.subr.bf16.mxu0 %v3527
        %4055 = vmatpush1.bf16.msra.mxu0 %v3526
        %4056 = vmatprep.subr.bf16.mxu0 %v3533
        %4057 = vmatpush1.bf16.msra.mxu0 %v3532
        %4058 = vmatprep.subr.bf16.mxu0 %v3539
        %4059 = vmatpush1.bf16.msra.mxu0 %v3538
        %4060 = vmatprep.subr.bf16.mxu0 %v3545
        %4061 = vmatpush1.bf16.msra.mxu0 %v3544
        %4062 = vmatprep.mubr.bf16.mxu0 %v2193
        %4063 = vmatmul.mubr.bf16.gmra.mrb[0].mxu0 %v2192
        %v4064 = vpop.f32.mrb[0].mxu0
        %v4065 = vadd.f32 %v2563, %v4064
        %v4066 = vpop.f32.mrb[0].mxu0
        %v4067 = vadd.f32 %v2567, %v4066
        %v4068 = vpop.f32.mrb[0].mxu0
        %v4069 = vadd.f32 %v2563, %v4068
        %v4070 = vpop.f32.mrb[0].mxu0
        %v4071 = vadd.f32 %v2567, %v4070
        %4072 = vmatprep.mubr.bf16.mxu0 %v2199
        %4073 = vmatmul.mubr.bf16.gmra.mrb[0].mxu0 %v2198
        %v4074 = vpop.f32.mrb[0].mxu0
        %v4075 = vadd.f32 %v2563, %v4074
        %v4076 = vpop.f32.mrb[0].mxu0
        %v4077 = vadd.f32 %v2567, %v4076
        %v4078 = vpop.f32.mrb[0].mxu0
        %v4079 = vadd.f32 %v2563, %v4078
        %v4080 = vpop.f32.mrb[0].mxu0
        %v4081 = vadd.f32 %v2567, %v4080
        %4082 = vmatprep.mubr.bf16.mxu0 %v2205
        %4083 = vmatmul.mubr.bf16.gmra.mrb[0].mxu0 %v2204
        %v4084 = vpop.f32.mrb[0].mxu0
        %v4085 = vadd.f32 %v2563, %v4084
        %v4086 = vpop.f32.mrb[0].mxu0
        %v4087 = vadd.f32 %v2567, %v4086
        %v4088 = vpop.f32.mrb[0].mxu0
        %v4089 = vadd.f32 %v2563, %v4088
        %v4090 = vpop.f32.mrb[0].mxu0
        %v4091 = vadd.f32 %v2567, %v4090
        %4092 = vmatprep.mubr.bf16.mxu0 %v2211
        %4093 = vmatmul.mubr.bf16.gmra.mrb[0].mxu0 %v2210
        %v4094 = vpop.f32.mrb[0].mxu0
        %v4095 = vadd.f32 %v2563, %v4094
        %v4096 = vpop.f32.mrb[0].mxu0
        %v4097 = vadd.f32 %v2567, %v4096
        %v4098 = vpop.f32.mrb[0].mxu0
        %v4099 = vadd.f32 %v2563, %v4098
        %v4100 = vpop.f32.mrb[0].mxu0
        %v4101 = vadd.f32 %v2567, %v4100
        %4102 = vmatprep.mubr.bf16.mxu0 %v2217
        %4103 = vmatmul.mubr.bf16.gmra.mrb[0].mxu0 %v2216
        %v4104 = vpop.f32.mrb[0].mxu0
        %v4105 = vadd.f32 %v2563, %v4104
        %v4106 = vpop.f32.mrb[0].mxu0
        %v4107 = vadd.f32 %v2567, %v4106
        %v4108 = vpop.f32.mrb[0].mxu0
        %v4109 = vadd.f32 %v2563, %v4108
        %v4110 = vpop.f32.mrb[0].mxu0
        %v4111 = vadd.f32 %v2567, %v4110
        %4112 = vmatprep.mubr.bf16.mxu0 %v2223
        %4113 = vmatmul.mubr.bf16.gmra.mrb[0].mxu0 %v2222
        %v4114 = vpop.f32.mrb[0].mxu0
        %v4115 = vadd.f32 %v2563, %v4114
        %v4116 = vpop.f32.mrb[0].mxu0
        %v4117 = vadd.f32 %v2567, %v4116
        %v4118 = vpop.f32.mrb[0].mxu0
        %v4119 = vadd.f32 %v2563, %v4118
        %v4120 = vpop.f32.mrb[0].mxu0
        %v4121 = vadd.f32 %v2567, %v4120
        %4122 = vmatprep.mubr.bf16.mxu0 %v2229
        %4123 = vmatmul.mubr.bf16.gmra.mrb[0].mxu0 %v2228
        %v4124 = vpop.f32.mrb[0].mxu0
        %v4125 = vadd.f32 %v2563, %v4124
        %v4126 = vpop.f32.mrb[0].mxu0
        %v4127 = vadd.f32 %v2567, %v4126
        %v4128 = vpop.f32.mrb[0].mxu0
        %v4129 = vadd.f32 %v2563, %v4128
        %v4130 = vpop.f32.mrb[0].mxu0
        %v4131 = vadd.f32 %v2567, %v4130
        %4132 = vmatprep.mubr.bf16.mxu0 %v2235
        %4133 = vmatmul.mubr.bf16.gmra.mrb[0].mxu0 %v2234
        %v4134 = vpop.f32.mrb[0].mxu0
        %v4135 = vadd.f32 %v2563, %v4134
        %v4136 = vpop.f32.mrb[0].mxu0
        %v4137 = vadd.f32 %v2567, %v4136
        %v4138 = vpop.f32.mrb[0].mxu0
        %v4139 = vadd.f32 %v2563, %v4138
        %v4140 = vpop.f32.mrb[0].mxu0
        %v4141 = vadd.f32 %v2567, %v4140
        %4142 = vmatprep.mubr.bf16.mxu0 %v2241
        %4143 = vmatmul.mubr.bf16.gmra.mrb[0].mxu0 %v2240
        %v4144 = vpop.f32.mrb[0].mxu0
        %v4145 = vadd.f32 %v2563, %v4144
        %v4146 = vpop.f32.mrb[0].mxu0
        %v4147 = vadd.f32 %v2567, %v4146
        %v4148 = vpop.f32.mrb[0].mxu0
        %v4149 = vadd.f32 %v2563, %v4148
        %v4150 = vpop.f32.mrb[0].mxu0
        %v4151 = vadd.f32 %v2567, %v4150
        %4152 = vmatprep.mubr.bf16.mxu0 %v2247
        %4153 = vmatmul.mubr.bf16.gmra.mrb[0].mxu0 %v2246
        %v4154 = vpop.f32.mrb[0].mxu0
        %v4155 = vadd.f32 %v2563, %v4154
        %v4156 = vpop.f32.mrb[0].mxu0
        %v4157 = vadd.f32 %v2567, %v4156
        %v4158 = vpop.f32.mrb[0].mxu0
        %v4159 = vadd.f32 %v2563, %v4158
        %v4160 = vpop.f32.mrb[0].mxu0
        %v4161 = vadd.f32 %v2567, %v4160
        %4162 = vmatprep.mubr.bf16.mxu0 %v2253
        %4163 = vmatmul.mubr.bf16.gmra.mrb[0].mxu0 %v2252
        %v4164 = vpop.f32.mrb[0].mxu0
        %v4165 = vadd.f32 %v2563, %v4164
        %v4166 = vpop.f32.mrb[0].mxu0
        %v4167 = vadd.f32 %v2567, %v4166
        %v4168 = vpop.f32.mrb[0].mxu0
        %v4169 = vadd.f32 %v2563, %v4168
        %v4170 = vpop.f32.mrb[0].mxu0
        %v4171 = vadd.f32 %v2567, %v4170
        %4172 = vmatprep.mubr.bf16.mxu0 %v2259
        %4173 = vmatmul.mubr.bf16.gmra.mrb[0].mxu0 %v2258
        %v4174 = vpop.f32.mrb[0].mxu0
        %v4175 = vadd.f32 %v2563, %v4174
        %v4176 = vpop.f32.mrb[0].mxu0
        %v4177 = vadd.f32 %v2567, %v4176
        %v4178 = vpop.f32.mrb[0].mxu0
        %v4179 = vadd.f32 %v2563, %v4178
        %v4180 = vpop.f32.mrb[0].mxu0
        %v4181 = vadd.f32 %v2567, %v4180
        %4182 = vmatprep.mubr.bf16.mxu0 %v2265
        %4183 = vmatmul.mubr.bf16.gmra.mrb[0].mxu0 %v2264
        %v4184 = vpop.f32.mrb[0].mxu0
        %v4185 = vadd.f32 %v2563, %v4184
        %v4186 = vpop.f32.mrb[0].mxu0
        %v4187 = vadd.f32 %v2567, %v4186
        %v4188 = vpop.f32.mrb[0].mxu0
        %v4189 = vadd.f32 %v2563, %v4188
        %v4190 = vpop.f32.mrb[0].mxu0
        %v4191 = vadd.f32 %v2567, %v4190
        %4192 = vdwg.mxu0
        %4193 = vmatprep.subr.bf16.mxu0 %v3551
        %4194 = vmatpush1.bf16.msra.mxu0 %v3550
        %4195 = vmatprep.subr.bf16.mxu0 %v3557
        %4196 = vmatpush1.bf16.msra.mxu0 %v3556
        %4197 = vmatprep.subr.bf16.mxu0 %v3563
        %4198 = vmatpush1.bf16.msra.mxu0 %v3562
        %4199 = vmatprep.subr.bf16.mxu0 %v3569
        %4200 = vmatpush1.bf16.msra.mxu0 %v3568
        %4201 = vmatprep.subr.bf16.mxu0 %v3575
        %4202 = vmatpush1.bf16.msra.mxu0 %v3574
        %4203 = vmatprep.subr.bf16.mxu0 %v3581
        %4204 = vmatpush1.bf16.msra.mxu0 %v3580
        %4205 = vmatprep.subr.bf16.mxu0 %v3587
        %4206 = vmatpush1.bf16.msra.mxu0 %v3586
        %4207 = vmatprep.subr.bf16.mxu0 %v3593
        %4208 = vmatpush1.bf16.msra.mxu0 %v3592
        %4209 = vmatprep.subr.bf16.mxu0 %v3599
        %4210 = vmatpush1.bf16.msra.mxu0 %v3598
        %4211 = vmatprep.subr.bf16.mxu0 %v3605
        %4212 = vmatpush1.bf16.msra.mxu0 %v3604
        %4213 = vmatprep.subr.bf16.mxu0 %v3611
        %4214 = vmatpush1.bf16.msra.mxu0 %v3610
        %4215 = vmatprep.subr.bf16.mxu0 %v3617
        %4216 = vmatpush1.bf16.msra.mxu0 %v3616
        %4217 = vmatprep.subr.bf16.mxu0 %v3623
        %4218 = vmatpush1.bf16.msra.mxu0 %v3622
        %4219 = vmatprep.subr.bf16.mxu0 %v3629
        %4220 = vmatpush1.bf16.msra.mxu0 %v3628
        %4221 = vmatprep.subr.bf16.mxu0 %v3635
        %4222 = vmatpush1.bf16.msra.mxu0 %v3634
        %4223 = vmatprep.subr.bf16.mxu0 %v3641
        %4224 = vmatpush1.bf16.msra.mxu0 %v3640
        %4225 = vmatprep.mubr.bf16.mxu0 %v2195
        %4226 = vmatmul.mubr.bf16.gmra.mrb[0].mxu0 %v2194
        %v4227 = vpop.f32.mrb[0].mxu0
        %v4228 = vadd.f32 %v4065, %v4227
        %v4229 = vpop.f32.mrb[0].mxu0
        %v4230 = vadd.f32 %v4067, %v4229
        %v4231 = vpop.f32.mrb[0].mxu0
        %v4232 = vadd.f32 %v4069, %v4231
        %v4233 = vpop.f32.mrb[0].mxu0
        %v4234 = vadd.f32 %v4071, %v4233
        %4235 = vmatprep.mubr.bf16.mxu0 %v2201
        %4236 = vmatmul.mubr.bf16.gmra.mrb[0].mxu0 %v2200
        %v4237 = vpop.f32.mrb[0].mxu0
        %v4238 = vadd.f32 %v4075, %v4237
        %v4239 = vpop.f32.mrb[0].mxu0
        %v4240 = vadd.f32 %v4077, %v4239
        %v4241 = vpop.f32.mrb[0].mxu0
        %v4242 = vadd.f32 %v4079, %v4241
        %v4243 = vpop.f32.mrb[0].mxu0
        %v4244 = vadd.f32 %v4081, %v4243
        %4245 = vmatprep.mubr.bf16.mxu0 %v2207
        %4246 = vmatmul.mubr.bf16.gmra.mrb[0].mxu0 %v2206
        %v4247 = vpop.f32.mrb[0].mxu0
        %v4248 = vadd.f32 %v4085, %v4247
        %v4249 = vpop.f32.mrb[0].mxu0
        %v4250 = vadd.f32 %v4087, %v4249
        %v4251 = vpop.f32.mrb[0].mxu0
        %v4252 = vadd.f32 %v4089, %v4251
        %v4253 = vpop.f32.mrb[0].mxu0
        %v4254 = vadd.f32 %v4091, %v4253
        %4255 = vmatprep.mubr.bf16.mxu0 %v2213
        %4256 = vmatmul.mubr.bf16.gmra.mrb[0].mxu0 %v2212
        %v4257 = vpop.f32.mrb[0].mxu0
        %v4258 = vadd.f32 %v4095, %v4257
        %v4259 = vpop.f32.mrb[0].mxu0
        %v4260 = vadd.f32 %v4097, %v4259
        %v4261 = vpop.f32.mrb[0].mxu0
        %v4262 = vadd.f32 %v4099, %v4261
        %v4263 = vpop.f32.mrb[0].mxu0
        %v4264 = vadd.f32 %v4101, %v4263
        %4265 = vmatprep.mubr.bf16.mxu0 %v2219
        %4266 = vmatmul.mubr.bf16.gmra.mrb[0].mxu0 %v2218
        %v4267 = vpop.f32.mrb[0].mxu0
        %v4268 = vadd.f32 %v4105, %v4267
        %v4269 = vpop.f32.mrb[0].mxu0
        %v4270 = vadd.f32 %v4107, %v4269
        %v4271 = vpop.f32.mrb[0].mxu0
        %v4272 = vadd.f32 %v4109, %v4271
        %v4273 = vpop.f32.mrb[0].mxu0
        %v4274 = vadd.f32 %v4111, %v4273
        %4275 = vmatprep.mubr.bf16.mxu0 %v2225
        %4276 = vmatmul.mubr.bf16.gmra.mrb[0].mxu0 %v2224
        %v4277 = vpop.f32.mrb[0].mxu0
        %v4278 = vadd.f32 %v4115, %v4277
        %v4279 = vpop.f32.mrb[0].mxu0
        %v4280 = vadd.f32 %v4117, %v4279
        %v4281 = vpop.f32.mrb[0].mxu0
        %v4282 = vadd.f32 %v4119, %v4281
        %v4283 = vpop.f32.mrb[0].mxu0
        %v4284 = vadd.f32 %v4121, %v4283
        %4285 = vmatprep.mubr.bf16.mxu0 %v2231
        %4286 = vmatmul.mubr.bf16.gmra.mrb[0].mxu0 %v2230
        %v4287 = vpop.f32.mrb[0].mxu0
        %v4288 = vadd.f32 %v4125, %v4287
        %v4289 = vpop.f32.mrb[0].mxu0
        %v4290 = vadd.f32 %v4127, %v4289
        %v4291 = vpop.f32.mrb[0].mxu0
        %v4292 = vadd.f32 %v4129, %v4291
        %v4293 = vpop.f32.mrb[0].mxu0
        %v4294 = vadd.f32 %v4131, %v4293
        %4295 = vmatprep.mubr.bf16.mxu0 %v2237
        %4296 = vmatmul.mubr.bf16.gmra.mrb[0].mxu0 %v2236
        %v4297 = vpop.f32.mrb[0].mxu0
        %v4298 = vadd.f32 %v4135, %v4297
        %v4299 = vpop.f32.mrb[0].mxu0
        %v4300 = vadd.f32 %v4137, %v4299
        %v4301 = vpop.f32.mrb[0].mxu0
        %v4302 = vadd.f32 %v4139, %v4301
        %v4303 = vpop.f32.mrb[0].mxu0
        %v4304 = vadd.f32 %v4141, %v4303
        %4305 = vmatprep.mubr.bf16.mxu0 %v2243
        %4306 = vmatmul.mubr.bf16.gmra.mrb[0].mxu0 %v2242
        %v4307 = vpop.f32.mrb[0].mxu0
        %v4308 = vadd.f32 %v4145, %v4307
        %v4309 = vpop.f32.mrb[0].mxu0
        %v4310 = vadd.f32 %v4147, %v4309
        %v4311 = vpop.f32.mrb[0].mxu0
        %v4312 = vadd.f32 %v4149, %v4311
        %v4313 = vpop.f32.mrb[0].mxu0
        %v4314 = vadd.f32 %v4151, %v4313
        %4315 = vmatprep.mubr.bf16.mxu0 %v2249
        %4316 = vmatmul.mubr.bf16.gmra.mrb[0].mxu0 %v2248
        %v4317 = vpop.f32.mrb[0].mxu0
        %v4318 = vadd.f32 %v4155, %v4317
        %v4319 = vpop.f32.mrb[0].mxu0
        %v4320 = vadd.f32 %v4157, %v4319
        %v4321 = vpop.f32.mrb[0].mxu0
        %v4322 = vadd.f32 %v4159, %v4321
        %v4323 = vpop.f32.mrb[0].mxu0
        %v4324 = vadd.f32 %v4161, %v4323
        %4325 = vmatprep.mubr.bf16.mxu0 %v2255
        %4326 = vmatmul.mubr.bf16.gmra.mrb[0].mxu0 %v2254
        %v4327 = vpop.f32.mrb[0].mxu0
        %v4328 = vadd.f32 %v4165, %v4327
        %v4329 = vpop.f32.mrb[0].mxu0
        %v4330 = vadd.f32 %v4167, %v4329
        %v4331 = vpop.f32.mrb[0].mxu0
        %v4332 = vadd.f32 %v4169, %v4331
        %v4333 = vpop.f32.mrb[0].mxu0
        %v4334 = vadd.f32 %v4171, %v4333
        %4335 = vmatprep.mubr.bf16.mxu0 %v2261
        %4336 = vmatmul.mubr.bf16.gmra.mrb[0].mxu0 %v2260
        %v4337 = vpop.f32.mrb[0].mxu0
        %v4338 = vadd.f32 %v4175, %v4337
        %v4339 = vpop.f32.mrb[0].mxu0
        %v4340 = vadd.f32 %v4177, %v4339
        %v4341 = vpop.f32.mrb[0].mxu0
        %v4342 = vadd.f32 %v4179, %v4341
        %v4343 = vpop.f32.mrb[0].mxu0
        %v4344 = vadd.f32 %v4181, %v4343
        %4345 = vmatprep.mubr.bf16.mxu0 %v2267
        %4346 = vmatmul.mubr.bf16.gmra.mrb[0].mxu0 %v2266
        %v4347 = vpop.f32.mrb[0].mxu0
        %v4348 = vadd.f32 %v4185, %v4347
        %v4349 = vpop.f32.mrb[0].mxu0
        %v4350 = vadd.f32 %v4187, %v4349
        %v4351 = vpop.f32.mrb[0].mxu0
        %v4352 = vadd.f32 %v4189, %v4351
        %v4353 = vpop.f32.mrb[0].mxu0
        %v4354 = vadd.f32 %v4191, %v4353
        %4355 = vdwg.mxu0
        %4356 = vmatprep.subr.bf16.mxu0 %v3647
        %4357 = vmatpush1.bf16.msra.mxu0 %v3646
        %4358 = vmatprep.subr.bf16.mxu0 %v3653
        %4359 = vmatpush1.bf16.msra.mxu0 %v3652
        %4360 = vmatprep.subr.bf16.mxu0 %v3659
        %4361 = vmatpush1.bf16.msra.mxu0 %v3658
        %4362 = vmatprep.subr.bf16.mxu0 %v3665
        %4363 = vmatpush1.bf16.msra.mxu0 %v3664
        %4364 = vmatprep.subr.bf16.mxu0 %v3671
        %4365 = vmatpush1.bf16.msra.mxu0 %v3670
        %4366 = vmatprep.subr.bf16.mxu0 %v3677
        %4367 = vmatpush1.bf16.msra.mxu0 %v3676
        %4368 = vmatprep.subr.bf16.mxu0 %v3683
        %4369 = vmatpush1.bf16.msra.mxu0 %v3682
        %4370 = vmatprep.subr.bf16.mxu0 %v3689
        %4371 = vmatpush1.bf16.msra.mxu0 %v3688
        %4372 = vmatprep.subr.bf16.mxu0 %v3695
        %4373 = vmatpush1.bf16.msra.mxu0 %v3694
        %4374 = vmatprep.subr.bf16.mxu0 %v3701
        %4375 = vmatpush1.bf16.msra.mxu0 %v3700
        %4376 = vmatprep.subr.bf16.mxu0 %v3707
        %4377 = vmatpush1.bf16.msra.mxu0 %v3706
        %4378 = vmatprep.subr.bf16.mxu0 %v3713
        %4379 = vmatpush1.bf16.msra.mxu0 %v3712
        %4380 = vmatprep.subr.bf16.mxu0 %v3719
        %4381 = vmatpush1.bf16.msra.mxu0 %v3718
        %4382 = vmatprep.subr.bf16.mxu0 %v3725
        %4383 = vmatpush1.bf16.msra.mxu0 %v3724
        %4384 = vmatprep.subr.bf16.mxu0 %v3731
        %4385 = vmatpush1.bf16.msra.mxu0 %v3730
        %4386 = vmatprep.subr.bf16.mxu0 %v3737
        %4387 = vmatpush1.bf16.msra.mxu0 %v3736
        %4388 = vmatprep.mubr.bf16.mxu0 %v2197
        %4389 = vmatmul.mubr.bf16.gmra.mrb[0].mxu0 %v2196
        %v4390 = vpop.f32.mrb[0].mxu0
        %v4391 = vadd.f32 %v4228, %v4390
        %v4392 = vpop.f32.mrb[0].mxu0
        %v4393 = vadd.f32 %v4230, %v4392
        %v4394 = vpop.f32.mrb[0].mxu0
        %v4395 = vadd.f32 %v4232, %v4394
        %v4396 = vpop.f32.mrb[0].mxu0
        %v4397 = vadd.f32 %v4234, %v4396
        %4398 = vmatprep.mubr.bf16.mxu0 %v2203
        %4399 = vmatmul.mubr.bf16.gmra.mrb[0].mxu0 %v2202
        %v4400 = vpop.f32.mrb[0].mxu0
        %v4401 = vadd.f32 %v4238, %v4400
        %v4402 = vpop.f32.mrb[0].mxu0
        %v4403 = vadd.f32 %v4240, %v4402
        %v4404 = vpop.f32.mrb[0].mxu0
        %v4405 = vadd.f32 %v4242, %v4404
        %v4406 = vpop.f32.mrb[0].mxu0
        %v4407 = vadd.f32 %v4244, %v4406
        %4408 = vmatprep.mubr.bf16.mxu0 %v2209
        %4409 = vmatmul.mubr.bf16.gmra.mrb[0].mxu0 %v2208
        %v4410 = vpop.f32.mrb[0].mxu0
        %v4411 = vadd.f32 %v4248, %v4410
        %v4412 = vpop.f32.mrb[0].mxu0
        %v4413 = vadd.f32 %v4250, %v4412
        %v4414 = vpop.f32.mrb[0].mxu0
        %v4415 = vadd.f32 %v4252, %v4414
        %v4416 = vpop.f32.mrb[0].mxu0
        %v4417 = vadd.f32 %v4254, %v4416
        %4418 = vmatprep.mubr.bf16.mxu0 %v2215
        %4419 = vmatmul.mubr.bf16.gmra.mrb[0].mxu0 %v2214
        %v4420 = vpop.f32.mrb[0].mxu0
        %v4421 = vadd.f32 %v4258, %v4420
        %v4422 = vpop.f32.mrb[0].mxu0
        %v4423 = vadd.f32 %v4260, %v4422
        %v4424 = vpop.f32.mrb[0].mxu0
        %v4425 = vadd.f32 %v4262, %v4424
        %v4426 = vpop.f32.mrb[0].mxu0
        %v4427 = vadd.f32 %v4264, %v4426
        %4428 = vmatprep.mubr.bf16.mxu0 %v2221
        %4429 = vmatmul.mubr.bf16.gmra.mrb[0].mxu0 %v2220
        %v4430 = vpop.f32.mrb[0].mxu0
        %v4431 = vadd.f32 %v4268, %v4430
        %v4432 = vpop.f32.mrb[0].mxu0
        %v4433 = vadd.f32 %v4270, %v4432
        %v4434 = vpop.f32.mrb[0].mxu0
        %v4435 = vadd.f32 %v4272, %v4434
        %v4436 = vpop.f32.mrb[0].mxu0
        %v4437 = vadd.f32 %v4274, %v4436
        %4438 = vmatprep.mubr.bf16.mxu0 %v2227
        %4439 = vmatmul.mubr.bf16.gmra.mrb[0].mxu0 %v2226
        %v4440 = vpop.f32.mrb[0].mxu0
        %v4441 = vadd.f32 %v4278, %v4440
        %v4442 = vpop.f32.mrb[0].mxu0
        %v4443 = vadd.f32 %v4280, %v4442
        %v4444 = vpop.f32.mrb[0].mxu0
        %v4445 = vadd.f32 %v4282, %v4444
        %v4446 = vpop.f32.mrb[0].mxu0
        %v4447 = vadd.f32 %v4284, %v4446
        %4448 = vmatprep.mubr.bf16.mxu0 %v2233
        %4449 = vmatmul.mubr.bf16.gmra.mrb[0].mxu0 %v2232
        %v4450 = vpop.f32.mrb[0].mxu0
        %v4451 = vadd.f32 %v4288, %v4450
        %v4452 = vpop.f32.mrb[0].mxu0
        %v4453 = vadd.f32 %v4290, %v4452
        %v4454 = vpop.f32.mrb[0].mxu0
        %v4455 = vadd.f32 %v4292, %v4454
        %v4456 = vpop.f32.mrb[0].mxu0
        %v4457 = vadd.f32 %v4294, %v4456
        %4458 = vmatprep.mubr.bf16.mxu0 %v2239
        %4459 = vmatmul.mubr.bf16.gmra.mrb[0].mxu0 %v2238
        %v4460 = vpop.f32.mrb[0].mxu0
        %v4461 = vadd.f32 %v4298, %v4460
        %v4462 = vpop.f32.mrb[0].mxu0
        %v4463 = vadd.f32 %v4300, %v4462
        %v4464 = vpop.f32.mrb[0].mxu0
        %v4465 = vadd.f32 %v4302, %v4464
        %v4466 = vpop.f32.mrb[0].mxu0
        %v4467 = vadd.f32 %v4304, %v4466
        %4468 = vmatprep.mubr.bf16.mxu0 %v2245
        %4469 = vmatmul.mubr.bf16.gmra.mrb[0].mxu0 %v2244
        %v4470 = vpop.f32.mrb[0].mxu0
        %v4471 = vadd.f32 %v4308, %v4470
        %v4472 = vpop.f32.mrb[0].mxu0
        %v4473 = vadd.f32 %v4310, %v4472
        %v4474 = vpop.f32.mrb[0].mxu0
        %v4475 = vadd.f32 %v4312, %v4474
        %v4476 = vpop.f32.mrb[0].mxu0
        %v4477 = vadd.f32 %v4314, %v4476
        %4478 = vmatprep.mubr.bf16.mxu0 %v2251
        %4479 = vmatmul.mubr.bf16.gmra.mrb[0].mxu0 %v2250
        %v4480 = vpop.f32.mrb[0].mxu0
        %v4481 = vadd.f32 %v4318, %v4480
        %v4482 = vpop.f32.mrb[0].mxu0
        %v4483 = vadd.f32 %v4320, %v4482
        %v4484 = vpop.f32.mrb[0].mxu0
        %v4485 = vadd.f32 %v4322, %v4484
        %v4486 = vpop.f32.mrb[0].mxu0
        %v4487 = vadd.f32 %v4324, %v4486
        %4488 = vmatprep.mubr.bf16.mxu0 %v2257
        %4489 = vmatmul.mubr.bf16.gmra.mrb[0].mxu0 %v2256
        %v4490 = vpop.f32.mrb[0].mxu0
        %v4491 = vadd.f32 %v4328, %v4490
        %v4492 = vpop.f32.mrb[0].mxu0
        %v4493 = vadd.f32 %v4330, %v4492
        %v4494 = vpop.f32.mrb[0].mxu0
        %v4495 = vadd.f32 %v4332, %v4494
        %v4496 = vpop.f32.mrb[0].mxu0
        %v4497 = vadd.f32 %v4334, %v4496
        %4498 = vmatprep.mubr.bf16.mxu0 %v2263
        %4499 = vmatmul.mubr.bf16.gmra.mrb[0].mxu0 %v2262
        %v4500 = vpop.f32.mrb[0].mxu0
        %v4501 = vadd.f32 %v4338, %v4500
        %v4502 = vpop.f32.mrb[0].mxu0
        %v4503 = vadd.f32 %v4340, %v4502
        %v4504 = vpop.f32.mrb[0].mxu0
        %v4505 = vadd.f32 %v4342, %v4504
        %v4506 = vpop.f32.mrb[0].mxu0
        %v4507 = vadd.f32 %v4344, %v4506
        %4508 = vmatprep.mubr.bf16.mxu0 %v2269
        %4509 = vmatmul.mubr.bf16.gmra.mrb[0].mxu0 %v2268
        %v4510 = vpop.f32.mrb[0].mxu0
        %v4511 = vadd.f32 %v4348, %v4510
        %v4512 = vpop.f32.mrb[0].mxu0
        %v4513 = vadd.f32 %v4350, %v4512
        %v4514 = vpop.f32.mrb[0].mxu0
        %v4515 = vadd.f32 %v4352, %v4514
        %v4516 = vpop.f32.mrb[0].mxu0
        %v4517 = vadd.f32 %v4354, %v4516
        %4518 = vdwg.mxu0
        %4519 = vmatprep.subr.bf16.mxu0 %v3457
        %4520 = vmatpush1.bf16.msra.mxu0 %v3456
        %4521 = vmatprep.subr.bf16.mxu0 %v3463
        %4522 = vmatpush1.bf16.msra.mxu0 %v3462
        %4523 = vmatprep.subr.bf16.mxu0 %v3469
        %4524 = vmatpush1.bf16.msra.mxu0 %v3468
        %4525 = vmatprep.subr.bf16.mxu0 %v3475
        %4526 = vmatpush1.bf16.msra.mxu0 %v3474
        %4527 = vmatprep.subr.bf16.mxu0 %v3481
        %4528 = vmatpush1.bf16.msra.mxu0 %v3480
        %4529 = vmatprep.subr.bf16.mxu0 %v3487
        %4530 = vmatpush1.bf16.msra.mxu0 %v3486
        %4531 = vmatprep.subr.bf16.mxu0 %v3493
        %4532 = vmatpush1.bf16.msra.mxu0 %v3492
        %4533 = vmatprep.subr.bf16.mxu0 %v3499
        %4534 = vmatpush1.bf16.msra.mxu0 %v3498
        %4535 = vmatprep.subr.bf16.mxu0 %v3505
        %4536 = vmatpush1.bf16.msra.mxu0 %v3504
        %4537 = vmatprep.subr.bf16.mxu0 %v3511
        %4538 = vmatpush1.bf16.msra.mxu0 %v3510
        %4539 = vmatprep.subr.bf16.mxu0 %v3517
        %4540 = vmatpush1.bf16.msra.mxu0 %v3516
        %4541 = vmatprep.subr.bf16.mxu0 %v3523
        %4542 = vmatpush1.bf16.msra.mxu0 %v3522
        %4543 = vmatprep.subr.bf16.mxu0 %v3529
        %4544 = vmatpush1.bf16.msra.mxu0 %v3528
        %4545 = vmatprep.subr.bf16.mxu0 %v3535
        %4546 = vmatpush1.bf16.msra.mxu0 %v3534
        %4547 = vmatprep.subr.bf16.mxu0 %v3541
        %4548 = vmatpush1.bf16.msra.mxu0 %v3540
        %4549 = vmatprep.subr.bf16.mxu0 %v3547
        %4550 = vmatpush1.bf16.msra.mxu0 %v3546
        %4551 = vmatprep.mubr.bf16.mxu0 %v2193
        %4552 = vmatmul.mubr.bf16.gmra.mrb[0].mxu0 %v2192
        %v4553 = vpop.f32.mrb[0].mxu0
        %v4554 = vadd.f32 %v2571, %v4553
        %v4555 = vpop.f32.mrb[0].mxu0
        %v4556 = vadd.f32 %v2575, %v4555
        %v4557 = vpop.f32.mrb[0].mxu0
        %v4558 = vadd.f32 %v2571, %v4557
        %v4559 = vpop.f32.mrb[0].mxu0
        %v4560 = vadd.f32 %v2575, %v4559
        %4561 = vmatprep.mubr.bf16.mxu0 %v2199
        %4562 = vmatmul.mubr.bf16.gmra.mrb[0].mxu0 %v2198
        %v4563 = vpop.f32.mrb[0].mxu0
        %v4564 = vadd.f32 %v2571, %v4563
        %v4565 = vpop.f32.mrb[0].mxu0
        %v4566 = vadd.f32 %v2575, %v4565
        %v4567 = vpop.f32.mrb[0].mxu0
        %v4568 = vadd.f32 %v2571, %v4567
        %v4569 = vpop.f32.mrb[0].mxu0
        %v4570 = vadd.f32 %v2575, %v4569
        %4571 = vmatprep.mubr.bf16.mxu0 %v2205
        %4572 = vmatmul.mubr.bf16.gmra.mrb[0].mxu0 %v2204
        %v4573 = vpop.f32.mrb[0].mxu0
        %v4574 = vadd.f32 %v2571, %v4573
        %v4575 = vpop.f32.mrb[0].mxu0
        %v4576 = vadd.f32 %v2575, %v4575
        %v4577 = vpop.f32.mrb[0].mxu0
        %v4578 = vadd.f32 %v2571, %v4577
        %v4579 = vpop.f32.mrb[0].mxu0
        %v4580 = vadd.f32 %v2575, %v4579
        %4581 = vmatprep.mubr.bf16.mxu0 %v2211
        %4582 = vmatmul.mubr.bf16.gmra.mrb[0].mxu0 %v2210
        %v4583 = vpop.f32.mrb[0].mxu0
        %v4584 = vadd.f32 %v2571, %v4583
        %v4585 = vpop.f32.mrb[0].mxu0
        %v4586 = vadd.f32 %v2575, %v4585
        %v4587 = vpop.f32.mrb[0].mxu0
        %v4588 = vadd.f32 %v2571, %v4587
        %v4589 = vpop.f32.mrb[0].mxu0
        %v4590 = vadd.f32 %v2575, %v4589
        %4591 = vmatprep.mubr.bf16.mxu0 %v2217
        %4592 = vmatmul.mubr.bf16.gmra.mrb[0].mxu0 %v2216
        %v4593 = vpop.f32.mrb[0].mxu0
        %v4594 = vadd.f32 %v2571, %v4593
        %v4595 = vpop.f32.mrb[0].mxu0
        %v4596 = vadd.f32 %v2575, %v4595
        %v4597 = vpop.f32.mrb[0].mxu0
        %v4598 = vadd.f32 %v2571, %v4597
        %v4599 = vpop.f32.mrb[0].mxu0
        %v4600 = vadd.f32 %v2575, %v4599
        %4601 = vmatprep.mubr.bf16.mxu0 %v2223
        %4602 = vmatmul.mubr.bf16.gmra.mrb[0].mxu0 %v2222
        %v4603 = vpop.f32.mrb[0].mxu0
        %v4604 = vadd.f32 %v2571, %v4603
        %v4605 = vpop.f32.mrb[0].mxu0
        %v4606 = vadd.f32 %v2575, %v4605
        %v4607 = vpop.f32.mrb[0].mxu0
        %v4608 = vadd.f32 %v2571, %v4607
        %v4609 = vpop.f32.mrb[0].mxu0
        %v4610 = vadd.f32 %v2575, %v4609
        %4611 = vmatprep.mubr.bf16.mxu0 %v2229
        %4612 = vmatmul.mubr.bf16.gmra.mrb[0].mxu0 %v2228
        %v4613 = vpop.f32.mrb[0].mxu0
        %v4614 = vadd.f32 %v2571, %v4613
        %v4615 = vpop.f32.mrb[0].mxu0
        %v4616 = vadd.f32 %v2575, %v4615
        %v4617 = vpop.f32.mrb[0].mxu0
        %v4618 = vadd.f32 %v2571, %v4617
        %v4619 = vpop.f32.mrb[0].mxu0
        %v4620 = vadd.f32 %v2575, %v4619
        %4621 = vmatprep.mubr.bf16.mxu0 %v2235
        %4622 = vmatmul.mubr.bf16.gmra.mrb[0].mxu0 %v2234
        %v4623 = vpop.f32.mrb[0].mxu0
        %v4624 = vadd.f32 %v2571, %v4623
        %v4625 = vpop.f32.mrb[0].mxu0
        %v4626 = vadd.f32 %v2575, %v4625
        %v4627 = vpop.f32.mrb[0].mxu0
        %v4628 = vadd.f32 %v2571, %v4627
        %v4629 = vpop.f32.mrb[0].mxu0
        %v4630 = vadd.f32 %v2575, %v4629
        %4631 = vmatprep.mubr.bf16.mxu0 %v2241
        %4632 = vmatmul.mubr.bf16.gmra.mrb[0].mxu0 %v2240
        %v4633 = vpop.f32.mrb[0].mxu0
        %v4634 = vadd.f32 %v2571, %v4633
        %v4635 = vpop.f32.mrb[0].mxu0
        %v4636 = vadd.f32 %v2575, %v4635
        %v4637 = vpop.f32.mrb[0].mxu0
        %v4638 = vadd.f32 %v2571, %v4637
        %v4639 = vpop.f32.mrb[0].mxu0
        %v4640 = vadd.f32 %v2575, %v4639
        %4641 = vmatprep.mubr.bf16.mxu0 %v2247
        %4642 = vmatmul.mubr.bf16.gmra.mrb[0].mxu0 %v2246
        %v4643 = vpop.f32.mrb[0].mxu0
        %v4644 = vadd.f32 %v2571, %v4643
        %v4645 = vpop.f32.mrb[0].mxu0
        %v4646 = vadd.f32 %v2575, %v4645
        %v4647 = vpop.f32.mrb[0].mxu0
        %v4648 = vadd.f32 %v2571, %v4647
        %v4649 = vpop.f32.mrb[0].mxu0
        %v4650 = vadd.f32 %v2575, %v4649
        %4651 = vmatprep.mubr.bf16.mxu0 %v2253
        %4652 = vmatmul.mubr.bf16.gmra.mrb[0].mxu0 %v2252
        %v4653 = vpop.f32.mrb[0].mxu0
        %v4654 = vadd.f32 %v2571, %v4653
        %v4655 = vpop.f32.mrb[0].mxu0
        %v4656 = vadd.f32 %v2575, %v4655
        %v4657 = vpop.f32.mrb[0].mxu0
        %v4658 = vadd.f32 %v2571, %v4657
        %v4659 = vpop.f32.mrb[0].mxu0
        %v4660 = vadd.f32 %v2575, %v4659
        %4661 = vmatprep.mubr.bf16.mxu0 %v2259
        %4662 = vmatmul.mubr.bf16.gmra.mrb[0].mxu0 %v2258
        %v4663 = vpop.f32.mrb[0].mxu0
        %v4664 = vadd.f32 %v2571, %v4663
        %v4665 = vpop.f32.mrb[0].mxu0
        %v4666 = vadd.f32 %v2575, %v4665
        %v4667 = vpop.f32.mrb[0].mxu0
        %v4668 = vadd.f32 %v2571, %v4667
        %v4669 = vpop.f32.mrb[0].mxu0
        %v4670 = vadd.f32 %v2575, %v4669
        %4671 = vmatprep.mubr.bf16.mxu0 %v2265
        %4672 = vmatmul.mubr.bf16.gmra.mrb[0].mxu0 %v2264
        %v4673 = vpop.f32.mrb[0].mxu0
        %v4674 = vadd.f32 %v2571, %v4673
        %v4675 = vpop.f32.mrb[0].mxu0
        %v4676 = vadd.f32 %v2575, %v4675
        %v4677 = vpop.f32.mrb[0].mxu0
        %v4678 = vadd.f32 %v2571, %v4677
        %v4679 = vpop.f32.mrb[0].mxu0
        %v4680 = vadd.f32 %v2575, %v4679
        %4681 = vdwg.mxu0
        %4682 = vmatprep.subr.bf16.mxu0 %v3553
        %4683 = vmatpush1.bf16.msra.mxu0 %v3552
        %4684 = vmatprep.subr.bf16.mxu0 %v3559
        %4685 = vmatpush1.bf16.msra.mxu0 %v3558
        %4686 = vmatprep.subr.bf16.mxu0 %v3565
        %4687 = vmatpush1.bf16.msra.mxu0 %v3564
        %4688 = vmatprep.subr.bf16.mxu0 %v3571
        %4689 = vmatpush1.bf16.msra.mxu0 %v3570
        %4690 = vmatprep.subr.bf16.mxu0 %v3577
        %4691 = vmatpush1.bf16.msra.mxu0 %v3576
        %4692 = vmatprep.subr.bf16.mxu0 %v3583
        %4693 = vmatpush1.bf16.msra.mxu0 %v3582
        %4694 = vmatprep.subr.bf16.mxu0 %v3589
        %4695 = vmatpush1.bf16.msra.mxu0 %v3588
        %4696 = vmatprep.subr.bf16.mxu0 %v3595
        %4697 = vmatpush1.bf16.msra.mxu0 %v3594
        %4698 = vmatprep.subr.bf16.mxu0 %v3601
        %4699 = vmatpush1.bf16.msra.mxu0 %v3600
        %4700 = vmatprep.subr.bf16.mxu0 %v3607
        %4701 = vmatpush1.bf16.msra.mxu0 %v3606
        %4702 = vmatprep.subr.bf16.mxu0 %v3613
        %4703 = vmatpush1.bf16.msra.mxu0 %v3612
        %4704 = vmatprep.subr.bf16.mxu0 %v3619
        %4705 = vmatpush1.bf16.msra.mxu0 %v3618
        %4706 = vmatprep.subr.bf16.mxu0 %v3625
        %4707 = vmatpush1.bf16.msra.mxu0 %v3624
        %4708 = vmatprep.subr.bf16.mxu0 %v3631
        %4709 = vmatpush1.bf16.msra.mxu0 %v3630
        %4710 = vmatprep.subr.bf16.mxu0 %v3637
        %4711 = vmatpush1.bf16.msra.mxu0 %v3636
        %4712 = vmatprep.subr.bf16.mxu0 %v3643
        %4713 = vmatpush1.bf16.msra.mxu0 %v3642
        %4714 = vmatprep.mubr.bf16.mxu0 %v2195
        %4715 = vmatmul.mubr.bf16.gmra.mrb[0].mxu0 %v2194
        %v4716 = vpop.f32.mrb[0].mxu0
        %v4717 = vadd.f32 %v4554, %v4716
        %v4718 = vpop.f32.mrb[0].mxu0
        %v4719 = vadd.f32 %v4556, %v4718
        %v4720 = vpop.f32.mrb[0].mxu0
        %v4721 = vadd.f32 %v4558, %v4720
        %v4722 = vpop.f32.mrb[0].mxu0
        %v4723 = vadd.f32 %v4560, %v4722
        %4724 = vmatprep.mubr.bf16.mxu0 %v2201
        %4725 = vmatmul.mubr.bf16.gmra.mrb[0].mxu0 %v2200
        %v4726 = vpop.f32.mrb[0].mxu0
        %v4727 = vadd.f32 %v4564, %v4726
        %v4728 = vpop.f32.mrb[0].mxu0
        %v4729 = vadd.f32 %v4566, %v4728
        %v4730 = vpop.f32.mrb[0].mxu0
        %v4731 = vadd.f32 %v4568, %v4730
        %v4732 = vpop.f32.mrb[0].mxu0
        %v4733 = vadd.f32 %v4570, %v4732
        %4734 = vmatprep.mubr.bf16.mxu0 %v2207
        %4735 = vmatmul.mubr.bf16.gmra.mrb[0].mxu0 %v2206
        %v4736 = vpop.f32.mrb[0].mxu0
        %v4737 = vadd.f32 %v4574, %v4736
        %v4738 = vpop.f32.mrb[0].mxu0
        %v4739 = vadd.f32 %v4576, %v4738
        %v4740 = vpop.f32.mrb[0].mxu0
        %v4741 = vadd.f32 %v4578, %v4740
        %v4742 = vpop.f32.mrb[0].mxu0
        %v4743 = vadd.f32 %v4580, %v4742
        %4744 = vmatprep.mubr.bf16.mxu0 %v2213
        %4745 = vmatmul.mubr.bf16.gmra.mrb[0].mxu0 %v2212
        %v4746 = vpop.f32.mrb[0].mxu0
        %v4747 = vadd.f32 %v4584, %v4746
        %v4748 = vpop.f32.mrb[0].mxu0
        %v4749 = vadd.f32 %v4586, %v4748
        %v4750 = vpop.f32.mrb[0].mxu0
        %v4751 = vadd.f32 %v4588, %v4750
        %v4752 = vpop.f32.mrb[0].mxu0
        %v4753 = vadd.f32 %v4590, %v4752
        %4754 = vmatprep.mubr.bf16.mxu0 %v2219
        %4755 = vmatmul.mubr.bf16.gmra.mrb[0].mxu0 %v2218
        %v4756 = vpop.f32.mrb[0].mxu0
        %v4757 = vadd.f32 %v4594, %v4756
        %v4758 = vpop.f32.mrb[0].mxu0
        %v4759 = vadd.f32 %v4596, %v4758
        %v4760 = vpop.f32.mrb[0].mxu0
        %v4761 = vadd.f32 %v4598, %v4760
        %v4762 = vpop.f32.mrb[0].mxu0
        %v4763 = vadd.f32 %v4600, %v4762
        %4764 = vmatprep.mubr.bf16.mxu0 %v2225
        %4765 = vmatmul.mubr.bf16.gmra.mrb[0].mxu0 %v2224
        %v4766 = vpop.f32.mrb[0].mxu0
        %v4767 = vadd.f32 %v4604, %v4766
        %v4768 = vpop.f32.mrb[0].mxu0
        %v4769 = vadd.f32 %v4606, %v4768
        %v4770 = vpop.f32.mrb[0].mxu0
        %v4771 = vadd.f32 %v4608, %v4770
        %v4772 = vpop.f32.mrb[0].mxu0
        %v4773 = vadd.f32 %v4610, %v4772
        %4774 = vmatprep.mubr.bf16.mxu0 %v2231
        %4775 = vmatmul.mubr.bf16.gmra.mrb[0].mxu0 %v2230
        %v4776 = vpop.f32.mrb[0].mxu0
        %v4777 = vadd.f32 %v4614, %v4776
        %v4778 = vpop.f32.mrb[0].mxu0
        %v4779 = vadd.f32 %v4616, %v4778
        %v4780 = vpop.f32.mrb[0].mxu0
        %v4781 = vadd.f32 %v4618, %v4780
        %v4782 = vpop.f32.mrb[0].mxu0
        %v4783 = vadd.f32 %v4620, %v4782
        %4784 = vmatprep.mubr.bf16.mxu0 %v2237
        %4785 = vmatmul.mubr.bf16.gmra.mrb[0].mxu0 %v2236
        %v4786 = vpop.f32.mrb[0].mxu0
        %v4787 = vadd.f32 %v4624, %v4786
        %v4788 = vpop.f32.mrb[0].mxu0
        %v4789 = vadd.f32 %v4626, %v4788
        %v4790 = vpop.f32.mrb[0].mxu0
        %v4791 = vadd.f32 %v4628, %v4790
        %v4792 = vpop.f32.mrb[0].mxu0
        %v4793 = vadd.f32 %v4630, %v4792
        %4794 = vmatprep.mubr.bf16.mxu0 %v2243
        %4795 = vmatmul.mubr.bf16.gmra.mrb[0].mxu0 %v2242
        %v4796 = vpop.f32.mrb[0].mxu0
        %v4797 = vadd.f32 %v4634, %v4796
        %v4798 = vpop.f32.mrb[0].mxu0
        %v4799 = vadd.f32 %v4636, %v4798
        %v4800 = vpop.f32.mrb[0].mxu0
        %v4801 = vadd.f32 %v4638, %v4800
        %v4802 = vpop.f32.mrb[0].mxu0
        %v4803 = vadd.f32 %v4640, %v4802
        %4804 = vmatprep.mubr.bf16.mxu0 %v2249
        %4805 = vmatmul.mubr.bf16.gmra.mrb[0].mxu0 %v2248
        %v4806 = vpop.f32.mrb[0].mxu0
        %v4807 = vadd.f32 %v4644, %v4806
        %v4808 = vpop.f32.mrb[0].mxu0
        %v4809 = vadd.f32 %v4646, %v4808
        %v4810 = vpop.f32.mrb[0].mxu0
        %v4811 = vadd.f32 %v4648, %v4810
        %v4812 = vpop.f32.mrb[0].mxu0
        %v4813 = vadd.f32 %v4650, %v4812
        %4814 = vmatprep.mubr.bf16.mxu0 %v2255
        %4815 = vmatmul.mubr.bf16.gmra.mrb[0].mxu0 %v2254
        %v4816 = vpop.f32.mrb[0].mxu0
        %v4817 = vadd.f32 %v4654, %v4816
        %v4818 = vpop.f32.mrb[0].mxu0
        %v4819 = vadd.f32 %v4656, %v4818
        %v4820 = vpop.f32.mrb[0].mxu0
        %v4821 = vadd.f32 %v4658, %v4820
        %v4822 = vpop.f32.mrb[0].mxu0
        %v4823 = vadd.f32 %v4660, %v4822
        %4824 = vmatprep.mubr.bf16.mxu0 %v2261
        %4825 = vmatmul.mubr.bf16.gmra.mrb[0].mxu0 %v2260
        %v4826 = vpop.f32.mrb[0].mxu0
        %v4827 = vadd.f32 %v4664, %v4826
        %v4828 = vpop.f32.mrb[0].mxu0
        %v4829 = vadd.f32 %v4666, %v4828
        %v4830 = vpop.f32.mrb[0].mxu0
        %v4831 = vadd.f32 %v4668, %v4830
        %v4832 = vpop.f32.mrb[0].mxu0
        %v4833 = vadd.f32 %v4670, %v4832
        %4834 = vmatprep.mubr.bf16.mxu0 %v2267
        %4835 = vmatmul.mubr.bf16.gmra.mrb[0].mxu0 %v2266
        %v4836 = vpop.f32.mrb[0].mxu0
        %v4837 = vadd.f32 %v4674, %v4836
        %v4838 = vpop.f32.mrb[0].mxu0
        %v4839 = vadd.f32 %v4676, %v4838
        %v4840 = vpop.f32.mrb[0].mxu0
        %v4841 = vadd.f32 %v4678, %v4840
        %v4842 = vpop.f32.mrb[0].mxu0
        %v4843 = vadd.f32 %v4680, %v4842
        %4844 = vdwg.mxu0
        %4845 = vmatprep.subr.bf16.mxu0 %v3649
        %4846 = vmatpush1.bf16.msra.mxu0 %v3648
        %4847 = vmatprep.subr.bf16.mxu0 %v3655
        %4848 = vmatpush1.bf16.msra.mxu0 %v3654
        %4849 = vmatprep.subr.bf16.mxu0 %v3661
        %4850 = vmatpush1.bf16.msra.mxu0 %v3660
        %4851 = vmatprep.subr.bf16.mxu0 %v3667
        %4852 = vmatpush1.bf16.msra.mxu0 %v3666
        %4853 = vmatprep.subr.bf16.mxu0 %v3673
        %4854 = vmatpush1.bf16.msra.mxu0 %v3672
        %4855 = vmatprep.subr.bf16.mxu0 %v3679
        %4856 = vmatpush1.bf16.msra.mxu0 %v3678
        %4857 = vmatprep.subr.bf16.mxu0 %v3685
        %4858 = vmatpush1.bf16.msra.mxu0 %v3684
        %4859 = vmatprep.subr.bf16.mxu0 %v3691
        %4860 = vmatpush1.bf16.msra.mxu0 %v3690
        %4861 = vmatprep.subr.bf16.mxu0 %v3697
        %4862 = vmatpush1.bf16.msra.mxu0 %v3696
        %4863 = vmatprep.subr.bf16.mxu0 %v3703
        %4864 = vmatpush1.bf16.msra.mxu0 %v3702
        %4865 = vmatprep.subr.bf16.mxu0 %v3709
        %4866 = vmatpush1.bf16.msra.mxu0 %v3708
        %4867 = vmatprep.subr.bf16.mxu0 %v3715
        %4868 = vmatpush1.bf16.msra.mxu0 %v3714
        %4869 = vmatprep.subr.bf16.mxu0 %v3721
        %4870 = vmatpush1.bf16.msra.mxu0 %v3720
        %4871 = vmatprep.subr.bf16.mxu0 %v3727
        %4872 = vmatpush1.bf16.msra.mxu0 %v3726
        %4873 = vmatprep.subr.bf16.mxu0 %v3733
        %4874 = vmatpush1.bf16.msra.mxu0 %v3732
        %4875 = vmatprep.subr.bf16.mxu0 %v3739
        %4876 = vmatpush1.bf16.msra.mxu0 %v3738
        %4877 = vmatprep.mubr.bf16.mxu0 %v2197
        %4878 = vmatmul.mubr.bf16.gmra.mrb[0].mxu0 %v2196
        %v4879 = vpop.f32.mrb[0].mxu0
        %v4880 = vadd.f32 %v4717, %v4879
        %v4881 = vpop.f32.mrb[0].mxu0
        %v4882 = vadd.f32 %v4719, %v4881
        %v4883 = vpop.f32.mrb[0].mxu0
        %v4884 = vadd.f32 %v4721, %v4883
        %v4885 = vpop.f32.mrb[0].mxu0
        %v4886 = vadd.f32 %v4723, %v4885
        %4887 = vmatprep.mubr.bf16.mxu0 %v2203
        %4888 = vmatmul.mubr.bf16.gmra.mrb[0].mxu0 %v2202
        %v4889 = vpop.f32.mrb[0].mxu0
        %v4890 = vadd.f32 %v4727, %v4889
        %v4891 = vpop.f32.mrb[0].mxu0
        %v4892 = vadd.f32 %v4729, %v4891
        %v4893 = vpop.f32.mrb[0].mxu0
        %v4894 = vadd.f32 %v4731, %v4893
        %v4895 = vpop.f32.mrb[0].mxu0
        %v4896 = vadd.f32 %v4733, %v4895
        %4897 = vmatprep.mubr.bf16.mxu0 %v2209
        %4898 = vmatmul.mubr.bf16.gmra.mrb[0].mxu0 %v2208
        %v4899 = vpop.f32.mrb[0].mxu0
        %v4900 = vadd.f32 %v4737, %v4899
        %v4901 = vpop.f32.mrb[0].mxu0
        %v4902 = vadd.f32 %v4739, %v4901
        %v4903 = vpop.f32.mrb[0].mxu0
        %v4904 = vadd.f32 %v4741, %v4903
        %v4905 = vpop.f32.mrb[0].mxu0
        %v4906 = vadd.f32 %v4743, %v4905
        %4907 = vmatprep.mubr.bf16.mxu0 %v2215
        %4908 = vmatmul.mubr.bf16.gmra.mrb[0].mxu0 %v2214
        %v4909 = vpop.f32.mrb[0].mxu0
        %v4910 = vadd.f32 %v4747, %v4909
        %v4911 = vpop.f32.mrb[0].mxu0
        %v4912 = vadd.f32 %v4749, %v4911
        %v4913 = vpop.f32.mrb[0].mxu0
        %v4914 = vadd.f32 %v4751, %v4913
        %v4915 = vpop.f32.mrb[0].mxu0
        %v4916 = vadd.f32 %v4753, %v4915
        %4917 = vmatprep.mubr.bf16.mxu0 %v2221
        %4918 = vmatmul.mubr.bf16.gmra.mrb[0].mxu0 %v2220
        %v4919 = vpop.f32.mrb[0].mxu0
        %v4920 = vadd.f32 %v4757, %v4919
        %v4921 = vpop.f32.mrb[0].mxu0
        %v4922 = vadd.f32 %v4759, %v4921
        %v4923 = vpop.f32.mrb[0].mxu0
        %v4924 = vadd.f32 %v4761, %v4923
        %v4925 = vpop.f32.mrb[0].mxu0
        %v4926 = vadd.f32 %v4763, %v4925
        %4927 = vmatprep.mubr.bf16.mxu0 %v2227
        %4928 = vmatmul.mubr.bf16.gmra.mrb[0].mxu0 %v2226
        %v4929 = vpop.f32.mrb[0].mxu0
        %v4930 = vadd.f32 %v4767, %v4929
        %v4931 = vpop.f32.mrb[0].mxu0
        %v4932 = vadd.f32 %v4769, %v4931
        %v4933 = vpop.f32.mrb[0].mxu0
        %v4934 = vadd.f32 %v4771, %v4933
        %v4935 = vpop.f32.mrb[0].mxu0
        %v4936 = vadd.f32 %v4773, %v4935
        %4937 = vmatprep.mubr.bf16.mxu0 %v2233
        %4938 = vmatmul.mubr.bf16.gmra.mrb[0].mxu0 %v2232
        %v4939 = vpop.f32.mrb[0].mxu0
        %v4940 = vadd.f32 %v4777, %v4939
        %v4941 = vpop.f32.mrb[0].mxu0
        %v4942 = vadd.f32 %v4779, %v4941
        %v4943 = vpop.f32.mrb[0].mxu0
        %v4944 = vadd.f32 %v4781, %v4943
        %v4945 = vpop.f32.mrb[0].mxu0
        %v4946 = vadd.f32 %v4783, %v4945
        %4947 = vmatprep.mubr.bf16.mxu0 %v2239
        %4948 = vmatmul.mubr.bf16.gmra.mrb[0].mxu0 %v2238
        %v4949 = vpop.f32.mrb[0].mxu0
        %v4950 = vadd.f32 %v4787, %v4949
        %v4951 = vpop.f32.mrb[0].mxu0
        %v4952 = vadd.f32 %v4789, %v4951
        %v4953 = vpop.f32.mrb[0].mxu0
        %v4954 = vadd.f32 %v4791, %v4953
        %v4955 = vpop.f32.mrb[0].mxu0
        %v4956 = vadd.f32 %v4793, %v4955
        %4957 = vmatprep.mubr.bf16.mxu0 %v2245
        %4958 = vmatmul.mubr.bf16.gmra.mrb[0].mxu0 %v2244
        %v4959 = vpop.f32.mrb[0].mxu0
        %v4960 = vadd.f32 %v4797, %v4959
        %v4961 = vpop.f32.mrb[0].mxu0
        %v4962 = vadd.f32 %v4799, %v4961
        %v4963 = vpop.f32.mrb[0].mxu0
        %v4964 = vadd.f32 %v4801, %v4963
        %v4965 = vpop.f32.mrb[0].mxu0
        %v4966 = vadd.f32 %v4803, %v4965
        %4967 = vmatprep.mubr.bf16.mxu0 %v2251
        %4968 = vmatmul.mubr.bf16.gmra.mrb[0].mxu0 %v2250
        %v4969 = vpop.f32.mrb[0].mxu0
        %v4970 = vadd.f32 %v4807, %v4969
        %v4971 = vpop.f32.mrb[0].mxu0
        %v4972 = vadd.f32 %v4809, %v4971
        %v4973 = vpop.f32.mrb[0].mxu0
        %v4974 = vadd.f32 %v4811, %v4973
        %v4975 = vpop.f32.mrb[0].mxu0
        %v4976 = vadd.f32 %v4813, %v4975
        %4977 = vmatprep.mubr.bf16.mxu0 %v2257
        %4978 = vmatmul.mubr.bf16.gmra.mrb[0].mxu0 %v2256
        %v4979 = vpop.f32.mrb[0].mxu0
        %v4980 = vadd.f32 %v4817, %v4979
        %v4981 = vpop.f32.mrb[0].mxu0
        %v4982 = vadd.f32 %v4819, %v4981
        %v4983 = vpop.f32.mrb[0].mxu0
        %v4984 = vadd.f32 %v4821, %v4983
        %v4985 = vpop.f32.mrb[0].mxu0
        %v4986 = vadd.f32 %v4823, %v4985
        %4987 = vmatprep.mubr.bf16.mxu0 %v2263
        %4988 = vmatmul.mubr.bf16.gmra.mrb[0].mxu0 %v2262
        %v4989 = vpop.f32.mrb[0].mxu0
        %v4990 = vadd.f32 %v4827, %v4989
        %v4991 = vpop.f32.mrb[0].mxu0
        %v4992 = vadd.f32 %v4829, %v4991
        %v4993 = vpop.f32.mrb[0].mxu0
        %v4994 = vadd.f32 %v4831, %v4993
        %v4995 = vpop.f32.mrb[0].mxu0
        %v4996 = vadd.f32 %v4833, %v4995
        %4997 = vmatprep.mubr.bf16.mxu0 %v2269
        %4998 = vmatmul.mubr.bf16.gmra.mrb[0].mxu0 %v2268
        %v4999 = vpop.f32.mrb[0].mxu0
        %v5000 = vadd.f32 %v4837, %v4999
        %v5001 = vpop.f32.mrb[0].mxu0
        %v5002 = vadd.f32 %v4839, %v5001
        %v5003 = vpop.f32.mrb[0].mxu0
        %v5004 = vadd.f32 %v4841, %v5003
        %v5005 = vpop.f32.mrb[0].mxu0
        %v5006 = vadd.f32 %v4843, %v5005
        %5007 = vdwg.mxu0
        %5008 = vmatprep.subr.bf16.mxu0 %v3459
        %5009 = vmatpush1.bf16.msra.mxu0 %v3458
        %5010 = vmatprep.subr.bf16.mxu0 %v3465
        %5011 = vmatpush1.bf16.msra.mxu0 %v3464
        %5012 = vmatprep.subr.bf16.mxu0 %v3471
        %5013 = vmatpush1.bf16.msra.mxu0 %v3470
        %5014 = vmatprep.subr.bf16.mxu0 %v3477
        %5015 = vmatpush1.bf16.msra.mxu0 %v3476
        %5016 = vmatprep.subr.bf16.mxu0 %v3483
        %5017 = vmatpush1.bf16.msra.mxu0 %v3482
        %5018 = vmatprep.subr.bf16.mxu0 %v3489
        %5019 = vmatpush1.bf16.msra.mxu0 %v3488
        %5020 = vmatprep.subr.bf16.mxu0 %v3495
        %5021 = vmatpush1.bf16.msra.mxu0 %v3494
        %5022 = vmatprep.subr.bf16.mxu0 %v3501
        %5023 = vmatpush1.bf16.msra.mxu0 %v3500
        %5024 = vmatprep.subr.bf16.mxu0 %v3507
        %5025 = vmatpush1.bf16.msra.mxu0 %v3506
        %5026 = vmatprep.subr.bf16.mxu0 %v3513
        %5027 = vmatpush1.bf16.msra.mxu0 %v3512
        %5028 = vmatprep.subr.bf16.mxu0 %v3519
        %5029 = vmatpush1.bf16.msra.mxu0 %v3518
        %5030 = vmatprep.subr.bf16.mxu0 %v3525
        %5031 = vmatpush1.bf16.msra.mxu0 %v3524
        %5032 = vmatprep.subr.bf16.mxu0 %v3531
        %5033 = vmatpush1.bf16.msra.mxu0 %v3530
        %5034 = vmatprep.subr.bf16.mxu0 %v3537
        %5035 = vmatpush1.bf16.msra.mxu0 %v3536
        %5036 = vmatprep.subr.bf16.mxu0 %v3543
        %5037 = vmatpush1.bf16.msra.mxu0 %v3542
        %5038 = vmatprep.subr.bf16.mxu0 %v3549
        %5039 = vmatpush1.bf16.msra.mxu0 %v3548
        %5040 = vmatprep.mubr.bf16.mxu0 %v2193
        %5041 = vmatmul.mubr.bf16.gmra.mrb[0].mxu0 %v2192
        %v5042 = vpop.f32.mrb[0].mxu0
        %v5043 = vadd.f32 %v2579, %v5042
        %v5044 = vpop.f32.mrb[0].mxu0
        %v5045 = vadd.f32 %v2583, %v5044
        %v5046 = vpop.f32.mrb[0].mxu0
        %v5047 = vadd.f32 %v2579, %v5046
        %v5048 = vpop.f32.mrb[0].mxu0
        %v5049 = vadd.f32 %v2583, %v5048
        %5050 = vmatprep.mubr.bf16.mxu0 %v2199
        %5051 = vmatmul.mubr.bf16.gmra.mrb[0].mxu0 %v2198
        %v5052 = vpop.f32.mrb[0].mxu0
        %v5053 = vadd.f32 %v2579, %v5052
        %v5054 = vpop.f32.mrb[0].mxu0
        %v5055 = vadd.f32 %v2583, %v5054
        %v5056 = vpop.f32.mrb[0].mxu0
        %v5057 = vadd.f32 %v2579, %v5056
        %v5058 = vpop.f32.mrb[0].mxu0
        %v5059 = vadd.f32 %v2583, %v5058
        %5060 = vmatprep.mubr.bf16.mxu0 %v2205
        %5061 = vmatmul.mubr.bf16.gmra.mrb[0].mxu0 %v2204
        %v5062 = vpop.f32.mrb[0].mxu0
        %v5063 = vadd.f32 %v2579, %v5062
        %v5064 = vpop.f32.mrb[0].mxu0
        %v5065 = vadd.f32 %v2583, %v5064
        %v5066 = vpop.f32.mrb[0].mxu0
        %v5067 = vadd.f32 %v2579, %v5066
        %v5068 = vpop.f32.mrb[0].mxu0
        %v5069 = vadd.f32 %v2583, %v5068
        %5070 = vmatprep.mubr.bf16.mxu0 %v2211
        %5071 = vmatmul.mubr.bf16.gmra.mrb[0].mxu0 %v2210
        %v5072 = vpop.f32.mrb[0].mxu0
        %v5073 = vadd.f32 %v2579, %v5072
        %v5074 = vpop.f32.mrb[0].mxu0
        %v5075 = vadd.f32 %v2583, %v5074
        %v5076 = vpop.f32.mrb[0].mxu0
        %v5077 = vadd.f32 %v2579, %v5076
        %v5078 = vpop.f32.mrb[0].mxu0
        %v5079 = vadd.f32 %v2583, %v5078
        %5080 = vmatprep.mubr.bf16.mxu0 %v2217
        %5081 = vmatmul.mubr.bf16.gmra.mrb[0].mxu0 %v2216
        %v5082 = vpop.f32.mrb[0].mxu0
        %v5083 = vadd.f32 %v2579, %v5082
        %v5084 = vpop.f32.mrb[0].mxu0
        %v5085 = vadd.f32 %v2583, %v5084
        %v5086 = vpop.f32.mrb[0].mxu0
        %v5087 = vadd.f32 %v2579, %v5086
        %v5088 = vpop.f32.mrb[0].mxu0
        %v5089 = vadd.f32 %v2583, %v5088
        %5090 = vmatprep.mubr.bf16.mxu0 %v2223
        %5091 = vmatmul.mubr.bf16.gmra.mrb[0].mxu0 %v2222
        %v5092 = vpop.f32.mrb[0].mxu0
        %v5093 = vadd.f32 %v2579, %v5092
        %v5094 = vpop.f32.mrb[0].mxu0
        %v5095 = vadd.f32 %v2583, %v5094
        %v5096 = vpop.f32.mrb[0].mxu0
        %v5097 = vadd.f32 %v2579, %v5096
        %v5098 = vpop.f32.mrb[0].mxu0
        %v5099 = vadd.f32 %v2583, %v5098
        %5100 = vmatprep.mubr.bf16.mxu0 %v2229
        %5101 = vmatmul.mubr.bf16.gmra.mrb[0].mxu0 %v2228
        %v5102 = vpop.f32.mrb[0].mxu0
        %v5103 = vadd.f32 %v2579, %v5102
        %v5104 = vpop.f32.mrb[0].mxu0
        %v5105 = vadd.f32 %v2583, %v5104
        %v5106 = vpop.f32.mrb[0].mxu0
        %v5107 = vadd.f32 %v2579, %v5106
        %v5108 = vpop.f32.mrb[0].mxu0
        %v5109 = vadd.f32 %v2583, %v5108
        %5110 = vmatprep.mubr.bf16.mxu0 %v2235
        %5111 = vmatmul.mubr.bf16.gmra.mrb[0].mxu0 %v2234
        %v5112 = vpop.f32.mrb[0].mxu0
        %v5113 = vadd.f32 %v2579, %v5112
        %v5114 = vpop.f32.mrb[0].mxu0
        %v5115 = vadd.f32 %v2583, %v5114
        %v5116 = vpop.f32.mrb[0].mxu0
        %v5117 = vadd.f32 %v2579, %v5116
        %v5118 = vpop.f32.mrb[0].mxu0
        %v5119 = vadd.f32 %v2583, %v5118
        %5120 = vmatprep.mubr.bf16.mxu0 %v2241
        %5121 = vmatmul.mubr.bf16.gmra.mrb[0].mxu0 %v2240
        %v5122 = vpop.f32.mrb[0].mxu0
        %v5123 = vadd.f32 %v2579, %v5122
        %v5124 = vpop.f32.mrb[0].mxu0
        %v5125 = vadd.f32 %v2583, %v5124
        %v5126 = vpop.f32.mrb[0].mxu0
        %v5127 = vadd.f32 %v2579, %v5126
        %v5128 = vpop.f32.mrb[0].mxu0
        %v5129 = vadd.f32 %v2583, %v5128
        %5130 = vmatprep.mubr.bf16.mxu0 %v2247
        %5131 = vmatmul.mubr.bf16.gmra.mrb[0].mxu0 %v2246
        %v5132 = vpop.f32.mrb[0].mxu0
        %v5133 = vadd.f32 %v2579, %v5132
        %v5134 = vpop.f32.mrb[0].mxu0
        %v5135 = vadd.f32 %v2583, %v5134
        %v5136 = vpop.f32.mrb[0].mxu0
        %v5137 = vadd.f32 %v2579, %v5136
        %v5138 = vpop.f32.mrb[0].mxu0
        %v5139 = vadd.f32 %v2583, %v5138
        %5140 = vmatprep.mubr.bf16.mxu0 %v2253
        %5141 = vmatmul.mubr.bf16.gmra.mrb[0].mxu0 %v2252
        %v5142 = vpop.f32.mrb[0].mxu0
        %v5143 = vadd.f32 %v2579, %v5142
        %v5144 = vpop.f32.mrb[0].mxu0
        %v5145 = vadd.f32 %v2583, %v5144
        %v5146 = vpop.f32.mrb[0].mxu0
        %v5147 = vadd.f32 %v2579, %v5146
        %v5148 = vpop.f32.mrb[0].mxu0
        %v5149 = vadd.f32 %v2583, %v5148
        %5150 = vmatprep.mubr.bf16.mxu0 %v2259
        %5151 = vmatmul.mubr.bf16.gmra.mrb[0].mxu0 %v2258
        %v5152 = vpop.f32.mrb[0].mxu0
        %v5153 = vadd.f32 %v2579, %v5152
        %v5154 = vpop.f32.mrb[0].mxu0
        %v5155 = vadd.f32 %v2583, %v5154
        %v5156 = vpop.f32.mrb[0].mxu0
        %v5157 = vadd.f32 %v2579, %v5156
        %v5158 = vpop.f32.mrb[0].mxu0
        %v5159 = vadd.f32 %v2583, %v5158
        %5160 = vmatprep.mubr.bf16.mxu0 %v2265
        %5161 = vmatmul.mubr.bf16.gmra.mrb[0].mxu0 %v2264
        %v5162 = vpop.f32.mrb[0].mxu0
        %v5163 = vadd.f32 %v2579, %v5162
        %v5164 = vpop.f32.mrb[0].mxu0
        %v5165 = vadd.f32 %v2583, %v5164
        %v5166 = vpop.f32.mrb[0].mxu0
        %v5167 = vadd.f32 %v2579, %v5166
        %v5168 = vpop.f32.mrb[0].mxu0
        %v5169 = vadd.f32 %v2583, %v5168
        %5170 = vdwg.mxu0
        %5171 = vmatprep.subr.bf16.mxu0 %v3555
        %5172 = vmatpush1.bf16.msra.mxu0 %v3554
        %5173 = vmatprep.subr.bf16.mxu0 %v3561
        %5174 = vmatpush1.bf16.msra.mxu0 %v3560
        %5175 = vmatprep.subr.bf16.mxu0 %v3567
        %5176 = vmatpush1.bf16.msra.mxu0 %v3566
        %5177 = vmatprep.subr.bf16.mxu0 %v3573
        %5178 = vmatpush1.bf16.msra.mxu0 %v3572
        %5179 = vmatprep.subr.bf16.mxu0 %v3579
        %5180 = vmatpush1.bf16.msra.mxu0 %v3578
        %5181 = vmatprep.subr.bf16.mxu0 %v3585
        %5182 = vmatpush1.bf16.msra.mxu0 %v3584
        %5183 = vmatprep.subr.bf16.mxu0 %v3591
        %5184 = vmatpush1.bf16.msra.mxu0 %v3590
        %5185 = vmatprep.subr.bf16.mxu0 %v3597
        %5186 = vmatpush1.bf16.msra.mxu0 %v3596
        %5187 = vmatprep.subr.bf16.mxu0 %v3603
        %5188 = vmatpush1.bf16.msra.mxu0 %v3602
        %5189 = vmatprep.subr.bf16.mxu0 %v3609
        %5190 = vmatpush1.bf16.msra.mxu0 %v3608
        %5191 = vmatprep.subr.bf16.mxu0 %v3615
        %5192 = vmatpush1.bf16.msra.mxu0 %v3614
        %5193 = vmatprep.subr.bf16.mxu0 %v3621
        %5194 = vmatpush1.bf16.msra.mxu0 %v3620
        %5195 = vmatprep.subr.bf16.mxu0 %v3627
        %5196 = vmatpush1.bf16.msra.mxu0 %v3626
        %5197 = vmatprep.subr.bf16.mxu0 %v3633
        %5198 = vmatpush1.bf16.msra.mxu0 %v3632
        %5199 = vmatprep.subr.bf16.mxu0 %v3639
        %5200 = vmatpush1.bf16.msra.mxu0 %v3638
        %5201 = vmatprep.subr.bf16.mxu0 %v3645
        %5202 = vmatpush1.bf16.msra.mxu0 %v3644
        %5203 = vmatprep.mubr.bf16.mxu0 %v2195
        %5204 = vmatmul.mubr.bf16.gmra.mrb[0].mxu0 %v2194
        %v5205 = vpop.f32.mrb[0].mxu0
        %v5206 = vadd.f32 %v5043, %v5205
        %v5207 = vpop.f32.mrb[0].mxu0
        %v5208 = vadd.f32 %v5045, %v5207
        %v5209 = vpop.f32.mrb[0].mxu0
        %v5210 = vadd.f32 %v5047, %v5209
        %v5211 = vpop.f32.mrb[0].mxu0
        %v5212 = vadd.f32 %v5049, %v5211
        %5213 = vmatprep.mubr.bf16.mxu0 %v2201
        %5214 = vmatmul.mubr.bf16.gmra.mrb[0].mxu0 %v2200
        %v5215 = vpop.f32.mrb[0].mxu0
        %v5216 = vadd.f32 %v5053, %v5215
        %v5217 = vpop.f32.mrb[0].mxu0
        %v5218 = vadd.f32 %v5055, %v5217
        %v5219 = vpop.f32.mrb[0].mxu0
        %v5220 = vadd.f32 %v5057, %v5219
        %v5221 = vpop.f32.mrb[0].mxu0
        %v5222 = vadd.f32 %v5059, %v5221
        %5223 = vmatprep.mubr.bf16.mxu0 %v2207
        %5224 = vmatmul.mubr.bf16.gmra.mrb[0].mxu0 %v2206
        %v5225 = vpop.f32.mrb[0].mxu0
        %v5226 = vadd.f32 %v5063, %v5225
        %v5227 = vpop.f32.mrb[0].mxu0
        %v5228 = vadd.f32 %v5065, %v5227
        %v5229 = vpop.f32.mrb[0].mxu0
        %v5230 = vadd.f32 %v5067, %v5229
        %v5231 = vpop.f32.mrb[0].mxu0
        %v5232 = vadd.f32 %v5069, %v5231
        %5233 = vmatprep.mubr.bf16.mxu0 %v2213
        %5234 = vmatmul.mubr.bf16.gmra.mrb[0].mxu0 %v2212
        %v5235 = vpop.f32.mrb[0].mxu0
        %v5236 = vadd.f32 %v5073, %v5235
        %v5237 = vpop.f32.mrb[0].mxu0
        %v5238 = vadd.f32 %v5075, %v5237
        %v5239 = vpop.f32.mrb[0].mxu0
        %v5240 = vadd.f32 %v5077, %v5239
        %v5241 = vpop.f32.mrb[0].mxu0
        %v5242 = vadd.f32 %v5079, %v5241
        %5243 = vmatprep.mubr.bf16.mxu0 %v2219
        %5244 = vmatmul.mubr.bf16.gmra.mrb[0].mxu0 %v2218
        %v5245 = vpop.f32.mrb[0].mxu0
        %v5246 = vadd.f32 %v5083, %v5245
        %v5247 = vpop.f32.mrb[0].mxu0
        %v5248 = vadd.f32 %v5085, %v5247
        %v5249 = vpop.f32.mrb[0].mxu0
        %v5250 = vadd.f32 %v5087, %v5249
        %v5251 = vpop.f32.mrb[0].mxu0
        %v5252 = vadd.f32 %v5089, %v5251
        %5253 = vmatprep.mubr.bf16.mxu0 %v2225
        %5254 = vmatmul.mubr.bf16.gmra.mrb[0].mxu0 %v2224
        %v5255 = vpop.f32.mrb[0].mxu0
        %v5256 = vadd.f32 %v5093, %v5255
        %v5257 = vpop.f32.mrb[0].mxu0
        %v5258 = vadd.f32 %v5095, %v5257
        %v5259 = vpop.f32.mrb[0].mxu0
        %v5260 = vadd.f32 %v5097, %v5259
        %v5261 = vpop.f32.mrb[0].mxu0
        %v5262 = vadd.f32 %v5099, %v5261
        %5263 = vmatprep.mubr.bf16.mxu0 %v2231
        %5264 = vmatmul.mubr.bf16.gmra.mrb[0].mxu0 %v2230
        %v5265 = vpop.f32.mrb[0].mxu0
        %v5266 = vadd.f32 %v5103, %v5265
        %v5267 = vpop.f32.mrb[0].mxu0
        %v5268 = vadd.f32 %v5105, %v5267
        %v5269 = vpop.f32.mrb[0].mxu0
        %v5270 = vadd.f32 %v5107, %v5269
        %v5271 = vpop.f32.mrb[0].mxu0
        %v5272 = vadd.f32 %v5109, %v5271
        %5273 = vmatprep.mubr.bf16.mxu0 %v2237
        %5274 = vmatmul.mubr.bf16.gmra.mrb[0].mxu0 %v2236
        %v5275 = vpop.f32.mrb[0].mxu0
        %v5276 = vadd.f32 %v5113, %v5275
        %v5277 = vpop.f32.mrb[0].mxu0
        %v5278 = vadd.f32 %v5115, %v5277
        %v5279 = vpop.f32.mrb[0].mxu0
        %v5280 = vadd.f32 %v5117, %v5279
        %v5281 = vpop.f32.mrb[0].mxu0
        %v5282 = vadd.f32 %v5119, %v5281
        %5283 = vmatprep.mubr.bf16.mxu0 %v2243
        %5284 = vmatmul.mubr.bf16.gmra.mrb[0].mxu0 %v2242
        %v5285 = vpop.f32.mrb[0].mxu0
        %v5286 = vadd.f32 %v5123, %v5285
        %v5287 = vpop.f32.mrb[0].mxu0
        %v5288 = vadd.f32 %v5125, %v5287
        %v5289 = vpop.f32.mrb[0].mxu0
        %v5290 = vadd.f32 %v5127, %v5289
        %v5291 = vpop.f32.mrb[0].mxu0
        %v5292 = vadd.f32 %v5129, %v5291
        %5293 = vmatprep.mubr.bf16.mxu0 %v2249
        %5294 = vmatmul.mubr.bf16.gmra.mrb[0].mxu0 %v2248
        %v5295 = vpop.f32.mrb[0].mxu0
        %v5296 = vadd.f32 %v5133, %v5295
        %v5297 = vpop.f32.mrb[0].mxu0
        %v5298 = vadd.f32 %v5135, %v5297
        %v5299 = vpop.f32.mrb[0].mxu0
        %v5300 = vadd.f32 %v5137, %v5299
        %v5301 = vpop.f32.mrb[0].mxu0
        %v5302 = vadd.f32 %v5139, %v5301
        %5303 = vmatprep.mubr.bf16.mxu0 %v2255
        %5304 = vmatmul.mubr.bf16.gmra.mrb[0].mxu0 %v2254
        %v5305 = vpop.f32.mrb[0].mxu0
        %v5306 = vadd.f32 %v5143, %v5305
        %v5307 = vpop.f32.mrb[0].mxu0
        %v5308 = vadd.f32 %v5145, %v5307
        %v5309 = vpop.f32.mrb[0].mxu0
        %v5310 = vadd.f32 %v5147, %v5309
        %v5311 = vpop.f32.mrb[0].mxu0
        %v5312 = vadd.f32 %v5149, %v5311
        %5313 = vmatprep.mubr.bf16.mxu0 %v2261
        %5314 = vmatmul.mubr.bf16.gmra.mrb[0].mxu0 %v2260
        %v5315 = vpop.f32.mrb[0].mxu0
        %v5316 = vadd.f32 %v5153, %v5315
        %v5317 = vpop.f32.mrb[0].mxu0
        %v5318 = vadd.f32 %v5155, %v5317
        %v5319 = vpop.f32.mrb[0].mxu0
        %v5320 = vadd.f32 %v5157, %v5319
        %v5321 = vpop.f32.mrb[0].mxu0
        %v5322 = vadd.f32 %v5159, %v5321
        %5323 = vmatprep.mubr.bf16.mxu0 %v2267
        %5324 = vmatmul.mubr.bf16.gmra.mrb[0].mxu0 %v2266
        %v5325 = vpop.f32.mrb[0].mxu0
        %v5326 = vadd.f32 %v5163, %v5325
        %v5327 = vpop.f32.mrb[0].mxu0
        %v5328 = vadd.f32 %v5165, %v5327
        %v5329 = vpop.f32.mrb[0].mxu0
        %v5330 = vadd.f32 %v5167, %v5329
        %v5331 = vpop.f32.mrb[0].mxu0
        %v5332 = vadd.f32 %v5169, %v5331
        %5333 = vdwg.mxu0
        %5334 = vmatprep.subr.bf16.mxu0 %v3651
        %5335 = vmatpush1.bf16.msra.mxu0 %v3650
        %5336 = vmatprep.subr.bf16.mxu0 %v3657
        %5337 = vmatpush1.bf16.msra.mxu0 %v3656
        %5338 = vmatprep.subr.bf16.mxu0 %v3663
        %5339 = vmatpush1.bf16.msra.mxu0 %v3662
        %5340 = vmatprep.subr.bf16.mxu0 %v3669
        %5341 = vmatpush1.bf16.msra.mxu0 %v3668
        %5342 = vmatprep.subr.bf16.mxu0 %v3675
        %5343 = vmatpush1.bf16.msra.mxu0 %v3674
        %5344 = vmatprep.subr.bf16.mxu0 %v3681
        %5345 = vmatpush1.bf16.msra.mxu0 %v3680
        %5346 = vmatprep.subr.bf16.mxu0 %v3687
        %5347 = vmatpush1.bf16.msra.mxu0 %v3686
        %5348 = vmatprep.subr.bf16.mxu0 %v3693
        %5349 = vmatpush1.bf16.msra.mxu0 %v3692
        %5350 = vmatprep.subr.bf16.mxu0 %v3699
        %5351 = vmatpush1.bf16.msra.mxu0 %v3698
        %5352 = vmatprep.subr.bf16.mxu0 %v3705
        %5353 = vmatpush1.bf16.msra.mxu0 %v3704
        %5354 = vmatprep.subr.bf16.mxu0 %v3711
        %5355 = vmatpush1.bf16.msra.mxu0 %v3710
        %5356 = vmatprep.subr.bf16.mxu0 %v3717
        %5357 = vmatpush1.bf16.msra.mxu0 %v3716
        %5358 = vmatprep.subr.bf16.mxu0 %v3723
        %5359 = vmatpush1.bf16.msra.mxu0 %v3722
        %5360 = vmatprep.subr.bf16.mxu0 %v3729
        %5361 = vmatpush1.bf16.msra.mxu0 %v3728
        %5362 = vmatprep.subr.bf16.mxu0 %v3735
        %5363 = vmatpush1.bf16.msra.mxu0 %v3734
        %5364 = vmatprep.subr.bf16.mxu0 %v3741
        %5365 = vmatpush1.bf16.msra.mxu0 %v3740
        %5366 = vmatprep.mubr.bf16.mxu0 %v2197
        %5367 = vmatmul.mubr.bf16.gmra.mrb[0].mxu0 %v2196
        %v5368 = vpop.f32.mrb[0].mxu0
        %v5369 = vadd.f32 %v5206, %v5368
        %v5370 = vpop.f32.mrb[0].mxu0
        %v5371 = vadd.f32 %v5208, %v5370
        %v5372 = vpop.f32.mrb[0].mxu0
        %v5373 = vadd.f32 %v5210, %v5372
        %v5374 = vpop.f32.mrb[0].mxu0
        %v5375 = vadd.f32 %v5212, %v5374
        %5376 = vmatprep.mubr.bf16.mxu0 %v2203
        %5377 = vmatmul.mubr.bf16.gmra.mrb[0].mxu0 %v2202
        %v5378 = vpop.f32.mrb[0].mxu0
        %v5379 = vadd.f32 %v5216, %v5378
        %v5380 = vpop.f32.mrb[0].mxu0
        %v5381 = vadd.f32 %v5218, %v5380
        %v5382 = vpop.f32.mrb[0].mxu0
        %v5383 = vadd.f32 %v5220, %v5382
        %v5384 = vpop.f32.mrb[0].mxu0
        %v5385 = vadd.f32 %v5222, %v5384
        %5386 = vmatprep.mubr.bf16.mxu0 %v2209
        %5387 = vmatmul.mubr.bf16.gmra.mrb[0].mxu0 %v2208
        %v5388 = vpop.f32.mrb[0].mxu0
        %v5389 = vadd.f32 %v5226, %v5388
        %v5390 = vpop.f32.mrb[0].mxu0
        %v5391 = vadd.f32 %v5228, %v5390
        %v5392 = vpop.f32.mrb[0].mxu0
        %v5393 = vadd.f32 %v5230, %v5392
        %v5394 = vpop.f32.mrb[0].mxu0
        %v5395 = vadd.f32 %v5232, %v5394
        %5396 = vmatprep.mubr.bf16.mxu0 %v2215
        %5397 = vmatmul.mubr.bf16.gmra.mrb[0].mxu0 %v2214
        %v5398 = vpop.f32.mrb[0].mxu0
        %v5399 = vadd.f32 %v5236, %v5398
        %v5400 = vpop.f32.mrb[0].mxu0
        %v5401 = vadd.f32 %v5238, %v5400
        %v5402 = vpop.f32.mrb[0].mxu0
        %v5403 = vadd.f32 %v5240, %v5402
        %v5404 = vpop.f32.mrb[0].mxu0
        %v5405 = vadd.f32 %v5242, %v5404
        %5406 = vmatprep.mubr.bf16.mxu0 %v2221
        %5407 = vmatmul.mubr.bf16.gmra.mrb[0].mxu0 %v2220
        %v5408 = vpop.f32.mrb[0].mxu0
        %v5409 = vadd.f32 %v5246, %v5408
        %v5410 = vpop.f32.mrb[0].mxu0
        %v5411 = vadd.f32 %v5248, %v5410
        %v5412 = vpop.f32.mrb[0].mxu0
        %v5413 = vadd.f32 %v5250, %v5412
        %v5414 = vpop.f32.mrb[0].mxu0
        %v5415 = vadd.f32 %v5252, %v5414
        %5416 = vmatprep.mubr.bf16.mxu0 %v2227
        %5417 = vmatmul.mubr.bf16.gmra.mrb[0].mxu0 %v2226
        %v5418 = vpop.f32.mrb[0].mxu0
        %v5419 = vadd.f32 %v5256, %v5418
        %v5420 = vpop.f32.mrb[0].mxu0
        %v5421 = vadd.f32 %v5258, %v5420
        %v5422 = vpop.f32.mrb[0].mxu0
        %v5423 = vadd.f32 %v5260, %v5422
        %v5424 = vpop.f32.mrb[0].mxu0
        %v5425 = vadd.f32 %v5262, %v5424
        %5426 = vmatprep.mubr.bf16.mxu0 %v2233
        %5427 = vmatmul.mubr.bf16.gmra.mrb[0].mxu0 %v2232
        %v5428 = vpop.f32.mrb[0].mxu0
        %v5429 = vadd.f32 %v5266, %v5428
        %v5430 = vpop.f32.mrb[0].mxu0
        %v5431 = vadd.f32 %v5268, %v5430
        %v5432 = vpop.f32.mrb[0].mxu0
        %v5433 = vadd.f32 %v5270, %v5432
        %v5434 = vpop.f32.mrb[0].mxu0
        %v5435 = vadd.f32 %v5272, %v5434
        %5436 = vmatprep.mubr.bf16.mxu0 %v2239
        %5437 = vmatmul.mubr.bf16.gmra.mrb[0].mxu0 %v2238
        %v5438 = vpop.f32.mrb[0].mxu0
        %v5439 = vadd.f32 %v5276, %v5438
        %v5440 = vpop.f32.mrb[0].mxu0
        %v5441 = vadd.f32 %v5278, %v5440
        %v5442 = vpop.f32.mrb[0].mxu0
        %v5443 = vadd.f32 %v5280, %v5442
        %v5444 = vpop.f32.mrb[0].mxu0
        %v5445 = vadd.f32 %v5282, %v5444
        %5446 = vmatprep.mubr.bf16.mxu0 %v2245
        %5447 = vmatmul.mubr.bf16.gmra.mrb[0].mxu0 %v2244
        %v5448 = vpop.f32.mrb[0].mxu0
        %v5449 = vadd.f32 %v5286, %v5448
        %v5450 = vpop.f32.mrb[0].mxu0
        %v5451 = vadd.f32 %v5288, %v5450
        %v5452 = vpop.f32.mrb[0].mxu0
        %v5453 = vadd.f32 %v5290, %v5452
        %v5454 = vpop.f32.mrb[0].mxu0
        %v5455 = vadd.f32 %v5292, %v5454
        %5456 = vmatprep.mubr.bf16.mxu0 %v2251
        %5457 = vmatmul.mubr.bf16.gmra.mrb[0].mxu0 %v2250
        %v5458 = vpop.f32.mrb[0].mxu0
        %v5459 = vadd.f32 %v5296, %v5458
        %v5460 = vpop.f32.mrb[0].mxu0
        %v5461 = vadd.f32 %v5298, %v5460
        %v5462 = vpop.f32.mrb[0].mxu0
        %v5463 = vadd.f32 %v5300, %v5462
        %v5464 = vpop.f32.mrb[0].mxu0
        %v5465 = vadd.f32 %v5302, %v5464
        %5466 = vmatprep.mubr.bf16.mxu0 %v2257
        %5467 = vmatmul.mubr.bf16.gmra.mrb[0].mxu0 %v2256
        %v5468 = vpop.f32.mrb[0].mxu0
        %v5469 = vadd.f32 %v5306, %v5468
        %v5470 = vpop.f32.mrb[0].mxu0
        %v5471 = vadd.f32 %v5308, %v5470
        %v5472 = vpop.f32.mrb[0].mxu0
        %v5473 = vadd.f32 %v5310, %v5472
        %v5474 = vpop.f32.mrb[0].mxu0
        %v5475 = vadd.f32 %v5312, %v5474
        %5476 = vmatprep.mubr.bf16.mxu0 %v2263
        %5477 = vmatmul.mubr.bf16.gmra.mrb[0].mxu0 %v2262
        %v5478 = vpop.f32.mrb[0].mxu0
        %v5479 = vadd.f32 %v5316, %v5478
        %v5480 = vpop.f32.mrb[0].mxu0
        %v5481 = vadd.f32 %v5318, %v5480
        %v5482 = vpop.f32.mrb[0].mxu0
        %v5483 = vadd.f32 %v5320, %v5482
        %v5484 = vpop.f32.mrb[0].mxu0
        %v5485 = vadd.f32 %v5322, %v5484
        %5486 = vmatprep.mubr.bf16.mxu0 %v2269
        %5487 = vmatmul.mubr.bf16.gmra.mrb[0].mxu0 %v2268
        %v5488 = vpop.f32.mrb[0].mxu0
        %v5489 = vadd.f32 %v5326, %v5488
        %v5490 = vpop.f32.mrb[0].mxu0
        %v5491 = vadd.f32 %v5328, %v5490
        %v5492 = vpop.f32.mrb[0].mxu0
        %v5493 = vadd.f32 %v5330, %v5492
        %v5494 = vpop.f32.mrb[0].mxu0
        %v5495 = vadd.f32 %v5332, %v5494
        %5496 = vdwg.mxu0
        %v5497 = vmul.f32 %v4391, 0.5
        %v5498 = vmul.f32 %v4393, 0.5
        %v5499 = vmul.f32 %v4880, 0.5
        %v5500 = vmul.f32 %v4882, 0.5
        %v5501 = vmul.f32 %v5369, 0.5
        %v5502 = vmul.f32 %v5371, 0.5
        %v5503 = vmul.f32 %v4395, 0.5
        %v5504 = vmul.f32 %v4397, 0.5
        %v5505 = vmul.f32 %v4884, 0.5
        %v5506 = vmul.f32 %v4886, 0.5
        %v5507 = vmul.f32 %v5373, 0.5
        %v5508 = vmul.f32 %v5375, 0.5
        %v5509 = vmul.f32 %v4401, 0.5
        %v5510 = vmul.f32 %v4403, 0.5
        %v5511 = vmul.f32 %v4890, 0.5
        %v5512 = vmul.f32 %v4892, 0.5
        %v5513 = vmul.f32 %v5379, 0.5
        %v5514 = vmul.f32 %v5381, 0.5
        %v5515 = vmul.f32 %v4405, 0.5
        %v5516 = vmul.f32 %v4407, 0.5
        %v5517 = vmul.f32 %v4894, 0.5
        %v5518 = vmul.f32 %v4896, 0.5
        %v5519 = vmul.f32 %v5383, 0.5
        %v5520 = vmul.f32 %v5385, 0.5
        %v5521 = vmul.f32 %v4411, 0.5
        %v5522 = vmul.f32 %v4413, 0.5
        %v5523 = vmul.f32 %v4900, 0.5
        %v5524 = vmul.f32 %v4902, 0.5
        %v5525 = vmul.f32 %v5389, 0.5
        %v5526 = vmul.f32 %v5391, 0.5
        %v5527 = vmul.f32 %v4415, 0.5
        %v5528 = vmul.f32 %v4417, 0.5
        %v5529 = vmul.f32 %v4904, 0.5
        %v5530 = vmul.f32 %v4906, 0.5
        %v5531 = vmul.f32 %v5393, 0.5
        %v5532 = vmul.f32 %v5395, 0.5
        %v5533 = vmul.f32 %v4421, 0.5
        %v5534 = vmul.f32 %v4423, 0.5
        %v5535 = vmul.f32 %v4910, 0.5
        %v5536 = vmul.f32 %v4912, 0.5
        %v5537 = vmul.f32 %v5399, 0.5
        %v5538 = vmul.f32 %v5401, 0.5
        %v5539 = vmul.f32 %v4425, 0.5
        %v5540 = vmul.f32 %v4427, 0.5
        %v5541 = vmul.f32 %v4914, 0.5
        %v5542 = vmul.f32 %v4916, 0.5
        %v5543 = vmul.f32 %v5403, 0.5
        %v5544 = vmul.f32 %v5405, 0.5
        %v5545 = vmul.f32 %v4431, 0.5
        %v5546 = vmul.f32 %v4433, 0.5
        %v5547 = vmul.f32 %v4920, 0.5
        %v5548 = vmul.f32 %v4922, 0.5
        %v5549 = vmul.f32 %v5409, 0.5
        %v5550 = vmul.f32 %v5411, 0.5
        %v5551 = vmul.f32 %v4435, 0.5
        %v5552 = vmul.f32 %v4437, 0.5
        %v5553 = vmul.f32 %v4924, 0.5
        %v5554 = vmul.f32 %v4926, 0.5
        %v5555 = vmul.f32 %v5413, 0.5
        %v5556 = vmul.f32 %v5415, 0.5
        %v5557 = vmul.f32 %v4441, 0.5
        %v5558 = vmul.f32 %v4443, 0.5
        %v5559 = vmul.f32 %v4930, 0.5
        %v5560 = vmul.f32 %v4932, 0.5
        %v5561 = vmul.f32 %v5419, 0.5
        %v5562 = vmul.f32 %v5421, 0.5
        %v5563 = vmul.f32 %v4445, 0.5
        %v5564 = vmul.f32 %v4447, 0.5
        %v5565 = vmul.f32 %v4934, 0.5
        %v5566 = vmul.f32 %v4936, 0.5
        %v5567 = vmul.f32 %v5423, 0.5
        %v5568 = vmul.f32 %v5425, 0.5
        %v5569 = vmul.f32 %v4451, 0.5
        %v5570 = vmul.f32 %v4453, 0.5
        %v5571 = vmul.f32 %v4940, 0.5
        %v5572 = vmul.f32 %v4942, 0.5
        %v5573 = vmul.f32 %v5429, 0.5
        %v5574 = vmul.f32 %v5431, 0.5
        %v5575 = vmul.f32 %v4455, 0.5
        %v5576 = vmul.f32 %v4457, 0.5
        %v5577 = vmul.f32 %v4944, 0.5
        %v5578 = vmul.f32 %v4946, 0.5
        %v5579 = vmul.f32 %v5433, 0.5
        %v5580 = vmul.f32 %v5435, 0.5
        %v5581 = vmul.f32 %v4461, 0.5
        %v5582 = vmul.f32 %v4463, 0.5
        %v5583 = vmul.f32 %v4950, 0.5
        %v5584 = vmul.f32 %v4952, 0.5
        %v5585 = vmul.f32 %v5439, 0.5
        %v5586 = vmul.f32 %v5441, 0.5
        %v5587 = vmul.f32 %v4465, 0.5
        %v5588 = vmul.f32 %v4467, 0.5
        %v5589 = vmul.f32 %v4954, 0.5
        %v5590 = vmul.f32 %v4956, 0.5
        %v5591 = vmul.f32 %v5443, 0.5
        %v5592 = vmul.f32 %v5445, 0.5
        %v5593 = vmul.f32 %v4471, 0.5
        %v5594 = vmul.f32 %v4473, 0.5
        %v5595 = vmul.f32 %v4960, 0.5
        %v5596 = vmul.f32 %v4962, 0.5
        %v5597 = vmul.f32 %v5449, 0.5
        %v5598 = vmul.f32 %v5451, 0.5
        %v5599 = vmul.f32 %v4475, 0.5
        %v5600 = vmul.f32 %v4477, 0.5
        %v5601 = vmul.f32 %v4964, 0.5
        %v5602 = vmul.f32 %v4966, 0.5
        %v5603 = vmul.f32 %v5453, 0.5
        %v5604 = vmul.f32 %v5455, 0.5
        %v5605 = vmul.f32 %v4481, 0.5
        %v5606 = vmul.f32 %v4483, 0.5
        %v5607 = vmul.f32 %v4970, 0.5
        %v5608 = vmul.f32 %v4972, 0.5
        %v5609 = vmul.f32 %v5459, 0.5
        %v5610 = vmul.f32 %v5461, 0.5
        %v5611 = vmul.f32 %v4485, 0.5
        %v5612 = vmul.f32 %v4487, 0.5
        %v5613 = vmul.f32 %v4974, 0.5
        %v5614 = vmul.f32 %v4976, 0.5
        %v5615 = vmul.f32 %v5463, 0.5
        %v5616 = vmul.f32 %v5465, 0.5
        %v5617 = vmul.f32 %v4491, 0.5
        %v5618 = vmul.f32 %v4493, 0.5
        %v5619 = vmul.f32 %v4980, 0.5
        %v5620 = vmul.f32 %v4982, 0.5
        %v5621 = vmul.f32 %v5469, 0.5
        %v5622 = vmul.f32 %v5471, 0.5
        %v5623 = vmul.f32 %v4495, 0.5
        %v5624 = vmul.f32 %v4497, 0.5
        %v5625 = vmul.f32 %v4984, 0.5
        %v5626 = vmul.f32 %v4986, 0.5
        %v5627 = vmul.f32 %v5473, 0.5
        %v5628 = vmul.f32 %v5475, 0.5
        %v5629 = vmul.f32 %v4501, 0.5
        %v5630 = vmul.f32 %v4503, 0.5
        %v5631 = vmul.f32 %v4990, 0.5
        %v5632 = vmul.f32 %v4992, 0.5
        %v5633 = vmul.f32 %v5479, 0.5
        %v5634 = vmul.f32 %v5481, 0.5
        %v5635 = vmul.f32 %v4505, 0.5
        %v5636 = vmul.f32 %v4507, 0.5
        %v5637 = vmul.f32 %v4994, 0.5
        %v5638 = vmul.f32 %v4996, 0.5
        %v5639 = vmul.f32 %v5483, 0.5
        %v5640 = vmul.f32 %v5485, 0.5
        %v5641 = vmul.f32 %v4511, 0.5
        %v5642 = vmul.f32 %v4513, 0.5
        %v5643 = vmul.f32 %v5000, 0.5
        %v5644 = vmul.f32 %v5002, 0.5
        %v5645 = vmul.f32 %v5489, 0.5
        %v5646 = vmul.f32 %v5491, 0.5
        %v5647 = vmul.f32 %v4515, 0.5
        %v5648 = vmul.f32 %v4517, 0.5
        %v5649 = vmul.f32 %v5004, 0.5
        %v5650 = vmul.f32 %v5006, 0.5
        %v5651 = vmul.f32 %v5493, 0.5
        %v5652 = vmul.f32 %v5495, 0.5
        %v5653 = vmul.f32 %v4391, 0.70710677
        %v5654 = vmul.f32 %v4393, 0.70710677
        %v5655 = vmul.f32 %v4880, 0.70710677
        %v5656 = vmul.f32 %v4882, 0.70710677
        %v5657 = vmul.f32 %v5369, 0.70710677
        %v5658 = vmul.f32 %v5371, 0.70710677
        %v5659 = vmul.f32 %v4395, 0.70710677
        %v5660 = vmul.f32 %v4397, 0.70710677
        %v5661 = vmul.f32 %v4884, 0.70710677
        %v5662 = vmul.f32 %v4886, 0.70710677
        %v5663 = vmul.f32 %v5373, 0.70710677
        %v5664 = vmul.f32 %v5375, 0.70710677
        %v5665 = vmul.f32 %v4401, 0.70710677
        %v5666 = vmul.f32 %v4403, 0.70710677
        %v5667 = vmul.f32 %v4890, 0.70710677
        %v5668 = vmul.f32 %v4892, 0.70710677
        %v5669 = vmul.f32 %v5379, 0.70710677
        %v5670 = vmul.f32 %v5381, 0.70710677
        %v5671 = vmul.f32 %v4405, 0.70710677
        %v5672 = vmul.f32 %v4407, 0.70710677
        %v5673 = vmul.f32 %v4894, 0.70710677
        %v5674 = vmul.f32 %v4896, 0.70710677
        %v5675 = vmul.f32 %v5383, 0.70710677
        %v5676 = vmul.f32 %v5385, 0.70710677
        %v5677 = vmul.f32 %v4411, 0.70710677
        %v5678 = vmul.f32 %v4413, 0.70710677
        %v5679 = vmul.f32 %v4900, 0.70710677
        %v5680 = vmul.f32 %v4902, 0.70710677
        %v5681 = vmul.f32 %v5389, 0.70710677
        %v5682 = vmul.f32 %v5391, 0.70710677
        %v5683 = vmul.f32 %v4415, 0.70710677
        %v5684 = vmul.f32 %v4417, 0.70710677
        %v5685 = vmul.f32 %v4904, 0.70710677
        %v5686 = vmul.f32 %v4906, 0.70710677
        %v5687 = vmul.f32 %v5393, 0.70710677
        %v5688 = vmul.f32 %v5395, 0.70710677
        %v5689 = vmul.f32 %v4421, 0.70710677
        %v5690 = vmul.f32 %v4423, 0.70710677
        %v5691 = vmul.f32 %v4910, 0.70710677
        %v5692 = vmul.f32 %v4912, 0.70710677
        %v5693 = vmul.f32 %v5399, 0.70710677
        %v5694 = vmul.f32 %v5401, 0.70710677
        %v5695 = vmul.f32 %v4425, 0.70710677
        %v5696 = vmul.f32 %v4427, 0.70710677
        %v5697 = vmul.f32 %v4914, 0.70710677
        %v5698 = vmul.f32 %v4916, 0.70710677
        %v5699 = vmul.f32 %v5403, 0.70710677
        %v5700 = vmul.f32 %v5405, 0.70710677
        %v5701 = vmul.f32 %v4431, 0.70710677
        %v5702 = vmul.f32 %v4433, 0.70710677
        %v5703 = vmul.f32 %v4920, 0.70710677
        %v5704 = vmul.f32 %v4922, 0.70710677
        %v5705 = vmul.f32 %v5409, 0.70710677
        %v5706 = vmul.f32 %v5411, 0.70710677
        %v5707 = vmul.f32 %v4435, 0.70710677
        %v5708 = vmul.f32 %v4437, 0.70710677
        %v5709 = vmul.f32 %v4924, 0.70710677
        %v5710 = vmul.f32 %v4926, 0.70710677
        %v5711 = vmul.f32 %v5413, 0.70710677
        %v5712 = vmul.f32 %v5415, 0.70710677
        %v5713 = vmul.f32 %v4441, 0.70710677
        %v5714 = vmul.f32 %v4443, 0.70710677
        %v5715 = vmul.f32 %v4930, 0.70710677
        %v5716 = vmul.f32 %v4932, 0.70710677
        %v5717 = vmul.f32 %v5419, 0.70710677
        %v5718 = vmul.f32 %v5421, 0.70710677
        %v5719 = vmul.f32 %v4445, 0.70710677
        %v5720 = vmul.f32 %v4447, 0.70710677
        %v5721 = vmul.f32 %v4934, 0.70710677
        %v5722 = vmul.f32 %v4936, 0.70710677
        %v5723 = vmul.f32 %v5423, 0.70710677
        %v5724 = vmul.f32 %v5425, 0.70710677
        %v5725 = vmul.f32 %v4451, 0.70710677
        %v5726 = vmul.f32 %v4453, 0.70710677
        %v5727 = vmul.f32 %v4940, 0.70710677
        %v5728 = vmul.f32 %v4942, 0.70710677
        %v5729 = vmul.f32 %v5429, 0.70710677
        %v5730 = vmul.f32 %v5431, 0.70710677
        %v5731 = vmul.f32 %v4455, 0.70710677
        %v5732 = vmul.f32 %v4457, 0.70710677
        %v5733 = vmul.f32 %v4944, 0.70710677
        %v5734 = vmul.f32 %v4946, 0.70710677
        %v5735 = vmul.f32 %v5433, 0.70710677
        %v5736 = vmul.f32 %v5435, 0.70710677
        %v5737 = vmul.f32 %v4461, 0.70710677
        %v5738 = vmul.f32 %v4463, 0.70710677
        %v5739 = vmul.f32 %v4950, 0.70710677
        %v5740 = vmul.f32 %v4952, 0.70710677
        %v5741 = vmul.f32 %v5439, 0.70710677
        %v5742 = vmul.f32 %v5441, 0.70710677
        %v5743 = vmul.f32 %v4465, 0.70710677
        %v5744 = vmul.f32 %v4467, 0.70710677
        %v5745 = vmul.f32 %v4954, 0.70710677
        %v5746 = vmul.f32 %v4956, 0.70710677
        %v5747 = vmul.f32 %v5443, 0.70710677
        %v5748 = vmul.f32 %v5445, 0.70710677
        %v5749 = vmul.f32 %v4471, 0.70710677
        %v5750 = vmul.f32 %v4473, 0.70710677
        %v5751 = vmul.f32 %v4960, 0.70710677
        %v5752 = vmul.f32 %v4962, 0.70710677
        %v5753 = vmul.f32 %v5449, 0.70710677
        %v5754 = vmul.f32 %v5451, 0.70710677
        %v5755 = vmul.f32 %v4475, 0.70710677
        %v5756 = vmul.f32 %v4477, 0.70710677
        %v5757 = vmul.f32 %v4964, 0.70710677
        %v5758 = vmul.f32 %v4966, 0.70710677
        %v5759 = vmul.f32 %v5453, 0.70710677
        %v5760 = vmul.f32 %v5455, 0.70710677
        %v5761 = vmul.f32 %v4481, 0.70710677
        %v5762 = vmul.f32 %v4483, 0.70710677
        %v5763 = vmul.f32 %v4970, 0.70710677
        %v5764 = vmul.f32 %v4972, 0.70710677
        %v5765 = vmul.f32 %v5459, 0.70710677
        %v5766 = vmul.f32 %v5461, 0.70710677
        %v5767 = vmul.f32 %v4485, 0.70710677
        %v5768 = vmul.f32 %v4487, 0.70710677
        %v5769 = vmul.f32 %v4974, 0.70710677
        %v5770 = vmul.f32 %v4976, 0.70710677
        %v5771 = vmul.f32 %v5463, 0.70710677
        %v5772 = vmul.f32 %v5465, 0.70710677
        %v5773 = vmul.f32 %v4491, 0.70710677
        %v5774 = vmul.f32 %v4493, 0.70710677
        %v5775 = vmul.f32 %v4980, 0.70710677
        %v5776 = vmul.f32 %v4982, 0.70710677
        %v5777 = vmul.f32 %v5469, 0.70710677
        %v5778 = vmul.f32 %v5471, 0.70710677
        %v5779 = vmul.f32 %v4495, 0.70710677
        %v5780 = vmul.f32 %v4497, 0.70710677
        %v5781 = vmul.f32 %v4984, 0.70710677
        %v5782 = vmul.f32 %v4986, 0.70710677
        %v5783 = vmul.f32 %v5473, 0.70710677
        %v5784 = vmul.f32 %v5475, 0.70710677
        %v5785 = vmul.f32 %v4501, 0.70710677
        %v5786 = vmul.f32 %v4503, 0.70710677
        %v5787 = vmul.f32 %v4990, 0.70710677
        %v5788 = vmul.f32 %v4992, 0.70710677
        %v5789 = vmul.f32 %v5479, 0.70710677
        %v5790 = vmul.f32 %v5481, 0.70710677
        %v5791 = vmul.f32 %v4505, 0.70710677
        %v5792 = vmul.f32 %v4507, 0.70710677
        %v5793 = vmul.f32 %v4994, 0.70710677
        %v5794 = vmul.f32 %v4996, 0.70710677
        %v5795 = vmul.f32 %v5483, 0.70710677
        %v5796 = vmul.f32 %v5485, 0.70710677
        %v5797 = vmul.f32 %v4511, 0.70710677
        %v5798 = vmul.f32 %v4513, 0.70710677
        %v5799 = vmul.f32 %v5000, 0.70710677
        %v5800 = vmul.f32 %v5002, 0.70710677
        %v5801 = vmul.f32 %v5489, 0.70710677
        %v5802 = vmul.f32 %v5491, 0.70710677
        %v5803 = vmul.f32 %v4515, 0.70710677
        %v5804 = vmul.f32 %v4517, 0.70710677
        %v5805 = vmul.f32 %v5004, 0.70710677
        %v5806 = vmul.f32 %v5006, 0.70710677
        %v5807 = vmul.f32 %v5493, 0.70710677
        %v5808 = vmul.f32 %v5495, 0.70710677
        %v5809 = verf.f32.pop %v5653
        %v5810 = verf.f32.pop %v5654
        %v5811 = verf.f32.pop %v5655
        %v5812 = verf.f32.pop %v5656
        %v5813 = verf.f32.pop %v5657
        %v5814 = verf.f32.pop %v5658
        %v5815 = verf.f32.pop %v5659
        %v5816 = verf.f32.pop %v5660
        %v5817 = verf.f32.pop %v5661
        %v5818 = verf.f32.pop %v5662
        %v5819 = verf.f32.pop %v5663
        %v5820 = verf.f32.pop %v5664
        %v5821 = verf.f32.pop %v5665
        %v5822 = verf.f32.pop %v5666
        %v5823 = verf.f32.pop %v5667
        %v5824 = verf.f32.pop %v5668
        %v5825 = verf.f32.pop %v5669
        %v5826 = verf.f32.pop %v5670
        %v5827 = verf.f32.pop %v5671
        %v5828 = verf.f32.pop %v5672
        %v5829 = verf.f32.pop %v5673
        %v5830 = verf.f32.pop %v5674
        %v5831 = verf.f32.pop %v5675
        %v5832 = verf.f32.pop %v5676
        %v5833 = verf.f32.pop %v5677
        %v5834 = verf.f32.pop %v5678
        %v5835 = verf.f32.pop %v5679
        %v5836 = verf.f32.pop %v5680
        %v5837 = verf.f32.pop %v5681
        %v5838 = verf.f32.pop %v5682
        %v5839 = verf.f32.pop %v5683
        %v5840 = verf.f32.pop %v5684
        %v5841 = verf.f32.pop %v5685
        %v5842 = verf.f32.pop %v5686
        %v5843 = verf.f32.pop %v5687
        %v5844 = verf.f32.pop %v5688
        %v5845 = verf.f32.pop %v5689
        %v5846 = verf.f32.pop %v5690
        %v5847 = verf.f32.pop %v5691
        %v5848 = verf.f32.pop %v5692
        %v5849 = verf.f32.pop %v5693
        %v5850 = verf.f32.pop %v5694
        %v5851 = verf.f32.pop %v5695
        %v5852 = verf.f32.pop %v5696
        %v5853 = verf.f32.pop %v5697
        %v5854 = verf.f32.pop %v5698
        %v5855 = verf.f32.pop %v5699
        %v5856 = verf.f32.pop %v5700
        %v5857 = verf.f32.pop %v5701
        %v5858 = verf.f32.pop %v5702
        %v5859 = verf.f32.pop %v5703
        %v5860 = verf.f32.pop %v5704
        %v5861 = verf.f32.pop %v5705
        %v5862 = verf.f32.pop %v5706
        %v5863 = verf.f32.pop %v5707
        %v5864 = verf.f32.pop %v5708
        %v5865 = verf.f32.pop %v5709
        %v5866 = verf.f32.pop %v5710
        %v5867 = verf.f32.pop %v5711
        %v5868 = verf.f32.pop %v5712
        %v5869 = verf.f32.pop %v5713
        %v5870 = verf.f32.pop %v5714
        %v5871 = verf.f32.pop %v5715
        %v5872 = verf.f32.pop %v5716
        %v5873 = verf.f32.pop %v5717
        %v5874 = verf.f32.pop %v5718
        %v5875 = verf.f32.pop %v5719
        %v5876 = verf.f32.pop %v5720
        %v5877 = verf.f32.pop %v5721
        %v5878 = verf.f32.pop %v5722
        %v5879 = verf.f32.pop %v5723
        %v5880 = verf.f32.pop %v5724
        %v5881 = verf.f32.pop %v5725
        %v5882 = verf.f32.pop %v5726
        %v5883 = verf.f32.pop %v5727
        %v5884 = verf.f32.pop %v5728
        %v5885 = verf.f32.pop %v5729
        %v5886 = verf.f32.pop %v5730
        %v5887 = verf.f32.pop %v5731
        %v5888 = verf.f32.pop %v5732
        %v5889 = verf.f32.pop %v5733
        %v5890 = verf.f32.pop %v5734
        %v5891 = verf.f32.pop %v5735
        %v5892 = verf.f32.pop %v5736
        %v5893 = verf.f32.pop %v5737
        %v5894 = verf.f32.pop %v5738
        %v5895 = verf.f32.pop %v5739
        %v5896 = verf.f32.pop %v5740
        %v5897 = verf.f32.pop %v5741
        %v5898 = verf.f32.pop %v5742
        %v5899 = verf.f32.pop %v5743
        %v5900 = verf.f32.pop %v5744
        %v5901 = verf.f32.pop %v5745
        %v5902 = verf.f32.pop %v5746
        %v5903 = verf.f32.pop %v5747
        %v5904 = verf.f32.pop %v5748
        %v5905 = verf.f32.pop %v5749
        %v5906 = verf.f32.pop %v5750
        %v5907 = verf.f32.pop %v5751
        %v5908 = verf.f32.pop %v5752
        %v5909 = verf.f32.pop %v5753
        %v5910 = verf.f32.pop %v5754
        %v5911 = verf.f32.pop %v5755
        %v5912 = verf.f32.pop %v5756
        %v5913 = verf.f32.pop %v5757
        %v5914 = verf.f32.pop %v5758
        %v5915 = verf.f32.pop %v5759
        %v5916 = verf.f32.pop %v5760
        %v5917 = verf.f32.pop %v5761
        %v5918 = verf.f32.pop %v5762
        %v5919 = verf.f32.pop %v5763
        %v5920 = verf.f32.pop %v5764
        %v5921 = verf.f32.pop %v5765
        %v5922 = verf.f32.pop %v5766
        %v5923 = verf.f32.pop %v5767
        %v5924 = verf.f32.pop %v5768
        %v5925 = verf.f32.pop %v5769
        %v5926 = verf.f32.pop %v5770
        %v5927 = verf.f32.pop %v5771
        %v5928 = verf.f32.pop %v5772
        %v5929 = verf.f32.pop %v5773
        %v5930 = verf.f32.pop %v5774
        %v5931 = verf.f32.pop %v5775
        %v5932 = verf.f32.pop %v5776
        %v5933 = verf.f32.pop %v5777
        %v5934 = verf.f32.pop %v5778
        %v5935 = verf.f32.pop %v5779
        %v5936 = verf.f32.pop %v5780
        %v5937 = verf.f32.pop %v5781
        %v5938 = verf.f32.pop %v5782
        %v5939 = verf.f32.pop %v5783
        %v5940 = verf.f32.pop %v5784
        %v5941 = verf.f32.pop %v5785
        %v5942 = verf.f32.pop %v5786
        %v5943 = verf.f32.pop %v5787
        %v5944 = verf.f32.pop %v5788
        %v5945 = verf.f32.pop %v5789
        %v5946 = verf.f32.pop %v5790
        %v5947 = verf.f32.pop %v5791
        %v5948 = verf.f32.pop %v5792
        %v5949 = verf.f32.pop %v5793
        %v5950 = verf.f32.pop %v5794
        %v5951 = verf.f32.pop %v5795
        %v5952 = verf.f32.pop %v5796
        %v5953 = verf.f32.pop %v5797
        %v5954 = verf.f32.pop %v5798
        %v5955 = verf.f32.pop %v5799
        %v5956 = verf.f32.pop %v5800
        %v5957 = verf.f32.pop %v5801
        %v5958 = verf.f32.pop %v5802
        %v5959 = verf.f32.pop %v5803
        %v5960 = verf.f32.pop %v5804
        %v5961 = verf.f32.pop %v5805
        %v5962 = verf.f32.pop %v5806
        %v5963 = verf.f32.pop %v5807
        %v5964 = verf.f32.pop %v5808
        %v5965 = vadd.f32 %v5809, 1.0
        %v5966 = vadd.f32 %v5810, 1.0
        %v5967 = vadd.f32 %v5811, 1.0
        %v5968 = vadd.f32 %v5812, 1.0
        %v5969 = vadd.f32 %v5813, 1.0
        %v5970 = vadd.f32 %v5814, 1.0
        %v5971 = vadd.f32 %v5815, 1.0
        %v5972 = vadd.f32 %v5816, 1.0
        %v5973 = vadd.f32 %v5817, 1.0
        %v5974 = vadd.f32 %v5818, 1.0
        %v5975 = vadd.f32 %v5819, 1.0
        %v5976 = vadd.f32 %v5820, 1.0
        %v5977 = vadd.f32 %v5821, 1.0
        %v5978 = vadd.f32 %v5822, 1.0
        %v5979 = vadd.f32 %v5823, 1.0
        %v5980 = vadd.f32 %v5824, 1.0
        %v5981 = vadd.f32 %v5825, 1.0
        %v5982 = vadd.f32 %v5826, 1.0
        %v5983 = vadd.f32 %v5827, 1.0
        %v5984 = vadd.f32 %v5828, 1.0
        %v5985 = vadd.f32 %v5829, 1.0
        %v5986 = vadd.f32 %v5830, 1.0
        %v5987 = vadd.f32 %v5831, 1.0
        %v5988 = vadd.f32 %v5832, 1.0
        %v5989 = vadd.f32 %v5833, 1.0
        %v5990 = vadd.f32 %v5834, 1.0
        %v5991 = vadd.f32 %v5835, 1.0
        %v5992 = vadd.f32 %v5836, 1.0
        %v5993 = vadd.f32 %v5837, 1.0
        %v5994 = vadd.f32 %v5838, 1.0
        %v5995 = vadd.f32 %v5839, 1.0
        %v5996 = vadd.f32 %v5840, 1.0
        %v5997 = vadd.f32 %v5841, 1.0
        %v5998 = vadd.f32 %v5842, 1.0
        %v5999 = vadd.f32 %v5843, 1.0
        %v6000 = vadd.f32 %v5844, 1.0
        %v6001 = vadd.f32 %v5845, 1.0
        %v6002 = vadd.f32 %v5846, 1.0
        %v6003 = vadd.f32 %v5847, 1.0
        %v6004 = vadd.f32 %v5848, 1.0
        %v6005 = vadd.f32 %v5849, 1.0
        %v6006 = vadd.f32 %v5850, 1.0
        %v6007 = vadd.f32 %v5851, 1.0
        %v6008 = vadd.f32 %v5852, 1.0
        %v6009 = vadd.f32 %v5853, 1.0
        %v6010 = vadd.f32 %v5854, 1.0
        %v6011 = vadd.f32 %v5855, 1.0
        %v6012 = vadd.f32 %v5856, 1.0
        %v6013 = vadd.f32 %v5857, 1.0
        %v6014 = vadd.f32 %v5858, 1.0
        %v6015 = vadd.f32 %v5859, 1.0
        %v6016 = vadd.f32 %v5860, 1.0
        %v6017 = vadd.f32 %v5861, 1.0
        %v6018 = vadd.f32 %v5862, 1.0
        %v6019 = vadd.f32 %v5863, 1.0
        %v6020 = vadd.f32 %v5864, 1.0
        %v6021 = vadd.f32 %v5865, 1.0
        %v6022 = vadd.f32 %v5866, 1.0
        %v6023 = vadd.f32 %v5867, 1.0
        %v6024 = vadd.f32 %v5868, 1.0
        %v6025 = vadd.f32 %v5869, 1.0
        %v6026 = vadd.f32 %v5870, 1.0
        %v6027 = vadd.f32 %v5871, 1.0
        %v6028 = vadd.f32 %v5872, 1.0
        %v6029 = vadd.f32 %v5873, 1.0
        %v6030 = vadd.f32 %v5874, 1.0
        %v6031 = vadd.f32 %v5875, 1.0
        %v6032 = vadd.f32 %v5876, 1.0
        %v6033 = vadd.f32 %v5877, 1.0
        %v6034 = vadd.f32 %v5878, 1.0
        %v6035 = vadd.f32 %v5879, 1.0
        %v6036 = vadd.f32 %v5880, 1.0
        %v6037 = vadd.f32 %v5881, 1.0
        %v6038 = vadd.f32 %v5882, 1.0
        %v6039 = vadd.f32 %v5883, 1.0
        %v6040 = vadd.f32 %v5884, 1.0
        %v6041 = vadd.f32 %v5885, 1.0
        %v6042 = vadd.f32 %v5886, 1.0
        %v6043 = vadd.f32 %v5887, 1.0
        %v6044 = vadd.f32 %v5888, 1.0
        %v6045 = vadd.f32 %v5889, 1.0
        %v6046 = vadd.f32 %v5890, 1.0
        %v6047 = vadd.f32 %v5891, 1.0
        %v6048 = vadd.f32 %v5892, 1.0
        %v6049 = vadd.f32 %v5893, 1.0
        %v6050 = vadd.f32 %v5894, 1.0
        %v6051 = vadd.f32 %v5895, 1.0
        %v6052 = vadd.f32 %v5896, 1.0
        %v6053 = vadd.f32 %v5897, 1.0
        %v6054 = vadd.f32 %v5898, 1.0
        %v6055 = vadd.f32 %v5899, 1.0
        %v6056 = vadd.f32 %v5900, 1.0
        %v6057 = vadd.f32 %v5901, 1.0
        %v6058 = vadd.f32 %v5902, 1.0
        %v6059 = vadd.f32 %v5903, 1.0
        %v6060 = vadd.f32 %v5904, 1.0
        %v6061 = vadd.f32 %v5905, 1.0
        %v6062 = vadd.f32 %v5906, 1.0
        %v6063 = vadd.f32 %v5907, 1.0
        %v6064 = vadd.f32 %v5908, 1.0
        %v6065 = vadd.f32 %v5909, 1.0
        %v6066 = vadd.f32 %v5910, 1.0
        %v6067 = vadd.f32 %v5911, 1.0
        %v6068 = vadd.f32 %v5912, 1.0
        %v6069 = vadd.f32 %v5913, 1.0
        %v6070 = vadd.f32 %v5914, 1.0
        %v6071 = vadd.f32 %v5915, 1.0
        %v6072 = vadd.f32 %v5916, 1.0
        %v6073 = vadd.f32 %v5917, 1.0
        %v6074 = vadd.f32 %v5918, 1.0
        %v6075 = vadd.f32 %v5919, 1.0
        %v6076 = vadd.f32 %v5920, 1.0
        %v6077 = vadd.f32 %v5921, 1.0
        %v6078 = vadd.f32 %v5922, 1.0
        %v6079 = vadd.f32 %v5923, 1.0
        %v6080 = vadd.f32 %v5924, 1.0
        %v6081 = vadd.f32 %v5925, 1.0
        %v6082 = vadd.f32 %v5926, 1.0
        %v6083 = vadd.f32 %v5927, 1.0
        %v6084 = vadd.f32 %v5928, 1.0
        %v6085 = vadd.f32 %v5929, 1.0
        %v6086 = vadd.f32 %v5930, 1.0
        %v6087 = vadd.f32 %v5931, 1.0
        %v6088 = vadd.f32 %v5932, 1.0
        %v6089 = vadd.f32 %v5933, 1.0
        %v6090 = vadd.f32 %v5934, 1.0
        %v6091 = vadd.f32 %v5935, 1.0
        %v6092 = vadd.f32 %v5936, 1.0
        %v6093 = vadd.f32 %v5937, 1.0
        %v6094 = vadd.f32 %v5938, 1.0
        %v6095 = vadd.f32 %v5939, 1.0
        %v6096 = vadd.f32 %v5940, 1.0
        %v6097 = vadd.f32 %v5941, 1.0
        %v6098 = vadd.f32 %v5942, 1.0
        %v6099 = vadd.f32 %v5943, 1.0
        %v6100 = vadd.f32 %v5944, 1.0
        %v6101 = vadd.f32 %v5945, 1.0
        %v6102 = vadd.f32 %v5946, 1.0
        %v6103 = vadd.f32 %v5947, 1.0
        %v6104 = vadd.f32 %v5948, 1.0
        %v6105 = vadd.f32 %v5949, 1.0
        %v6106 = vadd.f32 %v5950, 1.0
        %v6107 = vadd.f32 %v5951, 1.0
        %v6108 = vadd.f32 %v5952, 1.0
        %v6109 = vadd.f32 %v5953, 1.0
        %v6110 = vadd.f32 %v5954, 1.0
        %v6111 = vadd.f32 %v5955, 1.0
        %v6112 = vadd.f32 %v5956, 1.0
        %v6113 = vadd.f32 %v5957, 1.0
        %v6114 = vadd.f32 %v5958, 1.0
        %v6115 = vadd.f32 %v5959, 1.0
        %v6116 = vadd.f32 %v5960, 1.0
        %v6117 = vadd.f32 %v5961, 1.0
        %v6118 = vadd.f32 %v5962, 1.0
        %v6119 = vadd.f32 %v5963, 1.0
        %v6120 = vadd.f32 %v5964, 1.0
        %v6121 = vmul.f32 %v5497, %v5965
        %v6122 = vmul.f32 %v5498, %v5966
        %v6123 = vmul.f32 %v5499, %v5967
        %v6124 = vmul.f32 %v5500, %v5968
        %v6125 = vmul.f32 %v5501, %v5969
        %v6126 = vmul.f32 %v5502, %v5970
        %v6127 = vmul.f32 %v5503, %v5971
        %v6128 = vmul.f32 %v5504, %v5972
        %v6129 = vmul.f32 %v5505, %v5973
        %v6130 = vmul.f32 %v5506, %v5974
        %v6131 = vmul.f32 %v5507, %v5975
        %v6132 = vmul.f32 %v5508, %v5976
        %v6133 = vmul.f32 %v5509, %v5977
        %v6134 = vmul.f32 %v5510, %v5978
        %v6135 = vmul.f32 %v5511, %v5979
        %v6136 = vmul.f32 %v5512, %v5980
        %v6137 = vmul.f32 %v5513, %v5981
        %v6138 = vmul.f32 %v5514, %v5982
        %v6139 = vmul.f32 %v5515, %v5983
        %v6140 = vmul.f32 %v5516, %v5984
        %v6141 = vmul.f32 %v5517, %v5985
        %v6142 = vmul.f32 %v5518, %v5986
        %v6143 = vmul.f32 %v5519, %v5987
        %v6144 = vmul.f32 %v5520, %v5988
        %v6145 = vmul.f32 %v5521, %v5989
        %v6146 = vmul.f32 %v5522, %v5990
        %v6147 = vmul.f32 %v5523, %v5991
        %v6148 = vmul.f32 %v5524, %v5992
        %v6149 = vmul.f32 %v5525, %v5993
        %v6150 = vmul.f32 %v5526, %v5994
        %v6151 = vmul.f32 %v5527, %v5995
        %v6152 = vmul.f32 %v5528, %v5996
        %v6153 = vmul.f32 %v5529, %v5997
        %v6154 = vmul.f32 %v5530, %v5998
        %v6155 = vmul.f32 %v5531, %v5999
        %v6156 = vmul.f32 %v5532, %v6000
        %v6157 = vmul.f32 %v5533, %v6001
        %v6158 = vmul.f32 %v5534, %v6002
        %v6159 = vmul.f32 %v5535, %v6003
        %v6160 = vmul.f32 %v5536, %v6004
        %v6161 = vmul.f32 %v5537, %v6005
        %v6162 = vmul.f32 %v5538, %v6006
        %v6163 = vmul.f32 %v5539, %v6007
        %v6164 = vmul.f32 %v5540, %v6008
        %v6165 = vmul.f32 %v5541, %v6009
        %v6166 = vmul.f32 %v5542, %v6010
        %v6167 = vmul.f32 %v5543, %v6011
        %v6168 = vmul.f32 %v5544, %v6012
        %v6169 = vmul.f32 %v5545, %v6013
        %v6170 = vmul.f32 %v5546, %v6014
        %v6171 = vmul.f32 %v5547, %v6015
        %v6172 = vmul.f32 %v5548, %v6016
        %v6173 = vmul.f32 %v5549, %v6017
        %v6174 = vmul.f32 %v5550, %v6018
        %v6175 = vmul.f32 %v5551, %v6019
        %v6176 = vmul.f32 %v5552, %v6020
        %v6177 = vmul.f32 %v5553, %v6021
        %v6178 = vmul.f32 %v5554, %v6022
        %v6179 = vmul.f32 %v5555, %v6023
        %v6180 = vmul.f32 %v5556, %v6024
        %v6181 = vmul.f32 %v5557, %v6025
        %v6182 = vmul.f32 %v5558, %v6026
        %v6183 = vmul.f32 %v5559, %v6027
        %v6184 = vmul.f32 %v5560, %v6028
        %v6185 = vmul.f32 %v5561, %v6029
        %v6186 = vmul.f32 %v5562, %v6030
        %v6187 = vmul.f32 %v5563, %v6031
        %v6188 = vmul.f32 %v5564, %v6032
        %v6189 = vmul.f32 %v5565, %v6033
        %v6190 = vmul.f32 %v5566, %v6034
        %v6191 = vmul.f32 %v5567, %v6035
        %v6192 = vmul.f32 %v5568, %v6036
        %v6193 = vmul.f32 %v5569, %v6037
        %v6194 = vmul.f32 %v5570, %v6038
        %v6195 = vmul.f32 %v5571, %v6039
        %v6196 = vmul.f32 %v5572, %v6040
        %v6197 = vmul.f32 %v5573, %v6041
        %v6198 = vmul.f32 %v5574, %v6042
        %v6199 = vmul.f32 %v5575, %v6043
        %v6200 = vmul.f32 %v5576, %v6044
        %v6201 = vmul.f32 %v5577, %v6045
        %v6202 = vmul.f32 %v5578, %v6046
        %v6203 = vmul.f32 %v5579, %v6047
        %v6204 = vmul.f32 %v5580, %v6048
        %v6205 = vmul.f32 %v5581, %v6049
        %v6206 = vmul.f32 %v5582, %v6050
        %v6207 = vmul.f32 %v5583, %v6051
        %v6208 = vmul.f32 %v5584, %v6052
        %v6209 = vmul.f32 %v5585, %v6053
        %v6210 = vmul.f32 %v5586, %v6054
        %v6211 = vmul.f32 %v5587, %v6055
        %v6212 = vmul.f32 %v5588, %v6056
        %v6213 = vmul.f32 %v5589, %v6057
        %v6214 = vmul.f32 %v5590, %v6058
        %v6215 = vmul.f32 %v5591, %v6059
        %v6216 = vmul.f32 %v5592, %v6060
        %v6217 = vmul.f32 %v5593, %v6061
        %v6218 = vmul.f32 %v5594, %v6062
        %v6219 = vmul.f32 %v5595, %v6063
        %v6220 = vmul.f32 %v5596, %v6064
        %v6221 = vmul.f32 %v5597, %v6065
        %v6222 = vmul.f32 %v5598, %v6066
        %v6223 = vmul.f32 %v5599, %v6067
        %v6224 = vmul.f32 %v5600, %v6068
        %v6225 = vmul.f32 %v5601, %v6069
        %v6226 = vmul.f32 %v5602, %v6070
        %v6227 = vmul.f32 %v5603, %v6071
        %v6228 = vmul.f32 %v5604, %v6072
        %v6229 = vmul.f32 %v5605, %v6073
        %v6230 = vmul.f32 %v5606, %v6074
        %v6231 = vmul.f32 %v5607, %v6075
        %v6232 = vmul.f32 %v5608, %v6076
        %v6233 = vmul.f32 %v5609, %v6077
        %v6234 = vmul.f32 %v5610, %v6078
        %v6235 = vmul.f32 %v5611, %v6079
        %v6236 = vmul.f32 %v5612, %v6080
        %v6237 = vmul.f32 %v5613, %v6081
        %v6238 = vmul.f32 %v5614, %v6082
        %v6239 = vmul.f32 %v5615, %v6083
        %v6240 = vmul.f32 %v5616, %v6084
        %v6241 = vmul.f32 %v5617, %v6085
        %v6242 = vmul.f32 %v5618, %v6086
        %v6243 = vmul.f32 %v5619, %v6087
        %v6244 = vmul.f32 %v5620, %v6088
        %v6245 = vmul.f32 %v5621, %v6089
        %v6246 = vmul.f32 %v5622, %v6090
        %v6247 = vmul.f32 %v5623, %v6091
        %v6248 = vmul.f32 %v5624, %v6092
        %v6249 = vmul.f32 %v5625, %v6093
        %v6250 = vmul.f32 %v5626, %v6094
        %v6251 = vmul.f32 %v5627, %v6095
        %v6252 = vmul.f32 %v5628, %v6096
        %v6253 = vmul.f32 %v5629, %v6097
        %v6254 = vmul.f32 %v5630, %v6098
        %v6255 = vmul.f32 %v5631, %v6099
        %v6256 = vmul.f32 %v5632, %v6100
        %v6257 = vmul.f32 %v5633, %v6101
        %v6258 = vmul.f32 %v5634, %v6102
        %v6259 = vmul.f32 %v5635, %v6103
        %v6260 = vmul.f32 %v5636, %v6104
        %v6261 = vmul.f32 %v5637, %v6105
        %v6262 = vmul.f32 %v5638, %v6106
        %v6263 = vmul.f32 %v5639, %v6107
        %v6264 = vmul.f32 %v5640, %v6108
        %v6265 = vmul.f32 %v5641, %v6109
        %v6266 = vmul.f32 %v5642, %v6110
        %v6267 = vmul.f32 %v5643, %v6111
        %v6268 = vmul.f32 %v5644, %v6112
        %v6269 = vmul.f32 %v5645, %v6113
        %v6270 = vmul.f32 %v5646, %v6114
        %v6271 = vmul.f32 %v5647, %v6115
        %v6272 = vmul.f32 %v5648, %v6116
        %v6273 = vmul.f32 %v5649, %v6117
        %v6274 = vmul.f32 %v5650, %v6118
        %v6275 = vmul.f32 %v5651, %v6119
        %v6276 = vmul.f32 %v5652, %v6120
        %v6277 = vld [vmem:[%s406] sm:$0xff]
        %v6278 = vld [vmem:[%s406 + $0x8] sm:$0xff]
        %v6279 = vld [vmem:[%s406 + $0x10] sm:$0xff]
        %v6280 = vld [vmem:[%s406 + $0x18] sm:$0xff]
        %v6281 = vld [vmem:[%s406 + $0x20] sm:$0xff]
        %v6282 = vld [vmem:[%s406 + $0x28] sm:$0xff]
        %v6283 = vld [vmem:[%s406 + $0x30] sm:$0xff]
        %v6284 = vld [vmem:[%s406 + $0x38] sm:$0xff]
        %v6285 = vld [vmem:[%s406 + $0x40] sm:$0xff]
        %v6286 = vld [vmem:[%s406 + $0x48] sm:$0xff]
        %v6287 = vld [vmem:[%s406 + $0x50] sm:$0xff]
        %v6288 = vld [vmem:[%s406 + $0x58] sm:$0xff]
        %v6289 = vld [vmem:[%s406 + $0x60] sm:$0xff]
        %v6290 = vld [vmem:[%s406 + $0x68] sm:$0xff]
        %v6291 = vld [vmem:[%s406 + $0x70] sm:$0xff]
        %v6292 = vld [vmem:[%s406 + $0x78] sm:$0xff]
        %v6293 = vld [vmem:[%s406 + $0x80] sm:$0xff]
        %v6294 = vld [vmem:[%s406 + $0x88] sm:$0xff]
        %v6295 = vld [vmem:[%s406 + $0x90] sm:$0xff]
        %v6296 = vld [vmem:[%s406 + $0x98] sm:$0xff]
        %v6297 = vld [vmem:[%s406 + $0xa0] sm:$0xff]
        %v6298 = vld [vmem:[%s406 + $0xa8] sm:$0xff]
        %v6299 = vld [vmem:[%s406 + $0xb0] sm:$0xff]
        %v6300 = vld [vmem:[%s406 + $0xb8] sm:$0xff]
        %v6301 = vld [vmem:[%s406 + $0xc0] sm:$0xff]
        %v6302 = vld [vmem:[%s406 + $0xc8] sm:$0xff]
        %v6303 = vld [vmem:[%s406 + $0xd0] sm:$0xff]
        %v6304 = vld [vmem:[%s406 + $0xd8] sm:$0xff]
        %v6305 = vld [vmem:[%s406 + $0xe0] sm:$0xff]
        %v6306 = vld [vmem:[%s406 + $0xe8] sm:$0xff]
        %v6307 = vld [vmem:[%s406 + $0xf0] sm:$0xff]
        %v6308 = vld [vmem:[%s406 + $0xf8] sm:$0xff]
        %v6309 = vld [vmem:[%s406 + $0x100] sm:$0xff]
        %v6310 = vld [vmem:[%s406 + $0x108] sm:$0xff]
        %v6311 = vld [vmem:[%s406 + $0x110] sm:$0xff]
        %v6312 = vld [vmem:[%s406 + $0x118] sm:$0xff]
        %v6313 = vld [vmem:[%s406 + $0x120] sm:$0xff]
        %v6314 = vld [vmem:[%s406 + $0x128] sm:$0xff]
        %v6315 = vld [vmem:[%s406 + $0x130] sm:$0xff]
        %v6316 = vld [vmem:[%s406 + $0x138] sm:$0xff]
        %v6317 = vld [vmem:[%s406 + $0x140] sm:$0xff]
        %v6318 = vld [vmem:[%s406 + $0x148] sm:$0xff]
        %v6319 = vld [vmem:[%s406 + $0x150] sm:$0xff]
        %v6320 = vld [vmem:[%s406 + $0x158] sm:$0xff]
        %v6321 = vld [vmem:[%s406 + $0x160] sm:$0xff]
        %v6322 = vld [vmem:[%s406 + $0x168] sm:$0xff]
        %v6323 = vld [vmem:[%s406 + $0x170] sm:$0xff]
        %v6324 = vld [vmem:[%s406 + $0x178] sm:$0xff]
        %v6325 = vld [vmem:[%s406 + $0x180] sm:$0xff]
        %v6326 = vld [vmem:[%s406 + $0x188] sm:$0xff]
        %v6327 = vld [vmem:[%s406 + $0x190] sm:$0xff]
        %v6328 = vld [vmem:[%s406 + $0x198] sm:$0xff]
        %v6329 = vld [vmem:[%s406 + $0x1a0] sm:$0xff]
        %v6330 = vld [vmem:[%s406 + $0x1a8] sm:$0xff]
        %v6331 = vld [vmem:[%s406 + $0x1b0] sm:$0xff]
        %v6332 = vld [vmem:[%s406 + $0x1b8] sm:$0xff]
        %v6333 = vld [vmem:[%s406 + $0x1c0] sm:$0xff]
        %v6334 = vld [vmem:[%s406 + $0x1c8] sm:$0xff]
        %v6335 = vld [vmem:[%s406 + $0x1d0] sm:$0xff]
        %v6336 = vld [vmem:[%s406 + $0x1d8] sm:$0xff]
        %v6337 = vld [vmem:[%s406 + $0x1e0] sm:$0xff]
        %v6338 = vld [vmem:[%s406 + $0x1e8] sm:$0xff]
        %v6339 = vld [vmem:[%s406 + $0x1f0] sm:$0xff]
        %v6340 = vld [vmem:[%s406 + $0x1f8] sm:$0xff]
        %v6341 = vld [vmem:[%s406 + $0x200] sm:$0xff]
        %v6342 = vld [vmem:[%s406 + $0x208] sm:$0xff]
        %v6343 = vld [vmem:[%s406 + $0x210] sm:$0xff]
        %v6344 = vld [vmem:[%s406 + $0x218] sm:$0xff]
        %v6345 = vld [vmem:[%s406 + $0x220] sm:$0xff]
        %v6346 = vld [vmem:[%s406 + $0x228] sm:$0xff]
        %v6347 = vld [vmem:[%s406 + $0x230] sm:$0xff]
        %v6348 = vld [vmem:[%s406 + $0x238] sm:$0xff]
        %v6349 = vld [vmem:[%s406 + $0x240] sm:$0xff]
        %v6350 = vld [vmem:[%s406 + $0x248] sm:$0xff]
        %v6351 = vld [vmem:[%s406 + $0x250] sm:$0xff]
        %v6352 = vld [vmem:[%s406 + $0x258] sm:$0xff]
        %v6353 = vld [vmem:[%s406 + $0x260] sm:$0xff]
        %v6354 = vld [vmem:[%s406 + $0x268] sm:$0xff]
        %v6355 = vld [vmem:[%s406 + $0x270] sm:$0xff]
        %v6356 = vld [vmem:[%s406 + $0x278] sm:$0xff]
        %v6357 = vld [vmem:[%s406 + $0x280] sm:$0xff]
        %v6358 = vld [vmem:[%s406 + $0x288] sm:$0xff]
        %v6359 = vld [vmem:[%s406 + $0x290] sm:$0xff]
        %v6360 = vld [vmem:[%s406 + $0x298] sm:$0xff]
        %v6361 = vld [vmem:[%s406 + $0x2a0] sm:$0xff]
        %v6362 = vld [vmem:[%s406 + $0x2a8] sm:$0xff]
        %v6363 = vld [vmem:[%s406 + $0x2b0] sm:$0xff]
        %v6364 = vld [vmem:[%s406 + $0x2b8] sm:$0xff]
        %v6365 = vld [vmem:[%s406 + $0x2c0] sm:$0xff]
        %v6366 = vld [vmem:[%s406 + $0x2c8] sm:$0xff]
        %v6367 = vld [vmem:[%s406 + $0x2d0] sm:$0xff]
        %v6368 = vld [vmem:[%s406 + $0x2d8] sm:$0xff]
        %v6369 = vld [vmem:[%s406 + $0x2e0] sm:$0xff]
        %v6370 = vld [vmem:[%s406 + $0x2e8] sm:$0xff]
        %v6371 = vld [vmem:[%s406 + $0x2f0] sm:$0xff]
        %v6372 = vld [vmem:[%s406 + $0x2f8] sm:$0xff]
        %v6373 = vld [vmem:[%s406 + $0x300] sm:$0xff]
        %v6374 = vld [vmem:[%s406 + $0x308] sm:$0xff]
        %v6375 = vld [vmem:[%s406 + $0x310] sm:$0xff]
        %v6376 = vld [vmem:[%s406 + $0x318] sm:$0xff]
        %v6377 = vld [vmem:[%s406 + $0x320] sm:$0xff]
        %v6378 = vld [vmem:[%s406 + $0x328] sm:$0xff]
        %v6379 = vld [vmem:[%s406 + $0x330] sm:$0xff]
        %v6380 = vld [vmem:[%s406 + $0x338] sm:$0xff]
        %v6381 = vld [vmem:[%s406 + $0x340] sm:$0xff]
        %v6382 = vld [vmem:[%s406 + $0x348] sm:$0xff]
        %v6383 = vld [vmem:[%s406 + $0x350] sm:$0xff]
        %v6384 = vld [vmem:[%s406 + $0x358] sm:$0xff]
        %v6385 = vld [vmem:[%s406 + $0x360] sm:$0xff]
        %v6386 = vld [vmem:[%s406 + $0x368] sm:$0xff]
        %v6387 = vld [vmem:[%s406 + $0x370] sm:$0xff]
        %v6388 = vld [vmem:[%s406 + $0x378] sm:$0xff]
        %v6389 = vld [vmem:[%s406 + $0x380] sm:$0xff]
        %v6390 = vld [vmem:[%s406 + $0x388] sm:$0xff]
        %v6391 = vld [vmem:[%s406 + $0x390] sm:$0xff]
        %v6392 = vld [vmem:[%s406 + $0x398] sm:$0xff]
        %v6393 = vld [vmem:[%s406 + $0x3a0] sm:$0xff]
        %v6394 = vld [vmem:[%s406 + $0x3a8] sm:$0xff]
        %v6395 = vld [vmem:[%s406 + $0x3b0] sm:$0xff]
        %v6396 = vld [vmem:[%s406 + $0x3b8] sm:$0xff]
        %v6397 = vld [vmem:[%s406 + $0x3c0] sm:$0xff]
        %v6398 = vld [vmem:[%s406 + $0x3c8] sm:$0xff]
        %v6399 = vld [vmem:[%s406 + $0x3d0] sm:$0xff]
        %v6400 = vld [vmem:[%s406 + $0x3d8] sm:$0xff]
        %v6401 = vld [vmem:[%s406 + $0x3e0] sm:$0xff]
        %v6402 = vld [vmem:[%s406 + $0x3e8] sm:$0xff]
        %v6403 = vld [vmem:[%s406 + $0x3f0] sm:$0xff]
        %v6404 = vld [vmem:[%s406 + $0x3f8] sm:$0xff]
        %v6405 = vld [vmem:[%s406 + $0x400] sm:$0xff]
        %v6406 = vld [vmem:[%s406 + $0x408] sm:$0xff]
        %v6407 = vld [vmem:[%s406 + $0x410] sm:$0xff]
        %v6408 = vld [vmem:[%s406 + $0x418] sm:$0xff]
        %v6409 = vld [vmem:[%s406 + $0x420] sm:$0xff]
        %v6410 = vld [vmem:[%s406 + $0x428] sm:$0xff]
        %v6411 = vld [vmem:[%s406 + $0x430] sm:$0xff]
        %v6412 = vld [vmem:[%s406 + $0x438] sm:$0xff]
        %v6413 = vld [vmem:[%s406 + $0x440] sm:$0xff]
        %v6414 = vld [vmem:[%s406 + $0x448] sm:$0xff]
        %v6415 = vld [vmem:[%s406 + $0x450] sm:$0xff]
        %v6416 = vld [vmem:[%s406 + $0x458] sm:$0xff]
        %v6417 = vld [vmem:[%s406 + $0x460] sm:$0xff]
        %v6418 = vld [vmem:[%s406 + $0x468] sm:$0xff]
        %v6419 = vld [vmem:[%s406 + $0x470] sm:$0xff]
        %v6420 = vld [vmem:[%s406 + $0x478] sm:$0xff]
        %v6421 = vld [vmem:[%s406 + $0x480] sm:$0xff]
        %v6422 = vld [vmem:[%s406 + $0x488] sm:$0xff]
        %v6423 = vld [vmem:[%s406 + $0x490] sm:$0xff]
        %v6424 = vld [vmem:[%s406 + $0x498] sm:$0xff]
        %v6425 = vld [vmem:[%s406 + $0x4a0] sm:$0xff]
        %v6426 = vld [vmem:[%s406 + $0x4a8] sm:$0xff]
        %v6427 = vld [vmem:[%s406 + $0x4b0] sm:$0xff]
        %v6428 = vld [vmem:[%s406 + $0x4b8] sm:$0xff]
        %v6429 = vld [vmem:[%s406 + $0x4c0] sm:$0xff]
        %v6430 = vld [vmem:[%s406 + $0x4c8] sm:$0xff]
        %v6431 = vld [vmem:[%s406 + $0x4d0] sm:$0xff]
        %v6432 = vld [vmem:[%s406 + $0x4d8] sm:$0xff]
        %v6433 = vpack.c.bf16 %v6127, %v6121
        %v6434 = vpack.c.bf16 %v6128, %v6122
        %v6435 = vpack.c.bf16 %v6129, %v6123
        %v6436 = vpack.c.bf16 %v6130, %v6124
        %v6437 = vpack.c.bf16 %v6131, %v6125
        %v6438 = vpack.c.bf16 %v6132, %v6126
        %v6439 = vpack.c.bf16 %v6139, %v6133
        %v6440 = vpack.c.bf16 %v6140, %v6134
        %v6441 = vpack.c.bf16 %v6141, %v6135
        %v6442 = vpack.c.bf16 %v6142, %v6136
        %v6443 = vpack.c.bf16 %v6143, %v6137
        %v6444 = vpack.c.bf16 %v6144, %v6138
        %v6445 = vpack.c.bf16 %v6151, %v6145
        %v6446 = vpack.c.bf16 %v6152, %v6146
        %v6447 = vpack.c.bf16 %v6153, %v6147
        %v6448 = vpack.c.bf16 %v6154, %v6148
        %v6449 = vpack.c.bf16 %v6155, %v6149
        %v6450 = vpack.c.bf16 %v6156, %v6150
        %v6451 = vpack.c.bf16 %v6163, %v6157
        %v6452 = vpack.c.bf16 %v6164, %v6158
        %v6453 = vpack.c.bf16 %v6165, %v6159
        %v6454 = vpack.c.bf16 %v6166, %v6160
        %v6455 = vpack.c.bf16 %v6167, %v6161
        %v6456 = vpack.c.bf16 %v6168, %v6162
        %v6457 = vpack.c.bf16 %v6175, %v6169
        %v6458 = vpack.c.bf16 %v6176, %v6170
        %v6459 = vpack.c.bf16 %v6177, %v6171
        %v6460 = vpack.c.bf16 %v6178, %v6172
        %v6461 = vpack.c.bf16 %v6179, %v6173
        %v6462 = vpack.c.bf16 %v6180, %v6174
        %v6463 = vpack.c.bf16 %v6187, %v6181
        %v6464 = vpack.c.bf16 %v6188, %v6182
        %v6465 = vpack.c.bf16 %v6189, %v6183
        %v6466 = vpack.c.bf16 %v6190, %v6184
        %v6467 = vpack.c.bf16 %v6191, %v6185
        %v6468 = vpack.c.bf16 %v6192, %v6186
        %v6469 = vpack.c.bf16 %v6199, %v6193
        %v6470 = vpack.c.bf16 %v6200, %v6194
        %v6471 = vpack.c.bf16 %v6201, %v6195
        %v6472 = vpack.c.bf16 %v6202, %v6196
        %v6473 = vpack.c.bf16 %v6203, %v6197
        %v6474 = vpack.c.bf16 %v6204, %v6198
        %v6475 = vpack.c.bf16 %v6211, %v6205
        %v6476 = vpack.c.bf16 %v6212, %v6206
        %v6477 = vpack.c.bf16 %v6213, %v6207
        %v6478 = vpack.c.bf16 %v6214, %v6208
        %v6479 = vpack.c.bf16 %v6215, %v6209
        %v6480 = vpack.c.bf16 %v6216, %v6210
        %v6481 = vpack.c.bf16 %v6223, %v6217
        %v6482 = vpack.c.bf16 %v6224, %v6218
        %v6483 = vpack.c.bf16 %v6225, %v6219
        %v6484 = vpack.c.bf16 %v6226, %v6220
        %v6485 = vpack.c.bf16 %v6227, %v6221
        %v6486 = vpack.c.bf16 %v6228, %v6222
        %v6487 = vpack.c.bf16 %v6235, %v6229
        %v6488 = vpack.c.bf16 %v6236, %v6230
        %v6489 = vpack.c.bf16 %v6237, %v6231
        %v6490 = vpack.c.bf16 %v6238, %v6232
        %v6491 = vpack.c.bf16 %v6239, %v6233
        %v6492 = vpack.c.bf16 %v6240, %v6234
        %v6493 = vpack.c.bf16 %v6247, %v6241
        %v6494 = vpack.c.bf16 %v6248, %v6242
        %v6495 = vpack.c.bf16 %v6249, %v6243
        %v6496 = vpack.c.bf16 %v6250, %v6244
        %v6497 = vpack.c.bf16 %v6251, %v6245
        %v6498 = vpack.c.bf16 %v6252, %v6246
        %v6499 = vpack.c.bf16 %v6259, %v6253
        %v6500 = vpack.c.bf16 %v6260, %v6254
        %v6501 = vpack.c.bf16 %v6261, %v6255
        %v6502 = vpack.c.bf16 %v6262, %v6256
        %v6503 = vpack.c.bf16 %v6263, %v6257
        %v6504 = vpack.c.bf16 %v6264, %v6258
        %v6505 = vpack.c.bf16 %v6271, %v6265
        %v6506 = vpack.c.bf16 %v6272, %v6266
        %v6507 = vpack.c.bf16 %v6273, %v6267
        %v6508 = vpack.c.bf16 %v6274, %v6268
        %v6509 = vpack.c.bf16 %v6275, %v6269
        %v6510 = vpack.c.bf16 %v6276, %v6270
        %v6511 = vld [vmem:[%s354] sm:$0xff]
        %v6512 = vld [vmem:[%s354 + $0x8] sm:$0xff]
        %v6513 = vld [vmem:[%s354 + $0x10] sm:$0xff]
        %v6514 = vld [vmem:[%s354 + $0x18] sm:$0xff]
        %v6515 = vld [vmem:[%s354 + $0x20] sm:$0xff]
        %v6516 = vld [vmem:[%s354 + $0x28] sm:$0xff]
        %v6517 = vld [vmem:[%s354 + $0x30] sm:$0xff]
        %v6518 = vld [vmem:[%s354 + $0x38] sm:$0xff]
        %v6519 = vld [vmem:[%s354 + $0x40] sm:$0xff]
        %v6520 = vld [vmem:[%s354 + $0x48] sm:$0xff]
        %v6521 = vld [vmem:[%s354 + $0x50] sm:$0xff]
        %v6522 = vld [vmem:[%s354 + $0x58] sm:$0xff]
        %v6523 = vld [vmem:[%s354 + $0x60] sm:$0xff]
        %v6524 = vld [vmem:[%s354 + $0x68] sm:$0xff]
        %v6525 = vld [vmem:[%s354 + $0x70] sm:$0xff]
        %v6526 = vld [vmem:[%s354 + $0x78] sm:$0xff]
        %v6527 = vld [vmem:[%s354 + $0x80] sm:$0xff]
        %v6528 = vld [vmem:[%s354 + $0x88] sm:$0xff]
        %v6529 = vld [vmem:[%s354 + $0x90] sm:$0xff]
        %v6530 = vld [vmem:[%s354 + $0x98] sm:$0xff]
        %v6531 = vld [vmem:[%s354 + $0xa0] sm:$0xff]
        %v6532 = vld [vmem:[%s354 + $0xa8] sm:$0xff]
        %v6533 = vld [vmem:[%s354 + $0xb0] sm:$0xff]
        %v6534 = vld [vmem:[%s354 + $0xb8] sm:$0xff]
        %v6535 = vld [vmem:[%s354 + $0xc0] sm:$0xff]
        %v6536 = vld [vmem:[%s354 + $0xc8] sm:$0xff]
        %v6537 = vld [vmem:[%s354 + $0xd0] sm:$0xff]
        %v6538 = vld [vmem:[%s354 + $0xd8] sm:$0xff]
        %v6539 = vld [vmem:[%s354 + $0xe0] sm:$0xff]
        %v6540 = vld [vmem:[%s354 + $0xe8] sm:$0xff]
        %v6541 = vld [vmem:[%s354 + $0xf0] sm:$0xff]
        %v6542 = vld [vmem:[%s354 + $0xf8] sm:$0xff]
        %v6543 = vld [vmem:[%s354 + $0x100] sm:$0xff]
        %v6544 = vld [vmem:[%s354 + $0x108] sm:$0xff]
        %v6545 = vld [vmem:[%s354 + $0x110] sm:$0xff]
        %v6546 = vld [vmem:[%s354 + $0x118] sm:$0xff]
        %v6547 = vld [vmem:[%s354 + $0x120] sm:$0xff]
        %v6548 = vld [vmem:[%s354 + $0x128] sm:$0xff]
        %v6549 = vld [vmem:[%s354 + $0x130] sm:$0xff]
        %v6550 = vld [vmem:[%s354 + $0x138] sm:$0xff]
        %v6551 = vld [vmem:[%s354 + $0x140] sm:$0xff]
        %v6552 = vld [vmem:[%s354 + $0x148] sm:$0xff]
        %v6553 = vld [vmem:[%s354 + $0x150] sm:$0xff]
        %v6554 = vld [vmem:[%s354 + $0x158] sm:$0xff]
        %v6555 = vld [vmem:[%s354 + $0x160] sm:$0xff]
        %v6556 = vld [vmem:[%s354 + $0x168] sm:$0xff]
        %v6557 = vld [vmem:[%s354 + $0x170] sm:$0xff]
        %v6558 = vld [vmem:[%s354 + $0x178] sm:$0xff]
        %v6559 = vld [vmem:[%s354 + $0x180] sm:$0xff]
        %v6560 = vld [vmem:[%s354 + $0x188] sm:$0xff]
        %v6561 = vld [vmem:[%s354 + $0x190] sm:$0xff]
        %v6562 = vld [vmem:[%s354 + $0x198] sm:$0xff]
        %v6563 = vld [vmem:[%s354 + $0x1a0] sm:$0xff]
        %v6564 = vld [vmem:[%s354 + $0x1a8] sm:$0xff]
        %v6565 = vld [vmem:[%s354 + $0x1b0] sm:$0xff]
        %v6566 = vld [vmem:[%s354 + $0x1b8] sm:$0xff]
        %v6567 = vld [vmem:[%s354 + $0x1c0] sm:$0xff]
        %v6568 = vld [vmem:[%s354 + $0x1c8] sm:$0xff]
        %v6569 = vld [vmem:[%s354 + $0x1d0] sm:$0xff]
        %v6570 = vld [vmem:[%s354 + $0x1d8] sm:$0xff]
        %v6571 = vld [vmem:[%s354 + $0x1e0] sm:$0xff]
        %v6572 = vld [vmem:[%s354 + $0x1e8] sm:$0xff]
        %v6573 = vld [vmem:[%s354 + $0x1f0] sm:$0xff]
        %v6574 = vld [vmem:[%s354 + $0x1f8] sm:$0xff]
        %v6575 = vld [vmem:[%s354 + $0x200] sm:$0xff]
        %v6576 = vld [vmem:[%s354 + $0x208] sm:$0xff]
        %v6577 = vld [vmem:[%s354 + $0x210] sm:$0xff]
        %v6578 = vld [vmem:[%s354 + $0x218] sm:$0xff]
        %v6579 = vld [vmem:[%s354 + $0x220] sm:$0xff]
        %v6580 = vld [vmem:[%s354 + $0x228] sm:$0xff]
        %v6581 = vld [vmem:[%s354 + $0x230] sm:$0xff]
        %v6582 = vld [vmem:[%s354 + $0x238] sm:$0xff]
        %v6583 = vld [vmem:[%s354 + $0x240] sm:$0xff]
        %v6584 = vld [vmem:[%s354 + $0x248] sm:$0xff]
        %v6585 = vld [vmem:[%s354 + $0x250] sm:$0xff]
        %v6586 = vld [vmem:[%s354 + $0x258] sm:$0xff]
        %v6587 = vld [vmem:[%s354 + $0x260] sm:$0xff]
        %v6588 = vld [vmem:[%s354 + $0x268] sm:$0xff]
        %v6589 = vld [vmem:[%s354 + $0x270] sm:$0xff]
        %v6590 = vld [vmem:[%s354 + $0x278] sm:$0xff]
        %v6591 = vld [vmem:[%s354 + $0x280] sm:$0xff]
        %v6592 = vld [vmem:[%s354 + $0x288] sm:$0xff]
        %v6593 = vld [vmem:[%s354 + $0x290] sm:$0xff]
        %v6594 = vld [vmem:[%s354 + $0x298] sm:$0xff]
        %v6595 = vld [vmem:[%s354 + $0x2a0] sm:$0xff]
        %v6596 = vld [vmem:[%s354 + $0x2a8] sm:$0xff]
        %v6597 = vld [vmem:[%s354 + $0x2b0] sm:$0xff]
        %v6598 = vld [vmem:[%s354 + $0x2b8] sm:$0xff]
        %v6599 = vld [vmem:[%s354 + $0x2c0] sm:$0xff]
        %v6600 = vld [vmem:[%s354 + $0x2c8] sm:$0xff]
        %v6601 = vld [vmem:[%s354 + $0x2d0] sm:$0xff]
        %v6602 = vld [vmem:[%s354 + $0x2d8] sm:$0xff]
        %v6603 = vld [vmem:[%s354 + $0x2e0] sm:$0xff]
        %v6604 = vld [vmem:[%s354 + $0x2e8] sm:$0xff]
        %v6605 = vld [vmem:[%s354 + $0x2f0] sm:$0xff]
        %v6606 = vld [vmem:[%s354 + $0x2f8] sm:$0xff]
        %v6607 = vld [vmem:[%s354 + $0x300] sm:$0xff]
        %v6608 = vld [vmem:[%s354 + $0x308] sm:$0xff]
        %v6609 = vld [vmem:[%s354 + $0x310] sm:$0xff]
        %v6610 = vld [vmem:[%s354 + $0x318] sm:$0xff]
        %v6611 = vld [vmem:[%s354 + $0x320] sm:$0xff]
        %v6612 = vld [vmem:[%s354 + $0x328] sm:$0xff]
        %v6613 = vld [vmem:[%s354 + $0x330] sm:$0xff]
        %v6614 = vld [vmem:[%s354 + $0x338] sm:$0xff]
        %v6615 = vld [vmem:[%s354 + $0x340] sm:$0xff]
        %v6616 = vld [vmem:[%s354 + $0x348] sm:$0xff]
        %v6617 = vld [vmem:[%s354 + $0x350] sm:$0xff]
        %v6618 = vld [vmem:[%s354 + $0x358] sm:$0xff]
        %v6619 = vld [vmem:[%s354 + $0x360] sm:$0xff]
        %v6620 = vld [vmem:[%s354 + $0x368] sm:$0xff]
        %v6621 = vld [vmem:[%s354 + $0x370] sm:$0xff]
        %v6622 = vld [vmem:[%s354 + $0x378] sm:$0xff]
        %v6623 = vld [vmem:[%s354 + $0x380] sm:$0xff]
        %v6624 = vld [vmem:[%s354 + $0x388] sm:$0xff]
        %v6625 = vld [vmem:[%s354 + $0x390] sm:$0xff]
        %v6626 = vld [vmem:[%s354 + $0x398] sm:$0xff]
        %v6627 = vld [vmem:[%s354 + $0x3a0] sm:$0xff]
        %v6628 = vld [vmem:[%s354 + $0x3a8] sm:$0xff]
        %v6629 = vld [vmem:[%s354 + $0x3b0] sm:$0xff]
        %v6630 = vld [vmem:[%s354 + $0x3b8] sm:$0xff]
        %v6631 = vld [vmem:[%s354 + $0x3c0] sm:$0xff]
        %v6632 = vld [vmem:[%s354 + $0x3c8] sm:$0xff]
        %v6633 = vld [vmem:[%s354 + $0x3d0] sm:$0xff]
        %v6634 = vld [vmem:[%s354 + $0x3d8] sm:$0xff]
        %v6635 = vld [vmem:[%s354 + $0x3e0] sm:$0xff]
        %v6636 = vld [vmem:[%s354 + $0x3e8] sm:$0xff]
        %v6637 = vld [vmem:[%s354 + $0x3f0] sm:$0xff]
        %v6638 = vld [vmem:[%s354 + $0x3f8] sm:$0xff]
        %v6639 = vld [vmem:[%s354 + $0x400] sm:$0xff]
        %v6640 = vld [vmem:[%s354 + $0x408] sm:$0xff]
        %v6641 = vld [vmem:[%s354 + $0x410] sm:$0xff]
        %v6642 = vld [vmem:[%s354 + $0x418] sm:$0xff]
        %v6643 = vld [vmem:[%s354 + $0x420] sm:$0xff]
        %v6644 = vld [vmem:[%s354 + $0x428] sm:$0xff]
        %v6645 = vld [vmem:[%s354 + $0x430] sm:$0xff]
        %v6646 = vld [vmem:[%s354 + $0x438] sm:$0xff]
        %v6647 = vld [vmem:[%s354 + $0x440] sm:$0xff]
        %v6648 = vld [vmem:[%s354 + $0x448] sm:$0xff]
        %v6649 = vld [vmem:[%s354 + $0x450] sm:$0xff]
        %v6650 = vld [vmem:[%s354 + $0x458] sm:$0xff]
        %v6651 = vld [vmem:[%s354 + $0x460] sm:$0xff]
        %v6652 = vld [vmem:[%s354 + $0x468] sm:$0xff]
        %v6653 = vld [vmem:[%s354 + $0x470] sm:$0xff]
        %v6654 = vld [vmem:[%s354 + $0x478] sm:$0xff]
        %v6655 = vld [vmem:[%s354 + $0x480] sm:$0xff]
        %v6656 = vld [vmem:[%s354 + $0x488] sm:$0xff]
        %v6657 = vld [vmem:[%s354 + $0x490] sm:$0xff]
        %v6658 = vld [vmem:[%s354 + $0x498] sm:$0xff]
        %v6659 = vld [vmem:[%s354 + $0x4a0] sm:$0xff]
        %v6660 = vld [vmem:[%s354 + $0x4a8] sm:$0xff]
        %v6661 = vld [vmem:[%s354 + $0x4b0] sm:$0xff]
        %v6662 = vld [vmem:[%s354 + $0x4b8] sm:$0xff]
        %v6663 = vld [vmem:[%s354 + $0x4c0] sm:$0xff]
        %v6664 = vld [vmem:[%s354 + $0x4c8] sm:$0xff]
        %v6665 = vld [vmem:[%s354 + $0x4d0] sm:$0xff]
        %v6666 = vld [vmem:[%s354 + $0x4d8] sm:$0xff]
        %v6667 = vld [vmem:[%s354 + $0x4e0] sm:$0xff]
        %v6668 = vld [vmem:[%s354 + $0x4e8] sm:$0xff]
        %v6669 = vld [vmem:[%s354 + $0x4f0] sm:$0xff]
        %v6670 = vld [vmem:[%s354 + $0x4f8] sm:$0xff]
        %v6671 = vld [vmem:[%s354 + $0x500] sm:$0xff]
        %v6672 = vld [vmem:[%s354 + $0x508] sm:$0xff]
        %v6673 = vld [vmem:[%s354 + $0x510] sm:$0xff]
        %v6674 = vld [vmem:[%s354 + $0x518] sm:$0xff]
        %v6675 = vld [vmem:[%s354 + $0x520] sm:$0xff]
        %v6676 = vld [vmem:[%s354 + $0x528] sm:$0xff]
        %v6677 = vld [vmem:[%s354 + $0x530] sm:$0xff]
        %v6678 = vld [vmem:[%s354 + $0x538] sm:$0xff]
        %v6679 = vld [vmem:[%s354 + $0x540] sm:$0xff]
        %v6680 = vld [vmem:[%s354 + $0x548] sm:$0xff]
        %v6681 = vld [vmem:[%s354 + $0x550] sm:$0xff]
        %v6682 = vld [vmem:[%s354 + $0x558] sm:$0xff]
        %v6683 = vld [vmem:[%s354 + $0x560] sm:$0xff]
        %v6684 = vld [vmem:[%s354 + $0x568] sm:$0xff]
        %v6685 = vld [vmem:[%s354 + $0x570] sm:$0xff]
        %v6686 = vld [vmem:[%s354 + $0x578] sm:$0xff]
        %v6687 = vld [vmem:[%s354 + $0x580] sm:$0xff]
        %v6688 = vld [vmem:[%s354 + $0x588] sm:$0xff]
        %v6689 = vld [vmem:[%s354 + $0x590] sm:$0xff]
        %v6690 = vld [vmem:[%s354 + $0x598] sm:$0xff]
        %v6691 = vld [vmem:[%s354 + $0x5a0] sm:$0xff]
        %v6692 = vld [vmem:[%s354 + $0x5a8] sm:$0xff]
        %v6693 = vld [vmem:[%s354 + $0x5b0] sm:$0xff]
        %v6694 = vld [vmem:[%s354 + $0x5b8] sm:$0xff]
        %v6695 = vld [vmem:[%s354 + $0x5c0] sm:$0xff]
        %v6696 = vld [vmem:[%s354 + $0x5c8] sm:$0xff]
        %v6697 = vld [vmem:[%s354 + $0x5d0] sm:$0xff]
        %v6698 = vld [vmem:[%s354 + $0x5d8] sm:$0xff]
        %v6699 = vld [vmem:[%s354 + $0x5e0] sm:$0xff]
        %v6700 = vld [vmem:[%s354 + $0x5e8] sm:$0xff]
        %v6701 = vld [vmem:[%s354 + $0x5f0] sm:$0xff]
        %v6702 = vld [vmem:[%s354 + $0x5f8] sm:$0xff]
        %v6703 = vld [vmem:[%s354 + $0x600] sm:$0xff]
        %v6704 = vld [vmem:[%s354 + $0x608] sm:$0xff]
        %v6705 = vld [vmem:[%s354 + $0x610] sm:$0xff]
        %v6706 = vld [vmem:[%s354 + $0x618] sm:$0xff]
        %v6707 = vld [vmem:[%s354 + $0x620] sm:$0xff]
        %v6708 = vld [vmem:[%s354 + $0x628] sm:$0xff]
        %v6709 = vld [vmem:[%s354 + $0x630] sm:$0xff]
        %v6710 = vld [vmem:[%s354 + $0x638] sm:$0xff]
        %v6711 = vld [vmem:[%s354 + $0x640] sm:$0xff]
        %v6712 = vld [vmem:[%s354 + $0x648] sm:$0xff]
        %v6713 = vld [vmem:[%s354 + $0x650] sm:$0xff]
        %v6714 = vld [vmem:[%s354 + $0x658] sm:$0xff]
        %v6715 = vld [vmem:[%s354 + $0x660] sm:$0xff]
        %v6716 = vld [vmem:[%s354 + $0x668] sm:$0xff]
        %v6717 = vld [vmem:[%s354 + $0x670] sm:$0xff]
        %v6718 = vld [vmem:[%s354 + $0x678] sm:$0xff]
        %v6719 = vld [vmem:[%s354 + $0x680] sm:$0xff]
        %v6720 = vld [vmem:[%s354 + $0x688] sm:$0xff]
        %v6721 = vld [vmem:[%s354 + $0x690] sm:$0xff]
        %v6722 = vld [vmem:[%s354 + $0x698] sm:$0xff]
        %v6723 = vld [vmem:[%s354 + $0x6a0] sm:$0xff]
        %v6724 = vld [vmem:[%s354 + $0x6a8] sm:$0xff]
        %v6725 = vld [vmem:[%s354 + $0x6b0] sm:$0xff]
        %v6726 = vld [vmem:[%s354 + $0x6b8] sm:$0xff]
        %v6727 = vld [vmem:[%s354 + $0x6c0] sm:$0xff]
        %v6728 = vld [vmem:[%s354 + $0x6c8] sm:$0xff]
        %v6729 = vld [vmem:[%s354 + $0x6d0] sm:$0xff]
        %v6730 = vld [vmem:[%s354 + $0x6d8] sm:$0xff]
        %v6731 = vld [vmem:[%s354 + $0x6e0] sm:$0xff]
        %v6732 = vld [vmem:[%s354 + $0x6e8] sm:$0xff]
        %v6733 = vld [vmem:[%s354 + $0x6f0] sm:$0xff]
        %v6734 = vld [vmem:[%s354 + $0x6f8] sm:$0xff]
        %v6735 = vld [vmem:[%s354 + $0x700] sm:$0xff]
        %v6736 = vld [vmem:[%s354 + $0x708] sm:$0xff]
        %v6737 = vld [vmem:[%s354 + $0x710] sm:$0xff]
        %v6738 = vld [vmem:[%s354 + $0x718] sm:$0xff]
        %v6739 = vld [vmem:[%s354 + $0x720] sm:$0xff]
        %v6740 = vld [vmem:[%s354 + $0x728] sm:$0xff]
        %v6741 = vld [vmem:[%s354 + $0x730] sm:$0xff]
        %v6742 = vld [vmem:[%s354 + $0x738] sm:$0xff]
        %v6743 = vld [vmem:[%s354 + $0x740] sm:$0xff]
        %v6744 = vld [vmem:[%s354 + $0x748] sm:$0xff]
        %v6745 = vld [vmem:[%s354 + $0x750] sm:$0xff]
        %v6746 = vld [vmem:[%s354 + $0x758] sm:$0xff]
        %v6747 = vld [vmem:[%s354 + $0x760] sm:$0xff]
        %v6748 = vld [vmem:[%s354 + $0x768] sm:$0xff]
        %v6749 = vld [vmem:[%s354 + $0x770] sm:$0xff]
        %v6750 = vld [vmem:[%s354 + $0x778] sm:$0xff]
        %v6751 = vld [vmem:[%s354 + $0x780] sm:$0xff]
        %v6752 = vld [vmem:[%s354 + $0x788] sm:$0xff]
        %v6753 = vld [vmem:[%s354 + $0x790] sm:$0xff]
        %v6754 = vld [vmem:[%s354 + $0x798] sm:$0xff]
        %v6755 = vld [vmem:[%s354 + $0x7a0] sm:$0xff]
        %v6756 = vld [vmem:[%s354 + $0x7a8] sm:$0xff]
        %v6757 = vld [vmem:[%s354 + $0x7b0] sm:$0xff]
        %v6758 = vld [vmem:[%s354 + $0x7b8] sm:$0xff]
        %v6759 = vld [vmem:[%s354 + $0x7c0] sm:$0xff]
        %v6760 = vld [vmem:[%s354 + $0x7c8] sm:$0xff]
        %v6761 = vld [vmem:[%s354 + $0x7d0] sm:$0xff]
        %v6762 = vld [vmem:[%s354 + $0x7d8] sm:$0xff]
        %v6763 = vld [vmem:[%s354 + $0x7e0] sm:$0xff]
        %v6764 = vld [vmem:[%s354 + $0x7e8] sm:$0xff]
        %v6765 = vld [vmem:[%s354 + $0x7f0] sm:$0xff]
        %v6766 = vld [vmem:[%s354 + $0x7f8] sm:$0xff]
        %v6767 = vld [vmem:[%s354 + $0x800] sm:$0xff]
        %v6768 = vld [vmem:[%s354 + $0x808] sm:$0xff]
        %v6769 = vld [vmem:[%s354 + $0x810] sm:$0xff]
        %v6770 = vld [vmem:[%s354 + $0x818] sm:$0xff]
        %v6771 = vld [vmem:[%s354 + $0x820] sm:$0xff]
        %v6772 = vld [vmem:[%s354 + $0x828] sm:$0xff]
        %v6773 = vld [vmem:[%s354 + $0x830] sm:$0xff]
        %v6774 = vld [vmem:[%s354 + $0x838] sm:$0xff]
        %v6775 = vld [vmem:[%s354 + $0x840] sm:$0xff]
        %v6776 = vld [vmem:[%s354 + $0x848] sm:$0xff]
        %v6777 = vld [vmem:[%s354 + $0x850] sm:$0xff]
        %v6778 = vld [vmem:[%s354 + $0x858] sm:$0xff]
        %v6779 = vld [vmem:[%s354 + $0x860] sm:$0xff]
        %v6780 = vld [vmem:[%s354 + $0x868] sm:$0xff]
        %v6781 = vld [vmem:[%s354 + $0x870] sm:$0xff]
        %v6782 = vld [vmem:[%s354 + $0x878] sm:$0xff]
        %v6783 = vld [vmem:[%s354 + $0x880] sm:$0xff]
        %v6784 = vld [vmem:[%s354 + $0x888] sm:$0xff]
        %v6785 = vld [vmem:[%s354 + $0x890] sm:$0xff]
        %v6786 = vld [vmem:[%s354 + $0x898] sm:$0xff]
        %v6787 = vld [vmem:[%s354 + $0x8a0] sm:$0xff]
        %v6788 = vld [vmem:[%s354 + $0x8a8] sm:$0xff]
        %v6789 = vld [vmem:[%s354 + $0x8b0] sm:$0xff]
        %v6790 = vld [vmem:[%s354 + $0x8b8] sm:$0xff]
        %v6791 = vld [vmem:[%s354 + $0x8c0] sm:$0xff]
        %v6792 = vld [vmem:[%s354 + $0x8c8] sm:$0xff]
        %v6793 = vld [vmem:[%s354 + $0x8d0] sm:$0xff]
        %v6794 = vld [vmem:[%s354 + $0x8d8] sm:$0xff]
        %v6795 = vld [vmem:[%s354 + $0x8e0] sm:$0xff]
        %v6796 = vld [vmem:[%s354 + $0x8e8] sm:$0xff]
        %v6797 = vld [vmem:[%s354 + $0x8f0] sm:$0xff]
        %v6798 = vld [vmem:[%s354 + $0x8f8] sm:$0xff]
        %v7087 = vunpack.c.l.b16 %v6511
        %v7088 = vunpack.c.h.b16 %v6511
        %v7089 = vunpack.c.l.b16 %v6512
        %v7090 = vunpack.c.h.b16 %v6512
        %v7091 = vunpack.c.l.b16 %v6513
        %v7092 = vunpack.c.h.b16 %v6513
        %v7093 = vunpack.c.l.b16 %v6514
        %v7094 = vunpack.c.h.b16 %v6514
        %v7095 = vunpack.c.l.b16 %v6515
        %v7096 = vunpack.c.h.b16 %v6515
        %v7097 = vunpack.c.l.b16 %v6516
        %v7098 = vunpack.c.h.b16 %v6516
        %v7099 = vunpack.c.l.b16 %v6517
        %v7100 = vunpack.c.h.b16 %v6517
        %v7101 = vunpack.c.l.b16 %v6518
        %v7102 = vunpack.c.h.b16 %v6518
        %v7103 = vunpack.c.l.b16 %v6519
        %v7104 = vunpack.c.h.b16 %v6519
        %v7105 = vunpack.c.l.b16 %v6520
        %v7106 = vunpack.c.h.b16 %v6520
        %v7107 = vunpack.c.l.b16 %v6521
        %v7108 = vunpack.c.h.b16 %v6521
        %v7109 = vunpack.c.l.b16 %v6522
        %v7110 = vunpack.c.h.b16 %v6522
        %v7111 = vunpack.c.l.b16 %v6523
        %v7112 = vunpack.c.h.b16 %v6523
        %v7113 = vunpack.c.l.b16 %v6524
        %v7114 = vunpack.c.h.b16 %v6524
        %v7115 = vunpack.c.l.b16 %v6525
        %v7116 = vunpack.c.h.b16 %v6525
        %v7117 = vunpack.c.l.b16 %v6526
        %v7118 = vunpack.c.h.b16 %v6526
        %v7119 = vunpack.c.l.b16 %v6527
        %v7120 = vunpack.c.h.b16 %v6527
        %v7121 = vunpack.c.l.b16 %v6528
        %v7122 = vunpack.c.h.b16 %v6528
        %v7123 = vunpack.c.l.b16 %v6529
        %v7124 = vunpack.c.h.b16 %v6529
        %v7125 = vunpack.c.l.b16 %v6530
        %v7126 = vunpack.c.h.b16 %v6530
        %v7127 = vunpack.c.l.b16 %v6531
        %v7128 = vunpack.c.h.b16 %v6531
        %v7129 = vunpack.c.l.b16 %v6532
        %v7130 = vunpack.c.h.b16 %v6532
        %v7131 = vunpack.c.l.b16 %v6533
        %v7132 = vunpack.c.h.b16 %v6533
        %v7133 = vunpack.c.l.b16 %v6534
        %v7134 = vunpack.c.h.b16 %v6534
        %v7135 = vunpack.c.l.b16 %v6535
        %v7136 = vunpack.c.h.b16 %v6535
        %v7137 = vunpack.c.l.b16 %v6536
        %v7138 = vunpack.c.h.b16 %v6536
        %v7139 = vunpack.c.l.b16 %v6537
        %v7140 = vunpack.c.h.b16 %v6537
        %v7141 = vunpack.c.l.b16 %v6538
        %v7142 = vunpack.c.h.b16 %v6538
        %v7143 = vunpack.c.l.b16 %v6539
        %v7144 = vunpack.c.h.b16 %v6539
        %v7145 = vunpack.c.l.b16 %v6540
        %v7146 = vunpack.c.h.b16 %v6540
        %v7147 = vunpack.c.l.b16 %v6541
        %v7148 = vunpack.c.h.b16 %v6541
        %v7149 = vunpack.c.l.b16 %v6542
        %v7150 = vunpack.c.h.b16 %v6542
        %v7151 = vunpack.c.l.b16 %v6543
        %v7152 = vunpack.c.h.b16 %v6543
        %v7153 = vunpack.c.l.b16 %v6544
        %v7154 = vunpack.c.h.b16 %v6544
        %v7155 = vunpack.c.l.b16 %v6545
        %v7156 = vunpack.c.h.b16 %v6545
        %v7157 = vunpack.c.l.b16 %v6546
        %v7158 = vunpack.c.h.b16 %v6546
        %v7159 = vunpack.c.l.b16 %v6547
        %v7160 = vunpack.c.h.b16 %v6547
        %v7161 = vunpack.c.l.b16 %v6548
        %v7162 = vunpack.c.h.b16 %v6548
        %v7163 = vunpack.c.l.b16 %v6549
        %v7164 = vunpack.c.h.b16 %v6549
        %v7165 = vunpack.c.l.b16 %v6550
        %v7166 = vunpack.c.h.b16 %v6550
        %v7167 = vunpack.c.l.b16 %v6551
        %v7168 = vunpack.c.h.b16 %v6551
        %v7169 = vunpack.c.l.b16 %v6552
        %v7170 = vunpack.c.h.b16 %v6552
        %v7171 = vunpack.c.l.b16 %v6553
        %v7172 = vunpack.c.h.b16 %v6553
        %v7173 = vunpack.c.l.b16 %v6554
        %v7174 = vunpack.c.h.b16 %v6554
        %v7175 = vunpack.c.l.b16 %v6555
        %v7176 = vunpack.c.h.b16 %v6555
        %v7177 = vunpack.c.l.b16 %v6556
        %v7178 = vunpack.c.h.b16 %v6556
        %v7179 = vunpack.c.l.b16 %v6557
        %v7180 = vunpack.c.h.b16 %v6557
        %v7181 = vunpack.c.l.b16 %v6558
        %v7182 = vunpack.c.h.b16 %v6558
        %v7183 = vunpack.c.l.b16 %v6559
        %v7184 = vunpack.c.h.b16 %v6559
        %v7185 = vunpack.c.l.b16 %v6560
        %v7186 = vunpack.c.h.b16 %v6560
        %v7187 = vunpack.c.l.b16 %v6561
        %v7188 = vunpack.c.h.b16 %v6561
        %v7189 = vunpack.c.l.b16 %v6562
        %v7190 = vunpack.c.h.b16 %v6562
        %v7191 = vunpack.c.l.b16 %v6563
        %v7192 = vunpack.c.h.b16 %v6563
        %v7193 = vunpack.c.l.b16 %v6564
        %v7194 = vunpack.c.h.b16 %v6564
        %v7195 = vunpack.c.l.b16 %v6565
        %v7196 = vunpack.c.h.b16 %v6565
        %v7197 = vunpack.c.l.b16 %v6566
        %v7198 = vunpack.c.h.b16 %v6566
        %v7199 = vunpack.c.l.b16 %v6567
        %v7200 = vunpack.c.h.b16 %v6567
        %v7201 = vunpack.c.l.b16 %v6568
        %v7202 = vunpack.c.h.b16 %v6568
        %v7203 = vunpack.c.l.b16 %v6569
        %v7204 = vunpack.c.h.b16 %v6569
        %v7205 = vunpack.c.l.b16 %v6570
        %v7206 = vunpack.c.h.b16 %v6570
        %v7207 = vunpack.c.l.b16 %v6571
        %v7208 = vunpack.c.h.b16 %v6571
        %v7209 = vunpack.c.l.b16 %v6572
        %v7210 = vunpack.c.h.b16 %v6572
        %v7211 = vunpack.c.l.b16 %v6573
        %v7212 = vunpack.c.h.b16 %v6573
        %v7213 = vunpack.c.l.b16 %v6574
        %v7214 = vunpack.c.h.b16 %v6574
        %v7215 = vunpack.c.l.b16 %v6575
        %v7216 = vunpack.c.h.b16 %v6575
        %v7217 = vunpack.c.l.b16 %v6576
        %v7218 = vunpack.c.h.b16 %v6576
        %v7219 = vunpack.c.l.b16 %v6577
        %v7220 = vunpack.c.h.b16 %v6577
        %v7221 = vunpack.c.l.b16 %v6578
        %v7222 = vunpack.c.h.b16 %v6578
        %v7223 = vunpack.c.l.b16 %v6579
        %v7224 = vunpack.c.h.b16 %v6579
        %v7225 = vunpack.c.l.b16 %v6580
        %v7226 = vunpack.c.h.b16 %v6580
        %v7227 = vunpack.c.l.b16 %v6581
        %v7228 = vunpack.c.h.b16 %v6581
        %v7229 = vunpack.c.l.b16 %v6582
        %v7230 = vunpack.c.h.b16 %v6582
        %v7231 = vunpack.c.l.b16 %v6583
        %v7232 = vunpack.c.h.b16 %v6583
        %v7233 = vunpack.c.l.b16 %v6584
        %v7234 = vunpack.c.h.b16 %v6584
        %v7235 = vunpack.c.l.b16 %v6585
        %v7236 = vunpack.c.h.b16 %v6585
        %v7237 = vunpack.c.l.b16 %v6586
        %v7238 = vunpack.c.h.b16 %v6586
        %v7239 = vunpack.c.l.b16 %v6587
        %v7240 = vunpack.c.h.b16 %v6587
        %v7241 = vunpack.c.l.b16 %v6588
        %v7242 = vunpack.c.h.b16 %v6588
        %v7243 = vunpack.c.l.b16 %v6589
        %v7244 = vunpack.c.h.b16 %v6589
        %v7245 = vunpack.c.l.b16 %v6590
        %v7246 = vunpack.c.h.b16 %v6590
        %v7247 = vunpack.c.l.b16 %v6591
        %v7248 = vunpack.c.h.b16 %v6591
        %v7249 = vunpack.c.l.b16 %v6592
        %v7250 = vunpack.c.h.b16 %v6592
        %v7251 = vunpack.c.l.b16 %v6593
        %v7252 = vunpack.c.h.b16 %v6593
        %v7253 = vunpack.c.l.b16 %v6594
        %v7254 = vunpack.c.h.b16 %v6594
        %v7255 = vunpack.c.l.b16 %v6595
        %v7256 = vunpack.c.h.b16 %v6595
        %v7257 = vunpack.c.l.b16 %v6596
        %v7258 = vunpack.c.h.b16 %v6596
        %v7259 = vunpack.c.l.b16 %v6597
        %v7260 = vunpack.c.h.b16 %v6597
        %v7261 = vunpack.c.l.b16 %v6598
        %v7262 = vunpack.c.h.b16 %v6598
        %v7263 = vunpack.c.l.b16 %v6599
        %v7264 = vunpack.c.h.b16 %v6599
        %v7265 = vunpack.c.l.b16 %v6600
        %v7266 = vunpack.c.h.b16 %v6600
        %v7267 = vunpack.c.l.b16 %v6601
        %v7268 = vunpack.c.h.b16 %v6601
        %v7269 = vunpack.c.l.b16 %v6602
        %v7270 = vunpack.c.h.b16 %v6602
        %v7271 = vunpack.c.l.b16 %v6603
        %v7272 = vunpack.c.h.b16 %v6603
        %v7273 = vunpack.c.l.b16 %v6604
        %v7274 = vunpack.c.h.b16 %v6604
        %v7275 = vunpack.c.l.b16 %v6605
        %v7276 = vunpack.c.h.b16 %v6605
        %v7277 = vunpack.c.l.b16 %v6606
        %v7278 = vunpack.c.h.b16 %v6606
        %v7279 = vunpack.c.l.b16 %v6607
        %v7280 = vunpack.c.h.b16 %v6607
        %v7281 = vunpack.c.l.b16 %v6608
        %v7282 = vunpack.c.h.b16 %v6608
        %v7283 = vunpack.c.l.b16 %v6609
        %v7284 = vunpack.c.h.b16 %v6609
        %v7285 = vunpack.c.l.b16 %v6610
        %v7286 = vunpack.c.h.b16 %v6610
        %v7287 = vunpack.c.l.b16 %v6611
        %v7288 = vunpack.c.h.b16 %v6611
        %v7289 = vunpack.c.l.b16 %v6612
        %v7290 = vunpack.c.h.b16 %v6612
        %v7291 = vunpack.c.l.b16 %v6613
        %v7292 = vunpack.c.h.b16 %v6613
        %v7293 = vunpack.c.l.b16 %v6614
        %v7294 = vunpack.c.h.b16 %v6614
        %v7295 = vunpack.c.l.b16 %v6615
        %v7296 = vunpack.c.h.b16 %v6615
        %v7297 = vunpack.c.l.b16 %v6616
        %v7298 = vunpack.c.h.b16 %v6616
        %v7299 = vunpack.c.l.b16 %v6617
        %v7300 = vunpack.c.h.b16 %v6617
        %v7301 = vunpack.c.l.b16 %v6618
        %v7302 = vunpack.c.h.b16 %v6618
        %v7303 = vunpack.c.l.b16 %v6619
        %v7304 = vunpack.c.h.b16 %v6619
        %v7305 = vunpack.c.l.b16 %v6620
        %v7306 = vunpack.c.h.b16 %v6620
        %v7307 = vunpack.c.l.b16 %v6621
        %v7308 = vunpack.c.h.b16 %v6621
        %v7309 = vunpack.c.l.b16 %v6622
        %v7310 = vunpack.c.h.b16 %v6622
        %v7311 = vunpack.c.l.b16 %v6623
        %v7312 = vunpack.c.h.b16 %v6623
        %v7313 = vunpack.c.l.b16 %v6624
        %v7314 = vunpack.c.h.b16 %v6624
        %v7315 = vunpack.c.l.b16 %v6625
        %v7316 = vunpack.c.h.b16 %v6625
        %v7317 = vunpack.c.l.b16 %v6626
        %v7318 = vunpack.c.h.b16 %v6626
        %v7319 = vunpack.c.l.b16 %v6627
        %v7320 = vunpack.c.h.b16 %v6627
        %v7321 = vunpack.c.l.b16 %v6628
        %v7322 = vunpack.c.h.b16 %v6628
        %v7323 = vunpack.c.l.b16 %v6629
        %v7324 = vunpack.c.h.b16 %v6629
        %v7325 = vunpack.c.l.b16 %v6630
        %v7326 = vunpack.c.h.b16 %v6630
        %v7327 = vunpack.c.l.b16 %v6631
        %v7328 = vunpack.c.h.b16 %v6631
        %v7329 = vunpack.c.l.b16 %v6632
        %v7330 = vunpack.c.h.b16 %v6632
        %v7331 = vunpack.c.l.b16 %v6633
        %v7332 = vunpack.c.h.b16 %v6633
        %v7333 = vunpack.c.l.b16 %v6634
        %v7334 = vunpack.c.h.b16 %v6634
        %v7335 = vunpack.c.l.b16 %v6635
        %v7336 = vunpack.c.h.b16 %v6635
        %v7337 = vunpack.c.l.b16 %v6636
        %v7338 = vunpack.c.h.b16 %v6636
        %v7339 = vunpack.c.l.b16 %v6637
        %v7340 = vunpack.c.h.b16 %v6637
        %v7341 = vunpack.c.l.b16 %v6638
        %v7342 = vunpack.c.h.b16 %v6638
        %v7343 = vunpack.c.l.b16 %v6639
        %v7344 = vunpack.c.h.b16 %v6639
        %v7345 = vunpack.c.l.b16 %v6640
        %v7346 = vunpack.c.h.b16 %v6640
        %v7347 = vunpack.c.l.b16 %v6641
        %v7348 = vunpack.c.h.b16 %v6641
        %v7349 = vunpack.c.l.b16 %v6642
        %v7350 = vunpack.c.h.b16 %v6642
        %v7351 = vunpack.c.l.b16 %v6643
        %v7352 = vunpack.c.h.b16 %v6643
        %v7353 = vunpack.c.l.b16 %v6644
        %v7354 = vunpack.c.h.b16 %v6644
        %v7355 = vunpack.c.l.b16 %v6645
        %v7356 = vunpack.c.h.b16 %v6645
        %v7357 = vunpack.c.l.b16 %v6646
        %v7358 = vunpack.c.h.b16 %v6646
        %v7359 = vunpack.c.l.b16 %v6647
        %v7360 = vunpack.c.h.b16 %v6647
        %v7361 = vunpack.c.l.b16 %v6648
        %v7362 = vunpack.c.h.b16 %v6648
        %v7363 = vunpack.c.l.b16 %v6649
        %v7364 = vunpack.c.h.b16 %v6649
        %v7365 = vunpack.c.l.b16 %v6650
        %v7366 = vunpack.c.h.b16 %v6650
        %v7367 = vunpack.c.l.b16 %v6651
        %v7368 = vunpack.c.h.b16 %v6651
        %v7369 = vunpack.c.l.b16 %v6652
        %v7370 = vunpack.c.h.b16 %v6652
        %v7371 = vunpack.c.l.b16 %v6653
        %v7372 = vunpack.c.h.b16 %v6653
        %v7373 = vunpack.c.l.b16 %v6654
        %v7374 = vunpack.c.h.b16 %v6654
        %v7375 = vunpack.c.l.b16 %v6655
        %v7376 = vunpack.c.h.b16 %v6655
        %v7377 = vunpack.c.l.b16 %v6656
        %v7378 = vunpack.c.h.b16 %v6656
        %v7379 = vunpack.c.l.b16 %v6657
        %v7380 = vunpack.c.h.b16 %v6657
        %v7381 = vunpack.c.l.b16 %v6658
        %v7382 = vunpack.c.h.b16 %v6658
        %v7383 = vunpack.c.l.b16 %v6659
        %v7384 = vunpack.c.h.b16 %v6659
        %v7385 = vunpack.c.l.b16 %v6660
        %v7386 = vunpack.c.h.b16 %v6660
        %v7387 = vunpack.c.l.b16 %v6661
        %v7388 = vunpack.c.h.b16 %v6661
        %v7389 = vunpack.c.l.b16 %v6662
        %v7390 = vunpack.c.h.b16 %v6662
        %v7391 = vunpack.c.l.b16 %v6663
        %v7392 = vunpack.c.h.b16 %v6663
        %v7393 = vunpack.c.l.b16 %v6664
        %v7394 = vunpack.c.h.b16 %v6664
        %v7395 = vunpack.c.l.b16 %v6665
        %v7396 = vunpack.c.h.b16 %v6665
        %v7397 = vunpack.c.l.b16 %v6666
        %v7398 = vunpack.c.h.b16 %v6666
        %v7399 = vunpack.c.l.b16 %v6667
        %v7400 = vunpack.c.h.b16 %v6667
        %v7401 = vunpack.c.l.b16 %v6668
        %v7402 = vunpack.c.h.b16 %v6668
        %v7403 = vunpack.c.l.b16 %v6669
        %v7404 = vunpack.c.h.b16 %v6669
        %v7405 = vunpack.c.l.b16 %v6670
        %v7406 = vunpack.c.h.b16 %v6670
        %v7407 = vunpack.c.l.b16 %v6671
        %v7408 = vunpack.c.h.b16 %v6671
        %v7409 = vunpack.c.l.b16 %v6672
        %v7410 = vunpack.c.h.b16 %v6672
        %v7411 = vunpack.c.l.b16 %v6673
        %v7412 = vunpack.c.h.b16 %v6673
        %v7413 = vunpack.c.l.b16 %v6674
        %v7414 = vunpack.c.h.b16 %v6674
        %v7415 = vunpack.c.l.b16 %v6675
        %v7416 = vunpack.c.h.b16 %v6675
        %v7417 = vunpack.c.l.b16 %v6676
        %v7418 = vunpack.c.h.b16 %v6676
        %v7419 = vunpack.c.l.b16 %v6677
        %v7420 = vunpack.c.h.b16 %v6677
        %v7421 = vunpack.c.l.b16 %v6678
        %v7422 = vunpack.c.h.b16 %v6678
        %v7423 = vunpack.c.l.b16 %v6679
        %v7424 = vunpack.c.h.b16 %v6679
        %v7425 = vunpack.c.l.b16 %v6680
        %v7426 = vunpack.c.h.b16 %v6680
        %v7427 = vunpack.c.l.b16 %v6681
        %v7428 = vunpack.c.h.b16 %v6681
        %v7429 = vunpack.c.l.b16 %v6682
        %v7430 = vunpack.c.h.b16 %v6682
        %v7431 = vunpack.c.l.b16 %v6683
        %v7432 = vunpack.c.h.b16 %v6683
        %v7433 = vunpack.c.l.b16 %v6684
        %v7434 = vunpack.c.h.b16 %v6684
        %v7435 = vunpack.c.l.b16 %v6685
        %v7436 = vunpack.c.h.b16 %v6685
        %v7437 = vunpack.c.l.b16 %v6686
        %v7438 = vunpack.c.h.b16 %v6686
        %v7439 = vunpack.c.l.b16 %v6687
        %v7440 = vunpack.c.h.b16 %v6687
        %v7441 = vunpack.c.l.b16 %v6688
        %v7442 = vunpack.c.h.b16 %v6688
        %v7443 = vunpack.c.l.b16 %v6689
        %v7444 = vunpack.c.h.b16 %v6689
        %v7445 = vunpack.c.l.b16 %v6690
        %v7446 = vunpack.c.h.b16 %v6690
        %v7447 = vunpack.c.l.b16 %v6691
        %v7448 = vunpack.c.h.b16 %v6691
        %v7449 = vunpack.c.l.b16 %v6692
        %v7450 = vunpack.c.h.b16 %v6692
        %v7451 = vunpack.c.l.b16 %v6693
        %v7452 = vunpack.c.h.b16 %v6693
        %v7453 = vunpack.c.l.b16 %v6694
        %v7454 = vunpack.c.h.b16 %v6694
        %v7455 = vunpack.c.l.b16 %v6695
        %v7456 = vunpack.c.h.b16 %v6695
        %v7457 = vunpack.c.l.b16 %v6696
        %v7458 = vunpack.c.h.b16 %v6696
        %v7459 = vunpack.c.l.b16 %v6697
        %v7460 = vunpack.c.h.b16 %v6697
        %v7461 = vunpack.c.l.b16 %v6698
        %v7462 = vunpack.c.h.b16 %v6698
        %v7463 = vunpack.c.l.b16 %v6699
        %v7464 = vunpack.c.h.b16 %v6699
        %v7465 = vunpack.c.l.b16 %v6700
        %v7466 = vunpack.c.h.b16 %v6700
        %v7467 = vunpack.c.l.b16 %v6701
        %v7468 = vunpack.c.h.b16 %v6701
        %v7469 = vunpack.c.l.b16 %v6702
        %v7470 = vunpack.c.h.b16 %v6702
        %v7471 = vunpack.c.l.b16 %v6703
        %v7472 = vunpack.c.h.b16 %v6703
        %v7473 = vunpack.c.l.b16 %v6704
        %v7474 = vunpack.c.h.b16 %v6704
        %v7475 = vunpack.c.l.b16 %v6705
        %v7476 = vunpack.c.h.b16 %v6705
        %v7477 = vunpack.c.l.b16 %v6706
        %v7478 = vunpack.c.h.b16 %v6706
        %v7479 = vunpack.c.l.b16 %v6707
        %v7480 = vunpack.c.h.b16 %v6707
        %v7481 = vunpack.c.l.b16 %v6708
        %v7482 = vunpack.c.h.b16 %v6708
        %v7483 = vunpack.c.l.b16 %v6709
        %v7484 = vunpack.c.h.b16 %v6709
        %v7485 = vunpack.c.l.b16 %v6710
        %v7486 = vunpack.c.h.b16 %v6710
        %v7487 = vunpack.c.l.b16 %v6711
        %v7488 = vunpack.c.h.b16 %v6711
        %v7489 = vunpack.c.l.b16 %v6712
        %v7490 = vunpack.c.h.b16 %v6712
        %v7491 = vunpack.c.l.b16 %v6713
        %v7492 = vunpack.c.h.b16 %v6713
        %v7493 = vunpack.c.l.b16 %v6714
        %v7494 = vunpack.c.h.b16 %v6714
        %v7495 = vunpack.c.l.b16 %v6715
        %v7496 = vunpack.c.h.b16 %v6715
        %v7497 = vunpack.c.l.b16 %v6716
        %v7498 = vunpack.c.h.b16 %v6716
        %v7499 = vunpack.c.l.b16 %v6717
        %v7500 = vunpack.c.h.b16 %v6717
        %v7501 = vunpack.c.l.b16 %v6718
        %v7502 = vunpack.c.h.b16 %v6718
        %v7503 = vunpack.c.l.b16 %v6719
        %v7504 = vunpack.c.h.b16 %v6719
        %v7505 = vunpack.c.l.b16 %v6720
        %v7506 = vunpack.c.h.b16 %v6720
        %v7507 = vunpack.c.l.b16 %v6721
        %v7508 = vunpack.c.h.b16 %v6721
        %v7509 = vunpack.c.l.b16 %v6722
        %v7510 = vunpack.c.h.b16 %v6722
        %v7511 = vunpack.c.l.b16 %v6723
        %v7512 = vunpack.c.h.b16 %v6723
        %v7513 = vunpack.c.l.b16 %v6724
        %v7514 = vunpack.c.h.b16 %v6724
        %v7515 = vunpack.c.l.b16 %v6725
        %v7516 = vunpack.c.h.b16 %v6725
        %v7517 = vunpack.c.l.b16 %v6726
        %v7518 = vunpack.c.h.b16 %v6726
        %v7519 = vunpack.c.l.b16 %v6727
        %v7520 = vunpack.c.h.b16 %v6727
        %v7521 = vunpack.c.l.b16 %v6728
        %v7522 = vunpack.c.h.b16 %v6728
        %v7523 = vunpack.c.l.b16 %v6729
        %v7524 = vunpack.c.h.b16 %v6729
        %v7525 = vunpack.c.l.b16 %v6730
        %v7526 = vunpack.c.h.b16 %v6730
        %v7527 = vunpack.c.l.b16 %v6731
        %v7528 = vunpack.c.h.b16 %v6731
        %v7529 = vunpack.c.l.b16 %v6732
        %v7530 = vunpack.c.h.b16 %v6732
        %v7531 = vunpack.c.l.b16 %v6733
        %v7532 = vunpack.c.h.b16 %v6733
        %v7533 = vunpack.c.l.b16 %v6734
        %v7534 = vunpack.c.h.b16 %v6734
        %v7535 = vunpack.c.l.b16 %v6735
        %v7536 = vunpack.c.h.b16 %v6735
        %v7537 = vunpack.c.l.b16 %v6736
        %v7538 = vunpack.c.h.b16 %v6736
        %v7539 = vunpack.c.l.b16 %v6737
        %v7540 = vunpack.c.h.b16 %v6737
        %v7541 = vunpack.c.l.b16 %v6738
        %v7542 = vunpack.c.h.b16 %v6738
        %v7543 = vunpack.c.l.b16 %v6739
        %v7544 = vunpack.c.h.b16 %v6739
        %v7545 = vunpack.c.l.b16 %v6740
        %v7546 = vunpack.c.h.b16 %v6740
        %v7547 = vunpack.c.l.b16 %v6741
        %v7548 = vunpack.c.h.b16 %v6741
        %v7549 = vunpack.c.l.b16 %v6742
        %v7550 = vunpack.c.h.b16 %v6742
        %v7551 = vunpack.c.l.b16 %v6743
        %v7552 = vunpack.c.h.b16 %v6743
        %v7553 = vunpack.c.l.b16 %v6744
        %v7554 = vunpack.c.h.b16 %v6744
        %v7555 = vunpack.c.l.b16 %v6745
        %v7556 = vunpack.c.h.b16 %v6745
        %v7557 = vunpack.c.l.b16 %v6746
        %v7558 = vunpack.c.h.b16 %v6746
        %v7559 = vunpack.c.l.b16 %v6747
        %v7560 = vunpack.c.h.b16 %v6747
        %v7561 = vunpack.c.l.b16 %v6748
        %v7562 = vunpack.c.h.b16 %v6748
        %v7563 = vunpack.c.l.b16 %v6749
        %v7564 = vunpack.c.h.b16 %v6749
        %v7565 = vunpack.c.l.b16 %v6750
        %v7566 = vunpack.c.h.b16 %v6750
        %v7567 = vunpack.c.l.b16 %v6751
        %v7568 = vunpack.c.h.b16 %v6751
        %v7569 = vunpack.c.l.b16 %v6752
        %v7570 = vunpack.c.h.b16 %v6752
        %v7571 = vunpack.c.l.b16 %v6753
        %v7572 = vunpack.c.h.b16 %v6753
        %v7573 = vunpack.c.l.b16 %v6754
        %v7574 = vunpack.c.h.b16 %v6754
        %v7575 = vunpack.c.l.b16 %v6755
        %v7576 = vunpack.c.h.b16 %v6755
        %v7577 = vunpack.c.l.b16 %v6756
        %v7578 = vunpack.c.h.b16 %v6756
        %v7579 = vunpack.c.l.b16 %v6757
        %v7580 = vunpack.c.h.b16 %v6757
        %v7581 = vunpack.c.l.b16 %v6758
        %v7582 = vunpack.c.h.b16 %v6758
        %v7583 = vunpack.c.l.b16 %v6759
        %v7584 = vunpack.c.h.b16 %v6759
        %v7585 = vunpack.c.l.b16 %v6760
        %v7586 = vunpack.c.h.b16 %v6760
        %v7587 = vunpack.c.l.b16 %v6761
        %v7588 = vunpack.c.h.b16 %v6761
        %v7589 = vunpack.c.l.b16 %v6762
        %v7590 = vunpack.c.h.b16 %v6762
        %v7591 = vunpack.c.l.b16 %v6763
        %v7592 = vunpack.c.h.b16 %v6763
        %v7593 = vunpack.c.l.b16 %v6764
        %v7594 = vunpack.c.h.b16 %v6764
        %v7595 = vunpack.c.l.b16 %v6765
        %v7596 = vunpack.c.h.b16 %v6765
        %v7597 = vunpack.c.l.b16 %v6766
        %v7598 = vunpack.c.h.b16 %v6766
        %v7599 = vunpack.c.l.b16 %v6767
        %v7600 = vunpack.c.h.b16 %v6767
        %v7601 = vunpack.c.l.b16 %v6768
        %v7602 = vunpack.c.h.b16 %v6768
        %v7603 = vunpack.c.l.b16 %v6769
        %v7604 = vunpack.c.h.b16 %v6769
        %v7605 = vunpack.c.l.b16 %v6770
        %v7606 = vunpack.c.h.b16 %v6770
        %v7607 = vunpack.c.l.b16 %v6771
        %v7608 = vunpack.c.h.b16 %v6771
        %v7609 = vunpack.c.l.b16 %v6772
        %v7610 = vunpack.c.h.b16 %v6772
        %v7611 = vunpack.c.l.b16 %v6773
        %v7612 = vunpack.c.h.b16 %v6773
        %v7613 = vunpack.c.l.b16 %v6774
        %v7614 = vunpack.c.h.b16 %v6774
        %v7615 = vunpack.c.l.b16 %v6775
        %v7616 = vunpack.c.h.b16 %v6775
        %v7617 = vunpack.c.l.b16 %v6776
        %v7618 = vunpack.c.h.b16 %v6776
        %v7619 = vunpack.c.l.b16 %v6777
        %v7620 = vunpack.c.h.b16 %v6777
        %v7621 = vunpack.c.l.b16 %v6778
        %v7622 = vunpack.c.h.b16 %v6778
        %v7623 = vunpack.c.l.b16 %v6779
        %v7624 = vunpack.c.h.b16 %v6779
        %v7625 = vunpack.c.l.b16 %v6780
        %v7626 = vunpack.c.h.b16 %v6780
        %v7627 = vunpack.c.l.b16 %v6781
        %v7628 = vunpack.c.h.b16 %v6781
        %v7629 = vunpack.c.l.b16 %v6782
        %v7630 = vunpack.c.h.b16 %v6782
        %v7631 = vunpack.c.l.b16 %v6783
        %v7632 = vunpack.c.h.b16 %v6783
        %v7633 = vunpack.c.l.b16 %v6784
        %v7634 = vunpack.c.h.b16 %v6784
        %v7635 = vunpack.c.l.b16 %v6785
        %v7636 = vunpack.c.h.b16 %v6785
        %v7637 = vunpack.c.l.b16 %v6786
        %v7638 = vunpack.c.h.b16 %v6786
        %v7639 = vunpack.c.l.b16 %v6787
        %v7640 = vunpack.c.h.b16 %v6787
        %v7641 = vunpack.c.l.b16 %v6788
        %v7642 = vunpack.c.h.b16 %v6788
        %v7643 = vunpack.c.l.b16 %v6789
        %v7644 = vunpack.c.h.b16 %v6789
        %v7645 = vunpack.c.l.b16 %v6790
        %v7646 = vunpack.c.h.b16 %v6790
        %v7647 = vunpack.c.l.b16 %v6791
        %v7648 = vunpack.c.h.b16 %v6791
        %v7649 = vunpack.c.l.b16 %v6792
        %v7650 = vunpack.c.h.b16 %v6792
        %v7651 = vunpack.c.l.b16 %v6793
        %v7652 = vunpack.c.h.b16 %v6793
        %v7653 = vunpack.c.l.b16 %v6794
        %v7654 = vunpack.c.h.b16 %v6794
        %v7655 = vunpack.c.l.b16 %v6795
        %v7656 = vunpack.c.h.b16 %v6795
        %v7657 = vunpack.c.l.b16 %v6796
        %v7658 = vunpack.c.h.b16 %v6796
        %v7659 = vunpack.c.l.b16 %v6797
        %v7660 = vunpack.c.h.b16 %v6797
        %v7661 = vunpack.c.l.b16 %v6798
        %v7662 = vunpack.c.h.b16 %v6798
        %v7663 = vpack.c.b16 %v7093, %v7087
        %v7664 = vpack.c.b16 %v7094, %v7088
        %v7665 = vpack.c.b16 %v7095, %v7089
        %v7666 = vpack.c.b16 %v7096, %v7090
        %v7667 = vpack.c.b16 %v7097, %v7091
        %v7668 = vpack.c.b16 %v7098, %v7092
        %v7669 = vpack.c.b16 %v7105, %v7099
        %v7670 = vpack.c.b16 %v7106, %v7100
        %v7671 = vpack.c.b16 %v7107, %v7101
        %v7672 = vpack.c.b16 %v7108, %v7102
        %v7673 = vpack.c.b16 %v7109, %v7103
        %v7674 = vpack.c.b16 %v7110, %v7104
        %v7675 = vpack.c.b16 %v7117, %v7111
        %v7676 = vpack.c.b16 %v7118, %v7112
        %v7677 = vpack.c.b16 %v7119, %v7113
        %v7678 = vpack.c.b16 %v7120, %v7114
        %v7679 = vpack.c.b16 %v7121, %v7115
        %v7680 = vpack.c.b16 %v7122, %v7116
        %v7681 = vpack.c.b16 %v7129, %v7123
        %v7682 = vpack.c.b16 %v7130, %v7124
        %v7683 = vpack.c.b16 %v7131, %v7125
        %v7684 = vpack.c.b16 %v7132, %v7126
        %v7685 = vpack.c.b16 %v7133, %v7127
        %v7686 = vpack.c.b16 %v7134, %v7128
        %v7687 = vpack.c.b16 %v7141, %v7135
        %v7688 = vpack.c.b16 %v7142, %v7136
        %v7689 = vpack.c.b16 %v7143, %v7137
        %v7690 = vpack.c.b16 %v7144, %v7138
        %v7691 = vpack.c.b16 %v7145, %v7139
        %v7692 = vpack.c.b16 %v7146, %v7140
        %v7693 = vpack.c.b16 %v7153, %v7147
        %v7694 = vpack.c.b16 %v7154, %v7148
        %v7695 = vpack.c.b16 %v7155, %v7149
        %v7696 = vpack.c.b16 %v7156, %v7150
        %v7697 = vpack.c.b16 %v7157, %v7151
        %v7698 = vpack.c.b16 %v7158, %v7152
        %v7699 = vpack.c.b16 %v7165, %v7159
        %v7700 = vpack.c.b16 %v7166, %v7160
        %v7701 = vpack.c.b16 %v7167, %v7161
        %v7702 = vpack.c.b16 %v7168, %v7162
        %v7703 = vpack.c.b16 %v7169, %v7163
        %v7704 = vpack.c.b16 %v7170, %v7164
        %v7705 = vpack.c.b16 %v7177, %v7171
        %v7706 = vpack.c.b16 %v7178, %v7172
        %v7707 = vpack.c.b16 %v7179, %v7173
        %v7708 = vpack.c.b16 %v7180, %v7174
        %v7709 = vpack.c.b16 %v7181, %v7175
        %v7710 = vpack.c.b16 %v7182, %v7176
        %v7711 = vpack.c.b16 %v7189, %v7183
        %v7712 = vpack.c.b16 %v7190, %v7184
        %v7713 = vpack.c.b16 %v7191, %v7185
        %v7714 = vpack.c.b16 %v7192, %v7186
        %v7715 = vpack.c.b16 %v7193, %v7187
        %v7716 = vpack.c.b16 %v7194, %v7188
        %v7717 = vpack.c.b16 %v7201, %v7195
        %v7718 = vpack.c.b16 %v7202, %v7196
        %v7719 = vpack.c.b16 %v7203, %v7197
        %v7720 = vpack.c.b16 %v7204, %v7198
        %v7721 = vpack.c.b16 %v7205, %v7199
        %v7722 = vpack.c.b16 %v7206, %v7200
        %v7723 = vpack.c.b16 %v7213, %v7207
        %v7724 = vpack.c.b16 %v7214, %v7208
        %v7725 = vpack.c.b16 %v7215, %v7209
        %v7726 = vpack.c.b16 %v7216, %v7210
        %v7727 = vpack.c.b16 %v7217, %v7211
        %v7728 = vpack.c.b16 %v7218, %v7212
        %v7729 = vpack.c.b16 %v7225, %v7219
        %v7730 = vpack.c.b16 %v7226, %v7220
        %v7731 = vpack.c.b16 %v7227, %v7221
        %v7732 = vpack.c.b16 %v7228, %v7222
        %v7733 = vpack.c.b16 %v7229, %v7223
        %v7734 = vpack.c.b16 %v7230, %v7224
        %v7735 = vpack.c.b16 %v7237, %v7231
        %v7736 = vpack.c.b16 %v7238, %v7232
        %v7737 = vpack.c.b16 %v7239, %v7233
        %v7738 = vpack.c.b16 %v7240, %v7234
        %v7739 = vpack.c.b16 %v7241, %v7235
        %v7740 = vpack.c.b16 %v7242, %v7236
        %v7741 = vpack.c.b16 %v7249, %v7243
        %v7742 = vpack.c.b16 %v7250, %v7244
        %v7743 = vpack.c.b16 %v7251, %v7245
        %v7744 = vpack.c.b16 %v7252, %v7246
        %v7745 = vpack.c.b16 %v7253, %v7247
        %v7746 = vpack.c.b16 %v7254, %v7248
        %v7747 = vpack.c.b16 %v7261, %v7255
        %v7748 = vpack.c.b16 %v7262, %v7256
        %v7749 = vpack.c.b16 %v7263, %v7257
        %v7750 = vpack.c.b16 %v7264, %v7258
        %v7751 = vpack.c.b16 %v7265, %v7259
        %v7752 = vpack.c.b16 %v7266, %v7260
        %v7753 = vpack.c.b16 %v7273, %v7267
        %v7754 = vpack.c.b16 %v7274, %v7268
        %v7755 = vpack.c.b16 %v7275, %v7269
        %v7756 = vpack.c.b16 %v7276, %v7270
        %v7757 = vpack.c.b16 %v7277, %v7271
        %v7758 = vpack.c.b16 %v7278, %v7272
        %v7759 = vpack.c.b16 %v7285, %v7279
        %v7760 = vpack.c.b16 %v7286, %v7280
        %v7761 = vpack.c.b16 %v7287, %v7281
        %v7762 = vpack.c.b16 %v7288, %v7282
        %v7763 = vpack.c.b16 %v7289, %v7283
        %v7764 = vpack.c.b16 %v7290, %v7284
        %v7765 = vpack.c.b16 %v7297, %v7291
        %v7766 = vpack.c.b16 %v7298, %v7292
        %v7767 = vpack.c.b16 %v7299, %v7293
        %v7768 = vpack.c.b16 %v7300, %v7294
        %v7769 = vpack.c.b16 %v7301, %v7295
        %v7770 = vpack.c.b16 %v7302, %v7296
        %v7771 = vpack.c.b16 %v7309, %v7303
        %v7772 = vpack.c.b16 %v7310, %v7304
        %v7773 = vpack.c.b16 %v7311, %v7305
        %v7774 = vpack.c.b16 %v7312, %v7306
        %v7775 = vpack.c.b16 %v7313, %v7307
        %v7776 = vpack.c.b16 %v7314, %v7308
        %v7777 = vpack.c.b16 %v7321, %v7315
        %v7778 = vpack.c.b16 %v7322, %v7316
        %v7779 = vpack.c.b16 %v7323, %v7317
        %v7780 = vpack.c.b16 %v7324, %v7318
        %v7781 = vpack.c.b16 %v7325, %v7319
        %v7782 = vpack.c.b16 %v7326, %v7320
        %v7783 = vpack.c.b16 %v7333, %v7327
        %v7784 = vpack.c.b16 %v7334, %v7328
        %v7785 = vpack.c.b16 %v7335, %v7329
        %v7786 = vpack.c.b16 %v7336, %v7330
        %v7787 = vpack.c.b16 %v7337, %v7331
        %v7788 = vpack.c.b16 %v7338, %v7332
        %v7789 = vpack.c.b16 %v7345, %v7339
        %v7790 = vpack.c.b16 %v7346, %v7340
        %v7791 = vpack.c.b16 %v7347, %v7341
        %v7792 = vpack.c.b16 %v7348, %v7342
        %v7793 = vpack.c.b16 %v7349, %v7343
        %v7794 = vpack.c.b16 %v7350, %v7344
        %v7795 = vpack.c.b16 %v7357, %v7351
        %v7796 = vpack.c.b16 %v7358, %v7352
        %v7797 = vpack.c.b16 %v7359, %v7353
        %v7798 = vpack.c.b16 %v7360, %v7354
        %v7799 = vpack.c.b16 %v7361, %v7355
        %v7800 = vpack.c.b16 %v7362, %v7356
        %v7801 = vpack.c.b16 %v7369, %v7363
        %v7802 = vpack.c.b16 %v7370, %v7364
        %v7803 = vpack.c.b16 %v7371, %v7365
        %v7804 = vpack.c.b16 %v7372, %v7366
        %v7805 = vpack.c.b16 %v7373, %v7367
        %v7806 = vpack.c.b16 %v7374, %v7368
        %v7807 = vpack.c.b16 %v7381, %v7375
        %v7808 = vpack.c.b16 %v7382, %v7376
        %v7809 = vpack.c.b16 %v7383, %v7377
        %v7810 = vpack.c.b16 %v7384, %v7378
        %v7811 = vpack.c.b16 %v7385, %v7379
        %v7812 = vpack.c.b16 %v7386, %v7380
        %v7813 = vpack.c.b16 %v7393, %v7387
        %v7814 = vpack.c.b16 %v7394, %v7388
        %v7815 = vpack.c.b16 %v7395, %v7389
        %v7816 = vpack.c.b16 %v7396, %v7390
        %v7817 = vpack.c.b16 %v7397, %v7391
        %v7818 = vpack.c.b16 %v7398, %v7392
        %v7819 = vpack.c.b16 %v7405, %v7399
        %v7820 = vpack.c.b16 %v7406, %v7400
        %v7821 = vpack.c.b16 %v7407, %v7401
        %v7822 = vpack.c.b16 %v7408, %v7402
        %v7823 = vpack.c.b16 %v7409, %v7403
        %v7824 = vpack.c.b16 %v7410, %v7404
        %v7825 = vpack.c.b16 %v7417, %v7411
        %v7826 = vpack.c.b16 %v7418, %v7412
        %v7827 = vpack.c.b16 %v7419, %v7413
        %v7828 = vpack.c.b16 %v7420, %v7414
        %v7829 = vpack.c.b16 %v7421, %v7415
        %v7830 = vpack.c.b16 %v7422, %v7416
        %v7831 = vpack.c.b16 %v7429, %v7423
        %v7832 = vpack.c.b16 %v7430, %v7424
        %v7833 = vpack.c.b16 %v7431, %v7425
        %v7834 = vpack.c.b16 %v7432, %v7426
        %v7835 = vpack.c.b16 %v7433, %v7427
        %v7836 = vpack.c.b16 %v7434, %v7428
        %v7837 = vpack.c.b16 %v7441, %v7435
        %v7838 = vpack.c.b16 %v7442, %v7436
        %v7839 = vpack.c.b16 %v7443, %v7437
        %v7840 = vpack.c.b16 %v7444, %v7438
        %v7841 = vpack.c.b16 %v7445, %v7439
        %v7842 = vpack.c.b16 %v7446, %v7440
        %v7843 = vpack.c.b16 %v7453, %v7447
        %v7844 = vpack.c.b16 %v7454, %v7448
        %v7845 = vpack.c.b16 %v7455, %v7449
        %v7846 = vpack.c.b16 %v7456, %v7450
        %v7847 = vpack.c.b16 %v7457, %v7451
        %v7848 = vpack.c.b16 %v7458, %v7452
        %v7849 = vpack.c.b16 %v7465, %v7459
        %v7850 = vpack.c.b16 %v7466, %v7460
        %v7851 = vpack.c.b16 %v7467, %v7461
        %v7852 = vpack.c.b16 %v7468, %v7462
        %v7853 = vpack.c.b16 %v7469, %v7463
        %v7854 = vpack.c.b16 %v7470, %v7464
        %v7855 = vpack.c.b16 %v7477, %v7471
        %v7856 = vpack.c.b16 %v7478, %v7472
        %v7857 = vpack.c.b16 %v7479, %v7473
        %v7858 = vpack.c.b16 %v7480, %v7474
        %v7859 = vpack.c.b16 %v7481, %v7475
        %v7860 = vpack.c.b16 %v7482, %v7476
        %v7861 = vpack.c.b16 %v7489, %v7483
        %v7862 = vpack.c.b16 %v7490, %v7484
        %v7863 = vpack.c.b16 %v7491, %v7485
        %v7864 = vpack.c.b16 %v7492, %v7486
        %v7865 = vpack.c.b16 %v7493, %v7487
        %v7866 = vpack.c.b16 %v7494, %v7488
        %v7867 = vpack.c.b16 %v7501, %v7495
        %v7868 = vpack.c.b16 %v7502, %v7496
        %v7869 = vpack.c.b16 %v7503, %v7497
        %v7870 = vpack.c.b16 %v7504, %v7498
        %v7871 = vpack.c.b16 %v7505, %v7499
        %v7872 = vpack.c.b16 %v7506, %v7500
        %v7873 = vpack.c.b16 %v7513, %v7507
        %v7874 = vpack.c.b16 %v7514, %v7508
        %v7875 = vpack.c.b16 %v7515, %v7509
        %v7876 = vpack.c.b16 %v7516, %v7510
        %v7877 = vpack.c.b16 %v7517, %v7511
        %v7878 = vpack.c.b16 %v7518, %v7512
        %v7879 = vpack.c.b16 %v7525, %v7519
        %v7880 = vpack.c.b16 %v7526, %v7520
        %v7881 = vpack.c.b16 %v7527, %v7521
        %v7882 = vpack.c.b16 %v7528, %v7522
        %v7883 = vpack.c.b16 %v7529, %v7523
        %v7884 = vpack.c.b16 %v7530, %v7524
        %v7885 = vpack.c.b16 %v7537, %v7531
        %v7886 = vpack.c.b16 %v7538, %v7532
        %v7887 = vpack.c.b16 %v7539, %v7533
        %v7888 = vpack.c.b16 %v7540, %v7534
        %v7889 = vpack.c.b16 %v7541, %v7535
        %v7890 = vpack.c.b16 %v7542, %v7536
        %v7891 = vpack.c.b16 %v7549, %v7543
        %v7892 = vpack.c.b16 %v7550, %v7544
        %v7893 = vpack.c.b16 %v7551, %v7545
        %v7894 = vpack.c.b16 %v7552, %v7546
        %v7895 = vpack.c.b16 %v7553, %v7547
        %v7896 = vpack.c.b16 %v7554, %v7548
        %v7897 = vpack.c.b16 %v7561, %v7555
        %v7898 = vpack.c.b16 %v7562, %v7556
        %v7899 = vpack.c.b16 %v7563, %v7557
        %v7900 = vpack.c.b16 %v7564, %v7558
        %v7901 = vpack.c.b16 %v7565, %v7559
        %v7902 = vpack.c.b16 %v7566, %v7560
        %v7903 = vpack.c.b16 %v7573, %v7567
        %v7904 = vpack.c.b16 %v7574, %v7568
        %v7905 = vpack.c.b16 %v7575, %v7569
        %v7906 = vpack.c.b16 %v7576, %v7570
        %v7907 = vpack.c.b16 %v7577, %v7571
        %v7908 = vpack.c.b16 %v7578, %v7572
        %v7909 = vpack.c.b16 %v7585, %v7579
        %v7910 = vpack.c.b16 %v7586, %v7580
        %v7911 = vpack.c.b16 %v7587, %v7581
        %v7912 = vpack.c.b16 %v7588, %v7582
        %v7913 = vpack.c.b16 %v7589, %v7583
        %v7914 = vpack.c.b16 %v7590, %v7584
        %v7915 = vpack.c.b16 %v7597, %v7591
        %v7916 = vpack.c.b16 %v7598, %v7592
        %v7917 = vpack.c.b16 %v7599, %v7593
        %v7918 = vpack.c.b16 %v7600, %v7594
        %v7919 = vpack.c.b16 %v7601, %v7595
        %v7920 = vpack.c.b16 %v7602, %v7596
        %v7921 = vpack.c.b16 %v7609, %v7603
        %v7922 = vpack.c.b16 %v7610, %v7604
        %v7923 = vpack.c.b16 %v7611, %v7605
        %v7924 = vpack.c.b16 %v7612, %v7606
        %v7925 = vpack.c.b16 %v7613, %v7607
        %v7926 = vpack.c.b16 %v7614, %v7608
        %v7927 = vpack.c.b16 %v7621, %v7615
        %v7928 = vpack.c.b16 %v7622, %v7616
        %v7929 = vpack.c.b16 %v7623, %v7617
        %v7930 = vpack.c.b16 %v7624, %v7618
        %v7931 = vpack.c.b16 %v7625, %v7619
        %v7932 = vpack.c.b16 %v7626, %v7620
        %v7933 = vpack.c.b16 %v7633, %v7627
        %v7934 = vpack.c.b16 %v7634, %v7628
        %v7935 = vpack.c.b16 %v7635, %v7629
        %v7936 = vpack.c.b16 %v7636, %v7630
        %v7937 = vpack.c.b16 %v7637, %v7631
        %v7938 = vpack.c.b16 %v7638, %v7632
        %v7939 = vpack.c.b16 %v7645, %v7639
        %v7940 = vpack.c.b16 %v7646, %v7640
        %v7941 = vpack.c.b16 %v7647, %v7641
        %v7942 = vpack.c.b16 %v7648, %v7642
        %v7943 = vpack.c.b16 %v7649, %v7643
        %v7944 = vpack.c.b16 %v7650, %v7644
        %v7945 = vpack.c.b16 %v7657, %v7651
        %v7946 = vpack.c.b16 %v7658, %v7652
        %v7947 = vpack.c.b16 %v7659, %v7653
        %v7948 = vpack.c.b16 %v7660, %v7654
        %v7949 = vpack.c.b16 %v7661, %v7655
        %v7950 = vpack.c.b16 %v7662, %v7656
        %8239 = vmatprep.subr.bf16.mxu0 %v7664
        %8240 = vmatpush1.bf16.msra.mxu0 %v7663
        %8241 = vmatprep.subr.bf16.mxu0 %v7670
        %8242 = vmatpush1.bf16.msra.mxu0 %v7669
        %8243 = vmatprep.subr.bf16.mxu0 %v7676
        %8244 = vmatpush1.bf16.msra.mxu0 %v7675
        %8245 = vmatprep.subr.bf16.mxu0 %v7682
        %8246 = vmatpush1.bf16.msra.mxu0 %v7681
        %8247 = vmatprep.subr.bf16.mxu0 %v7688
        %8248 = vmatpush1.bf16.msra.mxu0 %v7687
        %8249 = vmatprep.subr.bf16.mxu0 %v7694
        %8250 = vmatpush1.bf16.msra.mxu0 %v7693
        %8251 = vmatprep.subr.bf16.mxu0 %v7700
        %8252 = vmatpush1.bf16.msra.mxu0 %v7699
        %8253 = vmatprep.subr.bf16.mxu0 %v7706
        %8254 = vmatpush1.bf16.msra.mxu0 %v7705
        %8255 = vmatprep.subr.bf16.mxu0 %v7712
        %8256 = vmatpush1.bf16.msra.mxu0 %v7711
        %8257 = vmatprep.subr.bf16.mxu0 %v7718
        %8258 = vmatpush1.bf16.msra.mxu0 %v7717
        %8259 = vmatprep.subr.bf16.mxu0 %v7724
        %8260 = vmatpush1.bf16.msra.mxu0 %v7723
        %8261 = vmatprep.subr.bf16.mxu0 %v7730
        %8262 = vmatpush1.bf16.msra.mxu0 %v7729
        %8263 = vmatprep.subr.bf16.mxu0 %v7736
        %8264 = vmatpush1.bf16.msra.mxu0 %v7735
        %8265 = vmatprep.subr.bf16.mxu0 %v7742
        %8266 = vmatpush1.bf16.msra.mxu0 %v7741
        %8267 = vmatprep.subr.bf16.mxu0 %v7748
        %8268 = vmatpush1.bf16.msra.mxu0 %v7747
        %8269 = vmatprep.subr.bf16.mxu0 %v7754
        %8270 = vmatpush1.bf16.msra.mxu0 %v7753
        %8271 = vmatprep.mubr.bf16.mxu0 %v6434
        %8272 = vmatmul.mubr.bf16.gmra.mrb[0].mxu0 %v6433
        %v8273 = vpop.f32.mrb[0].mxu0
        %v8274 = vadd.f32 0.0, %v8273
        %v8275 = vpop.f32.mrb[0].mxu0
        %v8276 = vadd.f32 0.0, %v8275
        %v8277 = vpop.f32.mrb[0].mxu0
        %v8278 = vadd.f32 0.0, %v8277
        %v8279 = vpop.f32.mrb[0].mxu0
        %v8280 = vadd.f32 0.0, %v8279
        %8281 = vmatprep.mubr.bf16.mxu0 %v6440
        %8282 = vmatmul.mubr.bf16.gmra.mrb[0].mxu0 %v6439
        %v8283 = vpop.f32.mrb[0].mxu0
        %v8284 = vadd.f32 0.0, %v8283
        %v8285 = vpop.f32.mrb[0].mxu0
        %v8286 = vadd.f32 0.0, %v8285
        %v8287 = vpop.f32.mrb[0].mxu0
        %v8288 = vadd.f32 0.0, %v8287
        %v8289 = vpop.f32.mrb[0].mxu0
        %v8290 = vadd.f32 0.0, %v8289
        %8291 = vmatprep.mubr.bf16.mxu0 %v6446
        %8292 = vmatmul.mubr.bf16.gmra.mrb[0].mxu0 %v6445
        %v8293 = vpop.f32.mrb[0].mxu0
        %v8294 = vadd.f32 0.0, %v8293
        %v8295 = vpop.f32.mrb[0].mxu0
        %v8296 = vadd.f32 0.0, %v8295
        %v8297 = vpop.f32.mrb[0].mxu0
        %v8298 = vadd.f32 0.0, %v8297
        %v8299 = vpop.f32.mrb[0].mxu0
        %v8300 = vadd.f32 0.0, %v8299
        %8301 = vmatprep.mubr.bf16.mxu0 %v6452
        %8302 = vmatmul.mubr.bf16.gmra.mrb[0].mxu0 %v6451
        %v8303 = vpop.f32.mrb[0].mxu0
        %v8304 = vadd.f32 0.0, %v8303
        %v8305 = vpop.f32.mrb[0].mxu0
        %v8306 = vadd.f32 0.0, %v8305
        %v8307 = vpop.f32.mrb[0].mxu0
        %v8308 = vadd.f32 0.0, %v8307
        %v8309 = vpop.f32.mrb[0].mxu0
        %v8310 = vadd.f32 0.0, %v8309
        %8311 = vmatprep.mubr.bf16.mxu0 %v6458
        %8312 = vmatmul.mubr.bf16.gmra.mrb[0].mxu0 %v6457
        %v8313 = vpop.f32.mrb[0].mxu0
        %v8314 = vadd.f32 0.0, %v8313
        %v8315 = vpop.f32.mrb[0].mxu0
        %v8316 = vadd.f32 0.0, %v8315
        %v8317 = vpop.f32.mrb[0].mxu0
        %v8318 = vadd.f32 0.0, %v8317
        %v8319 = vpop.f32.mrb[0].mxu0
        %v8320 = vadd.f32 0.0, %v8319
        %8321 = vmatprep.mubr.bf16.mxu0 %v6464
        %8322 = vmatmul.mubr.bf16.gmra.mrb[0].mxu0 %v6463
        %v8323 = vpop.f32.mrb[0].mxu0
        %v8324 = vadd.f32 0.0, %v8323
        %v8325 = vpop.f32.mrb[0].mxu0
        %v8326 = vadd.f32 0.0, %v8325
        %v8327 = vpop.f32.mrb[0].mxu0
        %v8328 = vadd.f32 0.0, %v8327
        %v8329 = vpop.f32.mrb[0].mxu0
        %v8330 = vadd.f32 0.0, %v8329
        %8331 = vmatprep.mubr.bf16.mxu0 %v6470
        %8332 = vmatmul.mubr.bf16.gmra.mrb[0].mxu0 %v6469
        %v8333 = vpop.f32.mrb[0].mxu0
        %v8334 = vadd.f32 0.0, %v8333
        %v8335 = vpop.f32.mrb[0].mxu0
        %v8336 = vadd.f32 0.0, %v8335
        %v8337 = vpop.f32.mrb[0].mxu0
        %v8338 = vadd.f32 0.0, %v8337
        %v8339 = vpop.f32.mrb[0].mxu0
        %v8340 = vadd.f32 0.0, %v8339
        %8341 = vmatprep.mubr.bf16.mxu0 %v6476
        %8342 = vmatmul.mubr.bf16.gmra.mrb[0].mxu0 %v6475
        %v8343 = vpop.f32.mrb[0].mxu0
        %v8344 = vadd.f32 0.0, %v8343
        %v8345 = vpop.f32.mrb[0].mxu0
        %v8346 = vadd.f32 0.0, %v8345
        %v8347 = vpop.f32.mrb[0].mxu0
        %v8348 = vadd.f32 0.0, %v8347
        %v8349 = vpop.f32.mrb[0].mxu0
        %v8350 = vadd.f32 0.0, %v8349
        %8351 = vmatprep.mubr.bf16.mxu0 %v6482
        %8352 = vmatmul.mubr.bf16.gmra.mrb[0].mxu0 %v6481
        %v8353 = vpop.f32.mrb[0].mxu0
        %v8354 = vadd.f32 0.0, %v8353
        %v8355 = vpop.f32.mrb[0].mxu0
        %v8356 = vadd.f32 0.0, %v8355
        %v8357 = vpop.f32.mrb[0].mxu0
        %v8358 = vadd.f32 0.0, %v8357
        %v8359 = vpop.f32.mrb[0].mxu0
        %v8360 = vadd.f32 0.0, %v8359
        %8361 = vmatprep.mubr.bf16.mxu0 %v6488
        %8362 = vmatmul.mubr.bf16.gmra.mrb[0].mxu0 %v6487
        %v8363 = vpop.f32.mrb[0].mxu0
        %v8364 = vadd.f32 0.0, %v8363
        %v8365 = vpop.f32.mrb[0].mxu0
        %v8366 = vadd.f32 0.0, %v8365
        %v8367 = vpop.f32.mrb[0].mxu0
        %v8368 = vadd.f32 0.0, %v8367
        %v8369 = vpop.f32.mrb[0].mxu0
        %v8370 = vadd.f32 0.0, %v8369
        %8371 = vmatprep.mubr.bf16.mxu0 %v6494
        %8372 = vmatmul.mubr.bf16.gmra.mrb[0].mxu0 %v6493
        %v8373 = vpop.f32.mrb[0].mxu0
        %v8374 = vadd.f32 0.0, %v8373
        %v8375 = vpop.f32.mrb[0].mxu0
        %v8376 = vadd.f32 0.0, %v8375
        %v8377 = vpop.f32.mrb[0].mxu0
        %v8378 = vadd.f32 0.0, %v8377
        %v8379 = vpop.f32.mrb[0].mxu0
        %v8380 = vadd.f32 0.0, %v8379
        %8381 = vmatprep.mubr.bf16.mxu0 %v6500
        %8382 = vmatmul.mubr.bf16.gmra.mrb[0].mxu0 %v6499
        %v8383 = vpop.f32.mrb[0].mxu0
        %v8384 = vadd.f32 0.0, %v8383
        %v8385 = vpop.f32.mrb[0].mxu0
        %v8386 = vadd.f32 0.0, %v8385
        %v8387 = vpop.f32.mrb[0].mxu0
        %v8388 = vadd.f32 0.0, %v8387
        %v8389 = vpop.f32.mrb[0].mxu0
        %v8390 = vadd.f32 0.0, %v8389
        %8391 = vmatprep.mubr.bf16.mxu0 %v6506
        %8392 = vmatmul.mubr.bf16.gmra.mrb[0].mxu0 %v6505
        %v8393 = vpop.f32.mrb[0].mxu0
        %v8394 = vadd.f32 0.0, %v8393
        %v8395 = vpop.f32.mrb[0].mxu0
        %v8396 = vadd.f32 0.0, %v8395
        %v8397 = vpop.f32.mrb[0].mxu0
        %v8398 = vadd.f32 0.0, %v8397
        %v8399 = vpop.f32.mrb[0].mxu0
        %v8400 = vadd.f32 0.0, %v8399
        %8401 = vdwg.mxu0
        %8402 = vmatprep.subr.bf16.mxu0 %v7760
        %8403 = vmatpush1.bf16.msra.mxu0 %v7759
        %8404 = vmatprep.subr.bf16.mxu0 %v7766
        %8405 = vmatpush1.bf16.msra.mxu0 %v7765
        %8406 = vmatprep.subr.bf16.mxu0 %v7772
        %8407 = vmatpush1.bf16.msra.mxu0 %v7771
        %8408 = vmatprep.subr.bf16.mxu0 %v7778
        %8409 = vmatpush1.bf16.msra.mxu0 %v7777
        %8410 = vmatprep.subr.bf16.mxu0 %v7784
        %8411 = vmatpush1.bf16.msra.mxu0 %v7783
        %8412 = vmatprep.subr.bf16.mxu0 %v7790
        %8413 = vmatpush1.bf16.msra.mxu0 %v7789
        %8414 = vmatprep.subr.bf16.mxu0 %v7796
        %8415 = vmatpush1.bf16.msra.mxu0 %v7795
        %8416 = vmatprep.subr.bf16.mxu0 %v7802
        %8417 = vmatpush1.bf16.msra.mxu0 %v7801
        %8418 = vmatprep.subr.bf16.mxu0 %v7808
        %8419 = vmatpush1.bf16.msra.mxu0 %v7807
        %8420 = vmatprep.subr.bf16.mxu0 %v7814
        %8421 = vmatpush1.bf16.msra.mxu0 %v7813
        %8422 = vmatprep.subr.bf16.mxu0 %v7820
        %8423 = vmatpush1.bf16.msra.mxu0 %v7819
        %8424 = vmatprep.subr.bf16.mxu0 %v7826
        %8425 = vmatpush1.bf16.msra.mxu0 %v7825
        %8426 = vmatprep.subr.bf16.mxu0 %v7832
        %8427 = vmatpush1.bf16.msra.mxu0 %v7831
        %8428 = vmatprep.subr.bf16.mxu0 %v7838
        %8429 = vmatpush1.bf16.msra.mxu0 %v7837
        %8430 = vmatprep.subr.bf16.mxu0 %v7844
        %8431 = vmatpush1.bf16.msra.mxu0 %v7843
        %8432 = vmatprep.subr.bf16.mxu0 %v7850
        %8433 = vmatpush1.bf16.msra.mxu0 %v7849
        %8434 = vmatprep.mubr.bf16.mxu0 %v6436
        %8435 = vmatmul.mubr.bf16.gmra.mrb[0].mxu0 %v6435
        %v8436 = vpop.f32.mrb[0].mxu0
        %v8437 = vadd.f32 %v8274, %v8436
        %v8438 = vpop.f32.mrb[0].mxu0
        %v8439 = vadd.f32 %v8276, %v8438
        %v8440 = vpop.f32.mrb[0].mxu0
        %v8441 = vadd.f32 %v8278, %v8440
        %v8442 = vpop.f32.mrb[0].mxu0
        %v8443 = vadd.f32 %v8280, %v8442
        %8444 = vmatprep.mubr.bf16.mxu0 %v6442
        %8445 = vmatmul.mubr.bf16.gmra.mrb[0].mxu0 %v6441
        %v8446 = vpop.f32.mrb[0].mxu0
        %v8447 = vadd.f32 %v8284, %v8446
        %v8448 = vpop.f32.mrb[0].mxu0
        %v8449 = vadd.f32 %v8286, %v8448
        %v8450 = vpop.f32.mrb[0].mxu0
        %v8451 = vadd.f32 %v8288, %v8450
        %v8452 = vpop.f32.mrb[0].mxu0
        %v8453 = vadd.f32 %v8290, %v8452
        %8454 = vmatprep.mubr.bf16.mxu0 %v6448
        %8455 = vmatmul.mubr.bf16.gmra.mrb[0].mxu0 %v6447
        %v8456 = vpop.f32.mrb[0].mxu0
        %v8457 = vadd.f32 %v8294, %v8456
        %v8458 = vpop.f32.mrb[0].mxu0
        %v8459 = vadd.f32 %v8296, %v8458
        %v8460 = vpop.f32.mrb[0].mxu0
        %v8461 = vadd.f32 %v8298, %v8460
        %v8462 = vpop.f32.mrb[0].mxu0
        %v8463 = vadd.f32 %v8300, %v8462
        %8464 = vmatprep.mubr.bf16.mxu0 %v6454
        %8465 = vmatmul.mubr.bf16.gmra.mrb[0].mxu0 %v6453
        %v8466 = vpop.f32.mrb[0].mxu0
        %v8467 = vadd.f32 %v8304, %v8466
        %v8468 = vpop.f32.mrb[0].mxu0
        %v8469 = vadd.f32 %v8306, %v8468
        %v8470 = vpop.f32.mrb[0].mxu0
        %v8471 = vadd.f32 %v8308, %v8470
        %v8472 = vpop.f32.mrb[0].mxu0
        %v8473 = vadd.f32 %v8310, %v8472
        %8474 = vmatprep.mubr.bf16.mxu0 %v6460
        %8475 = vmatmul.mubr.bf16.gmra.mrb[0].mxu0 %v6459
        %v8476 = vpop.f32.mrb[0].mxu0
        %v8477 = vadd.f32 %v8314, %v8476
        %v8478 = vpop.f32.mrb[0].mxu0
        %v8479 = vadd.f32 %v8316, %v8478
        %v8480 = vpop.f32.mrb[0].mxu0
        %v8481 = vadd.f32 %v8318, %v8480
        %v8482 = vpop.f32.mrb[0].mxu0
        %v8483 = vadd.f32 %v8320, %v8482
        %8484 = vmatprep.mubr.bf16.mxu0 %v6466
        %8485 = vmatmul.mubr.bf16.gmra.mrb[0].mxu0 %v6465
        %v8486 = vpop.f32.mrb[0].mxu0
        %v8487 = vadd.f32 %v8324, %v8486
        %v8488 = vpop.f32.mrb[0].mxu0
        %v8489 = vadd.f32 %v8326, %v8488
        %v8490 = vpop.f32.mrb[0].mxu0
        %v8491 = vadd.f32 %v8328, %v8490
        %v8492 = vpop.f32.mrb[0].mxu0
        %v8493 = vadd.f32 %v8330, %v8492
        %8494 = vmatprep.mubr.bf16.mxu0 %v6472
        %8495 = vmatmul.mubr.bf16.gmra.mrb[0].mxu0 %v6471
        %v8496 = vpop.f32.mrb[0].mxu0
        %v8497 = vadd.f32 %v8334, %v8496
        %v8498 = vpop.f32.mrb[0].mxu0
        %v8499 = vadd.f32 %v8336, %v8498
        %v8500 = vpop.f32.mrb[0].mxu0
        %v8501 = vadd.f32 %v8338, %v8500
        %v8502 = vpop.f32.mrb[0].mxu0
        %v8503 = vadd.f32 %v8340, %v8502
        %8504 = vmatprep.mubr.bf16.mxu0 %v6478
        %8505 = vmatmul.mubr.bf16.gmra.mrb[0].mxu0 %v6477
        %v8506 = vpop.f32.mrb[0].mxu0
        %v8507 = vadd.f32 %v8344, %v8506
        %v8508 = vpop.f32.mrb[0].mxu0
        %v8509 = vadd.f32 %v8346, %v8508
        %v8510 = vpop.f32.mrb[0].mxu0
        %v8511 = vadd.f32 %v8348, %v8510
        %v8512 = vpop.f32.mrb[0].mxu0
        %v8513 = vadd.f32 %v8350, %v8512
        %8514 = vmatprep.mubr.bf16.mxu0 %v6484
        %8515 = vmatmul.mubr.bf16.gmra.mrb[0].mxu0 %v6483
        %v8516 = vpop.f32.mrb[0].mxu0
        %v8517 = vadd.f32 %v8354, %v8516
        %v8518 = vpop.f32.mrb[0].mxu0
        %v8519 = vadd.f32 %v8356, %v8518
        %v8520 = vpop.f32.mrb[0].mxu0
        %v8521 = vadd.f32 %v8358, %v8520
        %v8522 = vpop.f32.mrb[0].mxu0
        %v8523 = vadd.f32 %v8360, %v8522
        %8524 = vmatprep.mubr.bf16.mxu0 %v6490
        %8525 = vmatmul.mubr.bf16.gmra.mrb[0].mxu0 %v6489
        %v8526 = vpop.f32.mrb[0].mxu0
        %v8527 = vadd.f32 %v8364, %v8526
        %v8528 = vpop.f32.mrb[0].mxu0
        %v8529 = vadd.f32 %v8366, %v8528
        %v8530 = vpop.f32.mrb[0].mxu0
        %v8531 = vadd.f32 %v8368, %v8530
        %v8532 = vpop.f32.mrb[0].mxu0
        %v8533 = vadd.f32 %v8370, %v8532
        %8534 = vmatprep.mubr.bf16.mxu0 %v6496
        %8535 = vmatmul.mubr.bf16.gmra.mrb[0].mxu0 %v6495
        %v8536 = vpop.f32.mrb[0].mxu0
        %v8537 = vadd.f32 %v8374, %v8536
        %v8538 = vpop.f32.mrb[0].mxu0
        %v8539 = vadd.f32 %v8376, %v8538
        %v8540 = vpop.f32.mrb[0].mxu0
        %v8541 = vadd.f32 %v8378, %v8540
        %v8542 = vpop.f32.mrb[0].mxu0
        %v8543 = vadd.f32 %v8380, %v8542
        %8544 = vmatprep.mubr.bf16.mxu0 %v6502
        %8545 = vmatmul.mubr.bf16.gmra.mrb[0].mxu0 %v6501
        %v8546 = vpop.f32.mrb[0].mxu0
        %v8547 = vadd.f32 %v8384, %v8546
        %v8548 = vpop.f32.mrb[0].mxu0
        %v8549 = vadd.f32 %v8386, %v8548
        %v8550 = vpop.f32.mrb[0].mxu0
        %v8551 = vadd.f32 %v8388, %v8550
        %v8552 = vpop.f32.mrb[0].mxu0
        %v8553 = vadd.f32 %v8390, %v8552
        %8554 = vmatprep.mubr.bf16.mxu0 %v6508
        %8555 = vmatmul.mubr.bf16.gmra.mrb[0].mxu0 %v6507
        %v8556 = vpop.f32.mrb[0].mxu0
        %v8557 = vadd.f32 %v8394, %v8556
        %v8558 = vpop.f32.mrb[0].mxu0
        %v8559 = vadd.f32 %v8396, %v8558
        %v8560 = vpop.f32.mrb[0].mxu0
        %v8561 = vadd.f32 %v8398, %v8560
        %v8562 = vpop.f32.mrb[0].mxu0
        %v8563 = vadd.f32 %v8400, %v8562
        %8564 = vdwg.mxu0
        %8565 = vmatprep.subr.bf16.mxu0 %v7856
        %8566 = vmatpush1.bf16.msra.mxu0 %v7855
        %8567 = vmatprep.subr.bf16.mxu0 %v7862
        %8568 = vmatpush1.bf16.msra.mxu0 %v7861
        %8569 = vmatprep.subr.bf16.mxu0 %v7868
        %8570 = vmatpush1.bf16.msra.mxu0 %v7867
        %8571 = vmatprep.subr.bf16.mxu0 %v7874
        %8572 = vmatpush1.bf16.msra.mxu0 %v7873
        %8573 = vmatprep.subr.bf16.mxu0 %v7880
        %8574 = vmatpush1.bf16.msra.mxu0 %v7879
        %8575 = vmatprep.subr.bf16.mxu0 %v7886
        %8576 = vmatpush1.bf16.msra.mxu0 %v7885
        %8577 = vmatprep.subr.bf16.mxu0 %v7892
        %8578 = vmatpush1.bf16.msra.mxu0 %v7891
        %8579 = vmatprep.subr.bf16.mxu0 %v7898
        %8580 = vmatpush1.bf16.msra.mxu0 %v7897
        %8581 = vmatprep.subr.bf16.mxu0 %v7904
        %8582 = vmatpush1.bf16.msra.mxu0 %v7903
        %8583 = vmatprep.subr.bf16.mxu0 %v7910
        %8584 = vmatpush1.bf16.msra.mxu0 %v7909
        %8585 = vmatprep.subr.bf16.mxu0 %v7916
        %8586 = vmatpush1.bf16.msra.mxu0 %v7915
        %8587 = vmatprep.subr.bf16.mxu0 %v7922
        %8588 = vmatpush1.bf16.msra.mxu0 %v7921
        %8589 = vmatprep.subr.bf16.mxu0 %v7928
        %8590 = vmatpush1.bf16.msra.mxu0 %v7927
        %8591 = vmatprep.subr.bf16.mxu0 %v7934
        %8592 = vmatpush1.bf16.msra.mxu0 %v7933
        %8593 = vmatprep.subr.bf16.mxu0 %v7940
        %8594 = vmatpush1.bf16.msra.mxu0 %v7939
        %8595 = vmatprep.subr.bf16.mxu0 %v7946
        %8596 = vmatpush1.bf16.msra.mxu0 %v7945
        %8597 = vmatprep.mubr.bf16.mxu0 %v6438
        %8598 = vmatmul.mubr.bf16.gmra.mrb[0].mxu0 %v6437
        %v8599 = vpop.f32.mrb[0].mxu0
        %v8600 = vadd.f32 %v8437, %v8599
        %v8601 = vpop.f32.mrb[0].mxu0
        %v8602 = vadd.f32 %v8439, %v8601
        %v8603 = vpop.f32.mrb[0].mxu0
        %v8604 = vadd.f32 %v8441, %v8603
        %v8605 = vpop.f32.mrb[0].mxu0
        %v8606 = vadd.f32 %v8443, %v8605
        %8607 = vmatprep.mubr.bf16.mxu0 %v6444
        %8608 = vmatmul.mubr.bf16.gmra.mrb[0].mxu0 %v6443
        %v8609 = vpop.f32.mrb[0].mxu0
        %v8610 = vadd.f32 %v8447, %v8609
        %v8611 = vpop.f32.mrb[0].mxu0
        %v8612 = vadd.f32 %v8449, %v8611
        %v8613 = vpop.f32.mrb[0].mxu0
        %v8614 = vadd.f32 %v8451, %v8613
        %v8615 = vpop.f32.mrb[0].mxu0
        %v8616 = vadd.f32 %v8453, %v8615
        %8617 = vmatprep.mubr.bf16.mxu0 %v6450
        %8618 = vmatmul.mubr.bf16.gmra.mrb[0].mxu0 %v6449
        %v8619 = vpop.f32.mrb[0].mxu0
        %v8620 = vadd.f32 %v8457, %v8619
        %v8621 = vpop.f32.mrb[0].mxu0
        %v8622 = vadd.f32 %v8459, %v8621
        %v8623 = vpop.f32.mrb[0].mxu0
        %v8624 = vadd.f32 %v8461, %v8623
        %v8625 = vpop.f32.mrb[0].mxu0
        %v8626 = vadd.f32 %v8463, %v8625
        %8627 = vmatprep.mubr.bf16.mxu0 %v6456
        %8628 = vmatmul.mubr.bf16.gmra.mrb[0].mxu0 %v6455
        %v8629 = vpop.f32.mrb[0].mxu0
        %v8630 = vadd.f32 %v8467, %v8629
        %v8631 = vpop.f32.mrb[0].mxu0
        %v8632 = vadd.f32 %v8469, %v8631
        %v8633 = vpop.f32.mrb[0].mxu0
        %v8634 = vadd.f32 %v8471, %v8633
        %v8635 = vpop.f32.mrb[0].mxu0
        %v8636 = vadd.f32 %v8473, %v8635
        %8637 = vmatprep.mubr.bf16.mxu0 %v6462
        %8638 = vmatmul.mubr.bf16.gmra.mrb[0].mxu0 %v6461
        %v8639 = vpop.f32.mrb[0].mxu0
        %v8640 = vadd.f32 %v8477, %v8639
        %v8641 = vpop.f32.mrb[0].mxu0
        %v8642 = vadd.f32 %v8479, %v8641
        %v8643 = vpop.f32.mrb[0].mxu0
        %v8644 = vadd.f32 %v8481, %v8643
        %v8645 = vpop.f32.mrb[0].mxu0
        %v8646 = vadd.f32 %v8483, %v8645
        %8647 = vmatprep.mubr.bf16.mxu0 %v6468
        %8648 = vmatmul.mubr.bf16.gmra.mrb[0].mxu0 %v6467
        %v8649 = vpop.f32.mrb[0].mxu0
        %v8650 = vadd.f32 %v8487, %v8649
        %v8651 = vpop.f32.mrb[0].mxu0
        %v8652 = vadd.f32 %v8489, %v8651
        %v8653 = vpop.f32.mrb[0].mxu0
        %v8654 = vadd.f32 %v8491, %v8653
        %v8655 = vpop.f32.mrb[0].mxu0
        %v8656 = vadd.f32 %v8493, %v8655
        %8657 = vmatprep.mubr.bf16.mxu0 %v6474
        %8658 = vmatmul.mubr.bf16.gmra.mrb[0].mxu0 %v6473
        %v8659 = vpop.f32.mrb[0].mxu0
        %v8660 = vadd.f32 %v8497, %v8659
        %v8661 = vpop.f32.mrb[0].mxu0
        %v8662 = vadd.f32 %v8499, %v8661
        %v8663 = vpop.f32.mrb[0].mxu0
        %v8664 = vadd.f32 %v8501, %v8663
        %v8665 = vpop.f32.mrb[0].mxu0
        %v8666 = vadd.f32 %v8503, %v8665
        %8667 = vmatprep.mubr.bf16.mxu0 %v6480
        %8668 = vmatmul.mubr.bf16.gmra.mrb[0].mxu0 %v6479
        %v8669 = vpop.f32.mrb[0].mxu0
        %v8670 = vadd.f32 %v8507, %v8669
        %v8671 = vpop.f32.mrb[0].mxu0
        %v8672 = vadd.f32 %v8509, %v8671
        %v8673 = vpop.f32.mrb[0].mxu0
        %v8674 = vadd.f32 %v8511, %v8673
        %v8675 = vpop.f32.mrb[0].mxu0
        %v8676 = vadd.f32 %v8513, %v8675
        %8677 = vmatprep.mubr.bf16.mxu0 %v6486
        %8678 = vmatmul.mubr.bf16.gmra.mrb[0].mxu0 %v6485
        %v8679 = vpop.f32.mrb[0].mxu0
        %v8680 = vadd.f32 %v8517, %v8679
        %v8681 = vpop.f32.mrb[0].mxu0
        %v8682 = vadd.f32 %v8519, %v8681
        %v8683 = vpop.f32.mrb[0].mxu0
        %v8684 = vadd.f32 %v8521, %v8683
        %v8685 = vpop.f32.mrb[0].mxu0
        %v8686 = vadd.f32 %v8523, %v8685
        %8687 = vmatprep.mubr.bf16.mxu0 %v6492
        %8688 = vmatmul.mubr.bf16.gmra.mrb[0].mxu0 %v6491
        %v8689 = vpop.f32.mrb[0].mxu0
        %v8690 = vadd.f32 %v8527, %v8689
        %v8691 = vpop.f32.mrb[0].mxu0
        %v8692 = vadd.f32 %v8529, %v8691
        %v8693 = vpop.f32.mrb[0].mxu0
        %v8694 = vadd.f32 %v8531, %v8693
        %v8695 = vpop.f32.mrb[0].mxu0
        %v8696 = vadd.f32 %v8533, %v8695
        %8697 = vmatprep.mubr.bf16.mxu0 %v6498
        %8698 = vmatmul.mubr.bf16.gmra.mrb[0].mxu0 %v6497
        %v8699 = vpop.f32.mrb[0].mxu0
        %v8700 = vadd.f32 %v8537, %v8699
        %v8701 = vpop.f32.mrb[0].mxu0
        %v8702 = vadd.f32 %v8539, %v8701
        %v8703 = vpop.f32.mrb[0].mxu0
        %v8704 = vadd.f32 %v8541, %v8703
        %v8705 = vpop.f32.mrb[0].mxu0
        %v8706 = vadd.f32 %v8543, %v8705
        %8707 = vmatprep.mubr.bf16.mxu0 %v6504
        %8708 = vmatmul.mubr.bf16.gmra.mrb[0].mxu0 %v6503
        %v8709 = vpop.f32.mrb[0].mxu0
        %v8710 = vadd.f32 %v8547, %v8709
        %v8711 = vpop.f32.mrb[0].mxu0
        %v8712 = vadd.f32 %v8549, %v8711
        %v8713 = vpop.f32.mrb[0].mxu0
        %v8714 = vadd.f32 %v8551, %v8713
        %v8715 = vpop.f32.mrb[0].mxu0
        %v8716 = vadd.f32 %v8553, %v8715
        %8717 = vmatprep.mubr.bf16.mxu0 %v6510
        %8718 = vmatmul.mubr.bf16.gmra.mrb[0].mxu0 %v6509
        %v8719 = vpop.f32.mrb[0].mxu0
        %v8720 = vadd.f32 %v8557, %v8719
        %v8721 = vpop.f32.mrb[0].mxu0
        %v8722 = vadd.f32 %v8559, %v8721
        %v8723 = vpop.f32.mrb[0].mxu0
        %v8724 = vadd.f32 %v8561, %v8723
        %v8725 = vpop.f32.mrb[0].mxu0
        %v8726 = vadd.f32 %v8563, %v8725
        %8727 = vdwg.mxu0
        %8728 = vmatprep.subr.bf16.mxu0 %v7666
        %8729 = vmatpush1.bf16.msra.mxu0 %v7665
        %8730 = vmatprep.subr.bf16.mxu0 %v7672
        %8731 = vmatpush1.bf16.msra.mxu0 %v7671
        %8732 = vmatprep.subr.bf16.mxu0 %v7678
        %8733 = vmatpush1.bf16.msra.mxu0 %v7677
        %8734 = vmatprep.subr.bf16.mxu0 %v7684
        %8735 = vmatpush1.bf16.msra.mxu0 %v7683
        %8736 = vmatprep.subr.bf16.mxu0 %v7690
        %8737 = vmatpush1.bf16.msra.mxu0 %v7689
        %8738 = vmatprep.subr.bf16.mxu0 %v7696
        %8739 = vmatpush1.bf16.msra.mxu0 %v7695
        %8740 = vmatprep.subr.bf16.mxu0 %v7702
        %8741 = vmatpush1.bf16.msra.mxu0 %v7701
        %8742 = vmatprep.subr.bf16.mxu0 %v7708
        %8743 = vmatpush1.bf16.msra.mxu0 %v7707
        %8744 = vmatprep.subr.bf16.mxu0 %v7714
        %8745 = vmatpush1.bf16.msra.mxu0 %v7713
        %8746 = vmatprep.subr.bf16.mxu0 %v7720
        %8747 = vmatpush1.bf16.msra.mxu0 %v7719
        %8748 = vmatprep.subr.bf16.mxu0 %v7726
        %8749 = vmatpush1.bf16.msra.mxu0 %v7725
        %8750 = vmatprep.subr.bf16.mxu0 %v7732
        %8751 = vmatpush1.bf16.msra.mxu0 %v7731
        %8752 = vmatprep.subr.bf16.mxu0 %v7738
        %8753 = vmatpush1.bf16.msra.mxu0 %v7737
        %8754 = vmatprep.subr.bf16.mxu0 %v7744
        %8755 = vmatpush1.bf16.msra.mxu0 %v7743
        %8756 = vmatprep.subr.bf16.mxu0 %v7750
        %8757 = vmatpush1.bf16.msra.mxu0 %v7749
        %8758 = vmatprep.subr.bf16.mxu0 %v7756
        %8759 = vmatpush1.bf16.msra.mxu0 %v7755
        %8760 = vmatprep.mubr.bf16.mxu0 %v6434
        %8761 = vmatmul.mubr.bf16.gmra.mrb[0].mxu0 %v6433
        %v8762 = vpop.f32.mrb[0].mxu0
        %v8763 = vadd.f32 0.0, %v8762
        %v8764 = vpop.f32.mrb[0].mxu0
        %v8765 = vadd.f32 0.0, %v8764
        %v8766 = vpop.f32.mrb[0].mxu0
        %v8767 = vadd.f32 0.0, %v8766
        %v8768 = vpop.f32.mrb[0].mxu0
        %v8769 = vadd.f32 0.0, %v8768
        %8770 = vmatprep.mubr.bf16.mxu0 %v6440
        %8771 = vmatmul.mubr.bf16.gmra.mrb[0].mxu0 %v6439
        %v8772 = vpop.f32.mrb[0].mxu0
        %v8773 = vadd.f32 0.0, %v8772
        %v8774 = vpop.f32.mrb[0].mxu0
        %v8775 = vadd.f32 0.0, %v8774
        %v8776 = vpop.f32.mrb[0].mxu0
        %v8777 = vadd.f32 0.0, %v8776
        %v8778 = vpop.f32.mrb[0].mxu0
        %v8779 = vadd.f32 0.0, %v8778
        %8780 = vmatprep.mubr.bf16.mxu0 %v6446
        %8781 = vmatmul.mubr.bf16.gmra.mrb[0].mxu0 %v6445
        %v8782 = vpop.f32.mrb[0].mxu0
        %v8783 = vadd.f32 0.0, %v8782
        %v8784 = vpop.f32.mrb[0].mxu0
        %v8785 = vadd.f32 0.0, %v8784
        %v8786 = vpop.f32.mrb[0].mxu0
        %v8787 = vadd.f32 0.0, %v8786
        %v8788 = vpop.f32.mrb[0].mxu0
        %v8789 = vadd.f32 0.0, %v8788
        %8790 = vmatprep.mubr.bf16.mxu0 %v6452
        %8791 = vmatmul.mubr.bf16.gmra.mrb[0].mxu0 %v6451
        %v8792 = vpop.f32.mrb[0].mxu0
        %v8793 = vadd.f32 0.0, %v8792
        %v8794 = vpop.f32.mrb[0].mxu0
        %v8795 = vadd.f32 0.0, %v8794
        %v8796 = vpop.f32.mrb[0].mxu0
        %v8797 = vadd.f32 0.0, %v8796
        %v8798 = vpop.f32.mrb[0].mxu0
        %v8799 = vadd.f32 0.0, %v8798
        %8800 = vmatprep.mubr.bf16.mxu0 %v6458
        %8801 = vmatmul.mubr.bf16.gmra.mrb[0].mxu0 %v6457
        %v8802 = vpop.f32.mrb[0].mxu0
        %v8803 = vadd.f32 0.0, %v8802
        %v8804 = vpop.f32.mrb[0].mxu0
        %v8805 = vadd.f32 0.0, %v8804
        %v8806 = vpop.f32.mrb[0].mxu0
        %v8807 = vadd.f32 0.0, %v8806
        %v8808 = vpop.f32.mrb[0].mxu0
        %v8809 = vadd.f32 0.0, %v8808
        %8810 = vmatprep.mubr.bf16.mxu0 %v6464
        %8811 = vmatmul.mubr.bf16.gmra.mrb[0].mxu0 %v6463
        %v8812 = vpop.f32.mrb[0].mxu0
        %v8813 = vadd.f32 0.0, %v8812
        %v8814 = vpop.f32.mrb[0].mxu0
        %v8815 = vadd.f32 0.0, %v8814
        %v8816 = vpop.f32.mrb[0].mxu0
        %v8817 = vadd.f32 0.0, %v8816
        %v8818 = vpop.f32.mrb[0].mxu0
        %v8819 = vadd.f32 0.0, %v8818
        %8820 = vmatprep.mubr.bf16.mxu0 %v6470
        %8821 = vmatmul.mubr.bf16.gmra.mrb[0].mxu0 %v6469
        %v8822 = vpop.f32.mrb[0].mxu0
        %v8823 = vadd.f32 0.0, %v8822
        %v8824 = vpop.f32.mrb[0].mxu0
        %v8825 = vadd.f32 0.0, %v8824
        %v8826 = vpop.f32.mrb[0].mxu0
        %v8827 = vadd.f32 0.0, %v8826
        %v8828 = vpop.f32.mrb[0].mxu0
        %v8829 = vadd.f32 0.0, %v8828
        %8830 = vmatprep.mubr.bf16.mxu0 %v6476
        %8831 = vmatmul.mubr.bf16.gmra.mrb[0].mxu0 %v6475
        %v8832 = vpop.f32.mrb[0].mxu0
        %v8833 = vadd.f32 0.0, %v8832
        %v8834 = vpop.f32.mrb[0].mxu0
        %v8835 = vadd.f32 0.0, %v8834
        %v8836 = vpop.f32.mrb[0].mxu0
        %v8837 = vadd.f32 0.0, %v8836
        %v8838 = vpop.f32.mrb[0].mxu0
        %v8839 = vadd.f32 0.0, %v8838
        %8840 = vmatprep.mubr.bf16.mxu0 %v6482
        %8841 = vmatmul.mubr.bf16.gmra.mrb[0].mxu0 %v6481
        %v8842 = vpop.f32.mrb[0].mxu0
        %v8843 = vadd.f32 0.0, %v8842
        %v8844 = vpop.f32.mrb[0].mxu0
        %v8845 = vadd.f32 0.0, %v8844
        %v8846 = vpop.f32.mrb[0].mxu0
        %v8847 = vadd.f32 0.0, %v8846
        %v8848 = vpop.f32.mrb[0].mxu0
        %v8849 = vadd.f32 0.0, %v8848
        %8850 = vmatprep.mubr.bf16.mxu0 %v6488
        %8851 = vmatmul.mubr.bf16.gmra.mrb[0].mxu0 %v6487
        %v8852 = vpop.f32.mrb[0].mxu0
        %v8853 = vadd.f32 0.0, %v8852
        %v8854 = vpop.f32.mrb[0].mxu0
        %v8855 = vadd.f32 0.0, %v8854
        %v8856 = vpop.f32.mrb[0].mxu0
        %v8857 = vadd.f32 0.0, %v8856
        %v8858 = vpop.f32.mrb[0].mxu0
        %v8859 = vadd.f32 0.0, %v8858
        %8860 = vmatprep.mubr.bf16.mxu0 %v6494
        %8861 = vmatmul.mubr.bf16.gmra.mrb[0].mxu0 %v6493
        %v8862 = vpop.f32.mrb[0].mxu0
        %v8863 = vadd.f32 0.0, %v8862
        %v8864 = vpop.f32.mrb[0].mxu0
        %v8865 = vadd.f32 0.0, %v8864
        %v8866 = vpop.f32.mrb[0].mxu0
        %v8867 = vadd.f32 0.0, %v8866
        %v8868 = vpop.f32.mrb[0].mxu0
        %v8869 = vadd.f32 0.0, %v8868
        %8870 = vmatprep.mubr.bf16.mxu0 %v6500
        %8871 = vmatmul.mubr.bf16.gmra.mrb[0].mxu0 %v6499
        %v8872 = vpop.f32.mrb[0].mxu0
        %v8873 = vadd.f32 0.0, %v8872
        %v8874 = vpop.f32.mrb[0].mxu0
        %v8875 = vadd.f32 0.0, %v8874
        %v8876 = vpop.f32.mrb[0].mxu0
        %v8877 = vadd.f32 0.0, %v8876
        %v8878 = vpop.f32.mrb[0].mxu0
        %v8879 = vadd.f32 0.0, %v8878
        %8880 = vmatprep.mubr.bf16.mxu0 %v6506
        %8881 = vmatmul.mubr.bf16.gmra.mrb[0].mxu0 %v6505
        %v8882 = vpop.f32.mrb[0].mxu0
        %v8883 = vadd.f32 0.0, %v8882
        %v8884 = vpop.f32.mrb[0].mxu0
        %v8885 = vadd.f32 0.0, %v8884
        %v8886 = vpop.f32.mrb[0].mxu0
        %v8887 = vadd.f32 0.0, %v8886
        %v8888 = vpop.f32.mrb[0].mxu0
        %v8889 = vadd.f32 0.0, %v8888
        %8890 = vdwg.mxu0
        %8891 = vmatprep.subr.bf16.mxu0 %v7762
        %8892 = vmatpush1.bf16.msra.mxu0 %v7761
        %8893 = vmatprep.subr.bf16.mxu0 %v7768
        %8894 = vmatpush1.bf16.msra.mxu0 %v7767
        %8895 = vmatprep.subr.bf16.mxu0 %v7774
        %8896 = vmatpush1.bf16.msra.mxu0 %v7773
        %8897 = vmatprep.subr.bf16.mxu0 %v7780
        %8898 = vmatpush1.bf16.msra.mxu0 %v7779
        %8899 = vmatprep.subr.bf16.mxu0 %v7786
        %8900 = vmatpush1.bf16.msra.mxu0 %v7785
        %8901 = vmatprep.subr.bf16.mxu0 %v7792
        %8902 = vmatpush1.bf16.msra.mxu0 %v7791
        %8903 = vmatprep.subr.bf16.mxu0 %v7798
        %8904 = vmatpush1.bf16.msra.mxu0 %v7797
        %8905 = vmatprep.subr.bf16.mxu0 %v7804
        %8906 = vmatpush1.bf16.msra.mxu0 %v7803
        %8907 = vmatprep.subr.bf16.mxu0 %v7810
        %8908 = vmatpush1.bf16.msra.mxu0 %v7809
        %8909 = vmatprep.subr.bf16.mxu0 %v7816
        %8910 = vmatpush1.bf16.msra.mxu0 %v7815
        %8911 = vmatprep.subr.bf16.mxu0 %v7822
        %8912 = vmatpush1.bf16.msra.mxu0 %v7821
        %8913 = vmatprep.subr.bf16.mxu0 %v7828
        %8914 = vmatpush1.bf16.msra.mxu0 %v7827
        %8915 = vmatprep.subr.bf16.mxu0 %v7834
        %8916 = vmatpush1.bf16.msra.mxu0 %v7833
        %8917 = vmatprep.subr.bf16.mxu0 %v7840
        %8918 = vmatpush1.bf16.msra.mxu0 %v7839
        %8919 = vmatprep.subr.bf16.mxu0 %v7846
        %8920 = vmatpush1.bf16.msra.mxu0 %v7845
        %8921 = vmatprep.subr.bf16.mxu0 %v7852
        %8922 = vmatpush1.bf16.msra.mxu0 %v7851
        %8923 = vmatprep.mubr.bf16.mxu0 %v6436
        %8924 = vmatmul.mubr.bf16.gmra.mrb[0].mxu0 %v6435
        %v8925 = vpop.f32.mrb[0].mxu0
        %v8926 = vadd.f32 %v8763, %v8925
        %v8927 = vpop.f32.mrb[0].mxu0
        %v8928 = vadd.f32 %v8765, %v8927
        %v8929 = vpop.f32.mrb[0].mxu0
        %v8930 = vadd.f32 %v8767, %v8929
        %v8931 = vpop.f32.mrb[0].mxu0
        %v8932 = vadd.f32 %v8769, %v8931
        %8933 = vmatprep.mubr.bf16.mxu0 %v6442
        %8934 = vmatmul.mubr.bf16.gmra.mrb[0].mxu0 %v6441
        %v8935 = vpop.f32.mrb[0].mxu0
        %v8936 = vadd.f32 %v8773, %v8935
        %v8937 = vpop.f32.mrb[0].mxu0
        %v8938 = vadd.f32 %v8775, %v8937
        %v8939 = vpop.f32.mrb[0].mxu0
        %v8940 = vadd.f32 %v8777, %v8939
        %v8941 = vpop.f32.mrb[0].mxu0
        %v8942 = vadd.f32 %v8779, %v8941
        %8943 = vmatprep.mubr.bf16.mxu0 %v6448
        %8944 = vmatmul.mubr.bf16.gmra.mrb[0].mxu0 %v6447
        %v8945 = vpop.f32.mrb[0].mxu0
        %v8946 = vadd.f32 %v8783, %v8945
        %v8947 = vpop.f32.mrb[0].mxu0
        %v8948 = vadd.f32 %v8785, %v8947
        %v8949 = vpop.f32.mrb[0].mxu0
        %v8950 = vadd.f32 %v8787, %v8949
        %v8951 = vpop.f32.mrb[0].mxu0
        %v8952 = vadd.f32 %v8789, %v8951
        %8953 = vmatprep.mubr.bf16.mxu0 %v6454
        %8954 = vmatmul.mubr.bf16.gmra.mrb[0].mxu0 %v6453
        %v8955 = vpop.f32.mrb[0].mxu0
        %v8956 = vadd.f32 %v8793, %v8955
        %v8957 = vpop.f32.mrb[0].mxu0
        %v8958 = vadd.f32 %v8795, %v8957
        %v8959 = vpop.f32.mrb[0].mxu0
        %v8960 = vadd.f32 %v8797, %v8959
        %v8961 = vpop.f32.mrb[0].mxu0
        %v8962 = vadd.f32 %v8799, %v8961
        %8963 = vmatprep.mubr.bf16.mxu0 %v6460
        %8964 = vmatmul.mubr.bf16.gmra.mrb[0].mxu0 %v6459
        %v8965 = vpop.f32.mrb[0].mxu0
        %v8966 = vadd.f32 %v8803, %v8965
        %v8967 = vpop.f32.mrb[0].mxu0
        %v8968 = vadd.f32 %v8805, %v8967
        %v8969 = vpop.f32.mrb[0].mxu0
        %v8970 = vadd.f32 %v8807, %v8969
        %v8971 = vpop.f32.mrb[0].mxu0
        %v8972 = vadd.f32 %v8809, %v8971
        %8973 = vmatprep.mubr.bf16.mxu0 %v6466
        %8974 = vmatmul.mubr.bf16.gmra.mrb[0].mxu0 %v6465
        %v8975 = vpop.f32.mrb[0].mxu0
        %v8976 = vadd.f32 %v8813, %v8975
        %v8977 = vpop.f32.mrb[0].mxu0
        %v8978 = vadd.f32 %v8815, %v8977
        %v8979 = vpop.f32.mrb[0].mxu0
        %v8980 = vadd.f32 %v8817, %v8979
        %v8981 = vpop.f32.mrb[0].mxu0
        %v8982 = vadd.f32 %v8819, %v8981
        %8983 = vmatprep.mubr.bf16.mxu0 %v6472
        %8984 = vmatmul.mubr.bf16.gmra.mrb[0].mxu0 %v6471
        %v8985 = vpop.f32.mrb[0].mxu0
        %v8986 = vadd.f32 %v8823, %v8985
        %v8987 = vpop.f32.mrb[0].mxu0
        %v8988 = vadd.f32 %v8825, %v8987
        %v8989 = vpop.f32.mrb[0].mxu0
        %v8990 = vadd.f32 %v8827, %v8989
        %v8991 = vpop.f32.mrb[0].mxu0
        %v8992 = vadd.f32 %v8829, %v8991
        %8993 = vmatprep.mubr.bf16.mxu0 %v6478
        %8994 = vmatmul.mubr.bf16.gmra.mrb[0].mxu0 %v6477
        %v8995 = vpop.f32.mrb[0].mxu0
        %v8996 = vadd.f32 %v8833, %v8995
        %v8997 = vpop.f32.mrb[0].mxu0
        %v8998 = vadd.f32 %v8835, %v8997
        %v8999 = vpop.f32.mrb[0].mxu0
        %v9000 = vadd.f32 %v8837, %v8999
        %v9001 = vpop.f32.mrb[0].mxu0
        %v9002 = vadd.f32 %v8839, %v9001
        %9003 = vmatprep.mubr.bf16.mxu0 %v6484
        %9004 = vmatmul.mubr.bf16.gmra.mrb[0].mxu0 %v6483
        %v9005 = vpop.f32.mrb[0].mxu0
        %v9006 = vadd.f32 %v8843, %v9005
        %v9007 = vpop.f32.mrb[0].mxu0
        %v9008 = vadd.f32 %v8845, %v9007
        %v9009 = vpop.f32.mrb[0].mxu0
        %v9010 = vadd.f32 %v8847, %v9009
        %v9011 = vpop.f32.mrb[0].mxu0
        %v9012 = vadd.f32 %v8849, %v9011
        %9013 = vmatprep.mubr.bf16.mxu0 %v6490
        %9014 = vmatmul.mubr.bf16.gmra.mrb[0].mxu0 %v6489
        %v9015 = vpop.f32.mrb[0].mxu0
        %v9016 = vadd.f32 %v8853, %v9015
        %v9017 = vpop.f32.mrb[0].mxu0
        %v9018 = vadd.f32 %v8855, %v9017
        %v9019 = vpop.f32.mrb[0].mxu0
        %v9020 = vadd.f32 %v8857, %v9019
        %v9021 = vpop.f32.mrb[0].mxu0
        %v9022 = vadd.f32 %v8859, %v9021
        %9023 = vmatprep.mubr.bf16.mxu0 %v6496
        %9024 = vmatmul.mubr.bf16.gmra.mrb[0].mxu0 %v6495
        %v9025 = vpop.f32.mrb[0].mxu0
        %v9026 = vadd.f32 %v8863, %v9025
        %v9027 = vpop.f32.mrb[0].mxu0
        %v9028 = vadd.f32 %v8865, %v9027
        %v9029 = vpop.f32.mrb[0].mxu0
        %v9030 = vadd.f32 %v8867, %v9029
        %v9031 = vpop.f32.mrb[0].mxu0
        %v9032 = vadd.f32 %v8869, %v9031
        %9033 = vmatprep.mubr.bf16.mxu0 %v6502
        %9034 = vmatmul.mubr.bf16.gmra.mrb[0].mxu0 %v6501
        %v9035 = vpop.f32.mrb[0].mxu0
        %v9036 = vadd.f32 %v8873, %v9035
        %v9037 = vpop.f32.mrb[0].mxu0
        %v9038 = vadd.f32 %v8875, %v9037
        %v9039 = vpop.f32.mrb[0].mxu0
        %v9040 = vadd.f32 %v8877, %v9039
        %v9041 = vpop.f32.mrb[0].mxu0
        %v9042 = vadd.f32 %v8879, %v9041
        %9043 = vmatprep.mubr.bf16.mxu0 %v6508
        %9044 = vmatmul.mubr.bf16.gmra.mrb[0].mxu0 %v6507
        %v9045 = vpop.f32.mrb[0].mxu0
        %v9046 = vadd.f32 %v8883, %v9045
        %v9047 = vpop.f32.mrb[0].mxu0
        %v9048 = vadd.f32 %v8885, %v9047
        %v9049 = vpop.f32.mrb[0].mxu0
        %v9050 = vadd.f32 %v8887, %v9049
        %v9051 = vpop.f32.mrb[0].mxu0
        %v9052 = vadd.f32 %v8889, %v9051
        %9053 = vdwg.mxu0
        %9054 = vmatprep.subr.bf16.mxu0 %v7858
        %9055 = vmatpush1.bf16.msra.mxu0 %v7857
        %9056 = vmatprep.subr.bf16.mxu0 %v7864
        %9057 = vmatpush1.bf16.msra.mxu0 %v7863
        %9058 = vmatprep.subr.bf16.mxu0 %v7870
        %9059 = vmatpush1.bf16.msra.mxu0 %v7869
        %9060 = vmatprep.subr.bf16.mxu0 %v7876
        %9061 = vmatpush1.bf16.msra.mxu0 %v7875
        %9062 = vmatprep.subr.bf16.mxu0 %v7882
        %9063 = vmatpush1.bf16.msra.mxu0 %v7881
        %9064 = vmatprep.subr.bf16.mxu0 %v7888
        %9065 = vmatpush1.bf16.msra.mxu0 %v7887
        %9066 = vmatprep.subr.bf16.mxu0 %v7894
        %9067 = vmatpush1.bf16.msra.mxu0 %v7893
        %9068 = vmatprep.subr.bf16.mxu0 %v7900
        %9069 = vmatpush1.bf16.msra.mxu0 %v7899
        %9070 = vmatprep.subr.bf16.mxu0 %v7906
        %9071 = vmatpush1.bf16.msra.mxu0 %v7905
        %9072 = vmatprep.subr.bf16.mxu0 %v7912
        %9073 = vmatpush1.bf16.msra.mxu0 %v7911
        %9074 = vmatprep.subr.bf16.mxu0 %v7918
        %9075 = vmatpush1.bf16.msra.mxu0 %v7917
        %9076 = vmatprep.subr.bf16.mxu0 %v7924
        %9077 = vmatpush1.bf16.msra.mxu0 %v7923
        %9078 = vmatprep.subr.bf16.mxu0 %v7930
        %9079 = vmatpush1.bf16.msra.mxu0 %v7929
        %9080 = vmatprep.subr.bf16.mxu0 %v7936
        %9081 = vmatpush1.bf16.msra.mxu0 %v7935
        %9082 = vmatprep.subr.bf16.mxu0 %v7942
        %9083 = vmatpush1.bf16.msra.mxu0 %v7941
        %9084 = vmatprep.subr.bf16.mxu0 %v7948
        %9085 = vmatpush1.bf16.msra.mxu0 %v7947
        %9086 = vmatprep.mubr.bf16.mxu0 %v6438
        %9087 = vmatmul.mubr.bf16.gmra.mrb[0].mxu0 %v6437
        %v9088 = vpop.f32.mrb[0].mxu0
        %v9089 = vadd.f32 %v8926, %v9088
        %v9090 = vpop.f32.mrb[0].mxu0
        %v9091 = vadd.f32 %v8928, %v9090
        %v9092 = vpop.f32.mrb[0].mxu0
        %v9093 = vadd.f32 %v8930, %v9092
        %v9094 = vpop.f32.mrb[0].mxu0
        %v9095 = vadd.f32 %v8932, %v9094
        %9096 = vmatprep.mubr.bf16.mxu0 %v6444
        %9097 = vmatmul.mubr.bf16.gmra.mrb[0].mxu0 %v6443
        %v9098 = vpop.f32.mrb[0].mxu0
        %v9099 = vadd.f32 %v8936, %v9098
        %v9100 = vpop.f32.mrb[0].mxu0
        %v9101 = vadd.f32 %v8938, %v9100
        %v9102 = vpop.f32.mrb[0].mxu0
        %v9103 = vadd.f32 %v8940, %v9102
        %v9104 = vpop.f32.mrb[0].mxu0
        %v9105 = vadd.f32 %v8942, %v9104
        %9106 = vmatprep.mubr.bf16.mxu0 %v6450
        %9107 = vmatmul.mubr.bf16.gmra.mrb[0].mxu0 %v6449
        %v9108 = vpop.f32.mrb[0].mxu0
        %v9109 = vadd.f32 %v8946, %v9108
        %v9110 = vpop.f32.mrb[0].mxu0
        %v9111 = vadd.f32 %v8948, %v9110
        %v9112 = vpop.f32.mrb[0].mxu0
        %v9113 = vadd.f32 %v8950, %v9112
        %v9114 = vpop.f32.mrb[0].mxu0
        %v9115 = vadd.f32 %v8952, %v9114
        %9116 = vmatprep.mubr.bf16.mxu0 %v6456
        %9117 = vmatmul.mubr.bf16.gmra.mrb[0].mxu0 %v6455
        %v9118 = vpop.f32.mrb[0].mxu0
        %v9119 = vadd.f32 %v8956, %v9118
        %v9120 = vpop.f32.mrb[0].mxu0
        %v9121 = vadd.f32 %v8958, %v9120
        %v9122 = vpop.f32.mrb[0].mxu0
        %v9123 = vadd.f32 %v8960, %v9122
        %v9124 = vpop.f32.mrb[0].mxu0
        %v9125 = vadd.f32 %v8962, %v9124
        %9126 = vmatprep.mubr.bf16.mxu0 %v6462
        %9127 = vmatmul.mubr.bf16.gmra.mrb[0].mxu0 %v6461
        %v9128 = vpop.f32.mrb[0].mxu0
        %v9129 = vadd.f32 %v8966, %v9128
        %v9130 = vpop.f32.mrb[0].mxu0
        %v9131 = vadd.f32 %v8968, %v9130
        %v9132 = vpop.f32.mrb[0].mxu0
        %v9133 = vadd.f32 %v8970, %v9132
        %v9134 = vpop.f32.mrb[0].mxu0
        %v9135 = vadd.f32 %v8972, %v9134
        %9136 = vmatprep.mubr.bf16.mxu0 %v6468
        %9137 = vmatmul.mubr.bf16.gmra.mrb[0].mxu0 %v6467
        %v9138 = vpop.f32.mrb[0].mxu0
        %v9139 = vadd.f32 %v8976, %v9138
        %v9140 = vpop.f32.mrb[0].mxu0
        %v9141 = vadd.f32 %v8978, %v9140
        %v9142 = vpop.f32.mrb[0].mxu0
        %v9143 = vadd.f32 %v8980, %v9142
        %v9144 = vpop.f32.mrb[0].mxu0
        %v9145 = vadd.f32 %v8982, %v9144
        %9146 = vmatprep.mubr.bf16.mxu0 %v6474
        %9147 = vmatmul.mubr.bf16.gmra.mrb[0].mxu0 %v6473
        %v9148 = vpop.f32.mrb[0].mxu0
        %v9149 = vadd.f32 %v8986, %v9148
        %v9150 = vpop.f32.mrb[0].mxu0
        %v9151 = vadd.f32 %v8988, %v9150
        %v9152 = vpop.f32.mrb[0].mxu0
        %v9153 = vadd.f32 %v8990, %v9152
        %v9154 = vpop.f32.mrb[0].mxu0
        %v9155 = vadd.f32 %v8992, %v9154
        %9156 = vmatprep.mubr.bf16.mxu0 %v6480
        %9157 = vmatmul.mubr.bf16.gmra.mrb[0].mxu0 %v6479
        %v9158 = vpop.f32.mrb[0].mxu0
        %v9159 = vadd.f32 %v8996, %v9158
        %v9160 = vpop.f32.mrb[0].mxu0
        %v9161 = vadd.f32 %v8998, %v9160
        %v9162 = vpop.f32.mrb[0].mxu0
        %v9163 = vadd.f32 %v9000, %v9162
        %v9164 = vpop.f32.mrb[0].mxu0
        %v9165 = vadd.f32 %v9002, %v9164
        %9166 = vmatprep.mubr.bf16.mxu0 %v6486
        %9167 = vmatmul.mubr.bf16.gmra.mrb[0].mxu0 %v6485
        %v9168 = vpop.f32.mrb[0].mxu0
        %v9169 = vadd.f32 %v9006, %v9168
        %v9170 = vpop.f32.mrb[0].mxu0
        %v9171 = vadd.f32 %v9008, %v9170
        %v9172 = vpop.f32.mrb[0].mxu0
        %v9173 = vadd.f32 %v9010, %v9172
        %v9174 = vpop.f32.mrb[0].mxu0
        %v9175 = vadd.f32 %v9012, %v9174
        %9176 = vmatprep.mubr.bf16.mxu0 %v6492
        %9177 = vmatmul.mubr.bf16.gmra.mrb[0].mxu0 %v6491
        %v9178 = vpop.f32.mrb[0].mxu0
        %v9179 = vadd.f32 %v9016, %v9178
        %v9180 = vpop.f32.mrb[0].mxu0
        %v9181 = vadd.f32 %v9018, %v9180
        %v9182 = vpop.f32.mrb[0].mxu0
        %v9183 = vadd.f32 %v9020, %v9182
        %v9184 = vpop.f32.mrb[0].mxu0
        %v9185 = vadd.f32 %v9022, %v9184
        %9186 = vmatprep.mubr.bf16.mxu0 %v6498
        %9187 = vmatmul.mubr.bf16.gmra.mrb[0].mxu0 %v6497
        %v9188 = vpop.f32.mrb[0].mxu0
        %v9189 = vadd.f32 %v9026, %v9188
        %v9190 = vpop.f32.mrb[0].mxu0
        %v9191 = vadd.f32 %v9028, %v9190
        %v9192 = vpop.f32.mrb[0].mxu0
        %v9193 = vadd.f32 %v9030, %v9192
        %v9194 = vpop.f32.mrb[0].mxu0
        %v9195 = vadd.f32 %v9032, %v9194
        %9196 = vmatprep.mubr.bf16.mxu0 %v6504
        %9197 = vmatmul.mubr.bf16.gmra.mrb[0].mxu0 %v6503
        %v9198 = vpop.f32.mrb[0].mxu0
        %v9199 = vadd.f32 %v9036, %v9198
        %v9200 = vpop.f32.mrb[0].mxu0
        %v9201 = vadd.f32 %v9038, %v9200
        %v9202 = vpop.f32.mrb[0].mxu0
        %v9203 = vadd.f32 %v9040, %v9202
        %v9204 = vpop.f32.mrb[0].mxu0
        %v9205 = vadd.f32 %v9042, %v9204
        %9206 = vmatprep.mubr.bf16.mxu0 %v6510
        %9207 = vmatmul.mubr.bf16.gmra.mrb[0].mxu0 %v6509
        %v9208 = vpop.f32.mrb[0].mxu0
        %v9209 = vadd.f32 %v9046, %v9208
        %v9210 = vpop.f32.mrb[0].mxu0
        %v9211 = vadd.f32 %v9048, %v9210
        %v9212 = vpop.f32.mrb[0].mxu0
        %v9213 = vadd.f32 %v9050, %v9212
        %v9214 = vpop.f32.mrb[0].mxu0
        %v9215 = vadd.f32 %v9052, %v9214
        %9216 = vdwg.mxu0
        %9217 = vmatprep.subr.bf16.mxu0 %v7668
        %9218 = vmatpush1.bf16.msra.mxu0 %v7667
        %9219 = vmatprep.subr.bf16.mxu0 %v7674
        %9220 = vmatpush1.bf16.msra.mxu0 %v7673
        %9221 = vmatprep.subr.bf16.mxu0 %v7680
        %9222 = vmatpush1.bf16.msra.mxu0 %v7679
        %9223 = vmatprep.subr.bf16.mxu0 %v7686
        %9224 = vmatpush1.bf16.msra.mxu0 %v7685
        %9225 = vmatprep.subr.bf16.mxu0 %v7692
        %9226 = vmatpush1.bf16.msra.mxu0 %v7691
        %9227 = vmatprep.subr.bf16.mxu0 %v7698
        %9228 = vmatpush1.bf16.msra.mxu0 %v7697
        %9229 = vmatprep.subr.bf16.mxu0 %v7704
        %9230 = vmatpush1.bf16.msra.mxu0 %v7703
        %9231 = vmatprep.subr.bf16.mxu0 %v7710
        %9232 = vmatpush1.bf16.msra.mxu0 %v7709
        %9233 = vmatprep.subr.bf16.mxu0 %v7716
        %9234 = vmatpush1.bf16.msra.mxu0 %v7715
        %9235 = vmatprep.subr.bf16.mxu0 %v7722
        %9236 = vmatpush1.bf16.msra.mxu0 %v7721
        %9237 = vmatprep.subr.bf16.mxu0 %v7728
        %9238 = vmatpush1.bf16.msra.mxu0 %v7727
        %9239 = vmatprep.subr.bf16.mxu0 %v7734
        %9240 = vmatpush1.bf16.msra.mxu0 %v7733
        %9241 = vmatprep.subr.bf16.mxu0 %v7740
        %9242 = vmatpush1.bf16.msra.mxu0 %v7739
        %9243 = vmatprep.subr.bf16.mxu0 %v7746
        %9244 = vmatpush1.bf16.msra.mxu0 %v7745
        %9245 = vmatprep.subr.bf16.mxu0 %v7752
        %9246 = vmatpush1.bf16.msra.mxu0 %v7751
        %9247 = vmatprep.subr.bf16.mxu0 %v7758
        %9248 = vmatpush1.bf16.msra.mxu0 %v7757
        %9249 = vmatprep.mubr.bf16.mxu0 %v6434
        %9250 = vmatmul.mubr.bf16.gmra.mrb[0].mxu0 %v6433
        %v9251 = vpop.f32.mrb[0].mxu0
        %v9252 = vadd.f32 0.0, %v9251
        %v9253 = vpop.f32.mrb[0].mxu0
        %v9254 = vadd.f32 0.0, %v9253
        %v9255 = vpop.f32.mrb[0].mxu0
        %v9256 = vadd.f32 0.0, %v9255
        %v9257 = vpop.f32.mrb[0].mxu0
        %v9258 = vadd.f32 0.0, %v9257
        %9259 = vmatprep.mubr.bf16.mxu0 %v6440
        %9260 = vmatmul.mubr.bf16.gmra.mrb[0].mxu0 %v6439
        %v9261 = vpop.f32.mrb[0].mxu0
        %v9262 = vadd.f32 0.0, %v9261
        %v9263 = vpop.f32.mrb[0].mxu0
        %v9264 = vadd.f32 0.0, %v9263
        %v9265 = vpop.f32.mrb[0].mxu0
        %v9266 = vadd.f32 0.0, %v9265
        %v9267 = vpop.f32.mrb[0].mxu0
        %v9268 = vadd.f32 0.0, %v9267
        %9269 = vmatprep.mubr.bf16.mxu0 %v6446
        %9270 = vmatmul.mubr.bf16.gmra.mrb[0].mxu0 %v6445
        %v9271 = vpop.f32.mrb[0].mxu0
        %v9272 = vadd.f32 0.0, %v9271
        %v9273 = vpop.f32.mrb[0].mxu0
        %v9274 = vadd.f32 0.0, %v9273
        %v9275 = vpop.f32.mrb[0].mxu0
        %v9276 = vadd.f32 0.0, %v9275
        %v9277 = vpop.f32.mrb[0].mxu0
        %v9278 = vadd.f32 0.0, %v9277
        %9279 = vmatprep.mubr.bf16.mxu0 %v6452
        %9280 = vmatmul.mubr.bf16.gmra.mrb[0].mxu0 %v6451
        %v9281 = vpop.f32.mrb[0].mxu0
        %v9282 = vadd.f32 0.0, %v9281
        %v9283 = vpop.f32.mrb[0].mxu0
        %v9284 = vadd.f32 0.0, %v9283
        %v9285 = vpop.f32.mrb[0].mxu0
        %v9286 = vadd.f32 0.0, %v9285
        %v9287 = vpop.f32.mrb[0].mxu0
        %v9288 = vadd.f32 0.0, %v9287
        %9289 = vmatprep.mubr.bf16.mxu0 %v6458
        %9290 = vmatmul.mubr.bf16.gmra.mrb[0].mxu0 %v6457
        %v9291 = vpop.f32.mrb[0].mxu0
        %v9292 = vadd.f32 0.0, %v9291
        %v9293 = vpop.f32.mrb[0].mxu0
        %v9294 = vadd.f32 0.0, %v9293
        %v9295 = vpop.f32.mrb[0].mxu0
        %v9296 = vadd.f32 0.0, %v9295
        %v9297 = vpop.f32.mrb[0].mxu0
        %v9298 = vadd.f32 0.0, %v9297
        %9299 = vmatprep.mubr.bf16.mxu0 %v6464
        %9300 = vmatmul.mubr.bf16.gmra.mrb[0].mxu0 %v6463
        %v9301 = vpop.f32.mrb[0].mxu0
        %v9302 = vadd.f32 0.0, %v9301
        %v9303 = vpop.f32.mrb[0].mxu0
        %v9304 = vadd.f32 0.0, %v9303
        %v9305 = vpop.f32.mrb[0].mxu0
        %v9306 = vadd.f32 0.0, %v9305
        %v9307 = vpop.f32.mrb[0].mxu0
        %v9308 = vadd.f32 0.0, %v9307
        %9309 = vmatprep.mubr.bf16.mxu0 %v6470
        %9310 = vmatmul.mubr.bf16.gmra.mrb[0].mxu0 %v6469
        %v9311 = vpop.f32.mrb[0].mxu0
        %v9312 = vadd.f32 0.0, %v9311
        %v9313 = vpop.f32.mrb[0].mxu0
        %v9314 = vadd.f32 0.0, %v9313
        %v9315 = vpop.f32.mrb[0].mxu0
        %v9316 = vadd.f32 0.0, %v9315
        %v9317 = vpop.f32.mrb[0].mxu0
        %v9318 = vadd.f32 0.0, %v9317
        %9319 = vmatprep.mubr.bf16.mxu0 %v6476
        %9320 = vmatmul.mubr.bf16.gmra.mrb[0].mxu0 %v6475
        %v9321 = vpop.f32.mrb[0].mxu0
        %v9322 = vadd.f32 0.0, %v9321
        %v9323 = vpop.f32.mrb[0].mxu0
        %v9324 = vadd.f32 0.0, %v9323
        %v9325 = vpop.f32.mrb[0].mxu0
        %v9326 = vadd.f32 0.0, %v9325
        %v9327 = vpop.f32.mrb[0].mxu0
        %v9328 = vadd.f32 0.0, %v9327
        %9329 = vmatprep.mubr.bf16.mxu0 %v6482
        %9330 = vmatmul.mubr.bf16.gmra.mrb[0].mxu0 %v6481
        %v9331 = vpop.f32.mrb[0].mxu0
        %v9332 = vadd.f32 0.0, %v9331
        %v9333 = vpop.f32.mrb[0].mxu0
        %v9334 = vadd.f32 0.0, %v9333
        %v9335 = vpop.f32.mrb[0].mxu0
        %v9336 = vadd.f32 0.0, %v9335
        %v9337 = vpop.f32.mrb[0].mxu0
        %v9338 = vadd.f32 0.0, %v9337
        %9339 = vmatprep.mubr.bf16.mxu0 %v6488
        %9340 = vmatmul.mubr.bf16.gmra.mrb[0].mxu0 %v6487
        %v9341 = vpop.f32.mrb[0].mxu0
        %v9342 = vadd.f32 0.0, %v9341
        %v9343 = vpop.f32.mrb[0].mxu0
        %v9344 = vadd.f32 0.0, %v9343
        %v9345 = vpop.f32.mrb[0].mxu0
        %v9346 = vadd.f32 0.0, %v9345
        %v9347 = vpop.f32.mrb[0].mxu0
        %v9348 = vadd.f32 0.0, %v9347
        %9349 = vmatprep.mubr.bf16.mxu0 %v6494
        %9350 = vmatmul.mubr.bf16.gmra.mrb[0].mxu0 %v6493
        %v9351 = vpop.f32.mrb[0].mxu0
        %v9352 = vadd.f32 0.0, %v9351
        %v9353 = vpop.f32.mrb[0].mxu0
        %v9354 = vadd.f32 0.0, %v9353
        %v9355 = vpop.f32.mrb[0].mxu0
        %v9356 = vadd.f32 0.0, %v9355
        %v9357 = vpop.f32.mrb[0].mxu0
        %v9358 = vadd.f32 0.0, %v9357
        %9359 = vmatprep.mubr.bf16.mxu0 %v6500
        %9360 = vmatmul.mubr.bf16.gmra.mrb[0].mxu0 %v6499
        %v9361 = vpop.f32.mrb[0].mxu0
        %v9362 = vadd.f32 0.0, %v9361
        %v9363 = vpop.f32.mrb[0].mxu0
        %v9364 = vadd.f32 0.0, %v9363
        %v9365 = vpop.f32.mrb[0].mxu0
        %v9366 = vadd.f32 0.0, %v9365
        %v9367 = vpop.f32.mrb[0].mxu0
        %v9368 = vadd.f32 0.0, %v9367
        %9369 = vmatprep.mubr.bf16.mxu0 %v6506
        %9370 = vmatmul.mubr.bf16.gmra.mrb[0].mxu0 %v6505
        %v9371 = vpop.f32.mrb[0].mxu0
        %v9372 = vadd.f32 0.0, %v9371
        %v9373 = vpop.f32.mrb[0].mxu0
        %v9374 = vadd.f32 0.0, %v9373
        %v9375 = vpop.f32.mrb[0].mxu0
        %v9376 = vadd.f32 0.0, %v9375
        %v9377 = vpop.f32.mrb[0].mxu0
        %v9378 = vadd.f32 0.0, %v9377
        %9379 = vdwg.mxu0
        %9380 = vmatprep.subr.bf16.mxu0 %v7764
        %9381 = vmatpush1.bf16.msra.mxu0 %v7763
        %9382 = vmatprep.subr.bf16.mxu0 %v7770
        %9383 = vmatpush1.bf16.msra.mxu0 %v7769
        %9384 = vmatprep.subr.bf16.mxu0 %v7776
        %9385 = vmatpush1.bf16.msra.mxu0 %v7775
        %9386 = vmatprep.subr.bf16.mxu0 %v7782
        %9387 = vmatpush1.bf16.msra.mxu0 %v7781
        %9388 = vmatprep.subr.bf16.mxu0 %v7788
        %9389 = vmatpush1.bf16.msra.mxu0 %v7787
        %9390 = vmatprep.subr.bf16.mxu0 %v7794
        %9391 = vmatpush1.bf16.msra.mxu0 %v7793
        %9392 = vmatprep.subr.bf16.mxu0 %v7800
        %9393 = vmatpush1.bf16.msra.mxu0 %v7799
        %9394 = vmatprep.subr.bf16.mxu0 %v7806
        %9395 = vmatpush1.bf16.msra.mxu0 %v7805
        %9396 = vmatprep.subr.bf16.mxu0 %v7812
        %9397 = vmatpush1.bf16.msra.mxu0 %v7811
        %9398 = vmatprep.subr.bf16.mxu0 %v7818
        %9399 = vmatpush1.bf16.msra.mxu0 %v7817
        %9400 = vmatprep.subr.bf16.mxu0 %v7824
        %9401 = vmatpush1.bf16.msra.mxu0 %v7823
        %9402 = vmatprep.subr.bf16.mxu0 %v7830
        %9403 = vmatpush1.bf16.msra.mxu0 %v7829
        %9404 = vmatprep.subr.bf16.mxu0 %v7836
        %9405 = vmatpush1.bf16.msra.mxu0 %v7835
        %9406 = vmatprep.subr.bf16.mxu0 %v7842
        %9407 = vmatpush1.bf16.msra.mxu0 %v7841
        %9408 = vmatprep.subr.bf16.mxu0 %v7848
        %9409 = vmatpush1.bf16.msra.mxu0 %v7847
        %9410 = vmatprep.subr.bf16.mxu0 %v7854
        %9411 = vmatpush1.bf16.msra.mxu0 %v7853
        %9412 = vmatprep.mubr.bf16.mxu0 %v6436
        %9413 = vmatmul.mubr.bf16.gmra.mrb[0].mxu0 %v6435
        %v9414 = vpop.f32.mrb[0].mxu0
        %v9415 = vadd.f32 %v9252, %v9414
        %v9416 = vpop.f32.mrb[0].mxu0
        %v9417 = vadd.f32 %v9254, %v9416
        %v9418 = vpop.f32.mrb[0].mxu0
        %v9419 = vadd.f32 %v9256, %v9418
        %v9420 = vpop.f32.mrb[0].mxu0
        %v9421 = vadd.f32 %v9258, %v9420
        %9422 = vmatprep.mubr.bf16.mxu0 %v6442
        %9423 = vmatmul.mubr.bf16.gmra.mrb[0].mxu0 %v6441
        %v9424 = vpop.f32.mrb[0].mxu0
        %v9425 = vadd.f32 %v9262, %v9424
        %v9426 = vpop.f32.mrb[0].mxu0
        %v9427 = vadd.f32 %v9264, %v9426
        %v9428 = vpop.f32.mrb[0].mxu0
        %v9429 = vadd.f32 %v9266, %v9428
        %v9430 = vpop.f32.mrb[0].mxu0
        %v9431 = vadd.f32 %v9268, %v9430
        %9432 = vmatprep.mubr.bf16.mxu0 %v6448
        %9433 = vmatmul.mubr.bf16.gmra.mrb[0].mxu0 %v6447
        %v9434 = vpop.f32.mrb[0].mxu0
        %v9435 = vadd.f32 %v9272, %v9434
        %v9436 = vpop.f32.mrb[0].mxu0
        %v9437 = vadd.f32 %v9274, %v9436
        %v9438 = vpop.f32.mrb[0].mxu0
        %v9439 = vadd.f32 %v9276, %v9438
        %v9440 = vpop.f32.mrb[0].mxu0
        %v9441 = vadd.f32 %v9278, %v9440
        %9442 = vmatprep.mubr.bf16.mxu0 %v6454
        %9443 = vmatmul.mubr.bf16.gmra.mrb[0].mxu0 %v6453
        %v9444 = vpop.f32.mrb[0].mxu0
        %v9445 = vadd.f32 %v9282, %v9444
        %v9446 = vpop.f32.mrb[0].mxu0
        %v9447 = vadd.f32 %v9284, %v9446
        %v9448 = vpop.f32.mrb[0].mxu0
        %v9449 = vadd.f32 %v9286, %v9448
        %v9450 = vpop.f32.mrb[0].mxu0
        %v9451 = vadd.f32 %v9288, %v9450
        %9452 = vmatprep.mubr.bf16.mxu0 %v6460
        %9453 = vmatmul.mubr.bf16.gmra.mrb[0].mxu0 %v6459
        %v9454 = vpop.f32.mrb[0].mxu0
        %v9455 = vadd.f32 %v9292, %v9454
        %v9456 = vpop.f32.mrb[0].mxu0
        %v9457 = vadd.f32 %v9294, %v9456
        %v9458 = vpop.f32.mrb[0].mxu0
        %v9459 = vadd.f32 %v9296, %v9458
        %v9460 = vpop.f32.mrb[0].mxu0
        %v9461 = vadd.f32 %v9298, %v9460
        %9462 = vmatprep.mubr.bf16.mxu0 %v6466
        %9463 = vmatmul.mubr.bf16.gmra.mrb[0].mxu0 %v6465
        %v9464 = vpop.f32.mrb[0].mxu0
        %v9465 = vadd.f32 %v9302, %v9464
        %v9466 = vpop.f32.mrb[0].mxu0
        %v9467 = vadd.f32 %v9304, %v9466
        %v9468 = vpop.f32.mrb[0].mxu0
        %v9469 = vadd.f32 %v9306, %v9468
        %v9470 = vpop.f32.mrb[0].mxu0
        %v9471 = vadd.f32 %v9308, %v9470
        %9472 = vmatprep.mubr.bf16.mxu0 %v6472
        %9473 = vmatmul.mubr.bf16.gmra.mrb[0].mxu0 %v6471
        %v9474 = vpop.f32.mrb[0].mxu0
        %v9475 = vadd.f32 %v9312, %v9474
        %v9476 = vpop.f32.mrb[0].mxu0
        %v9477 = vadd.f32 %v9314, %v9476
        %v9478 = vpop.f32.mrb[0].mxu0
        %v9479 = vadd.f32 %v9316, %v9478
        %v9480 = vpop.f32.mrb[0].mxu0
        %v9481 = vadd.f32 %v9318, %v9480
        %9482 = vmatprep.mubr.bf16.mxu0 %v6478
        %9483 = vmatmul.mubr.bf16.gmra.mrb[0].mxu0 %v6477
        %v9484 = vpop.f32.mrb[0].mxu0
        %v9485 = vadd.f32 %v9322, %v9484
        %v9486 = vpop.f32.mrb[0].mxu0
        %v9487 = vadd.f32 %v9324, %v9486
        %v9488 = vpop.f32.mrb[0].mxu0
        %v9489 = vadd.f32 %v9326, %v9488
        %v9490 = vpop.f32.mrb[0].mxu0
        %v9491 = vadd.f32 %v9328, %v9490
        %9492 = vmatprep.mubr.bf16.mxu0 %v6484
        %9493 = vmatmul.mubr.bf16.gmra.mrb[0].mxu0 %v6483
        %v9494 = vpop.f32.mrb[0].mxu0
        %v9495 = vadd.f32 %v9332, %v9494
        %v9496 = vpop.f32.mrb[0].mxu0
        %v9497 = vadd.f32 %v9334, %v9496
        %v9498 = vpop.f32.mrb[0].mxu0
        %v9499 = vadd.f32 %v9336, %v9498
        %v9500 = vpop.f32.mrb[0].mxu0
        %v9501 = vadd.f32 %v9338, %v9500
        %9502 = vmatprep.mubr.bf16.mxu0 %v6490
        %9503 = vmatmul.mubr.bf16.gmra.mrb[0].mxu0 %v6489
        %v9504 = vpop.f32.mrb[0].mxu0
        %v9505 = vadd.f32 %v9342, %v9504
        %v9506 = vpop.f32.mrb[0].mxu0
        %v9507 = vadd.f32 %v9344, %v9506
        %v9508 = vpop.f32.mrb[0].mxu0
        %v9509 = vadd.f32 %v9346, %v9508
        %v9510 = vpop.f32.mrb[0].mxu0
        %v9511 = vadd.f32 %v9348, %v9510
        %9512 = vmatprep.mubr.bf16.mxu0 %v6496
        %9513 = vmatmul.mubr.bf16.gmra.mrb[0].mxu0 %v6495
        %v9514 = vpop.f32.mrb[0].mxu0
        %v9515 = vadd.f32 %v9352, %v9514
        %v9516 = vpop.f32.mrb[0].mxu0
        %v9517 = vadd.f32 %v9354, %v9516
        %v9518 = vpop.f32.mrb[0].mxu0
        %v9519 = vadd.f32 %v9356, %v9518
        %v9520 = vpop.f32.mrb[0].mxu0
        %v9521 = vadd.f32 %v9358, %v9520
        %9522 = vmatprep.mubr.bf16.mxu0 %v6502
        %9523 = vmatmul.mubr.bf16.gmra.mrb[0].mxu0 %v6501
        %v9524 = vpop.f32.mrb[0].mxu0
        %v9525 = vadd.f32 %v9362, %v9524
        %v9526 = vpop.f32.mrb[0].mxu0
        %v9527 = vadd.f32 %v9364, %v9526
        %v9528 = vpop.f32.mrb[0].mxu0
        %v9529 = vadd.f32 %v9366, %v9528
        %v9530 = vpop.f32.mrb[0].mxu0
        %v9531 = vadd.f32 %v9368, %v9530
        %9532 = vmatprep.mubr.bf16.mxu0 %v6508
        %9533 = vmatmul.mubr.bf16.gmra.mrb[0].mxu0 %v6507
        %v9534 = vpop.f32.mrb[0].mxu0
        %v9535 = vadd.f32 %v9372, %v9534
        %v9536 = vpop.f32.mrb[0].mxu0
        %v9537 = vadd.f32 %v9374, %v9536
        %v9538 = vpop.f32.mrb[0].mxu0
        %v9539 = vadd.f32 %v9376, %v9538
        %v9540 = vpop.f32.mrb[0].mxu0
        %v9541 = vadd.f32 %v9378, %v9540
        %9542 = vdwg.mxu0
        %9543 = vmatprep.subr.bf16.mxu0 %v7860
        %9544 = vmatpush1.bf16.msra.mxu0 %v7859
        %9545 = vmatprep.subr.bf16.mxu0 %v7866
        %9546 = vmatpush1.bf16.msra.mxu0 %v7865
        %9547 = vmatprep.subr.bf16.mxu0 %v7872
        %9548 = vmatpush1.bf16.msra.mxu0 %v7871
        %9549 = vmatprep.subr.bf16.mxu0 %v7878
        %9550 = vmatpush1.bf16.msra.mxu0 %v7877
        %9551 = vmatprep.subr.bf16.mxu0 %v7884
        %9552 = vmatpush1.bf16.msra.mxu0 %v7883
        %9553 = vmatprep.subr.bf16.mxu0 %v7890
        %9554 = vmatpush1.bf16.msra.mxu0 %v7889
        %9555 = vmatprep.subr.bf16.mxu0 %v7896
        %9556 = vmatpush1.bf16.msra.mxu0 %v7895
        %9557 = vmatprep.subr.bf16.mxu0 %v7902
        %9558 = vmatpush1.bf16.msra.mxu0 %v7901
        %9559 = vmatprep.subr.bf16.mxu0 %v7908
        %9560 = vmatpush1.bf16.msra.mxu0 %v7907
        %9561 = vmatprep.subr.bf16.mxu0 %v7914
        %9562 = vmatpush1.bf16.msra.mxu0 %v7913
        %9563 = vmatprep.subr.bf16.mxu0 %v7920
        %9564 = vmatpush1.bf16.msra.mxu0 %v7919
        %9565 = vmatprep.subr.bf16.mxu0 %v7926
        %9566 = vmatpush1.bf16.msra.mxu0 %v7925
        %9567 = vmatprep.subr.bf16.mxu0 %v7932
        %9568 = vmatpush1.bf16.msra.mxu0 %v7931
        %9569 = vmatprep.subr.bf16.mxu0 %v7938
        %9570 = vmatpush1.bf16.msra.mxu0 %v7937
        %9571 = vmatprep.subr.bf16.mxu0 %v7944
        %9572 = vmatpush1.bf16.msra.mxu0 %v7943
        %9573 = vmatprep.subr.bf16.mxu0 %v7950
        %9574 = vmatpush1.bf16.msra.mxu0 %v7949
        %9575 = vmatprep.mubr.bf16.mxu0 %v6438
        %9576 = vmatmul.mubr.bf16.gmra.mrb[0].mxu0 %v6437
        %v9577 = vpop.f32.mrb[0].mxu0
        %v9578 = vadd.f32 %v9415, %v9577
        %v9579 = vpop.f32.mrb[0].mxu0
        %v9580 = vadd.f32 %v9417, %v9579
        %v9581 = vpop.f32.mrb[0].mxu0
        %v9582 = vadd.f32 %v9419, %v9581
        %v9583 = vpop.f32.mrb[0].mxu0
        %v9584 = vadd.f32 %v9421, %v9583
        %9585 = vmatprep.mubr.bf16.mxu0 %v6444
        %9586 = vmatmul.mubr.bf16.gmra.mrb[0].mxu0 %v6443
        %v9587 = vpop.f32.mrb[0].mxu0
        %v9588 = vadd.f32 %v9425, %v9587
        %v9589 = vpop.f32.mrb[0].mxu0
        %v9590 = vadd.f32 %v9427, %v9589
        %v9591 = vpop.f32.mrb[0].mxu0
        %v9592 = vadd.f32 %v9429, %v9591
        %v9593 = vpop.f32.mrb[0].mxu0
        %v9594 = vadd.f32 %v9431, %v9593
        %9595 = vmatprep.mubr.bf16.mxu0 %v6450
        %9596 = vmatmul.mubr.bf16.gmra.mrb[0].mxu0 %v6449
        %v9597 = vpop.f32.mrb[0].mxu0
        %v9598 = vadd.f32 %v9435, %v9597
        %v9599 = vpop.f32.mrb[0].mxu0
        %v9600 = vadd.f32 %v9437, %v9599
        %v9601 = vpop.f32.mrb[0].mxu0
        %v9602 = vadd.f32 %v9439, %v9601
        %v9603 = vpop.f32.mrb[0].mxu0
        %v9604 = vadd.f32 %v9441, %v9603
        %9605 = vmatprep.mubr.bf16.mxu0 %v6456
        %9606 = vmatmul.mubr.bf16.gmra.mrb[0].mxu0 %v6455
        %v9607 = vpop.f32.mrb[0].mxu0
        %v9608 = vadd.f32 %v9445, %v9607
        %v9609 = vpop.f32.mrb[0].mxu0
        %v9610 = vadd.f32 %v9447, %v9609
        %v9611 = vpop.f32.mrb[0].mxu0
        %v9612 = vadd.f32 %v9449, %v9611
        %v9613 = vpop.f32.mrb[0].mxu0
        %v9614 = vadd.f32 %v9451, %v9613
        %9615 = vmatprep.mubr.bf16.mxu0 %v6462
        %9616 = vmatmul.mubr.bf16.gmra.mrb[0].mxu0 %v6461
        %v9617 = vpop.f32.mrb[0].mxu0
        %v9618 = vadd.f32 %v9455, %v9617
        %v9619 = vpop.f32.mrb[0].mxu0
        %v9620 = vadd.f32 %v9457, %v9619
        %v9621 = vpop.f32.mrb[0].mxu0
        %v9622 = vadd.f32 %v9459, %v9621
        %v9623 = vpop.f32.mrb[0].mxu0
        %v9624 = vadd.f32 %v9461, %v9623
        %9625 = vmatprep.mubr.bf16.mxu0 %v6468
        %9626 = vmatmul.mubr.bf16.gmra.mrb[0].mxu0 %v6467
        %v9627 = vpop.f32.mrb[0].mxu0
        %v9628 = vadd.f32 %v9465, %v9627
        %v9629 = vpop.f32.mrb[0].mxu0
        %v9630 = vadd.f32 %v9467, %v9629
        %v9631 = vpop.f32.mrb[0].mxu0
        %v9632 = vadd.f32 %v9469, %v9631
        %v9633 = vpop.f32.mrb[0].mxu0
        %v9634 = vadd.f32 %v9471, %v9633
        %9635 = vmatprep.mubr.bf16.mxu0 %v6474
        %9636 = vmatmul.mubr.bf16.gmra.mrb[0].mxu0 %v6473
        %v9637 = vpop.f32.mrb[0].mxu0
        %v9638 = vadd.f32 %v9475, %v9637
        %v9639 = vpop.f32.mrb[0].mxu0
        %v9640 = vadd.f32 %v9477, %v9639
        %v9641 = vpop.f32.mrb[0].mxu0
        %v9642 = vadd.f32 %v9479, %v9641
        %v9643 = vpop.f32.mrb[0].mxu0
        %v9644 = vadd.f32 %v9481, %v9643
        %9645 = vmatprep.mubr.bf16.mxu0 %v6480
        %9646 = vmatmul.mubr.bf16.gmra.mrb[0].mxu0 %v6479
        %v9647 = vpop.f32.mrb[0].mxu0
        %v9648 = vadd.f32 %v9485, %v9647
        %v9649 = vpop.f32.mrb[0].mxu0
        %v9650 = vadd.f32 %v9487, %v9649
        %v9651 = vpop.f32.mrb[0].mxu0
        %v9652 = vadd.f32 %v9489, %v9651
        %v9653 = vpop.f32.mrb[0].mxu0
        %v9654 = vadd.f32 %v9491, %v9653
        %9655 = vmatprep.mubr.bf16.mxu0 %v6486
        %9656 = vmatmul.mubr.bf16.gmra.mrb[0].mxu0 %v6485
        %v9657 = vpop.f32.mrb[0].mxu0
        %v9658 = vadd.f32 %v9495, %v9657
        %v9659 = vpop.f32.mrb[0].mxu0
        %v9660 = vadd.f32 %v9497, %v9659
        %v9661 = vpop.f32.mrb[0].mxu0
        %v9662 = vadd.f32 %v9499, %v9661
        %v9663 = vpop.f32.mrb[0].mxu0
        %v9664 = vadd.f32 %v9501, %v9663
        %9665 = vmatprep.mubr.bf16.mxu0 %v6492
        %9666 = vmatmul.mubr.bf16.gmra.mrb[0].mxu0 %v6491
        %v9667 = vpop.f32.mrb[0].mxu0
        %v9668 = vadd.f32 %v9505, %v9667
        %v9669 = vpop.f32.mrb[0].mxu0
        %v9670 = vadd.f32 %v9507, %v9669
        %v9671 = vpop.f32.mrb[0].mxu0
        %v9672 = vadd.f32 %v9509, %v9671
        %v9673 = vpop.f32.mrb[0].mxu0
        %v9674 = vadd.f32 %v9511, %v9673
        %9675 = vmatprep.mubr.bf16.mxu0 %v6498
        %9676 = vmatmul.mubr.bf16.gmra.mrb[0].mxu0 %v6497
        %v9677 = vpop.f32.mrb[0].mxu0
        %v9678 = vadd.f32 %v9515, %v9677
        %v9679 = vpop.f32.mrb[0].mxu0
        %v9680 = vadd.f32 %v9517, %v9679
        %v9681 = vpop.f32.mrb[0].mxu0
        %v9682 = vadd.f32 %v9519, %v9681
        %v9683 = vpop.f32.mrb[0].mxu0
        %v9684 = vadd.f32 %v9521, %v9683
        %9685 = vmatprep.mubr.bf16.mxu0 %v6504
        %9686 = vmatmul.mubr.bf16.gmra.mrb[0].mxu0 %v6503
        %v9687 = vpop.f32.mrb[0].mxu0
        %v9688 = vadd.f32 %v9525, %v9687
        %v9689 = vpop.f32.mrb[0].mxu0
        %v9690 = vadd.f32 %v9527, %v9689
        %v9691 = vpop.f32.mrb[0].mxu0
        %v9692 = vadd.f32 %v9529, %v9691
        %v9693 = vpop.f32.mrb[0].mxu0
        %v9694 = vadd.f32 %v9531, %v9693
        %9695 = vmatprep.mubr.bf16.mxu0 %v6510
        %9696 = vmatmul.mubr.bf16.gmra.mrb[0].mxu0 %v6509
        %v9697 = vpop.f32.mrb[0].mxu0
        %v9698 = vadd.f32 %v9535, %v9697
        %v9699 = vpop.f32.mrb[0].mxu0
        %v9700 = vadd.f32 %v9537, %v9699
        %v9701 = vpop.f32.mrb[0].mxu0
        %v9702 = vadd.f32 %v9539, %v9701
        %v9703 = vpop.f32.mrb[0].mxu0
        %v9704 = vadd.f32 %v9541, %v9703
        %9705 = vdwg.mxu0
        %v9706 = vadd.f32 %v6277, %v8600
        %v9707 = vadd.f32 %v6278, %v8602
        %v9708 = vadd.f32 %v6279, %v9089
        %v9709 = vadd.f32 %v6280, %v9091
        %v9710 = vadd.f32 %v6281, %v9578
        %v9711 = vadd.f32 %v6282, %v9580
        %v9712 = vadd.f32 %v6283, %v8604
        %v9713 = vadd.f32 %v6284, %v8606
        %v9714 = vadd.f32 %v6285, %v9093
        %v9715 = vadd.f32 %v6286, %v9095
        %v9716 = vadd.f32 %v6287, %v9582
        %v9717 = vadd.f32 %v6288, %v9584
        %v9718 = vadd.f32 %v6289, %v8610
        %v9719 = vadd.f32 %v6290, %v8612
        %v9720 = vadd.f32 %v6291, %v9099
        %v9721 = vadd.f32 %v6292, %v9101
        %v9722 = vadd.f32 %v6293, %v9588
        %v9723 = vadd.f32 %v6294, %v9590
        %v9724 = vadd.f32 %v6295, %v8614
        %v9725 = vadd.f32 %v6296, %v8616
        %v9726 = vadd.f32 %v6297, %v9103
        %v9727 = vadd.f32 %v6298, %v9105
        %v9728 = vadd.f32 %v6299, %v9592
        %v9729 = vadd.f32 %v6300, %v9594
        %v9730 = vadd.f32 %v6301, %v8620
        %v9731 = vadd.f32 %v6302, %v8622
        %v9732 = vadd.f32 %v6303, %v9109
        %v9733 = vadd.f32 %v6304, %v9111
        %v9734 = vadd.f32 %v6305, %v9598
        %v9735 = vadd.f32 %v6306, %v9600
        %v9736 = vadd.f32 %v6307, %v8624
        %v9737 = vadd.f32 %v6308, %v8626
        %v9738 = vadd.f32 %v6309, %v9113
        %v9739 = vadd.f32 %v6310, %v9115
        %v9740 = vadd.f32 %v6311, %v9602
        %v9741 = vadd.f32 %v6312, %v9604
        %v9742 = vadd.f32 %v6313, %v8630
        %v9743 = vadd.f32 %v6314, %v8632
        %v9744 = vadd.f32 %v6315, %v9119
        %v9745 = vadd.f32 %v6316, %v9121
        %v9746 = vadd.f32 %v6317, %v9608
        %v9747 = vadd.f32 %v6318, %v9610
        %v9748 = vadd.f32 %v6319, %v8634
        %v9749 = vadd.f32 %v6320, %v8636
        %v9750 = vadd.f32 %v6321, %v9123
        %v9751 = vadd.f32 %v6322, %v9125
        %v9752 = vadd.f32 %v6323, %v9612
        %v9753 = vadd.f32 %v6324, %v9614
        %v9754 = vadd.f32 %v6325, %v8640
        %v9755 = vadd.f32 %v6326, %v8642
        %v9756 = vadd.f32 %v6327, %v9129
        %v9757 = vadd.f32 %v6328, %v9131
        %v9758 = vadd.f32 %v6329, %v9618
        %v9759 = vadd.f32 %v6330, %v9620
        %v9760 = vadd.f32 %v6331, %v8644
        %v9761 = vadd.f32 %v6332, %v8646
        %v9762 = vadd.f32 %v6333, %v9133
        %v9763 = vadd.f32 %v6334, %v9135
        %v9764 = vadd.f32 %v6335, %v9622
        %v9765 = vadd.f32 %v6336, %v9624
        %v9766 = vadd.f32 %v6337, %v8650
        %v9767 = vadd.f32 %v6338, %v8652
        %v9768 = vadd.f32 %v6339, %v9139
        %v9769 = vadd.f32 %v6340, %v9141
        %v9770 = vadd.f32 %v6341, %v9628
        %v9771 = vadd.f32 %v6342, %v9630
        %v9772 = vadd.f32 %v6343, %v8654
        %v9773 = vadd.f32 %v6344, %v8656
        %v9774 = vadd.f32 %v6345, %v9143
        %v9775 = vadd.f32 %v6346, %v9145
        %v9776 = vadd.f32 %v6347, %v9632
        %v9777 = vadd.f32 %v6348, %v9634
        %v9778 = vadd.f32 %v6349, %v8660
        %v9779 = vadd.f32 %v6350, %v8662
        %v9780 = vadd.f32 %v6351, %v9149
        %v9781 = vadd.f32 %v6352, %v9151
        %v9782 = vadd.f32 %v6353, %v9638
        %v9783 = vadd.f32 %v6354, %v9640
        %v9784 = vadd.f32 %v6355, %v8664
        %v9785 = vadd.f32 %v6356, %v8666
        %v9786 = vadd.f32 %v6357, %v9153
        %v9787 = vadd.f32 %v6358, %v9155
        %v9788 = vadd.f32 %v6359, %v9642
        %v9789 = vadd.f32 %v6360, %v9644
        %v9790 = vadd.f32 %v6361, %v8670
        %v9791 = vadd.f32 %v6362, %v8672
        %v9792 = vadd.f32 %v6363, %v9159
        %v9793 = vadd.f32 %v6364, %v9161
        %v9794 = vadd.f32 %v6365, %v9648
        %v9795 = vadd.f32 %v6366, %v9650
        %v9796 = vadd.f32 %v6367, %v8674
        %v9797 = vadd.f32 %v6368, %v8676
        %v9798 = vadd.f32 %v6369, %v9163
        %v9799 = vadd.f32 %v6370, %v9165
        %v9800 = vadd.f32 %v6371, %v9652
        %v9801 = vadd.f32 %v6372, %v9654
        %v9802 = vadd.f32 %v6373, %v8680
        %v9803 = vadd.f32 %v6374, %v8682
        %v9804 = vadd.f32 %v6375, %v9169
        %v9805 = vadd.f32 %v6376, %v9171
        %v9806 = vadd.f32 %v6377, %v9658
        %v9807 = vadd.f32 %v6378, %v9660
        %v9808 = vadd.f32 %v6379, %v8684
        %v9809 = vadd.f32 %v6380, %v8686
        %v9810 = vadd.f32 %v6381, %v9173
        %v9811 = vadd.f32 %v6382, %v9175
        %v9812 = vadd.f32 %v6383, %v9662
        %v9813 = vadd.f32 %v6384, %v9664
        %v9814 = vadd.f32 %v6385, %v8690
        %v9815 = vadd.f32 %v6386, %v8692
        %v9816 = vadd.f32 %v6387, %v9179
        %v9817 = vadd.f32 %v6388, %v9181
        %v9818 = vadd.f32 %v6389, %v9668
        %v9819 = vadd.f32 %v6390, %v9670
        %v9820 = vadd.f32 %v6391, %v8694
        %v9821 = vadd.f32 %v6392, %v8696
        %v9822 = vadd.f32 %v6393, %v9183
        %v9823 = vadd.f32 %v6394, %v9185
        %v9824 = vadd.f32 %v6395, %v9672
        %v9825 = vadd.f32 %v6396, %v9674
        %v9826 = vadd.f32 %v6397, %v8700
        %v9827 = vadd.f32 %v6398, %v8702
        %v9828 = vadd.f32 %v6399, %v9189
        %v9829 = vadd.f32 %v6400, %v9191
        %v9830 = vadd.f32 %v6401, %v9678
        %v9831 = vadd.f32 %v6402, %v9680
        %v9832 = vadd.f32 %v6403, %v8704
        %v9833 = vadd.f32 %v6404, %v8706
        %v9834 = vadd.f32 %v6405, %v9193
        %v9835 = vadd.f32 %v6406, %v9195
        %v9836 = vadd.f32 %v6407, %v9682
        %v9837 = vadd.f32 %v6408, %v9684
        %v9838 = vadd.f32 %v6409, %v8710
        %v9839 = vadd.f32 %v6410, %v8712
        %v9840 = vadd.f32 %v6411, %v9199
        %v9841 = vadd.f32 %v6412, %v9201
        %v9842 = vadd.f32 %v6413, %v9688
        %v9843 = vadd.f32 %v6414, %v9690
        %v9844 = vadd.f32 %v6415, %v8714
        %v9845 = vadd.f32 %v6416, %v8716
        %v9846 = vadd.f32 %v6417, %v9203
        %v9847 = vadd.f32 %v6418, %v9205
        %v9848 = vadd.f32 %v6419, %v9692
        %v9849 = vadd.f32 %v6420, %v9694
        %v9850 = vadd.f32 %v6421, %v8720
        %v9851 = vadd.f32 %v6422, %v8722
        %v9852 = vadd.f32 %v6423, %v9209
        %v9853 = vadd.f32 %v6424, %v9211
        %v9854 = vadd.f32 %v6425, %v9698
        %v9855 = vadd.f32 %v6426, %v9700
        %v9856 = vadd.f32 %v6427, %v8724
        %v9857 = vadd.f32 %v6428, %v8726
        %v9858 = vadd.f32 %v6429, %v9213
        %v9859 = vadd.f32 %v6430, %v9215
        %v9860 = vadd.f32 %v6431, %v9702
        %v9861 = vadd.f32 %v6432, %v9704
        %9862 = vst [vmem:[%s406] sm:$0xff] %v9706
        %9863 = vst [vmem:[%s406 + $0x8] sm:$0xff] %v9707
        %9864 = vst [vmem:[%s406 + $0x10] sm:$0xff] %v9708
        %9865 = vst [vmem:[%s406 + $0x18] sm:$0xff] %v9709
        %9866 = vst [vmem:[%s406 + $0x20] sm:$0xff] %v9710
        %9867 = vst [vmem:[%s406 + $0x28] sm:$0xff] %v9711
        %9868 = vst [vmem:[%s406 + $0x30] sm:$0xff] %v9712
        %9869 = vst [vmem:[%s406 + $0x38] sm:$0xff] %v9713
        %9870 = vst [vmem:[%s406 + $0x40] sm:$0xff] %v9714
        %9871 = vst [vmem:[%s406 + $0x48] sm:$0xff] %v9715
        %9872 = vst [vmem:[%s406 + $0x50] sm:$0xff] %v9716
        %9873 = vst [vmem:[%s406 + $0x58] sm:$0xff] %v9717
        %9874 = vst [vmem:[%s406 + $0x60] sm:$0xff] %v9718
        %9875 = vst [vmem:[%s406 + $0x68] sm:$0xff] %v9719
        %9876 = vst [vmem:[%s406 + $0x70] sm:$0xff] %v9720
        %9877 = vst [vmem:[%s406 + $0x78] sm:$0xff] %v9721
        %9878 = vst [vmem:[%s406 + $0x80] sm:$0xff] %v9722
        %9879 = vst [vmem:[%s406 + $0x88] sm:$0xff] %v9723
        %9880 = vst [vmem:[%s406 + $0x90] sm:$0xff] %v9724
        %9881 = vst [vmem:[%s406 + $0x98] sm:$0xff] %v9725
        %9882 = vst [vmem:[%s406 + $0xa0] sm:$0xff] %v9726
        %9883 = vst [vmem:[%s406 + $0xa8] sm:$0xff] %v9727
        %9884 = vst [vmem:[%s406 + $0xb0] sm:$0xff] %v9728
        %9885 = vst [vmem:[%s406 + $0xb8] sm:$0xff] %v9729
        %9886 = vst [vmem:[%s406 + $0xc0] sm:$0xff] %v9730
        %9887 = vst [vmem:[%s406 + $0xc8] sm:$0xff] %v9731
        %9888 = vst [vmem:[%s406 + $0xd0] sm:$0xff] %v9732
        %9889 = vst [vmem:[%s406 + $0xd8] sm:$0xff] %v9733
        %9890 = vst [vmem:[%s406 + $0xe0] sm:$0xff] %v9734
        %9891 = vst [vmem:[%s406 + $0xe8] sm:$0xff] %v9735
        %9892 = vst [vmem:[%s406 + $0xf0] sm:$0xff] %v9736
        %9893 = vst [vmem:[%s406 + $0xf8] sm:$0xff] %v9737
        %9894 = vst [vmem:[%s406 + $0x100] sm:$0xff] %v9738
        %9895 = vst [vmem:[%s406 + $0x108] sm:$0xff] %v9739
        %9896 = vst [vmem:[%s406 + $0x110] sm:$0xff] %v9740
        %9897 = vst [vmem:[%s406 + $0x118] sm:$0xff] %v9741
        %9898 = vst [vmem:[%s406 + $0x120] sm:$0xff] %v9742
        %9899 = vst [vmem:[%s406 + $0x128] sm:$0xff] %v9743
        %9900 = vst [vmem:[%s406 + $0x130] sm:$0xff] %v9744
        %9901 = vst [vmem:[%s406 + $0x138] sm:$0xff] %v9745
        %9902 = vst [vmem:[%s406 + $0x140] sm:$0xff] %v9746
        %9903 = vst [vmem:[%s406 + $0x148] sm:$0xff] %v9747
        %9904 = vst [vmem:[%s406 + $0x150] sm:$0xff] %v9748
        %9905 = vst [vmem:[%s406 + $0x158] sm:$0xff] %v9749
        %9906 = vst [vmem:[%s406 + $0x160] sm:$0xff] %v9750
        %9907 = vst [vmem:[%s406 + $0x168] sm:$0xff] %v9751
        %9908 = vst [vmem:[%s406 + $0x170] sm:$0xff] %v9752
        %9909 = vst [vmem:[%s406 + $0x178] sm:$0xff] %v9753
        %9910 = vst [vmem:[%s406 + $0x180] sm:$0xff] %v9754
        %9911 = vst [vmem:[%s406 + $0x188] sm:$0xff] %v9755
        %9912 = vst [vmem:[%s406 + $0x190] sm:$0xff] %v9756
        %9913 = vst [vmem:[%s406 + $0x198] sm:$0xff] %v9757
        %9914 = vst [vmem:[%s406 + $0x1a0] sm:$0xff] %v9758
        %9915 = vst [vmem:[%s406 + $0x1a8] sm:$0xff] %v9759
        %9916 = vst [vmem:[%s406 + $0x1b0] sm:$0xff] %v9760
        %9917 = vst [vmem:[%s406 + $0x1b8] sm:$0xff] %v9761
        %9918 = vst [vmem:[%s406 + $0x1c0] sm:$0xff] %v9762
        %9919 = vst [vmem:[%s406 + $0x1c8] sm:$0xff] %v9763
        %9920 = vst [vmem:[%s406 + $0x1d0] sm:$0xff] %v9764
        %9921 = vst [vmem:[%s406 + $0x1d8] sm:$0xff] %v9765
        %9922 = vst [vmem:[%s406 + $0x1e0] sm:$0xff] %v9766
        %9923 = vst [vmem:[%s406 + $0x1e8] sm:$0xff] %v9767
        %9924 = vst [vmem:[%s406 + $0x1f0] sm:$0xff] %v9768
        %9925 = vst [vmem:[%s406 + $0x1f8] sm:$0xff] %v9769
        %9926 = vst [vmem:[%s406 + $0x200] sm:$0xff] %v9770
        %9927 = vst [vmem:[%s406 + $0x208] sm:$0xff] %v9771
        %9928 = vst [vmem:[%s406 + $0x210] sm:$0xff] %v9772
        %9929 = vst [vmem:[%s406 + $0x218] sm:$0xff] %v9773
        %9930 = vst [vmem:[%s406 + $0x220] sm:$0xff] %v9774
        %9931 = vst [vmem:[%s406 + $0x228] sm:$0xff] %v9775
        %9932 = vst [vmem:[%s406 + $0x230] sm:$0xff] %v9776
        %9933 = vst [vmem:[%s406 + $0x238] sm:$0xff] %v9777
        %9934 = vst [vmem:[%s406 + $0x240] sm:$0xff] %v9778
        %9935 = vst [vmem:[%s406 + $0x248] sm:$0xff] %v9779
        %9936 = vst [vmem:[%s406 + $0x250] sm:$0xff] %v9780
        %9937 = vst [vmem:[%s406 + $0x258] sm:$0xff] %v9781
        %9938 = vst [vmem:[%s406 + $0x260] sm:$0xff] %v9782
        %9939 = vst [vmem:[%s406 + $0x268] sm:$0xff] %v9783
        %9940 = vst [vmem:[%s406 + $0x270] sm:$0xff] %v9784
        %9941 = vst [vmem:[%s406 + $0x278] sm:$0xff] %v9785
        %9942 = vst [vmem:[%s406 + $0x280] sm:$0xff] %v9786
        %9943 = vst [vmem:[%s406 + $0x288] sm:$0xff] %v9787
        %9944 = vst [vmem:[%s406 + $0x290] sm:$0xff] %v9788
        %9945 = vst [vmem:[%s406 + $0x298] sm:$0xff] %v9789
        %9946 = vst [vmem:[%s406 + $0x2a0] sm:$0xff] %v9790
        %9947 = vst [vmem:[%s406 + $0x2a8] sm:$0xff] %v9791
        %9948 = vst [vmem:[%s406 + $0x2b0] sm:$0xff] %v9792
        %9949 = vst [vmem:[%s406 + $0x2b8] sm:$0xff] %v9793
        %9950 = vst [vmem:[%s406 + $0x2c0] sm:$0xff] %v9794
        %9951 = vst [vmem:[%s406 + $0x2c8] sm:$0xff] %v9795
        %9952 = vst [vmem:[%s406 + $0x2d0] sm:$0xff] %v9796
        %9953 = vst [vmem:[%s406 + $0x2d8] sm:$0xff] %v9797
        %9954 = vst [vmem:[%s406 + $0x2e0] sm:$0xff] %v9798
        %9955 = vst [vmem:[%s406 + $0x2e8] sm:$0xff] %v9799
        %9956 = vst [vmem:[%s406 + $0x2f0] sm:$0xff] %v9800
        %9957 = vst [vmem:[%s406 + $0x2f8] sm:$0xff] %v9801
        %9958 = vst [vmem:[%s406 + $0x300] sm:$0xff] %v9802
        %9959 = vst [vmem:[%s406 + $0x308] sm:$0xff] %v9803
        %9960 = vst [vmem:[%s406 + $0x310] sm:$0xff] %v9804
        %9961 = vst [vmem:[%s406 + $0x318] sm:$0xff] %v9805
        %9962 = vst [vmem:[%s406 + $0x320] sm:$0xff] %v9806
        %9963 = vst [vmem:[%s406 + $0x328] sm:$0xff] %v9807
        %9964 = vst [vmem:[%s406 + $0x330] sm:$0xff] %v9808
        %9965 = vst [vmem:[%s406 + $0x338] sm:$0xff] %v9809
        %9966 = vst [vmem:[%s406 + $0x340] sm:$0xff] %v9810
        %9967 = vst [vmem:[%s406 + $0x348] sm:$0xff] %v9811
        %9968 = vst [vmem:[%s406 + $0x350] sm:$0xff] %v9812
        %9969 = vst [vmem:[%s406 + $0x358] sm:$0xff] %v9813
        %9970 = vst [vmem:[%s406 + $0x360] sm:$0xff] %v9814
        %9971 = vst [vmem:[%s406 + $0x368] sm:$0xff] %v9815
        %9972 = vst [vmem:[%s406 + $0x370] sm:$0xff] %v9816
        %9973 = vst [vmem:[%s406 + $0x378] sm:$0xff] %v9817
        %9974 = vst [vmem:[%s406 + $0x380] sm:$0xff] %v9818
        %9975 = vst [vmem:[%s406 + $0x388] sm:$0xff] %v9819
        %9976 = vst [vmem:[%s406 + $0x390] sm:$0xff] %v9820
        %9977 = vst [vmem:[%s406 + $0x398] sm:$0xff] %v9821
        %9978 = vst [vmem:[%s406 + $0x3a0] sm:$0xff] %v9822
        %9979 = vst [vmem:[%s406 + $0x3a8] sm:$0xff] %v9823
        %9980 = vst [vmem:[%s406 + $0x3b0] sm:$0xff] %v9824
        %9981 = vst [vmem:[%s406 + $0x3b8] sm:$0xff] %v9825
        %9982 = vst [vmem:[%s406 + $0x3c0] sm:$0xff] %v9826
        %9983 = vst [vmem:[%s406 + $0x3c8] sm:$0xff] %v9827
        %9984 = vst [vmem:[%s406 + $0x3d0] sm:$0xff] %v9828
        %9985 = vst [vmem:[%s406 + $0x3d8] sm:$0xff] %v9829
        %9986 = vst [vmem:[%s406 + $0x3e0] sm:$0xff] %v9830
        %9987 = vst [vmem:[%s406 + $0x3e8] sm:$0xff] %v9831
        %9988 = vst [vmem:[%s406 + $0x3f0] sm:$0xff] %v9832
        %9989 = vst [vmem:[%s406 + $0x3f8] sm:$0xff] %v9833
        %9990 = vst [vmem:[%s406 + $0x400] sm:$0xff] %v9834
        %9991 = vst [vmem:[%s406 + $0x408] sm:$0xff] %v9835
        %9992 = vst [vmem:[%s406 + $0x410] sm:$0xff] %v9836
        %9993 = vst [vmem:[%s406 + $0x418] sm:$0xff] %v9837
        %9994 = vst [vmem:[%s406 + $0x420] sm:$0xff] %v9838
        %9995 = vst [vmem:[%s406 + $0x428] sm:$0xff] %v9839
        %9996 = vst [vmem:[%s406 + $0x430] sm:$0xff] %v9840
        %9997 = vst [vmem:[%s406 + $0x438] sm:$0xff] %v9841
        %9998 = vst [vmem:[%s406 + $0x440] sm:$0xff] %v9842
        %9999 = vst [vmem:[%s406 + $0x448] sm:$0xff] %v9843
        %10000 = vst [vmem:[%s406 + $0x450] sm:$0xff] %v9844
        %10001 = vst [vmem:[%s406 + $0x458] sm:$0xff] %v9845
        %10002 = vst [vmem:[%s406 + $0x460] sm:$0xff] %v9846
        %10003 = vst [vmem:[%s406 + $0x468] sm:$0xff] %v9847
        %10004 = vst [vmem:[%s406 + $0x470] sm:$0xff] %v9848
        %10005 = vst [vmem:[%s406 + $0x478] sm:$0xff] %v9849
        %10006 = vst [vmem:[%s406 + $0x480] sm:$0xff] %v9850
        %10007 = vst [vmem:[%s406 + $0x488] sm:$0xff] %v9851
        %10008 = vst [vmem:[%s406 + $0x490] sm:$0xff] %v9852
        %10009 = vst [vmem:[%s406 + $0x498] sm:$0xff] %v9853
        %10010 = vst [vmem:[%s406 + $0x4a0] sm:$0xff] %v9854
        %10011 = vst [vmem:[%s406 + $0x4a8] sm:$0xff] %v9855
        %10012 = vst [vmem:[%s406 + $0x4b0] sm:$0xff] %v9856
        %10013 = vst [vmem:[%s406 + $0x4b8] sm:$0xff] %v9857
        %10014 = vst [vmem:[%s406 + $0x4c0] sm:$0xff] %v9858
        %10015 = vst [vmem:[%s406 + $0x4c8] sm:$0xff] %v9859
        %10016 = vst [vmem:[%s406 + $0x4d0] sm:$0xff] %v9860
        %10017 = vst [vmem:[%s406 + $0x4d8] sm:$0xff] %v9861
        %p10018 = scmp.lt.s32.totalorder %s23, 1
        %s10019 = scalar_select %p10018, %s23, 1
        %s10020 = smul.addr %s10019, 156
        %s10021 = smul.addr %s10020, 8
        %s10022 = scalar_lea.vmem %s6, %s10021
        // Predicated region
        $region69: #{mlp_block.1} parent=43 // pred_check
          %p10023 = pneg %p202
        $region70: #{mlp_block.1} parent=43 // pred_check_branch
          %10025 = sbr.rel (%p10023) target = $region72
        $region71: #{mlp_block.1} parent=43 // pred_region
          _
        $region72: #{mlp_block.1} parent=43 // pred_fallthru
          _
      $region44: #{mlp_block.1} parent=5 // pred_fallthru
        _
      %p10026 = scmp.le.s32.totalorder 2, %s14
      // Predicated region
      $region73: #{mlp_block.1} parent=5 // pred_check
        %p10027 = pneg %p10026
      $region74: #{mlp_block.1} parent=5 // pred_check_branch
        %10029 = sbr.rel (%p10027) target = $region76
      $region75: #{mlp_block.1} parent=5 // pred_region
        %s10030 = ssub.s32 %s14, 2
        // Predicated region
        $region77: #{mlp_block.1} parent=75 // pred_check
          %p10031 = pneg %p208
        $region78: #{mlp_block.1} parent=75 // pred_check_branch
          %10033 = sbr.rel (%p10031) target = $region80
        $region79: #{mlp_block.1} parent=75 // pred_region
          %p10034 = scmp.lt.s32.totalorder %s25, 1
          %s10035 = scalar_select %p10034, %s25, 1
          %s10036 = smul.addr %s10035, 156
          %s10037 = smul.addr %s10036, 8
          %s10038 = scalar_lea.vmem %s6, %s10037
        $region80: #{mlp_block.1} parent=75 // pred_fallthru
          _
      $region76: #{mlp_block.1} parent=5 // pred_fallthru
        _
    $region6: #{mlp_block.1} parent=1 // loop_footer
      %s18 = sadd.s32 1, %s14
    $region7: #{mlp_block.1} parent=1 // loop_footer_branch
      %13 = sbr.rel target = $region3
    $region8: #{mlp_block.1} parent=1 // loop_exit
      _
    %10039 = vsyncpa [#allocation4], 1
    %s10040 = scalar_lea.sflag [#allocation4], 1
    %10041 = vsyncpa %s10040, 1
    %10042 = vsyncpa [#allocation6], 1

</llo_original>
